<compile_context>
chip_gen: v6e
topology: v6e:2x2x1
jax: 0.10.0
libtpu: 0.0.40
codegen_flags: <defaults>
</compile_context>

<pallas_src>
import functools

import jax
import jax.numpy as jnp
from jax.experimental import pallas as pl
from jax.experimental.pallas import tpu as pltpu

# -----------------------------------------------------------------------------
# Small synthetic "DistilBERT" config (real one: hidden=768 / 12 heads / 6 layers)
# -----------------------------------------------------------------------------
CFG = dict(
    vocab=50,
    max_pos=16,
    hidden=32,
    n_heads=4,
    n_layers=2,
    ffn=64,
)

VMEM_SPEC = pl.BlockSpec(memory_space=pltpu.MemorySpace.VMEM)


def _device_kind():
    try:
        return jax.devices()[0].device_kind.lower()
    except Exception:
        return ""


_KIND = _device_kind()
# bf16 EUP (exp / tanh-GELU) only on v6e / v7x; keep f32 VPU/EUP math on v5e and older.
EUP_BF16 = ("v6" in _KIND) or ("v7" in _KIND) or ("7x" in _KIND)


def _vmem_limit_bytes():
    if ("v7" in _KIND) or ("7x" in _KIND):
        return 56 * 1024 * 1024      # leave headroom under v7x's 64 MiB / TensorCore
    if ("v5" in _KIND) or ("v6" in _KIND):
        return 96 * 1024 * 1024      # well above the 16/32 MiB scoped defaults
    return 48 * 1024 * 1024


VMEM_LIMIT_BYTES = _vmem_limit_bytes()

# Resident (grid-invariant) weights: single-buffered if this JAX build supports
# pipeline_mode on top-level pallas_call BlockSpecs; otherwise default double-buffered.
_WEIGHT_BUFFERING = {"use_buffered": True}


def _const_spec(shape):
    """BlockSpec for a grid-invariant (fully resident) operand."""
    ndim = len(shape)
    index_map = lambda *_: (0,) * ndim
    if _WEIGHT_BUFFERING["use_buffered"]:
        return pl.BlockSpec(shape, index_map, pipeline_mode=pl.Buffered(1))
    return pl.BlockSpec(shape, index_map)


def _row_tile(rows):
    for t in (1024, 512, 256, 128, 64, 32, 16):
        if rows % t == 0:
            return t
    return rows   # fall back to a single full-array block


# -----------------------------------------------------------------------------
# Pallas kernels
# -----------------------------------------------------------------------------
def _layernorm_kernel(x_ref, g_ref, b_ref, o_ref):
    # Embedding LayerNorm (DistilBERT eps = 1e-12); stats in f32, bf16 output.
    x = x_ref[...].astype(jnp.float32)
    mu = jnp.mean(x, axis=-1, keepdims=True)
    var = jnp.mean(jnp.square(x - mu), axis=-1, keepdims=True)
    y = (x - mu) * jax.lax.rsqrt(var + 1e-12)
    o_ref[...] = (y * g_ref[...] + b_ref[...]).astype(o_ref.dtype)


def _fused_layer_kernel(x_ref, bias_ref,
                        qkv_w_ref, qkv_b_ref,
                        o_w_ref, o_b_ref,
                        ln1_g_ref, ln1_b_ref,
                        w1_ref, b1_ref, w2_ref, b2_ref,
                        ln2_g_ref, ln2_b_ref,
                        o_ref, ctx_ref,
                        *, n_heads, pool_output, eup_bf16):
    """One full DistilBERT transformer block for one (batch*chunk) element."""
    f32, bf16 = jnp.float32, jnp.bfloat16
    exp_dtype = bf16 if eup_bf16 else f32

    x_bf = x_ref[0]                                       # (S, H) bf16 activations
    x32 = x_bf.astype(f32)
    S, H = x32.shape
    dh = H // n_heads

    # ---- fused QKV projection (1/sqrt(dh) pre-folded into the Q weights) ----
    qkv = (jnp.dot(x_bf, qkv_w_ref[...], preferred_element_type=f32)
           + qkv_b_ref[...])                              # (S, 3H) f32

    bias = bias_ref[0]                                    # (1, S) additive mask bias

    # ---- attention: per-head, ctx assembled into an (S, H) scratch via static
    #      lane-slice column writes (no head-merge transpose), then ONE full-K
    #      output-projection GEMM below.
    # TODO(synk): at real head counts (12, S=512) convert this static unroll into a
    # lax.fori_loop over heads to bound the live (S,S) score/exp temporaries.
    for h in range(n_heads):
        sl = slice(h * dh, (h + 1) * dh)
        qh = qkv[:, sl].astype(bf16)
        kh = qkv[:, H + h * dh: H + (h + 1) * dh].astype(bf16)
        vh = qkv[:, 2 * H + h * dh: 2 * H + (h + 1) * dh].astype(bf16)

        s = jnp.dot(qh, kh.T, preferred_element_type=f32) + bias      # (S, S) f32
        s = s - jnp.max(s, axis=-1, keepdims=True)
        e = jnp.exp(s.astype(exp_dtype))                               # bf16 EUP on v6e/v7x
        denom = jnp.sum(e.astype(f32), axis=-1, keepdims=True)
        ctx = jnp.dot(e.astype(bf16), vh, preferred_element_type=f32)  # (S, dh)
        ctx = ctx * pl.reciprocal(denom, approx=True)
        ctx_ref[:, sl] = ctx

    # single (S,H) x (H,H) output projection (K = H, full MXU contraction depth)
    attn = (jnp.dot(ctx_ref[...].astype(bf16), o_w_ref[...],
                    preferred_element_type=f32) + o_b_ref[...])

    # ---- residual + LayerNorm (f32 statistics) ----
    def _ln(y, g, b):
        mu = jnp.mean(y, axis=-1, keepdims=True)
        var = jnp.mean(jnp.square(y - mu), axis=-1, keepdims=True)
        return (y - mu) * jax.lax.rsqrt(var + 1e-12) * g + b

    x1 = _ln(x32 + attn, ln1_g_ref[...], ln1_b_ref[...])

    # ---- FFN ----
    h1 = jnp.dot(x1.astype(bf16), w1_ref[...], preferred_element_type=f32) + b1_ref[...]
    # TODO(synk): DistilBERT uses the exact erf GELU; tanh approximation used here
    # (difference ~1e-3, keeps lowering to VPU/EUP ops that are known-good on TPU).
    act = jax.nn.gelu(h1.astype(exp_dtype), approximate=True).astype(bf16)
    ffn_out = jnp.dot(act, w2_ref[...], preferred_element_type=f32) + b2_ref[...]

    x2 = _ln(x1 + ffn_out, ln2_g_ref[...], ln2_b_ref[...])

    if pool_output:
        # last layer: emit only the per-chunk token mean (== hidden_state.mean(dim=1));
        # avoids writing / re-reading the full (BN, S, H) activation for pooling.
        o_ref[0] = jnp.mean(x2, axis=0, keepdims=True)
    else:
        o_ref[0] = x2.astype(o_ref.dtype)                 # bf16 inter-layer activations


def _pool_head_kernel(cm_ref, w_ref, b_ref, o_ref):
    # cm_ref: (B, C, H) per-chunk token means. mean over chunks + Linear(H,1) + sigmoid.
    agg = jnp.mean(cm_ref[...].astype(jnp.float32), axis=1)                 # (B, H)
    logits = jnp.dot(agg, w_ref[...], preferred_element_type=jnp.float32) + b_ref[...]
    o_ref[...] = jax.nn.sigmoid(logits)


# -----------------------------------------------------------------------------
# Thin wrappers around pallas_call
# -----------------------------------------------------------------------------
def emb_layernorm(x2d, g, b):
    M, H = x2d.shape
    tile = _row_tile(M)
    return pl.pallas_call(
        _layernorm_kernel,
        out_shape=jax.ShapeDtypeStruct((M, H), jnp.bfloat16),
        grid=(M // tile,),
        in_specs=[pl.BlockSpec((tile, H), lambda i: (i, 0)),
                  _const_spec((1, H)),
                  _const_spec((1, H))],
        out_specs=pl.BlockSpec((tile, H), lambda i: (i, 0)),
        compiler_params=pltpu.CompilerParams(
            dimension_semantics=("parallel",),
            vmem_limit_bytes=VMEM_LIMIT_BYTES),
    )(x2d, g.reshape(1, H), b.reshape(1, H))


def fused_layer(x, mask_bias, lp, cfg, *, pool_output=False):
    BN, S, H = x.shape
    F = cfg["ffn"]
    nH = cfg["n_heads"]
    kernel = functools.partial(_fused_layer_kernel, n_heads=nH,
                               pool_output=pool_output, eup_bf16=EUP_BF16)

    if pool_output:
        out_shape = jax.ShapeDtypeStruct((BN, 1, H), jnp.float32)
        out_spec = pl.BlockSpec((1, 1, H), lambda i: (i, 0, 0))
    else:
        out_shape = jax.ShapeDtypeStruct((BN, S, H), jnp.bfloat16)
        out_spec = pl.BlockSpec((1, S, H), lambda i: (i, 0, 0))

    return pl.pallas_call(
        kernel,
        out_shape=out_shape,
        grid=(BN,),
        in_specs=[
            pl.BlockSpec((1, S, H), lambda i: (i, 0, 0)),   # x (one chunk), bf16
            pl.BlockSpec((1, 1, S), lambda i: (i, 0, 0)),   # additive mask bias (not per-head)
            _const_spec((H, 3 * H)),                        # qkv_w (bf16, resident)
            _const_spec((1, 3 * H)),                        # qkv_b
            _const_spec((H, H)),                            # o_w   (bf16, resident)
            _const_spec((1, H)),                            # o_b
            _const_spec((1, H)),                            # sa_ln gamma
            _const_spec((1, H)),                            # sa_ln beta
            _const_spec((H, F)),                            # ffn w1 (bf16, resident)
            _const_spec((1, F)),                            # ffn b1
            _const_spec((F, H)),                            # ffn w2 (bf16, resident)
            _const_spec((1, H)),                            # ffn b2
            _const_spec((1, H)),                            # out_ln gamma
            _const_spec((1, H)),                            # out_ln beta
        ],
        out_specs=out_spec,
        scratch_shapes=[pltpu.VMEM((S, H), jnp.float32)],   # per-head ctx assembly buffer
        compiler_params=pltpu.CompilerParams(
            dimension_semantics=("parallel",),              # v7x: split chunks across 2 TCs
            vmem_limit_bytes=VMEM_LIMIT_BYTES),
    )(x, mask_bias,
      lp["qkv_w"], lp["qkv_b"], lp["o_w"], lp["o_b"],
      lp["ln1_g"], lp["ln1_b"],
      lp["w1"], lp["b1"], lp["w2"], lp["b2"],
      lp["ln2_g"], lp["ln2_b"])


def pool_head(chunk_means, cls_w, cls_b):
    # chunk_means: (B, C, H) f32 — tiny, whole-array VMEM.
    B = chunk_means.shape[0]
    probs = pl.pallas_call(
        _pool_head_kernel,
        out_shape=jax.ShapeDtypeStruct((B, 1), jnp.float32),
        in_specs=[VMEM_SPEC, VMEM_SPEC, VMEM_SPEC],
        out_specs=VMEM_SPEC,
        compiler_params=pltpu.CompilerParams(vmem_limit_bytes=VMEM_LIMIT_BYTES),
    )(chunk_means, cls_w, cls_b.reshape(1, 1))
    return probs[:, 0]                                      # sigmoid(logits).squeeze(-1)


# -----------------------------------------------------------------------------
# Model
# -----------------------------------------------------------------------------
def init_params(key, cfg):
    H, F, V, P = cfg["hidden"], cfg["ffn"], cfg["vocab"], cfg["max_pos"]
    nH = cfg["n_heads"]
    dh = H // nH
    scale = 1.0 / float(dh) ** 0.5
    keys = iter(jax.random.split(key, 3 + cfg["n_layers"] * 6))

    def w(k, shape):
        return jax.random.normal(k, shape, jnp.float32) * 0.02

    params = dict(
        word_emb=w(next(keys), (V, H)),
        pos_emb=w(next(keys), (P, H)),
        emb_ln_g=jnp.ones((H,), jnp.float32),
        emb_ln_b=jnp.zeros((H,), jnp.float32),
        cls_w=w(next(keys), (H, 1)),
        cls_b=jnp.zeros((1,), jnp.float32),
        layers=[],
    )
    for _ in range(cfg["n_layers"]):
        q_w, k_w, v_w, o_w = (w(next(keys), (H, H)) for _ in range(4))
        w1 = w(next(keys), (H, F))
        w2 = w(next(keys), (F, H))
        params["layers"].append(dict(
            # fused QKV weights in bf16, 1/sqrt(dh) attention scale folded into Q
            qkv_w=jnp.concatenate([q_w * scale, k_w, v_w], axis=1).astype(jnp.bfloat16),
            qkv_b=jnp.zeros((1, 3 * H), jnp.float32),
            o_w=o_w.astype(jnp.bfloat16), o_b=jnp.zeros((1, H), jnp.float32),
            ln1_g=jnp.ones((1, H), jnp.float32), ln1_b=jnp.zeros((1, H), jnp.float32),
            w1=w1.astype(jnp.bfloat16), b1=jnp.zeros((1, F), jnp.float32),
            w2=w2.astype(jnp.bfloat16), b2=jnp.zeros((1, H), jnp.float32),
            ln2_g=jnp.ones((1, H), jnp.float32), ln2_b=jnp.zeros((1, H), jnp.float32),
        ))
    return params


def simplified_html_forward(params, html_input_ids, html_attention_mask, cfg):
    B, C, S = html_input_ids.shape
    H = cfg["hidden"]
    BN = B * C

    ids = html_input_ids.reshape(BN, S)
    mask = html_attention_mask.reshape(BN, S)

    # Embedding gather stays in plain JAX glue (tiny table; no clean Pallas gather win).
    x = jnp.take(params["word_emb"], ids, axis=0) + params["pos_emb"][None, :S, :]
    x = emb_layernorm(x.reshape(BN * S, H), params["emb_ln_g"], params["emb_ln_b"])
    x = x.reshape(BN, S, H)                                  # bf16 activations

    # additive attention-mask bias, one copy per chunk (NOT replicated per head)
    mask_bias = jnp.where(mask == 0, jnp.float32(-1e9), jnp.float32(0.0)).reshape(BN, 1, S)

    n_layers = len(params["layers"])
    for li, lp in enumerate(params["layers"]):
        x = fused_layer(x, mask_bias, lp, cfg, pool_output=(li == n_layers - 1))

    # last layer already produced per-chunk token means (BN, 1, H):
    # token_embeddings.mean(dim=1) -> view(B,C,H) -> mean(dim=1) -> Linear -> sigmoid
    chunk_means = x.reshape(B, C, H)
    return pool_head(chunk_means, params["cls_w"], params["cls_b"])


# -----------------------------------------------------------------------------
if __name__ == "__main__":
    key = jax.random.PRNGKey(0)
    k_ids, k_mask, k_params = jax.random.split(key, 3)

    B, C, S = 2, 3, 8  # batch, num_chunks, seq_len

    html_input_ids = jax.random.randint(k_ids, (B, C, S), 0, CFG["vocab"], dtype=jnp.int32)
    html_attention_mask = (jax.random.uniform(k_mask, (B, C, S)) > 0.25).astype(jnp.int32)
    html_attention_mask = html_attention_mask.at[..., 0].set(1)  # at least one valid token

    params = init_params(k_params, CFG)

    def _run():
        fwd = jax.jit(functools.partial(simplified_html_forward, cfg=CFG))
        return jax.block_until_ready(fwd(params, html_input_ids, html_attention_mask))

    try:
        out = _run()
    except Exception:
        # Graceful degradation: if this JAX build rejects pipeline_mode=pl.Buffered(1)
        # on top-level pallas_call BlockSpecs, fall back to the default (double-buffered)
        # resident-weight specs — identical semantics, slightly more VMEM.
        _WEIGHT_BUFFERING["use_buffered"] = False
        out = _run()

    assert out.shape == (B,) and out.dtype == jnp.float32
    assert bool(jnp.all((out >= 0.0) & (out <= 1.0)))
    print("KERNEL_OK")
</pallas_src>

<mosaic_0001>
module attributes {stable_mosaic.version = 11 : i64} {
  func.func @_layernorm_kernel(%arg0: i32, %arg1: memref<16x32xf32, #tpu.memory_space<vmem>>, %arg2: memref<1x32xf32, #tpu.memory_space<vmem>>, %arg3: memref<1x32xf32, #tpu.memory_space<vmem>>, %arg4: memref<16x32xbf16, #tpu.memory_space<vmem>>) attributes {dimension_semantics = [#tpu.dimension_semantics<parallel>], iteration_bounds = array<i64: 3>, scalar_prefetch = 0 : i64, scratch_operands = 0 : i64, tpu.core_type = #tpu.core_type<tc>, window_params = [{transform_indices = @transform_0, window_bounds = array<i64: 16, 32>}, {pipeline_mode = #tpu.pipeline_mode<synchronous>, transform_indices = @transform_1, window_bounds = array<i64: 1, 32>}, {pipeline_mode = #tpu.pipeline_mode<synchronous>, transform_indices = @transform_2, window_bounds = array<i64: 1, 32>}, {transform_indices = @transform_3, window_bounds = array<i64: 16, 32>}]} {
    %c0 = arith.constant 0 : index
    %c0_0 = arith.constant 0 : index
    %0 = vector.load %arg1[%c0, %c0_0] : memref<16x32xf32, #tpu.memory_space<vmem>>, vector<16x32xf32>
    %cst = arith.constant dense<0.000000e+00> : vector<16xf32>
    %1 = vector.multi_reduction <add>, %0, %cst [1] : vector<16x32xf32> to vector<16xf32>
    %2 = vector.shape_cast %1 : vector<16xf32> to vector<16x1xf32>
    %cst_1 = arith.constant 3.200000e+01 : f32
    %3 = vector.broadcast %cst_1 : f32 to vector<16x1xf32>
    %4 = arith.divf %2, %3 : vector<16x1xf32>
    %5 = vector.broadcast %4 : vector<16x1xf32> to vector<16x32xf32>
    %6 = arith.subf %0, %5 : vector<16x32xf32>
    %7 = arith.mulf %6, %6 : vector<16x32xf32>
    %cst_2 = arith.constant dense<0.000000e+00> : vector<16xf32>
    %8 = vector.multi_reduction <add>, %7, %cst_2 [1] : vector<16x32xf32> to vector<16xf32>
    %9 = vector.shape_cast %8 : vector<16xf32> to vector<16x1xf32>
    %cst_3 = arith.constant 3.200000e+01 : f32
    %10 = vector.broadcast %cst_3 : f32 to vector<16x1xf32>
    %11 = arith.divf %9, %10 : vector<16x1xf32>
    %12 = vector.broadcast %4 : vector<16x1xf32> to vector<16x32xf32>
    %13 = arith.subf %0, %12 : vector<16x32xf32>
    %cst_4 = arith.constant 9.99999996E-13 : f32
    %14 = vector.broadcast %cst_4 : f32 to vector<16x1xf32>
    %15 = arith.addf %11, %14 : vector<16x1xf32>
    %16 = math.rsqrt %15 : vector<16x1xf32>
    %17 = vector.broadcast %16 : vector<16x1xf32> to vector<16x32xf32>
    %18 = arith.mulf %13, %17 : vector<16x32xf32>
    %c0_5 = arith.constant 0 : index
    %c0_6 = arith.constant 0 : index
    %19 = vector.load %arg2[%c0_5, %c0_6] : memref<1x32xf32, #tpu.memory_space<vmem>>, vector<1x32xf32>
    %20 = vector.broadcast %19 : vector<1x32xf32> to vector<16x32xf32>
    %21 = arith.mulf %18, %20 : vector<16x32xf32>
    %c0_7 = arith.constant 0 : index
    %c0_8 = arith.constant 0 : index
    %22 = vector.load %arg3[%c0_7, %c0_8] : memref<1x32xf32, #tpu.memory_space<vmem>>, vector<1x32xf32>
    %23 = vector.broadcast %22 : vector<1x32xf32> to vector<16x32xf32>
    %24 = arith.addf %21, %23 : vector<16x32xf32>
    %25 = arith.truncf %24 : vector<16x32xf32> to vector<16x32xbf16>
    %c0_9 = arith.constant 0 : index
    %c0_10 = arith.constant 0 : index
    %26 = vector.load %arg4[%c0_9, %c0_10] : memref<16x32xbf16, #tpu.memory_space<vmem>>, vector<16x32xbf16>
    tpu.vector_store %arg4[%c0_9, %c0_10], %25 {strides = array<i32>} : memref<16x32xbf16, #tpu.memory_space<vmem>>, vector<16x32xbf16>,
    return
  }
  func.func @transform_0(%arg0: i32) -> (i32, i32) {
    %c0_i32 = arith.constant 0 : i32
    %c0_i32_0 = arith.constant 0 : i32
    return %arg0, %c0_i32 : i32, i32
  }
  func.func @transform_1(%arg0: i32) -> (i32, i32) {
    %c0_i32 = arith.constant 0 : i32
    %c0_i32_0 = arith.constant 0 : i32
    %c0_i32_1 = arith.constant 0 : i32
    return %c0_i32, %c0_i32_0 : i32, i32
  }
  func.func @transform_2(%arg0: i32) -> (i32, i32) {
    %c0_i32 = arith.constant 0 : i32
    %c0_i32_0 = arith.constant 0 : i32
    %c0_i32_1 = arith.constant 0 : i32
    return %c0_i32, %c0_i32_0 : i32, i32
  }
  func.func @transform_3(%arg0: i32) -> (i32, i32) {
    %c0_i32 = arith.constant 0 : i32
    %c0_i32_0 = arith.constant 0 : i32
    return %arg0, %c0_i32 : i32, i32
  }
}

module attributes {stable_mosaic.version = 11 : i64} {
  func.func @_fused_layer_kernel(%arg0: i32, %arg1: memref<1x8x32xbf16, #tpu.memory_space<vmem>>, %arg2: memref<1x1x8xf32, #tpu.memory_space<vmem>>, %arg3: memref<32x96xbf16, #tpu.memory_space<vmem>>, %arg4: memref<1x96xf32, #tpu.memory_space<vmem>>, %arg5: memref<32x32xbf16, #tpu.memory_space<vmem>>, %arg6: memref<1x32xf32, #tpu.memory_space<vmem>>, %arg7: memref<1x32xf32, #tpu.memory_space<vmem>>, %arg8: memref<1x32xf32, #tpu.memory_space<vmem>>, %arg9: memref<32x64xbf16, #tpu.memory_space<vmem>>, %arg10: memref<1x64xf32, #tpu.memory_space<vmem>>, %arg11: memref<64x32xbf16, #tpu.memory_space<vmem>>, %arg12: memref<1x32xf32, #tpu.memory_space<vmem>>, %arg13: memref<1x32xf32, #tpu.memory_space<vmem>>, %arg14: memref<1x32xf32, #tpu.memory_space<vmem>>, %arg15: memref<1x8x32xbf16, #tpu.memory_space<vmem>>, %arg16: memref<8x32xf32, #tpu.memory_space<vmem>>) attributes {dimension_semantics = [#tpu.dimension_semantics<parallel>], iteration_bounds = array<i64: 6>, scalar_prefetch = 0 : i64, scratch_operands = 1 : i64, tpu.core_type = #tpu.core_type<tc>, window_params = [{transform_indices = @transform_0, window_bounds = array<i64: 1, 8, 32>}, {transform_indices = @transform_1, window_bounds = array<i64: 1, 1, 8>}, {pipeline_mode = #tpu.pipeline_mode<synchronous>, transform_indices = @transform_2, window_bounds = array<i64: 32, 96>}, {pipeline_mode = #tpu.pipeline_mode<synchronous>, transform_indices = @transform_3, window_bounds = array<i64: 1, 96>}, {pipeline_mode = #tpu.pipeline_mode<synchronous>, transform_indices = @transform_4, window_bounds = array<i64: 32, 32>}, {pipeline_mode = #tpu.pipeline_mode<synchronous>, transform_indices = @transform_5, window_bounds = array<i64: 1, 32>}, {pipeline_mode = #tpu.pipeline_mode<synchronous>, transform_indices = @transform_6, window_bounds = array<i64: 1, 32>}, {pipeline_mode = #tpu.pipeline_mode<synchronous>, transform_indices = @transform_7, window_bounds = array<i64: 1, 32>}, {pipeline_mode = #tpu.pipeline_mode<synchronous>, transform_indices = @transform_8, window_bounds = array<i64: 32, 64>}, {pipeline_mode = #tpu.pipeline_mode<synchronous>, transform_indices = @transform_9, window_bounds = array<i64: 1, 64>}, {pipeline_mode = #tpu.pipeline_mode<synchronous>, transform_indices = @transform_10, window_bounds = array<i64: 64, 32>}, {pipeline_mode = #tpu.pipeline_mode<synchronous>, transform_indices = @transform_11, window_bounds = array<i64: 1, 32>}, {pipeline_mode = #tpu.pipeline_mode<synchronous>, transform_indices = @transform_12, window_bounds = array<i64: 1, 32>}, {pipeline_mode = #tpu.pipeline_mode<synchronous>, transform_indices = @transform_13, window_bounds = array<i64: 1, 32>}, {transform_indices = @transform_14, window_bounds = array<i64: 1, 8, 32>}]} {
    %c0 = arith.constant 0 : index
    %c0_0 = arith.constant 0 : index
    %c0_1 = arith.constant 0 : index
    %0 = vector.load %arg1[%c0, %c0_0, %c0_1] : memref<1x8x32xbf16, #tpu.memory_space<vmem>>, vector<1x8x32xbf16>
    %1 = vector.shape_cast %0 : vector<1x8x32xbf16> to vector<8x32xbf16>
    %2 = arith.extf %1 : vector<8x32xbf16> to vector<8x32xf32>
    %c0_2 = arith.constant 0 : index
    %c0_3 = arith.constant 0 : index
    %3 = vector.load %arg3[%c0_2, %c0_3] : memref<32x96xbf16, #tpu.memory_space<vmem>>, vector<32x96xbf16>
    %cst = arith.constant dense<0.000000e+00> : vector<8x96xf32>
    %4 = tpu.matmul %1, %3, %cst {dimension_numbers = #tpu.dot_dimension_numbers<[1], [0], [0], [1], [0, 0, 1, 1], [], []>} : vector<8x32xbf16>, vector<32x96xbf16>, vector<8x96xf32> -> vector<8x96xf32>
    %c0_4 = arith.constant 0 : index
    %c0_5 = arith.constant 0 : index
    %5 = vector.load %arg4[%c0_4, %c0_5] : memref<1x96xf32, #tpu.memory_space<vmem>>, vector<1x96xf32>
    %6 = vector.broadcast %5 : vector<1x96xf32> to vector<8x96xf32>
    %7 = arith.addf %4, %6 : vector<8x96xf32>
    %c0_6 = arith.constant 0 : index
    %c0_7 = arith.constant 0 : index
    %c0_8 = arith.constant 0 : index
    %8 = vector.load %arg2[%c0_6, %c0_7, %c0_8] : memref<1x1x8xf32, #tpu.memory_space<vmem>>, vector<1x1x8xf32>
    %9 = vector.shape_cast %8 : vector<1x1x8xf32> to vector<1x8xf32>
    %10 = vector.extract_strided_slice %7 {offsets = [0, 0], sizes = [8, 8], strides = [1, 1]} : vector<8x96xf32> to vector<8x8xf32>
    %11 = arith.truncf %10 : vector<8x8xf32> to vector<8x8xbf16>
    %12 = vector.extract_strided_slice %7 {offsets = [0, 32], sizes = [8, 8], strides = [1, 1]} : vector<8x96xf32> to vector<8x8xf32>
    %13 = arith.truncf %12 : vector<8x8xf32> to vector<8x8xbf16>
    %14 = vector.extract_strided_slice %7 {offsets = [0, 64], sizes = [8, 8], strides = [1, 1]} : vector<8x96xf32> to vector<8x8xf32>
    %15 = arith.truncf %14 : vector<8x8xf32> to vector<8x8xbf16>
    %16 = tpu.transpose %13, [1, 0] : vector<8x8xbf16> -> vector<8x8xbf16>
    %cst_9 = arith.constant dense<0.000000e+00> : vector<8x8xf32>
    %17 = tpu.matmul %11, %16, %cst_9 {dimension_numbers = #tpu.dot_dimension_numbers<[1], [0], [0], [1], [0, 0, 1, 1], [], []>} : vector<8x8xbf16>, vector<8x8xbf16>, vector<8x8xf32> -> vector<8x8xf32>
    %18 = vector.broadcast %9 : vector<1x8xf32> to vector<8x8xf32>
    %19 = arith.addf %17, %18 : vector<8x8xf32>
    %cst_10 = arith.constant dense<0xFF800000> : vector<8xf32>
    %20 = vector.multi_reduction <maximumf>, %19, %cst_10 [1] : vector<8x8xf32> to vector<8xf32>
    %21 = vector.shape_cast %20 : vector<8xf32> to vector<8x1xf32>
    %22 = vector.broadcast %21 : vector<8x1xf32> to vector<8x8xf32>
    %23 = arith.subf %19, %22 : vector<8x8xf32>
    %24 = math.exp %23 : vector<8x8xf32>
    %cst_11 = arith.constant dense<0.000000e+00> : vector<8xf32>
    %25 = vector.multi_reduction <add>, %24, %cst_11 [1] : vector<8x8xf32> to vector<8xf32>
    %26 = vector.shape_cast %25 : vector<8xf32> to vector<8x1xf32>
    %27 = arith.truncf %24 : vector<8x8xf32> to vector<8x8xbf16>
    %cst_12 = arith.constant dense<0.000000e+00> : vector<8x8xf32>
    %28 = tpu.matmul %27, %15, %cst_12 {dimension_numbers = #tpu.dot_dimension_numbers<[1], [0], [0], [1], [0, 0, 1, 1], [], []>} : vector<8x8xbf16>, vector<8x8xbf16>, vector<8x8xf32> -> vector<8x8xf32>
    %29 = tpu.reciprocal %26 {approx = true} : vector<8x1xf32> -> vector<8x1xf32>
    %30 = vector.broadcast %29 : vector<8x1xf32> to vector<8x8xf32>
    %31 = arith.mulf %28, %30 : vector<8x8xf32>
    %c0_13 = arith.constant 0 : index
    %c0_14 = arith.constant 0 : index
    %32 = vector.load %arg16[%c0_13, %c0_14] : memref<8x32xf32, #tpu.memory_space<vmem>>, vector<8x8xf32>
    tpu.vector_store %arg16[%c0_13, %c0_14], %31 {strides = array<i32>} : memref<8x32xf32, #tpu.memory_space<vmem>>, vector<8x8xf32>,
    %33 = vector.extract_strided_slice %7 {offsets = [0, 8], sizes = [8, 8], strides = [1, 1]} : vector<8x96xf32> to vector<8x8xf32>
    %34 = arith.truncf %33 : vector<8x8xf32> to vector<8x8xbf16>
    %35 = vector.extract_strided_slice %7 {offsets = [0, 40], sizes = [8, 8], strides = [1, 1]} : vector<8x96xf32> to vector<8x8xf32>
    %36 = arith.truncf %35 : vector<8x8xf32> to vector<8x8xbf16>
    %37 = vector.extract_strided_slice %7 {offsets = [0, 72], sizes = [8, 8], strides = [1, 1]} : vector<8x96xf32> to vector<8x8xf32>
    %38 = arith.truncf %37 : vector<8x8xf32> to vector<8x8xbf16>
    %39 = tpu.transpose %36, [1, 0] : vector<8x8xbf16> -> vector<8x8xbf16>
    %cst_15 = arith.constant dense<0.000000e+00> : vector<8x8xf32>
    %40 = tpu.matmul %34, %39, %cst_15 {dimension_numbers = #tpu.dot_dimension_numbers<[1], [0], [0], [1], [0, 0, 1, 1], [], []>} : vector<8x8xbf16>, vector<8x8xbf16>, vector<8x8xf32> -> vector<8x8xf32>
    %41 = vector.broadcast %9 : vector<1x8xf32> to vector<8x8xf32>
    %42 = arith.addf %40, %41 : vector<8x8xf32>
    %cst_16 = arith.constant dense<0xFF800000> : vector<8xf32>
    %43 = vector.multi_reduction <maximumf>, %42, %cst_16 [1] : vector<8x8xf32> to vector<8xf32>
    %44 = vector.shape_cast %43 : vector<8xf32> to vector<8x1xf32>
    %45 = vector.broadcast %44 : vector<8x1xf32> to vector<8x8xf32>
    %46 = arith.subf %42, %45 : vector<8x8xf32>
    %47 = math.exp %46 : vector<8x8xf32>
    %cst_17 = arith.constant dense<0.000000e+00> : vector<8xf32>
    %48 = vector.multi_reduction <add>, %47, %cst_17 [1] : vector<8x8xf32> to vector<8xf32>
    %49 = vector.shape_cast %48 : vector<8xf32> to vector<8x1xf32>
    %50 = arith.truncf %47 : vector<8x8xf32> to vector<8x8xbf16>
    %cst_18 = arith.constant dense<0.000000e+00> : vector<8x8xf32>
    %51 = tpu.matmul %50, %38, %cst_18 {dimension_numbers = #tpu.dot_dimension_numbers<[1], [0], [0], [1], [0, 0, 1, 1], [], []>} : vector<8x8xbf16>, vector<8x8xbf16>, vector<8x8xf32> -> vector<8x8xf32>
    %52 = tpu.reciprocal %49 {approx = true} : vector<8x1xf32> -> vector<8x1xf32>
    %53 = vector.broadcast %52 : vector<8x1xf32> to vector<8x8xf32>
    %54 = arith.mulf %51, %53 : vector<8x8xf32>
    %c0_19 = arith.constant 0 : index
    %c8 = arith.constant 8 : index
    %55 = vector.load %arg16[%c0_19, %c8] : memref<8x32xf32, #tpu.memory_space<vmem>>, vector<8x8xf32>
    tpu.vector_store %arg16[%c0_19, %c8], %54 {strides = array<i32>} : memref<8x32xf32, #tpu.memory_space<vmem>>, vector<8x8xf32>,
    %56 = vector.extract_strided_slice %7 {offsets = [0, 16], sizes = [8, 8], strides = [1, 1]} : vector<8x96xf32> to vector<8x8xf32>
    %57 = arith.truncf %56 : vector<8x8xf32> to vector<8x8xbf16>
    %58 = vector.extract_strided_slice %7 {offsets = [0, 48], sizes = [8, 8], strides = [1, 1]} : vector<8x96xf32> to vector<8x8xf32>
    %59 = arith.truncf %58 : vector<8x8xf32> to vector<8x8xbf16>
    %60 = vector.extract_strided_slice %7 {offsets = [0, 80], sizes = [8, 8], strides = [1, 1]} : vector<8x96xf32> to vector<8x8xf32>
    %61 = arith.truncf %60 : vector<8x8xf32> to vector<8x8xbf16>
    %62 = tpu.transpose %59, [1, 0] : vector<8x8xbf16> -> vector<8x8xbf16>
    %cst_20 = arith.constant dense<0.000000e+00> : vector<8x8xf32>
    %63 = tpu.matmul %57, %62, %cst_20 {dimension_numbers = #tpu.dot_dimension_numbers<[1], [0], [0], [1], [0, 0, 1, 1], [], []>} : vector<8x8xbf16>, vector<8x8xbf16>, vector<8x8xf32> -> vector<8x8xf32>
    %64 = vector.broadcast %9 : vector<1x8xf32> to vector<8x8xf32>
    %65 = arith.addf %63, %64 : vector<8x8xf32>
    %cst_21 = arith.constant dense<0xFF800000> : vector<8xf32>
    %66 = vector.multi_reduction <maximumf>, %65, %cst_21 [1] : vector<8x8xf32> to vector<8xf32>
    %67 = vector.shape_cast %66 : vector<8xf32> to vector<8x1xf32>
    %68 = vector.broadcast %67 : vector<8x1xf32> to vector<8x8xf32>
    %69 = arith.subf %65, %68 : vector<8x8xf32>
    %70 = math.exp %69 : vector<8x8xf32>
    %cst_22 = arith.constant dense<0.000000e+00> : vector<8xf32>
    %71 = vector.multi_reduction <add>, %70, %cst_22 [1] : vector<8x8xf32> to vector<8xf32>
    %72 = vector.shape_cast %71 : vector<8xf32> to vector<8x1xf32>
    %73 = arith.truncf %70 : vector<8x8xf32> to vector<8x8xbf16>
    %cst_23 = arith.constant dense<0.000000e+00> : vector<8x8xf32>
    %74 = tpu.matmul %73, %61, %cst_23 {dimension_numbers = #tpu.dot_dimension_numbers<[1], [0], [0], [1], [0, 0, 1, 1], [], []>} : vector<8x8xbf16>, vector<8x8xbf16>, vector<8x8xf32> -> vector<8x8xf32>
    %75 = tpu.reciprocal %72 {approx = true} : vector<8x1xf32> -> vector<8x1xf32>
    %76 = vector.broadcast %75 : vector<8x1xf32> to vector<8x8xf32>
    %77 = arith.mulf %74, %76 : vector<8x8xf32>
    %c0_24 = arith.constant 0 : index
    %c16 = arith.constant 16 : index
    %78 = vector.load %arg16[%c0_24, %c16] : memref<8x32xf32, #tpu.memory_space<vmem>>, vector<8x8xf32>
    tpu.vector_store %arg16[%c0_24, %c16], %77 {strides = array<i32>} : memref<8x32xf32, #tpu.memory_space<vmem>>, vector<8x8xf32>,
    %79 = vector.extract_strided_slice %7 {offsets = [0, 24], sizes = [8, 8], strides = [1, 1]} : vector<8x96xf32> to vector<8x8xf32>
    %80 = arith.truncf %79 : vector<8x8xf32> to vector<8x8xbf16>
    %81 = vector.extract_strided_slice %7 {offsets = [0, 56], sizes = [8, 8], strides = [1, 1]} : vector<8x96xf32> to vector<8x8xf32>
    %82 = arith.truncf %81 : vector<8x8xf32> to vector<8x8xbf16>
    %83 = vector.extract_strided_slice %7 {offsets = [0, 88], sizes = [8, 8], strides = [1, 1]} : vector<8x96xf32> to vector<8x8xf32>
    %84 = arith.truncf %83 : vector<8x8xf32> to vector<8x8xbf16>
    %85 = tpu.transpose %82, [1, 0] : vector<8x8xbf16> -> vector<8x8xbf16>
    %cst_25 = arith.constant dense<0.000000e+00> : vector<8x8xf32>
    %86 = tpu.matmul %80, %85, %cst_25 {dimension_numbers = #tpu.dot_dimension_numbers<[1], [0], [0], [1], [0, 0, 1, 1], [], []>} : vector<8x8xbf16>, vector<8x8xbf16>, vector<8x8xf32> -> vector<8x8xf32>
    %87 = vector.broadcast %9 : vector<1x8xf32> to vector<8x8xf32>
    %88 = arith.addf %86, %87 : vector<8x8xf32>
    %cst_26 = arith.constant dense<0xFF800000> : vector<8xf32>
    %89 = vector.multi_reduction <maximumf>, %88, %cst_26 [1] : vector<8x8xf32> to vector<8xf32>
    %90 = vector.shape_cast %89 : vector<8xf32> to vector<8x1xf32>
    %91 = vector.broadcast %90 : vector<8x1xf32> to vector<8x8xf32>
    %92 = arith.subf %88, %91 : vector<8x8xf32>
    %93 = math.exp %92 : vector<8x8xf32>
    %cst_27 = arith.constant dense<0.000000e+00> : vector<8xf32>
    %94 = vector.multi_reduction <add>, %93, %cst_27 [1] : vector<8x8xf32> to vector<8xf32>
    %95 = vector.shape_cast %94 : vector<8xf32> to vector<8x1xf32>
    %96 = arith.truncf %93 : vector<8x8xf32> to vector<8x8xbf16>
    %cst_28 = arith.constant dense<0.000000e+00> : vector<8x8xf32>
    %97 = tpu.matmul %96, %84, %cst_28 {dimension_numbers = #tpu.dot_dimension_numbers<[1], [0], [0], [1], [0, 0, 1, 1], [], []>} : vector<8x8xbf16>, vector<8x8xbf16>, vector<8x8xf32> -> vector<8x8xf32>
    %98 = tpu.reciprocal %95 {approx = true} : vector<8x1xf32> -> vector<8x1xf32>
    %99 = vector.broadcast %98 : vector<8x1xf32> to vector<8x8xf32>
    %100 = arith.mulf %97, %99 : vector<8x8xf32>
    %c0_29 = arith.constant 0 : index
    %c24 = arith.constant 24 : index
    %101 = vector.load %arg16[%c0_29, %c24] : memref<8x32xf32, #tpu.memory_space<vmem>>, vector<8x8xf32>
    tpu.vector_store %arg16[%c0_29, %c24], %100 {strides = array<i32>} : memref<8x32xf32, #tpu.memory_space<vmem>>, vector<8x8xf32>,
    %c0_30 = arith.constant 0 : index
    %c0_31 = arith.constant 0 : index
    %102 = vector.load %arg16[%c0_30, %c0_31] : memref<8x32xf32, #tpu.memory_space<vmem>>, vector<8x32xf32>
    %103 = arith.truncf %102 : vector<8x32xf32> to vector<8x32xbf16>
    %c0_32 = arith.constant 0 : index
    %c0_33 = arith.constant 0 : index
    %104 = vector.load %arg5[%c0_32, %c0_33] : memref<32x32xbf16, #tpu.memory_space<vmem>>, vector<32x32xbf16>
    %cst_34 = arith.constant dense<0.000000e+00> : vector<8x32xf32>
    %105 = tpu.matmul %103, %104, %cst_34 {dimension_numbers = #tpu.dot_dimension_numbers<[1], [0], [0], [1], [0, 0, 1, 1], [], []>} : vector<8x32xbf16>, vector<32x32xbf16>, vector<8x32xf32> -> vector<8x32xf32>
    %c0_35 = arith.constant 0 : index
    %c0_36 = arith.constant 0 : index
    %106 = vector.load %arg6[%c0_35, %c0_36] : memref<1x32xf32, #tpu.memory_space<vmem>>, vector<1x32xf32>
    %107 = vector.broadcast %106 : vector<1x32xf32> to vector<8x32xf32>
    %108 = arith.addf %105, %107 : vector<8x32xf32>
    %109 = arith.addf %2, %108 : vector<8x32xf32>
    %c0_37 = arith.constant 0 : index
    %c0_38 = arith.constant 0 : index
    %110 = vector.load %arg7[%c0_37, %c0_38] : memref<1x32xf32, #tpu.memory_space<vmem>>, vector<1x32xf32>
    %c0_39 = arith.constant 0 : index
    %c0_40 = arith.constant 0 : index
    %111 = vector.load %arg8[%c0_39, %c0_40] : memref<1x32xf32, #tpu.memory_space<vmem>>, vector<1x32xf32>
    %cst_41 = arith.constant dense<0.000000e+00> : vector<8xf32>
    %112 = vector.multi_reduction <add>, %109, %cst_41 [1] : vector<8x32xf32> to vector<8xf32>
    %113 = vector.shape_cast %112 : vector<8xf32> to vector<8x1xf32>
    %cst_42 = arith.constant 3.200000e+01 : f32
    %114 = vector.broadcast %cst_42 : f32 to vector<8x1xf32>
    %115 = arith.divf %113, %114 : vector<8x1xf32>
    %116 = vector.broadcast %115 : vector<8x1xf32> to vector<8x32xf32>
    %117 = arith.subf %109, %116 : vector<8x32xf32>
    %118 = arith.mulf %117, %117 : vector<8x32xf32>
    %cst_43 = arith.constant dense<0.000000e+00> : vector<8xf32>
    %119 = vector.multi_reduction <add>, %118, %cst_43 [1] : vector<8x32xf32> to vector<8xf32>
    %120 = vector.shape_cast %119 : vector<8xf32> to vector<8x1xf32>
    %cst_44 = arith.constant 3.200000e+01 : f32
    %121 = vector.broadcast %cst_44 : f32 to vector<8x1xf32>
    %122 = arith.divf %120, %121 : vector<8x1xf32>
    %123 = vector.broadcast %115 : vector<8x1xf32> to vector<8x32xf32>
    %124 = arith.subf %109, %123 : vector<8x32xf32>
    %cst_45 = arith.constant 9.99999996E-13 : f32
    %125 = vector.broadcast %cst_45 : f32 to vector<8x1xf32>
    %126 = arith.addf %122, %125 : vector<8x1xf32>
    %127 = math.rsqrt %126 : vector<8x1xf32>
    %128 = vector.broadcast %127 : vector<8x1xf32> to vector<8x32xf32>
    %129 = arith.mulf %124, %128 : vector<8x32xf32>
    %130 = vector.broadcast %110 : vector<1x32xf32> to vector<8x32xf32>
    %131 = arith.mulf %129, %130 : vector<8x32xf32>
    %132 = vector.broadcast %111 : vector<1x32xf32> to vector<8x32xf32>
    %133 = arith.addf %131, %132 : vector<8x32xf32>
    %134 = arith.truncf %133 : vector<8x32xf32> to vector<8x32xbf16>
    %c0_46 = arith.constant 0 : index
    %c0_47 = arith.constant 0 : index
    %135 = vector.load %arg9[%c0_46, %c0_47] : memref<32x64xbf16, #tpu.memory_space<vmem>>, vector<32x64xbf16>
    %cst_48 = arith.constant dense<0.000000e+00> : vector<8x64xf32>
    %136 = tpu.matmul %134, %135, %cst_48 {dimension_numbers = #tpu.dot_dimension_numbers<[1], [0], [0], [1], [0, 0, 1, 1], [], []>} : vector<8x32xbf16>, vector<32x64xbf16>, vector<8x64xf32> -> vector<8x64xf32>
    %c0_49 = arith.constant 0 : index
    %c0_50 = arith.constant 0 : index
    %137 = vector.load %arg10[%c0_49, %c0_50] : memref<1x64xf32, #tpu.memory_space<vmem>>, vector<1x64xf32>
    %138 = vector.broadcast %137 : vector<1x64xf32> to vector<8x64xf32>
    %139 = arith.addf %136, %138 : vector<8x64xf32>
    %140 = arith.mulf %139, %139 : vector<8x64xf32>
    %141 = arith.mulf %139, %140 : vector<8x64xf32>
    %cst_51 = arith.constant 4.471500e-02 : f32
    %142 = vector.broadcast %cst_51 : f32 to vector<8x64xf32>
    %143 = arith.mulf %142, %141 : vector<8x64xf32>
    %144 = arith.addf %139, %143 : vector<8x64xf32>
    %cst_52 = arith.constant 0.797884583 : f32
    %145 = vector.broadcast %cst_52 : f32 to vector<8x64xf32>
    %146 = arith.mulf %145, %144 : vector<8x64xf32>
    %147 = math.tanh %146 : vector<8x64xf32>
    %cst_53 = arith.constant 1.000000e+00 : f32
    %148 = vector.broadcast %cst_53 : f32 to vector<8x64xf32>
    %149 = arith.addf %148, %147 : vector<8x64xf32>
    %cst_54 = arith.constant 5.000000e-01 : f32
    %150 = vector.broadcast %cst_54 : f32 to vector<8x64xf32>
    %151 = arith.mulf %150, %149 : vector<8x64xf32>
    %152 = arith.mulf %139, %151 : vector<8x64xf32>
    %153 = arith.truncf %152 : vector<8x64xf32> to vector<8x64xbf16>
    %c0_55 = arith.constant 0 : index
    %c0_56 = arith.constant 0 : index
    %154 = vector.load %arg11[%c0_55, %c0_56] : memref<64x32xbf16, #tpu.memory_space<vmem>>, vector<64x32xbf16>
    %cst_57 = arith.constant dense<0.000000e+00> : vector<8x32xf32>
    %155 = tpu.matmul %153, %154, %cst_57 {dimension_numbers = #tpu.dot_dimension_numbers<[1], [0], [0], [1], [0, 0, 1, 1], [], []>} : vector<8x64xbf16>, vector<64x32xbf16>, vector<8x32xf32> -> vector<8x32xf32>
    %c0_58 = arith.constant 0 : index
    %c0_59 = arith.constant 0 : index
    %156 = vector.load %arg12[%c0_58, %c0_59] : memref<1x32xf32, #tpu.memory_space<vmem>>, vector<1x32xf32>
    %157 = vector.broadcast %156 : vector<1x32xf32> to vector<8x32xf32>
    %158 = arith.addf %155, %157 : vector<8x32xf32>
    %159 = arith.addf %133, %158 : vector<8x32xf32>
    %c0_60 = arith.constant 0 : index
    %c0_61 = arith.constant 0 : index
    %160 = vector.load %arg13[%c0_60, %c0_61] : memref<1x32xf32, #tpu.memory_space<vmem>>, vector<1x32xf32>
    %c0_62 = arith.constant 0 : index
    %c0_63 = arith.constant 0 : index
    %161 = vector.load %arg14[%c0_62, %c0_63] : memref<1x32xf32, #tpu.memory_space<vmem>>, vector<1x32xf32>
    %cst_64 = arith.constant dense<0.000000e+00> : vector<8xf32>
    %162 = vector.multi_reduction <add>, %159, %cst_64 [1] : vector<8x32xf32> to vector<8xf32>
    %163 = vector.shape_cast %162 : vector<8xf32> to vector<8x1xf32>
    %cst_65 = arith.constant 3.200000e+01 : f32
    %164 = vector.broadcast %cst_65 : f32 to vector<8x1xf32>
    %165 = arith.divf %163, %164 : vector<8x1xf32>
    %166 = vector.broadcast %165 : vector<8x1xf32> to vector<8x32xf32>
    %167 = arith.subf %159, %166 : vector<8x32xf32>
    %168 = arith.mulf %167, %167 : vector<8x32xf32>
    %cst_66 = arith.constant dense<0.000000e+00> : vector<8xf32>
    %169 = vector.multi_reduction <add>, %168, %cst_66 [1] : vector<8x32xf32> to vector<8xf32>
    %170 = vector.shape_cast %169 : vector<8xf32> to vector<8x1xf32>
    %cst_67 = arith.constant 3.200000e+01 : f32
    %171 = vector.broadcast %cst_67 : f32 to vector<8x1xf32>
    %172 = arith.divf %170, %171 : vector<8x1xf32>
    %173 = vector.broadcast %165 : vector<8x1xf32> to vector<8x32xf32>
    %174 = arith.subf %159, %173 : vector<8x32xf32>
    %cst_68 = arith.constant 9.99999996E-13 : f32
    %175 = vector.broadcast %cst_68 : f32 to vector<8x1xf32>
    %176 = arith.addf %172, %175 : vector<8x1xf32>
    %177 = math.rsqrt %176 : vector<8x1xf32>
    %178 = vector.broadcast %177 : vector<8x1xf32> to vector<8x32xf32>
    %179 = arith.mulf %174, %178 : vector<8x32xf32>
    %180 = vector.broadcast %160 : vector<1x32xf32> to vector<8x32xf32>
    %181 = arith.mulf %179, %180 : vector<8x32xf32>
    %182 = vector.broadcast %161 : vector<1x32xf32> to vector<8x32xf32>
    %183 = arith.addf %181, %182 : vector<8x32xf32>
    %184 = arith.truncf %183 : vector<8x32xf32> to vector<8x32xbf16>
    %c0_69 = arith.constant 0 : index
    %c0_70 = arith.constant 0 : index
    %c0_71 = arith.constant 0 : index
    %185 = vector.load %arg15[%c0_69, %c0_70, %c0_71] : memref<1x8x32xbf16, #tpu.memory_space<vmem>>, vector<1x8x32xbf16>
    %186 = vector.shape_cast %185 : vector<1x8x32xbf16> to vector<8x32xbf16>
    %187 = vector.shape_cast %184 : vector<8x32xbf16> to vector<1x8x32xbf16>
    tpu.vector_store %arg15[%c0_69, %c0_70, %c0_71], %187 {strides = array<i32>} : memref<1x8x32xbf16, #tpu.memory_space<vmem>>, vector<1x8x32xbf16>,
    return
  }
  func.func @transform_0(%arg0: i32) -> (i32, i32, i32) {
    %c0_i32 = arith.constant 0 : i32
    %c0_i32_0 = arith.constant 0 : i32
    %c0_i32_1 = arith.constant 0 : i32
    return %arg0, %c0_i32, %c0_i32_0 : i32, i32, i32
  }
  func.func @transform_1(%arg0: i32) -> (i32, i32, i32) {
    %c0_i32 = arith.constant 0 : i32
    %c0_i32_0 = arith.constant 0 : i32
    %c0_i32_1 = arith.constant 0 : i32
    return %arg0, %c0_i32, %c0_i32_0 : i32, i32, i32
  }
  func.func @transform_2(%arg0: i32) -> (i32, i32) {
    %c0_i32 = arith.constant 0 : i32
    %c0_i32_0 = arith.constant 0 : i32
    %c0_i32_1 = arith.constant 0 : i32
    return %c0_i32, %c0_i32_0 : i32, i32
  }
  func.func @transform_3(%arg0: i32) -> (i32, i32) {
    %c0_i32 = arith.constant 0 : i32
    %c0_i32_0 = arith.constant 0 : i32
    %c0_i32_1 = arith.constant 0 : i32
    return %c0_i32, %c0_i32_0 : i32, i32
  }
  func.func @transform_4(%arg0: i32) -> (i32, i32) {
    %c0_i32 = arith.constant 0 : i32
    %c0_i32_0 = arith.constant 0 : i32
    %c0_i32_1 = arith.constant 0 : i32
    return %c0_i32, %c0_i32_0 : i32, i32
  }
  func.func @transform_5(%arg0: i32) -> (i32, i32) {
    %c0_i32 = arith.constant 0 : i32
    %c0_i32_0 = arith.constant 0 : i32
    %c0_i32_1 = arith.constant 0 : i32
    return %c0_i32, %c0_i32_0 : i32, i32
  }
  func.func @transform_6(%arg0: i32) -> (i32, i32) {
    %c0_i32 = arith.constant 0 : i32
    %c0_i32_0 = arith.constant 0 : i32
    %c0_i32_1 = arith.constant 0 : i32
    return %c0_i32, %c0_i32_0 : i32, i32
  }
  func.func @transform_7(%arg0: i32) -> (i32, i32) {
    %c0_i32 = arith.constant 0 : i32
    %c0_i32_0 = arith.constant 0 : i32
    %c0_i32_1 = arith.constant 0 : i32
    return %c0_i32, %c0_i32_0 : i32, i32
  }
  func.func @transform_8(%arg0: i32) -> (i32, i32) {
    %c0_i32 = arith.constant 0 : i32
    %c0_i32_0 = arith.constant 0 : i32
    %c0_i32_1 = arith.constant 0 : i32
    return %c0_i32, %c0_i32_0 : i32, i32
  }
  func.func @transform_9(%arg0: i32) -> (i32, i32) {
    %c0_i32 = arith.constant 0 : i32
    %c0_i32_0 = arith.constant 0 : i32
    %c0_i32_1 = arith.constant 0 : i32
    return %c0_i32, %c0_i32_0 : i32, i32
  }
  func.func @transform_10(%arg0: i32) -> (i32, i32) {
    %c0_i32 = arith.constant 0 : i32
    %c0_i32_0 = arith.constant 0 : i32
    %c0_i32_1 = arith.constant 0 : i32
    return %c0_i32, %c0_i32_0 : i32, i32
  }
  func.func @transform_11(%arg0: i32) -> (i32, i32) {
    %c0_i32 = arith.constant 0 : i32
    %c0_i32_0 = arith.constant 0 : i32
    %c0_i32_1 = arith.constant 0 : i32
    return %c0_i32, %c0_i32_0 : i32, i32
  }
  func.func @transform_12(%arg0: i32) -> (i32, i32) {
    %c0_i32 = arith.constant 0 : i32
    %c0_i32_0 = arith.constant 0 : i32
    %c0_i32_1 = arith.constant 0 : i32
    return %c0_i32, %c0_i32_0 : i32, i32
  }
  func.func @transform_13(%arg0: i32) -> (i32, i32) {
    %c0_i32 = arith.constant 0 : i32
    %c0_i32_0 = arith.constant 0 : i32
    %c0_i32_1 = arith.constant 0 : i32
    return %c0_i32, %c0_i32_0 : i32, i32
  }
  func.func @transform_14(%arg0: i32) -> (i32, i32, i32) {
    %c0_i32 = arith.constant 0 : i32
    %c0_i32_0 = arith.constant 0 : i32
    %c0_i32_1 = arith.constant 0 : i32
    return %arg0, %c0_i32, %c0_i32_0 : i32, i32, i32
  }
}

module attributes {stable_mosaic.version = 11 : i64} {
  func.func @_fused_layer_kernel(%arg0: i32, %arg1: memref<1x8x32xbf16, #tpu.memory_space<vmem>>, %arg2: memref<1x1x8xf32, #tpu.memory_space<vmem>>, %arg3: memref<32x96xbf16, #tpu.memory_space<vmem>>, %arg4: memref<1x96xf32, #tpu.memory_space<vmem>>, %arg5: memref<32x32xbf16, #tpu.memory_space<vmem>>, %arg6: memref<1x32xf32, #tpu.memory_space<vmem>>, %arg7: memref<1x32xf32, #tpu.memory_space<vmem>>, %arg8: memref<1x32xf32, #tpu.memory_space<vmem>>, %arg9: memref<32x64xbf16, #tpu.memory_space<vmem>>, %arg10: memref<1x64xf32, #tpu.memory_space<vmem>>, %arg11: memref<64x32xbf16, #tpu.memory_space<vmem>>, %arg12: memref<1x32xf32, #tpu.memory_space<vmem>>, %arg13: memref<1x32xf32, #tpu.memory_space<vmem>>, %arg14: memref<1x32xf32, #tpu.memory_space<vmem>>, %arg15: memref<1x1x32xf32, #tpu.memory_space<vmem>>, %arg16: memref<8x32xf32, #tpu.memory_space<vmem>>) attributes {dimension_semantics = [#tpu.dimension_semantics<parallel>], iteration_bounds = array<i64: 6>, scalar_prefetch = 0 : i64, scratch_operands = 1 : i64, tpu.core_type = #tpu.core_type<tc>, window_params = [{transform_indices = @transform_0, window_bounds = array<i64: 1, 8, 32>}, {transform_indices = @transform_1, window_bounds = array<i64: 1, 1, 8>}, {pipeline_mode = #tpu.pipeline_mode<synchronous>, transform_indices = @transform_2, window_bounds = array<i64: 32, 96>}, {pipeline_mode = #tpu.pipeline_mode<synchronous>, transform_indices = @transform_3, window_bounds = array<i64: 1, 96>}, {pipeline_mode = #tpu.pipeline_mode<synchronous>, transform_indices = @transform_4, window_bounds = array<i64: 32, 32>}, {pipeline_mode = #tpu.pipeline_mode<synchronous>, transform_indices = @transform_5, window_bounds = array<i64: 1, 32>}, {pipeline_mode = #tpu.pipeline_mode<synchronous>, transform_indices = @transform_6, window_bounds = array<i64: 1, 32>}, {pipeline_mode = #tpu.pipeline_mode<synchronous>, transform_indices = @transform_7, window_bounds = array<i64: 1, 32>}, {pipeline_mode = #tpu.pipeline_mode<synchronous>, transform_indices = @transform_8, window_bounds = array<i64: 32, 64>}, {pipeline_mode = #tpu.pipeline_mode<synchronous>, transform_indices = @transform_9, window_bounds = array<i64: 1, 64>}, {pipeline_mode = #tpu.pipeline_mode<synchronous>, transform_indices = @transform_10, window_bounds = array<i64: 64, 32>}, {pipeline_mode = #tpu.pipeline_mode<synchronous>, transform_indices = @transform_11, window_bounds = array<i64: 1, 32>}, {pipeline_mode = #tpu.pipeline_mode<synchronous>, transform_indices = @transform_12, window_bounds = array<i64: 1, 32>}, {pipeline_mode = #tpu.pipeline_mode<synchronous>, transform_indices = @transform_13, window_bounds = array<i64: 1, 32>}, {transform_indices = @transform_14, window_bounds = array<i64: 1, 1, 32>}]} {
    %c0 = arith.constant 0 : index
    %c0_0 = arith.constant 0 : index
    %c0_1 = arith.constant 0 : index
    %0 = vector.load %arg1[%c0, %c0_0, %c0_1] : memref<1x8x32xbf16, #tpu.memory_space<vmem>>, vector<1x8x32xbf16>
    %1 = vector.shape_cast %0 : vector<1x8x32xbf16> to vector<8x32xbf16>
    %2 = arith.extf %1 : vector<8x32xbf16> to vector<8x32xf32>
    %c0_2 = arith.constant 0 : index
    %c0_3 = arith.constant 0 : index
    %3 = vector.load %arg3[%c0_2, %c0_3] : memref<32x96xbf16, #tpu.memory_space<vmem>>, vector<32x96xbf16>
    %cst = arith.constant dense<0.000000e+00> : vector<8x96xf32>
    %4 = tpu.matmul %1, %3, %cst {dimension_numbers = #tpu.dot_dimension_numbers<[1], [0], [0], [1], [0, 0, 1, 1], [], []>} : vector<8x32xbf16>, vector<32x96xbf16>, vector<8x96xf32> -> vector<8x96xf32>
    %c0_4 = arith.constant 0 : index
    %c0_5 = arith.constant 0 : index
    %5 = vector.load %arg4[%c0_4, %c0_5] : memref<1x96xf32, #tpu.memory_space<vmem>>, vector<1x96xf32>
    %6 = vector.broadcast %5 : vector<1x96xf32> to vector<8x96xf32>
    %7 = arith.addf %4, %6 : vector<8x96xf32>
    %c0_6 = arith.constant 0 : index
    %c0_7 = arith.constant 0 : index
    %c0_8 = arith.constant 0 : index
    %8 = vector.load %arg2[%c0_6, %c0_7, %c0_8] : memref<1x1x8xf32, #tpu.memory_space<vmem>>, vector<1x1x8xf32>
    %9 = vector.shape_cast %8 : vector<1x1x8xf32> to vector<1x8xf32>
    %10 = vector.extract_strided_slice %7 {offsets = [0, 0], sizes = [8, 8], strides = [1, 1]} : vector<8x96xf32> to vector<8x8xf32>
    %11 = arith.truncf %10 : vector<8x8xf32> to vector<8x8xbf16>
    %12 = vector.extract_strided_slice %7 {offsets = [0, 32], sizes = [8, 8], strides = [1, 1]} : vector<8x96xf32> to vector<8x8xf32>
    %13 = arith.truncf %12 : vector<8x8xf32> to vector<8x8xbf16>
    %14 = vector.extract_strided_slice %7 {offsets = [0, 64], sizes = [8, 8], strides = [1, 1]} : vector<8x96xf32> to vector<8x8xf32>
    %15 = arith.truncf %14 : vector<8x8xf32> to vector<8x8xbf16>
    %16 = tpu.transpose %13, [1, 0] : vector<8x8xbf16> -> vector<8x8xbf16>
    %cst_9 = arith.constant dense<0.000000e+00> : vector<8x8xf32>
    %17 = tpu.matmul %11, %16, %cst_9 {dimension_numbers = #tpu.dot_dimension_numbers<[1], [0], [0], [1], [0, 0, 1, 1], [], []>} : vector<8x8xbf16>, vector<8x8xbf16>, vector<8x8xf32> -> vector<8x8xf32>
    %18 = vector.broadcast %9 : vector<1x8xf32> to vector<8x8xf32>
    %19 = arith.addf %17, %18 : vector<8x8xf32>
    %cst_10 = arith.constant dense<0xFF800000> : vector<8xf32>
    %20 = vector.multi_reduction <maximumf>, %19, %cst_10 [1] : vector<8x8xf32> to vector<8xf32>
    %21 = vector.shape_cast %20 : vector<8xf32> to vector<8x1xf32>
    %22 = vector.broadcast %21 : vector<8x1xf32> to vector<8x8xf32>
    %23 = arith.subf %19, %22 : vector<8x8xf32>
    %24 = math.exp %23 : vector<8x8xf32>
    %cst_11 = arith.constant dense<0.000000e+00> : vector<8xf32>
    %25 = vector.multi_reduction <add>, %24, %cst_11 [1] : vector<8x8xf32> to vector<8xf32>
    %26 = vector.shape_cast %25 : vector<8xf32> to vector<8x1xf32>
    %27 = arith.truncf %24 : vector<8x8xf32> to vector<8x8xbf16>
    %cst_12 = arith.constant dense<0.000000e+00> : vector<8x8xf32>
    %28 = tpu.matmul %27, %15, %cst_12 {dimension_numbers = #tpu.dot_dimension_numbers<[1], [0], [0], [1], [0, 0, 1, 1], [], []>} : vector<8x8xbf16>, vector<8x8xbf16>, vector<8x8xf32> -> vector<8x8xf32>
    %29 = tpu.reciprocal %26 {approx = true} : vector<8x1xf32> -> vector<8x1xf32>
    %30 = vector.broadcast %29 : vector<8x1xf32> to vector<8x8xf32>
    %31 = arith.mulf %28, %30 : vector<8x8xf32>
    %c0_13 = arith.constant 0 : index
    %c0_14 = arith.constant 0 : index
    %32 = vector.load %arg16[%c0_13, %c0_14] : memref<8x32xf32, #tpu.memory_space<vmem>>, vector<8x8xf32>
    tpu.vector_store %arg16[%c0_13, %c0_14], %31 {strides = array<i32>} : memref<8x32xf32, #tpu.memory_space<vmem>>, vector<8x8xf32>,
    %33 = vector.extract_strided_slice %7 {offsets = [0, 8], sizes = [8, 8], strides = [1, 1]} : vector<8x96xf32> to vector<8x8xf32>
    %34 = arith.truncf %33 : vector<8x8xf32> to vector<8x8xbf16>
    %35 = vector.extract_strided_slice %7 {offsets = [0, 40], sizes = [8, 8], strides = [1, 1]} : vector<8x96xf32> to vector<8x8xf32>
    %36 = arith.truncf %35 : vector<8x8xf32> to vector<8x8xbf16>
    %37 = vector.extract_strided_slice %7 {offsets = [0, 72], sizes = [8, 8], strides = [1, 1]} : vector<8x96xf32> to vector<8x8xf32>
    %38 = arith.truncf %37 : vector<8x8xf32> to vector<8x8xbf16>
    %39 = tpu.transpose %36, [1, 0] : vector<8x8xbf16> -> vector<8x8xbf16>
    %cst_15 = arith.constant dense<0.000000e+00> : vector<8x8xf32>
    %40 = tpu.matmul %34, %39, %cst_15 {dimension_numbers = #tpu.dot_dimension_numbers<[1], [0], [0], [1], [0, 0, 1, 1], [], []>} : vector<8x8xbf16>, vector<8x8xbf16>, vector<8x8xf32> -> vector<8x8xf32>
    %41 = vector.broadcast %9 : vector<1x8xf32> to vector<8x8xf32>
    %42 = arith.addf %40, %41 : vector<8x8xf32>
    %cst_16 = arith.constant dense<0xFF800000> : vector<8xf32>
    %43 = vector.multi_reduction <maximumf>, %42, %cst_16 [1] : vector<8x8xf32> to vector<8xf32>
    %44 = vector.shape_cast %43 : vector<8xf32> to vector<8x1xf32>
    %45 = vector.broadcast %44 : vector<8x1xf32> to vector<8x8xf32>
    %46 = arith.subf %42, %45 : vector<8x8xf32>
    %47 = math.exp %46 : vector<8x8xf32>
    %cst_17 = arith.constant dense<0.000000e+00> : vector<8xf32>
    %48 = vector.multi_reduction <add>, %47, %cst_17 [1] : vector<8x8xf32> to vector<8xf32>
    %49 = vector.shape_cast %48 : vector<8xf32> to vector<8x1xf32>
    %50 = arith.truncf %47 : vector<8x8xf32> to vector<8x8xbf16>
    %cst_18 = arith.constant dense<0.000000e+00> : vector<8x8xf32>
    %51 = tpu.matmul %50, %38, %cst_18 {dimension_numbers = #tpu.dot_dimension_numbers<[1], [0], [0], [1], [0, 0, 1, 1], [], []>} : vector<8x8xbf16>, vector<8x8xbf16>, vector<8x8xf32> -> vector<8x8xf32>
    %52 = tpu.reciprocal %49 {approx = true} : vector<8x1xf32> -> vector<8x1xf32>
    %53 = vector.broadcast %52 : vector<8x1xf32> to vector<8x8xf32>
    %54 = arith.mulf %51, %53 : vector<8x8xf32>
    %c0_19 = arith.constant 0 : index
    %c8 = arith.constant 8 : index
    %55 = vector.load %arg16[%c0_19, %c8] : memref<8x32xf32, #tpu.memory_space<vmem>>, vector<8x8xf32>
    tpu.vector_store %arg16[%c0_19, %c8], %54 {strides = array<i32>} : memref<8x32xf32, #tpu.memory_space<vmem>>, vector<8x8xf32>,
    %56 = vector.extract_strided_slice %7 {offsets = [0, 16], sizes = [8, 8], strides = [1, 1]} : vector<8x96xf32> to vector<8x8xf32>
    %57 = arith.truncf %56 : vector<8x8xf32> to vector<8x8xbf16>
    %58 = vector.extract_strided_slice %7 {offsets = [0, 48], sizes = [8, 8], strides = [1, 1]} : vector<8x96xf32> to vector<8x8xf32>
    %59 = arith.truncf %58 : vector<8x8xf32> to vector<8x8xbf16>
    %60 = vector.extract_strided_slice %7 {offsets = [0, 80], sizes = [8, 8], strides = [1, 1]} : vector<8x96xf32> to vector<8x8xf32>
    %61 = arith.truncf %60 : vector<8x8xf32> to vector<8x8xbf16>
    %62 = tpu.transpose %59, [1, 0] : vector<8x8xbf16> -> vector<8x8xbf16>
    %cst_20 = arith.constant dense<0.000000e+00> : vector<8x8xf32>
    %63 = tpu.matmul %57, %62, %cst_20 {dimension_numbers = #tpu.dot_dimension_numbers<[1], [0], [0], [1], [0, 0, 1, 1], [], []>} : vector<8x8xbf16>, vector<8x8xbf16>, vector<8x8xf32> -> vector<8x8xf32>
    %64 = vector.broadcast %9 : vector<1x8xf32> to vector<8x8xf32>
    %65 = arith.addf %63, %64 : vector<8x8xf32>
    %cst_21 = arith.constant dense<0xFF800000> : vector<8xf32>
    %66 = vector.multi_reduction <maximumf>, %65, %cst_21 [1] : vector<8x8xf32> to vector<8xf32>
    %67 = vector.shape_cast %66 : vector<8xf32> to vector<8x1xf32>
    %68 = vector.broadcast %67 : vector<8x1xf32> to vector<8x8xf32>
    %69 = arith.subf %65, %68 : vector<8x8xf32>
    %70 = math.exp %69 : vector<8x8xf32>
    %cst_22 = arith.constant dense<0.000000e+00> : vector<8xf32>
    %71 = vector.multi_reduction <add>, %70, %cst_22 [1] : vector<8x8xf32> to vector<8xf32>
    %72 = vector.shape_cast %71 : vector<8xf32> to vector<8x1xf32>
    %73 = arith.truncf %70 : vector<8x8xf32> to vector<8x8xbf16>
    %cst_23 = arith.constant dense<0.000000e+00> : vector<8x8xf32>
    %74 = tpu.matmul %73, %61, %cst_23 {dimension_numbers = #tpu.dot_dimension_numbers<[1], [0], [0], [1], [0, 0, 1, 1], [], []>} : vector<8x8xbf16>, vector<8x8xbf16>, vector<8x8xf32> -> vector<8x8xf32>
    %75 = tpu.reciprocal %72 {approx = true} : vector<8x1xf32> -> vector<8x1xf32>
    %76 = vector.broadcast %75 : vector<8x1xf32> to vector<8x8xf32>
    %77 = arith.mulf %74, %76 : vector<8x8xf32>
    %c0_24 = arith.constant 0 : index
    %c16 = arith.constant 16 : index
    %78 = vector.load %arg16[%c0_24, %c16] : memref<8x32xf32, #tpu.memory_space<vmem>>, vector<8x8xf32>
    tpu.vector_store %arg16[%c0_24, %c16], %77 {strides = array<i32>} : memref<8x32xf32, #tpu.memory_space<vmem>>, vector<8x8xf32>,
    %79 = vector.extract_strided_slice %7 {offsets = [0, 24], sizes = [8, 8], strides = [1, 1]} : vector<8x96xf32> to vector<8x8xf32>
    %80 = arith.truncf %79 : vector<8x8xf32> to vector<8x8xbf16>
    %81 = vector.extract_strided_slice %7 {offsets = [0, 56], sizes = [8, 8], strides = [1, 1]} : vector<8x96xf32> to vector<8x8xf32>
    %82 = arith.truncf %81 : vector<8x8xf32> to vector<8x8xbf16>
    %83 = vector.extract_strided_slice %7 {offsets = [0, 88], sizes = [8, 8], strides = [1, 1]} : vector<8x96xf32> to vector<8x8xf32>
    %84 = arith.truncf %83 : vector<8x8xf32> to vector<8x8xbf16>
    %85 = tpu.transpose %82, [1, 0] : vector<8x8xbf16> -> vector<8x8xbf16>
    %cst_25 = arith.constant dense<0.000000e+00> : vector<8x8xf32>
    %86 = tpu.matmul %80, %85, %cst_25 {dimension_numbers = #tpu.dot_dimension_numbers<[1], [0], [0], [1], [0, 0, 1, 1], [], []>} : vector<8x8xbf16>, vector<8x8xbf16>, vector<8x8xf32> -> vector<8x8xf32>
    %87 = vector.broadcast %9 : vector<1x8xf32> to vector<8x8xf32>
    %88 = arith.addf %86, %87 : vector<8x8xf32>
    %cst_26 = arith.constant dense<0xFF800000> : vector<8xf32>
    %89 = vector.multi_reduction <maximumf>, %88, %cst_26 [1] : vector<8x8xf32> to vector<8xf32>
    %90 = vector.shape_cast %89 : vector<8xf32> to vector<8x1xf32>
    %91 = vector.broadcast %90 : vector<8x1xf32> to vector<8x8xf32>
    %92 = arith.subf %88, %91 : vector<8x8xf32>
    %93 = math.exp %92 : vector<8x8xf32>
    %cst_27 = arith.constant dense<0.000000e+00> : vector<8xf32>
    %94 = vector.multi_reduction <add>, %93, %cst_27 [1] : vector<8x8xf32> to vector<8xf32>
    %95 = vector.shape_cast %94 : vector<8xf32> to vector<8x1xf32>
    %96 = arith.truncf %93 : vector<8x8xf32> to vector<8x8xbf16>
    %cst_28 = arith.constant dense<0.000000e+00> : vector<8x8xf32>
    %97 = tpu.matmul %96, %84, %cst_28 {dimension_numbers = #tpu.dot_dimension_numbers<[1], [0], [0], [1], [0, 0, 1, 1], [], []>} : vector<8x8xbf16>, vector<8x8xbf16>, vector<8x8xf32> -> vector<8x8xf32>
    %98 = tpu.reciprocal %95 {approx = true} : vector<8x1xf32> -> vector<8x1xf32>
    %99 = vector.broadcast %98 : vector<8x1xf32> to vector<8x8xf32>
    %100 = arith.mulf %97, %99 : vector<8x8xf32>
    %c0_29 = arith.constant 0 : index
    %c24 = arith.constant 24 : index
    %101 = vector.load %arg16[%c0_29, %c24] : memref<8x32xf32, #tpu.memory_space<vmem>>, vector<8x8xf32>
    tpu.vector_store %arg16[%c0_29, %c24], %100 {strides = array<i32>} : memref<8x32xf32, #tpu.memory_space<vmem>>, vector<8x8xf32>,
    %c0_30 = arith.constant 0 : index
    %c0_31 = arith.constant 0 : index
    %102 = vector.load %arg16[%c0_30, %c0_31] : memref<8x32xf32, #tpu.memory_space<vmem>>, vector<8x32xf32>
    %103 = arith.truncf %102 : vector<8x32xf32> to vector<8x32xbf16>
    %c0_32 = arith.constant 0 : index
    %c0_33 = arith.constant 0 : index
    %104 = vector.load %arg5[%c0_32, %c0_33] : memref<32x32xbf16, #tpu.memory_space<vmem>>, vector<32x32xbf16>
    %cst_34 = arith.constant dense<0.000000e+00> : vector<8x32xf32>
    %105 = tpu.matmul %103, %104, %cst_34 {dimension_numbers = #tpu.dot_dimension_numbers<[1], [0], [0], [1], [0, 0, 1, 1], [], []>} : vector<8x32xbf16>, vector<32x32xbf16>, vector<8x32xf32> -> vector<8x32xf32>
    %c0_35 = arith.constant 0 : index
    %c0_36 = arith.constant 0 : index
    %106 = vector.load %arg6[%c0_35, %c0_36] : memref<1x32xf32, #tpu.memory_space<vmem>>, vector<1x32xf32>
    %107 = vector.broadcast %106 : vector<1x32xf32> to vector<8x32xf32>
    %108 = arith.addf %105, %107 : vector<8x32xf32>
    %109 = arith.addf %2, %108 : vector<8x32xf32>
    %c0_37 = arith.constant 0 : index
    %c0_38 = arith.constant 0 : index
    %110 = vector.load %arg7[%c0_37, %c0_38] : memref<1x32xf32, #tpu.memory_space<vmem>>, vector<1x32xf32>
    %c0_39 = arith.constant 0 : index
    %c0_40 = arith.constant 0 : index
    %111 = vector.load %arg8[%c0_39, %c0_40] : memref<1x32xf32, #tpu.memory_space<vmem>>, vector<1x32xf32>
    %cst_41 = arith.constant dense<0.000000e+00> : vector<8xf32>
    %112 = vector.multi_reduction <add>, %109, %cst_41 [1] : vector<8x32xf32> to vector<8xf32>
    %113 = vector.shape_cast %112 : vector<8xf32> to vector<8x1xf32>
    %cst_42 = arith.constant 3.200000e+01 : f32
    %114 = vector.broadcast %cst_42 : f32 to vector<8x1xf32>
    %115 = arith.divf %113, %114 : vector<8x1xf32>
    %116 = vector.broadcast %115 : vector<8x1xf32> to vector<8x32xf32>
    %117 = arith.subf %109, %116 : vector<8x32xf32>
    %118 = arith.mulf %117, %117 : vector<8x32xf32>
    %cst_43 = arith.constant dense<0.000000e+00> : vector<8xf32>
    %119 = vector.multi_reduction <add>, %118, %cst_43 [1] : vector<8x32xf32> to vector<8xf32>
    %120 = vector.shape_cast %119 : vector<8xf32> to vector<8x1xf32>
    %cst_44 = arith.constant 3.200000e+01 : f32
    %121 = vector.broadcast %cst_44 : f32 to vector<8x1xf32>
    %122 = arith.divf %120, %121 : vector<8x1xf32>
    %123 = vector.broadcast %115 : vector<8x1xf32> to vector<8x32xf32>
    %124 = arith.subf %109, %123 : vector<8x32xf32>
    %cst_45 = arith.constant 9.99999996E-13 : f32
    %125 = vector.broadcast %cst_45 : f32 to vector<8x1xf32>
    %126 = arith.addf %122, %125 : vector<8x1xf32>
    %127 = math.rsqrt %126 : vector<8x1xf32>
    %128 = vector.broadcast %127 : vector<8x1xf32> to vector<8x32xf32>
    %129 = arith.mulf %124, %128 : vector<8x32xf32>
    %130 = vector.broadcast %110 : vector<1x32xf32> to vector<8x32xf32>
    %131 = arith.mulf %129, %130 : vector<8x32xf32>
    %132 = vector.broadcast %111 : vector<1x32xf32> to vector<8x32xf32>
    %133 = arith.addf %131, %132 : vector<8x32xf32>
    %134 = arith.truncf %133 : vector<8x32xf32> to vector<8x32xbf16>
    %c0_46 = arith.constant 0 : index
    %c0_47 = arith.constant 0 : index
    %135 = vector.load %arg9[%c0_46, %c0_47] : memref<32x64xbf16, #tpu.memory_space<vmem>>, vector<32x64xbf16>
    %cst_48 = arith.constant dense<0.000000e+00> : vector<8x64xf32>
    %136 = tpu.matmul %134, %135, %cst_48 {dimension_numbers = #tpu.dot_dimension_numbers<[1], [0], [0], [1], [0, 0, 1, 1], [], []>} : vector<8x32xbf16>, vector<32x64xbf16>, vector<8x64xf32> -> vector<8x64xf32>
    %c0_49 = arith.constant 0 : index
    %c0_50 = arith.constant 0 : index
    %137 = vector.load %arg10[%c0_49, %c0_50] : memref<1x64xf32, #tpu.memory_space<vmem>>, vector<1x64xf32>
    %138 = vector.broadcast %137 : vector<1x64xf32> to vector<8x64xf32>
    %139 = arith.addf %136, %138 : vector<8x64xf32>
    %140 = arith.mulf %139, %139 : vector<8x64xf32>
    %141 = arith.mulf %139, %140 : vector<8x64xf32>
    %cst_51 = arith.constant 4.471500e-02 : f32
    %142 = vector.broadcast %cst_51 : f32 to vector<8x64xf32>
    %143 = arith.mulf %142, %141 : vector<8x64xf32>
    %144 = arith.addf %139, %143 : vector<8x64xf32>
    %cst_52 = arith.constant 0.797884583 : f32
    %145 = vector.broadcast %cst_52 : f32 to vector<8x64xf32>
    %146 = arith.mulf %145, %144 : vector<8x64xf32>
    %147 = math.tanh %146 : vector<8x64xf32>
    %cst_53 = arith.constant 1.000000e+00 : f32
    %148 = vector.broadcast %cst_53 : f32 to vector<8x64xf32>
    %149 = arith.addf %148, %147 : vector<8x64xf32>
    %cst_54 = arith.constant 5.000000e-01 : f32
    %150 = vector.broadcast %cst_54 : f32 to vector<8x64xf32>
    %151 = arith.mulf %150, %149 : vector<8x64xf32>
    %152 = arith.mulf %139, %151 : vector<8x64xf32>
    %153 = arith.truncf %152 : vector<8x64xf32> to vector<8x64xbf16>
    %c0_55 = arith.constant 0 : index
    %c0_56 = arith.constant 0 : index
    %154 = vector.load %arg11[%c0_55, %c0_56] : memref<64x32xbf16, #tpu.memory_space<vmem>>, vector<64x32xbf16>
    %cst_57 = arith.constant dense<0.000000e+00> : vector<8x32xf32>
    %155 = tpu.matmul %153, %154, %cst_57 {dimension_numbers = #tpu.dot_dimension_numbers<[1], [0], [0], [1], [0, 0, 1, 1], [], []>} : vector<8x64xbf16>, vector<64x32xbf16>, vector<8x32xf32> -> vector<8x32xf32>
    %c0_58 = arith.constant 0 : index
    %c0_59 = arith.constant 0 : index
    %156 = vector.load %arg12[%c0_58, %c0_59] : memref<1x32xf32, #tpu.memory_space<vmem>>, vector<1x32xf32>
    %157 = vector.broadcast %156 : vector<1x32xf32> to vector<8x32xf32>
    %158 = arith.addf %155, %157 : vector<8x32xf32>
    %159 = arith.addf %133, %158 : vector<8x32xf32>
    %c0_60 = arith.constant 0 : index
    %c0_61 = arith.constant 0 : index
    %160 = vector.load %arg13[%c0_60, %c0_61] : memref<1x32xf32, #tpu.memory_space<vmem>>, vector<1x32xf32>
    %c0_62 = arith.constant 0 : index
    %c0_63 = arith.constant 0 : index
    %161 = vector.load %arg14[%c0_62, %c0_63] : memref<1x32xf32, #tpu.memory_space<vmem>>, vector<1x32xf32>
    %cst_64 = arith.constant dense<0.000000e+00> : vector<8xf32>
    %162 = vector.multi_reduction <add>, %159, %cst_64 [1] : vector<8x32xf32> to vector<8xf32>
    %163 = vector.shape_cast %162 : vector<8xf32> to vector<8x1xf32>
    %cst_65 = arith.constant 3.200000e+01 : f32
    %164 = vector.broadcast %cst_65 : f32 to vector<8x1xf32>
    %165 = arith.divf %163, %164 : vector<8x1xf32>
    %166 = vector.broadcast %165 : vector<8x1xf32> to vector<8x32xf32>
    %167 = arith.subf %159, %166 : vector<8x32xf32>
    %168 = arith.mulf %167, %167 : vector<8x32xf32>
    %cst_66 = arith.constant dense<0.000000e+00> : vector<8xf32>
    %169 = vector.multi_reduction <add>, %168, %cst_66 [1] : vector<8x32xf32> to vector<8xf32>
    %170 = vector.shape_cast %169 : vector<8xf32> to vector<8x1xf32>
    %cst_67 = arith.constant 3.200000e+01 : f32
    %171 = vector.broadcast %cst_67 : f32 to vector<8x1xf32>
    %172 = arith.divf %170, %171 : vector<8x1xf32>
    %173 = vector.broadcast %165 : vector<8x1xf32> to vector<8x32xf32>
    %174 = arith.subf %159, %173 : vector<8x32xf32>
    %cst_68 = arith.constant 9.99999996E-13 : f32
    %175 = vector.broadcast %cst_68 : f32 to vector<8x1xf32>
    %176 = arith.addf %172, %175 : vector<8x1xf32>
    %177 = math.rsqrt %176 : vector<8x1xf32>
    %178 = vector.broadcast %177 : vector<8x1xf32> to vector<8x32xf32>
    %179 = arith.mulf %174, %178 : vector<8x32xf32>
    %180 = vector.broadcast %160 : vector<1x32xf32> to vector<8x32xf32>
    %181 = arith.mulf %179, %180 : vector<8x32xf32>
    %182 = vector.broadcast %161 : vector<1x32xf32> to vector<8x32xf32>
    %183 = arith.addf %181, %182 : vector<8x32xf32>
    %cst_69 = arith.constant dense<0.000000e+00> : vector<32xf32>
    %184 = vector.multi_reduction <add>, %183, %cst_69 [0] : vector<8x32xf32> to vector<32xf32>
    %185 = vector.shape_cast %184 : vector<32xf32> to vector<1x32xf32>
    %cst_70 = arith.constant 8.000000e+00 : f32
    %186 = vector.broadcast %cst_70 : f32 to vector<1x32xf32>
    %187 = arith.divf %185, %186 : vector<1x32xf32>
    %c0_71 = arith.constant 0 : index
    %c0_72 = arith.constant 0 : index
    %c0_73 = arith.constant 0 : index
    %188 = vector.load %arg15[%c0_71, %c0_72, %c0_73] : memref<1x1x32xf32, #tpu.memory_space<vmem>>, vector<1x1x32xf32>
    %189 = vector.shape_cast %188 : vector<1x1x32xf32> to vector<1x32xf32>
    %190 = vector.shape_cast %187 : vector<1x32xf32> to vector<1x1x32xf32>
    tpu.vector_store %arg15[%c0_71, %c0_72, %c0_73], %190 {strides = array<i32>} : memref<1x1x32xf32, #tpu.memory_space<vmem>>, vector<1x1x32xf32>,
    return
  }
  func.func @transform_0(%arg0: i32) -> (i32, i32, i32) {
    %c0_i32 = arith.constant 0 : i32
    %c0_i32_0 = arith.constant 0 : i32
    %c0_i32_1 = arith.constant 0 : i32
    return %arg0, %c0_i32, %c0_i32_0 : i32, i32, i32
  }
  func.func @transform_1(%arg0: i32) -> (i32, i32, i32) {
    %c0_i32 = arith.constant 0 : i32
    %c0_i32_0 = arith.constant 0 : i32
    %c0_i32_1 = arith.constant 0 : i32
    return %arg0, %c0_i32, %c0_i32_0 : i32, i32, i32
  }
  func.func @transform_2(%arg0: i32) -> (i32, i32) {
    %c0_i32 = arith.constant 0 : i32
    %c0_i32_0 = arith.constant 0 : i32
    %c0_i32_1 = arith.constant 0 : i32
    return %c0_i32, %c0_i32_0 : i32, i32
  }
  func.func @transform_3(%arg0: i32) -> (i32, i32) {
    %c0_i32 = arith.constant 0 : i32
    %c0_i32_0 = arith.constant 0 : i32
    %c0_i32_1 = arith.constant 0 : i32
    return %c0_i32, %c0_i32_0 : i32, i32
  }
  func.func @transform_4(%arg0: i32) -> (i32, i32) {
    %c0_i32 = arith.constant 0 : i32
    %c0_i32_0 = arith.constant 0 : i32
    %c0_i32_1 = arith.constant 0 : i32
    return %c0_i32, %c0_i32_0 : i32, i32
  }
  func.func @transform_5(%arg0: i32) -> (i32, i32) {
    %c0_i32 = arith.constant 0 : i32
    %c0_i32_0 = arith.constant 0 : i32
    %c0_i32_1 = arith.constant 0 : i32
    return %c0_i32, %c0_i32_0 : i32, i32
  }
  func.func @transform_6(%arg0: i32) -> (i32, i32) {
    %c0_i32 = arith.constant 0 : i32
    %c0_i32_0 = arith.constant 0 : i32
    %c0_i32_1 = arith.constant 0 : i32
    return %c0_i32, %c0_i32_0 : i32, i32
  }
  func.func @transform_7(%arg0: i32) -> (i32, i32) {
    %c0_i32 = arith.constant 0 : i32
    %c0_i32_0 = arith.constant 0 : i32
    %c0_i32_1 = arith.constant 0 : i32
    return %c0_i32, %c0_i32_0 : i32, i32
  }
  func.func @transform_8(%arg0: i32) -> (i32, i32) {
    %c0_i32 = arith.constant 0 : i32
    %c0_i32_0 = arith.constant 0 : i32
    %c0_i32_1 = arith.constant 0 : i32
    return %c0_i32, %c0_i32_0 : i32, i32
  }
  func.func @transform_9(%arg0: i32) -> (i32, i32) {
    %c0_i32 = arith.constant 0 : i32
    %c0_i32_0 = arith.constant 0 : i32
    %c0_i32_1 = arith.constant 0 : i32
    return %c0_i32, %c0_i32_0 : i32, i32
  }
  func.func @transform_10(%arg0: i32) -> (i32, i32) {
    %c0_i32 = arith.constant 0 : i32
    %c0_i32_0 = arith.constant 0 : i32
    %c0_i32_1 = arith.constant 0 : i32
    return %c0_i32, %c0_i32_0 : i32, i32
  }
  func.func @transform_11(%arg0: i32) -> (i32, i32) {
    %c0_i32 = arith.constant 0 : i32
    %c0_i32_0 = arith.constant 0 : i32
    %c0_i32_1 = arith.constant 0 : i32
    return %c0_i32, %c0_i32_0 : i32, i32
  }
  func.func @transform_12(%arg0: i32) -> (i32, i32) {
    %c0_i32 = arith.constant 0 : i32
    %c0_i32_0 = arith.constant 0 : i32
    %c0_i32_1 = arith.constant 0 : i32
    return %c0_i32, %c0_i32_0 : i32, i32
  }
  func.func @transform_13(%arg0: i32) -> (i32, i32) {
    %c0_i32 = arith.constant 0 : i32
    %c0_i32_0 = arith.constant 0 : i32
    %c0_i32_1 = arith.constant 0 : i32
    return %c0_i32, %c0_i32_0 : i32, i32
  }
  func.func @transform_14(%arg0: i32) -> (i32, i32, i32) {
    %c0_i32 = arith.constant 0 : i32
    %c0_i32_0 = arith.constant 0 : i32
    %c0_i32_1 = arith.constant 0 : i32
    return %arg0, %c0_i32, %c0_i32_0 : i32, i32, i32
  }
}

module attributes {stable_mosaic.version = 11 : i64} {
  func.func @_pool_head_kernel(%arg0: memref<2x3x32xf32, #tpu.memory_space<vmem>>, %arg1: memref<32x1xf32, #tpu.memory_space<vmem>>, %arg2: memref<1x1xf32, #tpu.memory_space<vmem>>, %arg3: memref<2x1xf32, #tpu.memory_space<vmem>>) attributes {dimension_semantics = [], scalar_prefetch = 0 : i64, scratch_operands = 0 : i64, tpu.core_type = #tpu.core_type<tc>} {
    %c0 = arith.constant 0 : index
    %c0_0 = arith.constant 0 : index
    %c0_1 = arith.constant 0 : index
    %0 = vector.load %arg0[%c0, %c0_0, %c0_1] : memref<2x3x32xf32, #tpu.memory_space<vmem>>, vector<2x3x32xf32>
    %cst = arith.constant dense<0.000000e+00> : vector<2x32xf32>
    %1 = vector.multi_reduction <add>, %0, %cst [1] : vector<2x3x32xf32> to vector<2x32xf32>
    %cst_2 = arith.constant 3.000000e+00 : f32
    %2 = vector.broadcast %cst_2 : f32 to vector<2x32xf32>
    %3 = arith.divf %1, %2 : vector<2x32xf32>
    %c0_3 = arith.constant 0 : index
    %c0_4 = arith.constant 0 : index
    %4 = vector.load %arg1[%c0_3, %c0_4] : memref<32x1xf32, #tpu.memory_space<vmem>>, vector<32x1xf32>
    %cst_5 = arith.constant dense<0.000000e+00> : vector<2x1xf32>
    %5 = tpu.matmul %3, %4, %cst_5 {dimension_numbers = #tpu.dot_dimension_numbers<[1], [0], [0], [1], [0, 0, 1, 1], [], []>} : vector<2x32xf32>, vector<32x1xf32>, vector<2x1xf32> -> vector<2x1xf32>
    %c0_6 = arith.constant 0 : index
    %c0_7 = arith.constant 0 : index
    %6 = vector.load %arg2[%c0_6, %c0_7] : memref<1x1xf32, #tpu.memory_space<vmem>>, vector<1x1xf32>
    %7 = vector.broadcast %6 : vector<1x1xf32> to vector<2x1xf32>
    %8 = arith.addf %5, %7 : vector<2x1xf32>
    %9 = arith.negf %8 : vector<2x1xf32>
    %10 = math.exp %9 : vector<2x1xf32>
    %cst_8 = arith.constant 1.000000e+00 : f32
    %11 = vector.broadcast %cst_8 : f32 to vector<2x1xf32>
    %12 = arith.addf %11, %10 : vector<2x1xf32>
    %13 = arith.divf %11, %12 : vector<2x1xf32>
    %c0_9 = arith.constant 0 : index
    %c0_10 = arith.constant 0 : index
    %14 = vector.load %arg3[%c0_9, %c0_10] : memref<2x1xf32, #tpu.memory_space<vmem>>, vector<2x1xf32>
    tpu.vector_store %arg3[%c0_9, %c0_10], %13 {strides = array<i32>} : memref<2x1xf32, #tpu.memory_space<vmem>>, vector<2x1xf32>,
    return
  }
}

module attributes {stable_mosaic.version = 11 : i64} {
  func.func @_layernorm_kernel(%arg0: i32, %arg1: memref<16x32xf32, #tpu.memory_space<vmem>>, %arg2: memref<1x32xf32, #tpu.memory_space<vmem>>, %arg3: memref<1x32xf32, #tpu.memory_space<vmem>>, %arg4: memref<16x32xbf16, #tpu.memory_space<vmem>>) attributes {dimension_semantics = [#tpu.dimension_semantics<parallel>], iteration_bounds = array<i64: 3>, scalar_prefetch = 0 : i64, scratch_operands = 0 : i64, tpu.core_type = #tpu.core_type<tc>, window_params = [{transform_indices = @transform_0, window_bounds = array<i64: 16, 32>}, {pipeline_mode = #tpu.pipeline_mode<synchronous>, transform_indices = @transform_1, window_bounds = array<i64: 1, 32>}, {pipeline_mode = #tpu.pipeline_mode<synchronous>, transform_indices = @transform_2, window_bounds = array<i64: 1, 32>}, {transform_indices = @transform_3, window_bounds = array<i64: 16, 32>}]} {
    %c0 = arith.constant 0 : index
    %c0_0 = arith.constant 0 : index
    %0 = vector.load %arg1[%c0, %c0_0] : memref<16x32xf32, #tpu.memory_space<vmem>>, vector<16x32xf32>
    %cst = arith.constant dense<0.000000e+00> : vector<16xf32>
    %1 = vector.multi_reduction <add>, %0, %cst [1] : vector<16x32xf32> to vector<16xf32>
    %2 = vector.shape_cast %1 : vector<16xf32> to vector<16x1xf32>
    %cst_1 = arith.constant 3.200000e+01 : f32
    %3 = vector.broadcast %cst_1 : f32 to vector<16x1xf32>
    %4 = arith.divf %2, %3 : vector<16x1xf32>
    %5 = vector.broadcast %4 : vector<16x1xf32> to vector<16x32xf32>
    %6 = arith.subf %0, %5 : vector<16x32xf32>
    %7 = arith.mulf %6, %6 : vector<16x32xf32>
    %cst_2 = arith.constant dense<0.000000e+00> : vector<16xf32>
    %8 = vector.multi_reduction <add>, %7, %cst_2 [1] : vector<16x32xf32> to vector<16xf32>
    %9 = vector.shape_cast %8 : vector<16xf32> to vector<16x1xf32>
    %cst_3 = arith.constant 3.200000e+01 : f32
    %10 = vector.broadcast %cst_3 : f32 to vector<16x1xf32>
    %11 = arith.divf %9, %10 : vector<16x1xf32>
    %12 = vector.broadcast %4 : vector<16x1xf32> to vector<16x32xf32>
    %13 = arith.subf %0, %12 : vector<16x32xf32>
    %cst_4 = arith.constant 9.99999996E-13 : f32
    %14 = vector.broadcast %cst_4 : f32 to vector<16x1xf32>
    %15 = arith.addf %11, %14 : vector<16x1xf32>
    %16 = math.rsqrt %15 : vector<16x1xf32>
    %17 = vector.broadcast %16 : vector<16x1xf32> to vector<16x32xf32>
    %18 = arith.mulf %13, %17 : vector<16x32xf32>
    %c0_5 = arith.constant 0 : index
    %c0_6 = arith.constant 0 : index
    %19 = vector.load %arg2[%c0_5, %c0_6] : memref<1x32xf32, #tpu.memory_space<vmem>>, vector<1x32xf32>
    %20 = vector.broadcast %19 : vector<1x32xf32> to vector<16x32xf32>
    %21 = arith.mulf %18, %20 : vector<16x32xf32>
    %c0_7 = arith.constant 0 : index
    %c0_8 = arith.constant 0 : index
    %22 = vector.load %arg3[%c0_7, %c0_8] : memref<1x32xf32, #tpu.memory_space<vmem>>, vector<1x32xf32>
    %23 = vector.broadcast %22 : vector<1x32xf32> to vector<16x32xf32>
    %24 = arith.addf %21, %23 : vector<16x32xf32>
    %25 = arith.truncf %24 : vector<16x32xf32> to vector<16x32xbf16>
    %c0_9 = arith.constant 0 : index
    %c0_10 = arith.constant 0 : index
    %26 = vector.load %arg4[%c0_9, %c0_10] : memref<16x32xbf16, #tpu.memory_space<vmem>>, vector<16x32xbf16>
    tpu.vector_store %arg4[%c0_9, %c0_10], %25 {strides = array<i32>} : memref<16x32xbf16, #tpu.memory_space<vmem>>, vector<16x32xbf16>,
    return
  }
  func.func @transform_0(%arg0: i32) -> (i32, i32) {
    %c0_i32 = arith.constant 0 : i32
    %c0_i32_0 = arith.constant 0 : i32
    return %arg0, %c0_i32 : i32, i32
  }
  func.func @transform_1(%arg0: i32) -> (i32, i32) {
    %c0_i32 = arith.constant 0 : i32
    %c0_i32_0 = arith.constant 0 : i32
    %c0_i32_1 = arith.constant 0 : i32
    return %c0_i32, %c0_i32_0 : i32, i32
  }
  func.func @transform_2(%arg0: i32) -> (i32, i32) {
    %c0_i32 = arith.constant 0 : i32
    %c0_i32_0 = arith.constant 0 : i32
    %c0_i32_1 = arith.constant 0 : i32
    return %c0_i32, %c0_i32_0 : i32, i32
  }
  func.func @transform_3(%arg0: i32) -> (i32, i32) {
    %c0_i32 = arith.constant 0 : i32
    %c0_i32_0 = arith.constant 0 : i32
    return %arg0, %c0_i32 : i32, i32
  }
}

module attributes {stable_mosaic.version = 11 : i64} {
  func.func @_fused_layer_kernel(%arg0: i32, %arg1: memref<1x8x32xbf16, #tpu.memory_space<vmem>>, %arg2: memref<1x1x8xf32, #tpu.memory_space<vmem>>, %arg3: memref<32x96xbf16, #tpu.memory_space<vmem>>, %arg4: memref<1x96xf32, #tpu.memory_space<vmem>>, %arg5: memref<32x32xbf16, #tpu.memory_space<vmem>>, %arg6: memref<1x32xf32, #tpu.memory_space<vmem>>, %arg7: memref<1x32xf32, #tpu.memory_space<vmem>>, %arg8: memref<1x32xf32, #tpu.memory_space<vmem>>, %arg9: memref<32x64xbf16, #tpu.memory_space<vmem>>, %arg10: memref<1x64xf32, #tpu.memory_space<vmem>>, %arg11: memref<64x32xbf16, #tpu.memory_space<vmem>>, %arg12: memref<1x32xf32, #tpu.memory_space<vmem>>, %arg13: memref<1x32xf32, #tpu.memory_space<vmem>>, %arg14: memref<1x32xf32, #tpu.memory_space<vmem>>, %arg15: memref<1x8x32xbf16, #tpu.memory_space<vmem>>, %arg16: memref<8x32xf32, #tpu.memory_space<vmem>>) attributes {dimension_semantics = [#tpu.dimension_semantics<parallel>], iteration_bounds = array<i64: 6>, scalar_prefetch = 0 : i64, scratch_operands = 1 : i64, tpu.core_type = #tpu.core_type<tc>, window_params = [{transform_indices = @transform_0, window_bounds = array<i64: 1, 8, 32>}, {transform_indices = @transform_1, window_bounds = array<i64: 1, 1, 8>}, {pipeline_mode = #tpu.pipeline_mode<synchronous>, transform_indices = @transform_2, window_bounds = array<i64: 32, 96>}, {pipeline_mode = #tpu.pipeline_mode<synchronous>, transform_indices = @transform_3, window_bounds = array<i64: 1, 96>}, {pipeline_mode = #tpu.pipeline_mode<synchronous>, transform_indices = @transform_4, window_bounds = array<i64: 32, 32>}, {pipeline_mode = #tpu.pipeline_mode<synchronous>, transform_indices = @transform_5, window_bounds = array<i64: 1, 32>}, {pipeline_mode = #tpu.pipeline_mode<synchronous>, transform_indices = @transform_6, window_bounds = array<i64: 1, 32>}, {pipeline_mode = #tpu.pipeline_mode<synchronous>, transform_indices = @transform_7, window_bounds = array<i64: 1, 32>}, {pipeline_mode = #tpu.pipeline_mode<synchronous>, transform_indices = @transform_8, window_bounds = array<i64: 32, 64>}, {pipeline_mode = #tpu.pipeline_mode<synchronous>, transform_indices = @transform_9, window_bounds = array<i64: 1, 64>}, {pipeline_mode = #tpu.pipeline_mode<synchronous>, transform_indices = @transform_10, window_bounds = array<i64: 64, 32>}, {pipeline_mode = #tpu.pipeline_mode<synchronous>, transform_indices = @transform_11, window_bounds = array<i64: 1, 32>}, {pipeline_mode = #tpu.pipeline_mode<synchronous>, transform_indices = @transform_12, window_bounds = array<i64: 1, 32>}, {pipeline_mode = #tpu.pipeline_mode<synchronous>, transform_indices = @transform_13, window_bounds = array<i64: 1, 32>}, {transform_indices = @transform_14, window_bounds = array<i64: 1, 8, 32>}]} {
    %c0 = arith.constant 0 : index
    %c0_0 = arith.constant 0 : index
    %c0_1 = arith.constant 0 : index
    %0 = vector.load %arg1[%c0, %c0_0, %c0_1] : memref<1x8x32xbf16, #tpu.memory_space<vmem>>, vector<1x8x32xbf16>
    %1 = vector.shape_cast %0 : vector<1x8x32xbf16> to vector<8x32xbf16>
    %2 = arith.extf %1 : vector<8x32xbf16> to vector<8x32xf32>
    %c0_2 = arith.constant 0 : index
    %c0_3 = arith.constant 0 : index
    %3 = vector.load %arg3[%c0_2, %c0_3] : memref<32x96xbf16, #tpu.memory_space<vmem>>, vector<32x96xbf16>
    %cst = arith.constant dense<0.000000e+00> : vector<8x96xf32>
    %4 = tpu.matmul %1, %3, %cst {dimension_numbers = #tpu.dot_dimension_numbers<[1], [0], [0], [1], [0, 0, 1, 1], [], []>} : vector<8x32xbf16>, vector<32x96xbf16>, vector<8x96xf32> -> vector<8x96xf32>
    %c0_4 = arith.constant 0 : index
    %c0_5 = arith.constant 0 : index
    %5 = vector.load %arg4[%c0_4, %c0_5] : memref<1x96xf32, #tpu.memory_space<vmem>>, vector<1x96xf32>
    %6 = vector.broadcast %5 : vector<1x96xf32> to vector<8x96xf32>
    %7 = arith.addf %4, %6 : vector<8x96xf32>
    %c0_6 = arith.constant 0 : index
    %c0_7 = arith.constant 0 : index
    %c0_8 = arith.constant 0 : index
    %8 = vector.load %arg2[%c0_6, %c0_7, %c0_8] : memref<1x1x8xf32, #tpu.memory_space<vmem>>, vector<1x1x8xf32>
    %9 = vector.shape_cast %8 : vector<1x1x8xf32> to vector<1x8xf32>
    %10 = vector.extract_strided_slice %7 {offsets = [0, 0], sizes = [8, 8], strides = [1, 1]} : vector<8x96xf32> to vector<8x8xf32>
    %11 = arith.truncf %10 : vector<8x8xf32> to vector<8x8xbf16>
    %12 = vector.extract_strided_slice %7 {offsets = [0, 32], sizes = [8, 8], strides = [1, 1]} : vector<8x96xf32> to vector<8x8xf32>
    %13 = arith.truncf %12 : vector<8x8xf32> to vector<8x8xbf16>
    %14 = vector.extract_strided_slice %7 {offsets = [0, 64], sizes = [8, 8], strides = [1, 1]} : vector<8x96xf32> to vector<8x8xf32>
    %15 = arith.truncf %14 : vector<8x8xf32> to vector<8x8xbf16>
    %16 = tpu.transpose %13, [1, 0] : vector<8x8xbf16> -> vector<8x8xbf16>
    %cst_9 = arith.constant dense<0.000000e+00> : vector<8x8xf32>
    %17 = tpu.matmul %11, %16, %cst_9 {dimension_numbers = #tpu.dot_dimension_numbers<[1], [0], [0], [1], [0, 0, 1, 1], [], []>} : vector<8x8xbf16>, vector<8x8xbf16>, vector<8x8xf32> -> vector<8x8xf32>
    %18 = vector.broadcast %9 : vector<1x8xf32> to vector<8x8xf32>
    %19 = arith.addf %17, %18 : vector<8x8xf32>
    %cst_10 = arith.constant dense<0xFF800000> : vector<8xf32>
    %20 = vector.multi_reduction <maximumf>, %19, %cst_10 [1] : vector<8x8xf32> to vector<8xf32>
    %21 = vector.shape_cast %20 : vector<8xf32> to vector<8x1xf32>
    %22 = vector.broadcast %21 : vector<8x1xf32> to vector<8x8xf32>
    %23 = arith.subf %19, %22 : vector<8x8xf32>
    %24 = math.exp %23 : vector<8x8xf32>
    %cst_11 = arith.constant dense<0.000000e+00> : vector<8xf32>
    %25 = vector.multi_reduction <add>, %24, %cst_11 [1] : vector<8x8xf32> to vector<8xf32>
    %26 = vector.shape_cast %25 : vector<8xf32> to vector<8x1xf32>
    %27 = arith.truncf %24 : vector<8x8xf32> to vector<8x8xbf16>
    %cst_12 = arith.constant dense<0.000000e+00> : vector<8x8xf32>
    %28 = tpu.matmul %27, %15, %cst_12 {dimension_numbers = #tpu.dot_dimension_numbers<[1], [0], [0], [1], [0, 0, 1, 1], [], []>} : vector<8x8xbf16>, vector<8x8xbf16>, vector<8x8xf32> -> vector<8x8xf32>
    %29 = tpu.reciprocal %26 {approx = true} : vector<8x1xf32> -> vector<8x1xf32>
    %30 = vector.broadcast %29 : vector<8x1xf32> to vector<8x8xf32>
    %31 = arith.mulf %28, %30 : vector<8x8xf32>
    %c0_13 = arith.constant 0 : index
    %c0_14 = arith.constant 0 : index
    %32 = vector.load %arg16[%c0_13, %c0_14] : memref<8x32xf32, #tpu.memory_space<vmem>>, vector<8x8xf32>
    tpu.vector_store %arg16[%c0_13, %c0_14], %31 {strides = array<i32>} : memref<8x32xf32, #tpu.memory_space<vmem>>, vector<8x8xf32>,
    %33 = vector.extract_strided_slice %7 {offsets = [0, 8], sizes = [8, 8], strides = [1, 1]} : vector<8x96xf32> to vector<8x8xf32>
    %34 = arith.truncf %33 : vector<8x8xf32> to vector<8x8xbf16>
    %35 = vector.extract_strided_slice %7 {offsets = [0, 40], sizes = [8, 8], strides = [1, 1]} : vector<8x96xf32> to vector<8x8xf32>
    %36 = arith.truncf %35 : vector<8x8xf32> to vector<8x8xbf16>
    %37 = vector.extract_strided_slice %7 {offsets = [0, 72], sizes = [8, 8], strides = [1, 1]} : vector<8x96xf32> to vector<8x8xf32>
    %38 = arith.truncf %37 : vector<8x8xf32> to vector<8x8xbf16>
    %39 = tpu.transpose %36, [1, 0] : vector<8x8xbf16> -> vector<8x8xbf16>
    %cst_15 = arith.constant dense<0.000000e+00> : vector<8x8xf32>
    %40 = tpu.matmul %34, %39, %cst_15 {dimension_numbers = #tpu.dot_dimension_numbers<[1], [0], [0], [1], [0, 0, 1, 1], [], []>} : vector<8x8xbf16>, vector<8x8xbf16>, vector<8x8xf32> -> vector<8x8xf32>
    %41 = vector.broadcast %9 : vector<1x8xf32> to vector<8x8xf32>
    %42 = arith.addf %40, %41 : vector<8x8xf32>
    %cst_16 = arith.constant dense<0xFF800000> : vector<8xf32>
    %43 = vector.multi_reduction <maximumf>, %42, %cst_16 [1] : vector<8x8xf32> to vector<8xf32>
    %44 = vector.shape_cast %43 : vector<8xf32> to vector<8x1xf32>
    %45 = vector.broadcast %44 : vector<8x1xf32> to vector<8x8xf32>
    %46 = arith.subf %42, %45 : vector<8x8xf32>
    %47 = math.exp %46 : vector<8x8xf32>
    %cst_17 = arith.constant dense<0.000000e+00> : vector<8xf32>
    %48 = vector.multi_reduction <add>, %47, %cst_17 [1] : vector<8x8xf32> to vector<8xf32>
    %49 = vector.shape_cast %48 : vector<8xf32> to vector<8x1xf32>
    %50 = arith.truncf %47 : vector<8x8xf32> to vector<8x8xbf16>
    %cst_18 = arith.constant dense<0.000000e+00> : vector<8x8xf32>
    %51 = tpu.matmul %50, %38, %cst_18 {dimension_numbers = #tpu.dot_dimension_numbers<[1], [0], [0], [1], [0, 0, 1, 1], [], []>} : vector<8x8xbf16>, vector<8x8xbf16>, vector<8x8xf32> -> vector<8x8xf32>
    %52 = tpu.reciprocal %49 {approx = true} : vector<8x1xf32> -> vector<8x1xf32>
    %53 = vector.broadcast %52 : vector<8x1xf32> to vector<8x8xf32>
    %54 = arith.mulf %51, %53 : vector<8x8xf32>
    %c0_19 = arith.constant 0 : index
    %c8 = arith.constant 8 : index
    %55 = vector.load %arg16[%c0_19, %c8] : memref<8x32xf32, #tpu.memory_space<vmem>>, vector<8x8xf32>
    tpu.vector_store %arg16[%c0_19, %c8], %54 {strides = array<i32>} : memref<8x32xf32, #tpu.memory_space<vmem>>, vector<8x8xf32>,
    %56 = vector.extract_strided_slice %7 {offsets = [0, 16], sizes = [8, 8], strides = [1, 1]} : vector<8x96xf32> to vector<8x8xf32>
    %57 = arith.truncf %56 : vector<8x8xf32> to vector<8x8xbf16>
    %58 = vector.extract_strided_slice %7 {offsets = [0, 48], sizes = [8, 8], strides = [1, 1]} : vector<8x96xf32> to vector<8x8xf32>
    %59 = arith.truncf %58 : vector<8x8xf32> to vector<8x8xbf16>
    %60 = vector.extract_strided_slice %7 {offsets = [0, 80], sizes = [8, 8], strides = [1, 1]} : vector<8x96xf32> to vector<8x8xf32>
    %61 = arith.truncf %60 : vector<8x8xf32> to vector<8x8xbf16>
    %62 = tpu.transpose %59, [1, 0] : vector<8x8xbf16> -> vector<8x8xbf16>
    %cst_20 = arith.constant dense<0.000000e+00> : vector<8x8xf32>
    %63 = tpu.matmul %57, %62, %cst_20 {dimension_numbers = #tpu.dot_dimension_numbers<[1], [0], [0], [1], [0, 0, 1, 1], [], []>} : vector<8x8xbf16>, vector<8x8xbf16>, vector<8x8xf32> -> vector<8x8xf32>
    %64 = vector.broadcast %9 : vector<1x8xf32> to vector<8x8xf32>
    %65 = arith.addf %63, %64 : vector<8x8xf32>
    %cst_21 = arith.constant dense<0xFF800000> : vector<8xf32>
    %66 = vector.multi_reduction <maximumf>, %65, %cst_21 [1] : vector<8x8xf32> to vector<8xf32>
    %67 = vector.shape_cast %66 : vector<8xf32> to vector<8x1xf32>
    %68 = vector.broadcast %67 : vector<8x1xf32> to vector<8x8xf32>
    %69 = arith.subf %65, %68 : vector<8x8xf32>
    %70 = math.exp %69 : vector<8x8xf32>
    %cst_22 = arith.constant dense<0.000000e+00> : vector<8xf32>
    %71 = vector.multi_reduction <add>, %70, %cst_22 [1] : vector<8x8xf32> to vector<8xf32>
    %72 = vector.shape_cast %71 : vector<8xf32> to vector<8x1xf32>
    %73 = arith.truncf %70 : vector<8x8xf32> to vector<8x8xbf16>
    %cst_23 = arith.constant dense<0.000000e+00> : vector<8x8xf32>
    %74 = tpu.matmul %73, %61, %cst_23 {dimension_numbers = #tpu.dot_dimension_numbers<[1], [0], [0], [1], [0, 0, 1, 1], [], []>} : vector<8x8xbf16>, vector<8x8xbf16>, vector<8x8xf32> -> vector<8x8xf32>
    %75 = tpu.reciprocal %72 {approx = true} : vector<8x1xf32> -> vector<8x1xf32>
    %76 = vector.broadcast %75 : vector<8x1xf32> to vector<8x8xf32>
    %77 = arith.mulf %74, %76 : vector<8x8xf32>
    %c0_24 = arith.constant 0 : index
    %c16 = arith.constant 16 : index
    %78 = vector.load %arg16[%c0_24, %c16] : memref<8x32xf32, #tpu.memory_space<vmem>>, vector<8x8xf32>
    tpu.vector_store %arg16[%c0_24, %c16], %77 {strides = array<i32>} : memref<8x32xf32, #tpu.memory_space<vmem>>, vector<8x8xf32>,
    %79 = vector.extract_strided_slice %7 {offsets = [0, 24], sizes = [8, 8], strides = [1, 1]} : vector<8x96xf32> to vector<8x8xf32>
    %80 = arith.truncf %79 : vector<8x8xf32> to vector<8x8xbf16>
    %81 = vector.extract_strided_slice %7 {offsets = [0, 56], sizes = [8, 8], strides = [1, 1]} : vector<8x96xf32> to vector<8x8xf32>
    %82 = arith.truncf %81 : vector<8x8xf32> to vector<8x8xbf16>
    %83 = vector.extract_strided_slice %7 {offsets = [0, 88], sizes = [8, 8], strides = [1, 1]} : vector<8x96xf32> to vector<8x8xf32>
    %84 = arith.truncf %83 : vector<8x8xf32> to vector<8x8xbf16>
    %85 = tpu.transpose %82, [1, 0] : vector<8x8xbf16> -> vector<8x8xbf16>
    %cst_25 = arith.constant dense<0.000000e+00> : vector<8x8xf32>
    %86 = tpu.matmul %80, %85, %cst_25 {dimension_numbers = #tpu.dot_dimension_numbers<[1], [0], [0], [1], [0, 0, 1, 1], [], []>} : vector<8x8xbf16>, vector<8x8xbf16>, vector<8x8xf32> -> vector<8x8xf32>
    %87 = vector.broadcast %9 : vector<1x8xf32> to vector<8x8xf32>
    %88 = arith.addf %86, %87 : vector<8x8xf32>
    %cst_26 = arith.constant dense<0xFF800000> : vector<8xf32>
    %89 = vector.multi_reduction <maximumf>, %88, %cst_26 [1] : vector<8x8xf32> to vector<8xf32>
    %90 = vector.shape_cast %89 : vector<8xf32> to vector<8x1xf32>
    %91 = vector.broadcast %90 : vector<8x1xf32> to vector<8x8xf32>
    %92 = arith.subf %88, %91 : vector<8x8xf32>
    %93 = math.exp %92 : vector<8x8xf32>
    %cst_27 = arith.constant dense<0.000000e+00> : vector<8xf32>
    %94 = vector.multi_reduction <add>, %93, %cst_27 [1] : vector<8x8xf32> to vector<8xf32>
    %95 = vector.shape_cast %94 : vector<8xf32> to vector<8x1xf32>
    %96 = arith.truncf %93 : vector<8x8xf32> to vector<8x8xbf16>
    %cst_28 = arith.constant dense<0.000000e+00> : vector<8x8xf32>
    %97 = tpu.matmul %96, %84, %cst_28 {dimension_numbers = #tpu.dot_dimension_numbers<[1], [0], [0], [1], [0, 0, 1, 1], [], []>} : vector<8x8xbf16>, vector<8x8xbf16>, vector<8x8xf32> -> vector<8x8xf32>
    %98 = tpu.reciprocal %95 {approx = true} : vector<8x1xf32> -> vector<8x1xf32>
    %99 = vector.broadcast %98 : vector<8x1xf32> to vector<8x8xf32>
    %100 = arith.mulf %97, %99 : vector<8x8xf32>
    %c0_29 = arith.constant 0 : index
    %c24 = arith.constant 24 : index
    %101 = vector.load %arg16[%c0_29, %c24] : memref<8x32xf32, #tpu.memory_space<vmem>>, vector<8x8xf32>
    tpu.vector_store %arg16[%c0_29, %c24], %100 {strides = array<i32>} : memref<8x32xf32, #tpu.memory_space<vmem>>, vector<8x8xf32>,
    %c0_30 = arith.constant 0 : index
    %c0_31 = arith.constant 0 : index
    %102 = vector.load %arg16[%c0_30, %c0_31] : memref<8x32xf32, #tpu.memory_space<vmem>>, vector<8x32xf32>
    %103 = arith.truncf %102 : vector<8x32xf32> to vector<8x32xbf16>
    %c0_32 = arith.constant 0 : index
    %c0_33 = arith.constant 0 : index
    %104 = vector.load %arg5[%c0_32, %c0_33] : memref<32x32xbf16, #tpu.memory_space<vmem>>, vector<32x32xbf16>
    %cst_34 = arith.constant dense<0.000000e+00> : vector<8x32xf32>
    %105 = tpu.matmul %103, %104, %cst_34 {dimension_numbers = #tpu.dot_dimension_numbers<[1], [0], [0], [1], [0, 0, 1, 1], [], []>} : vector<8x32xbf16>, vector<32x32xbf16>, vector<8x32xf32> -> vector<8x32xf32>
    %c0_35 = arith.constant 0 : index
    %c0_36 = arith.constant 0 : index
    %106 = vector.load %arg6[%c0_35, %c0_36] : memref<1x32xf32, #tpu.memory_space<vmem>>, vector<1x32xf32>
    %107 = vector.broadcast %106 : vector<1x32xf32> to vector<8x32xf32>
    %108 = arith.addf %105, %107 : vector<8x32xf32>
    %109 = arith.addf %2, %108 : vector<8x32xf32>
    %c0_37 = arith.constant 0 : index
    %c0_38 = arith.constant 0 : index
    %110 = vector.load %arg7[%c0_37, %c0_38] : memref<1x32xf32, #tpu.memory_space<vmem>>, vector<1x32xf32>
    %c0_39 = arith.constant 0 : index
    %c0_40 = arith.constant 0 : index
    %111 = vector.load %arg8[%c0_39, %c0_40] : memref<1x32xf32, #tpu.memory_space<vmem>>, vector<1x32xf32>
    %cst_41 = arith.constant dense<0.000000e+00> : vector<8xf32>
    %112 = vector.multi_reduction <add>, %109, %cst_41 [1] : vector<8x32xf32> to vector<8xf32>
    %113 = vector.shape_cast %112 : vector<8xf32> to vector<8x1xf32>
    %cst_42 = arith.constant 3.200000e+01 : f32
    %114 = vector.broadcast %cst_42 : f32 to vector<8x1xf32>
    %115 = arith.divf %113, %114 : vector<8x1xf32>
    %116 = vector.broadcast %115 : vector<8x1xf32> to vector<8x32xf32>
    %117 = arith.subf %109, %116 : vector<8x32xf32>
    %118 = arith.mulf %117, %117 : vector<8x32xf32>
    %cst_43 = arith.constant dense<0.000000e+00> : vector<8xf32>
    %119 = vector.multi_reduction <add>, %118, %cst_43 [1] : vector<8x32xf32> to vector<8xf32>
    %120 = vector.shape_cast %119 : vector<8xf32> to vector<8x1xf32>
    %cst_44 = arith.constant 3.200000e+01 : f32
    %121 = vector.broadcast %cst_44 : f32 to vector<8x1xf32>
    %122 = arith.divf %120, %121 : vector<8x1xf32>
    %123 = vector.broadcast %115 : vector<8x1xf32> to vector<8x32xf32>
    %124 = arith.subf %109, %123 : vector<8x32xf32>
    %cst_45 = arith.constant 9.99999996E-13 : f32
    %125 = vector.broadcast %cst_45 : f32 to vector<8x1xf32>
    %126 = arith.addf %122, %125 : vector<8x1xf32>
    %127 = math.rsqrt %126 : vector<8x1xf32>
    %128 = vector.broadcast %127 : vector<8x1xf32> to vector<8x32xf32>
    %129 = arith.mulf %124, %128 : vector<8x32xf32>
    %130 = vector.broadcast %110 : vector<1x32xf32> to vector<8x32xf32>
    %131 = arith.mulf %129, %130 : vector<8x32xf32>
    %132 = vector.broadcast %111 : vector<1x32xf32> to vector<8x32xf32>
    %133 = arith.addf %131, %132 : vector<8x32xf32>
    %134 = arith.truncf %133 : vector<8x32xf32> to vector<8x32xbf16>
    %c0_46 = arith.constant 0 : index
    %c0_47 = arith.constant 0 : index
    %135 = vector.load %arg9[%c0_46, %c0_47] : memref<32x64xbf16, #tpu.memory_space<vmem>>, vector<32x64xbf16>
    %cst_48 = arith.constant dense<0.000000e+00> : vector<8x64xf32>
    %136 = tpu.matmul %134, %135, %cst_48 {dimension_numbers = #tpu.dot_dimension_numbers<[1], [0], [0], [1], [0, 0, 1, 1], [], []>} : vector<8x32xbf16>, vector<32x64xbf16>, vector<8x64xf32> -> vector<8x64xf32>
    %c0_49 = arith.constant 0 : index
    %c0_50 = arith.constant 0 : index
    %137 = vector.load %arg10[%c0_49, %c0_50] : memref<1x64xf32, #tpu.memory_space<vmem>>, vector<1x64xf32>
    %138 = vector.broadcast %137 : vector<1x64xf32> to vector<8x64xf32>
    %139 = arith.addf %136, %138 : vector<8x64xf32>
    %140 = arith.mulf %139, %139 : vector<8x64xf32>
    %141 = arith.mulf %139, %140 : vector<8x64xf32>
    %cst_51 = arith.constant 4.471500e-02 : f32
    %142 = vector.broadcast %cst_51 : f32 to vector<8x64xf32>
    %143 = arith.mulf %142, %141 : vector<8x64xf32>
    %144 = arith.addf %139, %143 : vector<8x64xf32>
    %cst_52 = arith.constant 0.797884583 : f32
    %145 = vector.broadcast %cst_52 : f32 to vector<8x64xf32>
    %146 = arith.mulf %145, %144 : vector<8x64xf32>
    %147 = math.tanh %146 : vector<8x64xf32>
    %cst_53 = arith.constant 1.000000e+00 : f32
    %148 = vector.broadcast %cst_53 : f32 to vector<8x64xf32>
    %149 = arith.addf %148, %147 : vector<8x64xf32>
    %cst_54 = arith.constant 5.000000e-01 : f32
    %150 = vector.broadcast %cst_54 : f32 to vector<8x64xf32>
    %151 = arith.mulf %150, %149 : vector<8x64xf32>
    %152 = arith.mulf %139, %151 : vector<8x64xf32>
    %153 = arith.truncf %152 : vector<8x64xf32> to vector<8x64xbf16>
    %c0_55 = arith.constant 0 : index
    %c0_56 = arith.constant 0 : index
    %154 = vector.load %arg11[%c0_55, %c0_56] : memref<64x32xbf16, #tpu.memory_space<vmem>>, vector<64x32xbf16>
    %cst_57 = arith.constant dense<0.000000e+00> : vector<8x32xf32>
    %155 = tpu.matmul %153, %154, %cst_57 {dimension_numbers = #tpu.dot_dimension_numbers<[1], [0], [0], [1], [0, 0, 1, 1], [], []>} : vector<8x64xbf16>, vector<64x32xbf16>, vector<8x32xf32> -> vector<8x32xf32>
    %c0_58 = arith.constant 0 : index
    %c0_59 = arith.constant 0 : index
    %156 = vector.load %arg12[%c0_58, %c0_59] : memref<1x32xf32, #tpu.memory_space<vmem>>, vector<1x32xf32>
    %157 = vector.broadcast %156 : vector<1x32xf32> to vector<8x32xf32>
    %158 = arith.addf %155, %157 : vector<8x32xf32>
    %159 = arith.addf %133, %158 : vector<8x32xf32>
    %c0_60 = arith.constant 0 : index
    %c0_61 = arith.constant 0 : index
    %160 = vector.load %arg13[%c0_60, %c0_61] : memref<1x32xf32, #tpu.memory_space<vmem>>, vector<1x32xf32>
    %c0_62 = arith.constant 0 : index
    %c0_63 = arith.constant 0 : index
    %161 = vector.load %arg14[%c0_62, %c0_63] : memref<1x32xf32, #tpu.memory_space<vmem>>, vector<1x32xf32>
    %cst_64 = arith.constant dense<0.000000e+00> : vector<8xf32>
    %162 = vector.multi_reduction <add>, %159, %cst_64 [1] : vector<8x32xf32> to vector<8xf32>
    %163 = vector.shape_cast %162 : vector<8xf32> to vector<8x1xf32>
    %cst_65 = arith.constant 3.200000e+01 : f32
    %164 = vector.broadcast %cst_65 : f32 to vector<8x1xf32>
    %165 = arith.divf %163, %164 : vector<8x1xf32>
    %166 = vector.broadcast %165 : vector<8x1xf32> to vector<8x32xf32>
    %167 = arith.subf %159, %166 : vector<8x32xf32>
    %168 = arith.mulf %167, %167 : vector<8x32xf32>
    %cst_66 = arith.constant dense<0.000000e+00> : vector<8xf32>
    %169 = vector.multi_reduction <add>, %168, %cst_66 [1] : vector<8x32xf32> to vector<8xf32>
    %170 = vector.shape_cast %169 : vector<8xf32> to vector<8x1xf32>
    %cst_67 = arith.constant 3.200000e+01 : f32
    %171 = vector.broadcast %cst_67 : f32 to vector<8x1xf32>
    %172 = arith.divf %170, %171 : vector<8x1xf32>
    %173 = vector.broadcast %165 : vector<8x1xf32> to vector<8x32xf32>
    %174 = arith.subf %159, %173 : vector<8x32xf32>
    %cst_68 = arith.constant 9.99999996E-13 : f32
    %175 = vector.broadcast %cst_68 : f32 to vector<8x1xf32>
    %176 = arith.addf %172, %175 : vector<8x1xf32>
    %177 = math.rsqrt %176 : vector<8x1xf32>
    %178 = vector.broadcast %177 : vector<8x1xf32> to vector<8x32xf32>
    %179 = arith.mulf %174, %178 : vector<8x32xf32>
    %180 = vector.broadcast %160 : vector<1x32xf32> to vector<8x32xf32>
    %181 = arith.mulf %179, %180 : vector<8x32xf32>
    %182 = vector.broadcast %161 : vector<1x32xf32> to vector<8x32xf32>
    %183 = arith.addf %181, %182 : vector<8x32xf32>
    %184 = arith.truncf %183 : vector<8x32xf32> to vector<8x32xbf16>
    %c0_69 = arith.constant 0 : index
    %c0_70 = arith.constant 0 : index
    %c0_71 = arith.constant 0 : index
    %185 = vector.load %arg15[%c0_69, %c0_70, %c0_71] : memref<1x8x32xbf16, #tpu.memory_space<vmem>>, vector<1x8x32xbf16>
    %186 = vector.shape_cast %185 : vector<1x8x32xbf16> to vector<8x32xbf16>
    %187 = vector.shape_cast %184 : vector<8x32xbf16> to vector<1x8x32xbf16>
    tpu.vector_store %arg15[%c0_69, %c0_70, %c0_71], %187 {strides = array<i32>} : memref<1x8x32xbf16, #tpu.memory_space<vmem>>, vector<1x8x32xbf16>,
    return
  }
  func.func @transform_0(%arg0: i32) -> (i32, i32, i32) {
    %c0_i32 = arith.constant 0 : i32
    %c0_i32_0 = arith.constant 0 : i32
    %c0_i32_1 = arith.constant 0 : i32
    return %arg0, %c0_i32, %c0_i32_0 : i32, i32, i32
  }
  func.func @transform_1(%arg0: i32) -> (i32, i32, i32) {
    %c0_i32 = arith.constant 0 : i32
    %c0_i32_0 = arith.constant 0 : i32
    %c0_i32_1 = arith.constant 0 : i32
    return %arg0, %c0_i32, %c0_i32_0 : i32, i32, i32
  }
  func.func @transform_2(%arg0: i32) -> (i32, i32) {
    %c0_i32 = arith.constant 0 : i32
    %c0_i32_0 = arith.constant 0 : i32
    %c0_i32_1 = arith.constant 0 : i32
    return %c0_i32, %c0_i32_0 : i32, i32
  }
  func.func @transform_3(%arg0: i32) -> (i32, i32) {
    %c0_i32 = arith.constant 0 : i32
    %c0_i32_0 = arith.constant 0 : i32
    %c0_i32_1 = arith.constant 0 : i32
    return %c0_i32, %c0_i32_0 : i32, i32
  }
  func.func @transform_4(%arg0: i32) -> (i32, i32) {
    %c0_i32 = arith.constant 0 : i32
    %c0_i32_0 = arith.constant 0 : i32
    %c0_i32_1 = arith.constant 0 : i32
    return %c0_i32, %c0_i32_0 : i32, i32
  }
  func.func @transform_5(%arg0: i32) -> (i32, i32) {
    %c0_i32 = arith.constant 0 : i32
    %c0_i32_0 = arith.constant 0 : i32
    %c0_i32_1 = arith.constant 0 : i32
    return %c0_i32, %c0_i32_0 : i32, i32
  }
  func.func @transform_6(%arg0: i32) -> (i32, i32) {
    %c0_i32 = arith.constant 0 : i32
    %c0_i32_0 = arith.constant 0 : i32
    %c0_i32_1 = arith.constant 0 : i32
    return %c0_i32, %c0_i32_0 : i32, i32
  }
  func.func @transform_7(%arg0: i32) -> (i32, i32) {
    %c0_i32 = arith.constant 0 : i32
    %c0_i32_0 = arith.constant 0 : i32
    %c0_i32_1 = arith.constant 0 : i32
    return %c0_i32, %c0_i32_0 : i32, i32
  }
  func.func @transform_8(%arg0: i32) -> (i32, i32) {
    %c0_i32 = arith.constant 0 : i32
    %c0_i32_0 = arith.constant 0 : i32
    %c0_i32_1 = arith.constant 0 : i32
    return %c0_i32, %c0_i32_0 : i32, i32
  }
  func.func @transform_9(%arg0: i32) -> (i32, i32) {
    %c0_i32 = arith.constant 0 : i32
    %c0_i32_0 = arith.constant 0 : i32
    %c0_i32_1 = arith.constant 0 : i32
    return %c0_i32, %c0_i32_0 : i32, i32
  }
  func.func @transform_10(%arg0: i32) -> (i32, i32) {
    %c0_i32 = arith.constant 0 : i32
    %c0_i32_0 = arith.constant 0 : i32
    %c0_i32_1 = arith.constant 0 : i32
    return %c0_i32, %c0_i32_0 : i32, i32
  }
  func.func @transform_11(%arg0: i32) -> (i32, i32) {
    %c0_i32 = arith.constant 0 : i32
    %c0_i32_0 = arith.constant 0 : i32
    %c0_i32_1 = arith.constant 0 : i32
    return %c0_i32, %c0_i32_0 : i32, i32
  }
  func.func @transform_12(%arg0: i32) -> (i32, i32) {
    %c0_i32 = arith.constant 0 : i32
    %c0_i32_0 = arith.constant 0 : i32
    %c0_i32_1 = arith.constant 0 : i32
    return %c0_i32, %c0_i32_0 : i32, i32
  }
  func.func @transform_13(%arg0: i32) -> (i32, i32) {
    %c0_i32 = arith.constant 0 : i32
    %c0_i32_0 = arith.constant 0 : i32
    %c0_i32_1 = arith.constant 0 : i32
    return %c0_i32, %c0_i32_0 : i32, i32
  }
  func.func @transform_14(%arg0: i32) -> (i32, i32, i32) {
    %c0_i32 = arith.constant 0 : i32
    %c0_i32_0 = arith.constant 0 : i32
    %c0_i32_1 = arith.constant 0 : i32
    return %arg0, %c0_i32, %c0_i32_0 : i32, i32, i32
  }
}

module attributes {stable_mosaic.version = 11 : i64} {
  func.func @_fused_layer_kernel(%arg0: i32, %arg1: memref<1x8x32xbf16, #tpu.memory_space<vmem>>, %arg2: memref<1x1x8xf32, #tpu.memory_space<vmem>>, %arg3: memref<32x96xbf16, #tpu.memory_space<vmem>>, %arg4: memref<1x96xf32, #tpu.memory_space<vmem>>, %arg5: memref<32x32xbf16, #tpu.memory_space<vmem>>, %arg6: memref<1x32xf32, #tpu.memory_space<vmem>>, %arg7: memref<1x32xf32, #tpu.memory_space<vmem>>, %arg8: memref<1x32xf32, #tpu.memory_space<vmem>>, %arg9: memref<32x64xbf16, #tpu.memory_space<vmem>>, %arg10: memref<1x64xf32, #tpu.memory_space<vmem>>, %arg11: memref<64x32xbf16, #tpu.memory_space<vmem>>, %arg12: memref<1x32xf32, #tpu.memory_space<vmem>>, %arg13: memref<1x32xf32, #tpu.memory_space<vmem>>, %arg14: memref<1x32xf32, #tpu.memory_space<vmem>>, %arg15: memref<1x1x32xf32, #tpu.memory_space<vmem>>, %arg16: memref<8x32xf32, #tpu.memory_space<vmem>>) attributes {dimension_semantics = [#tpu.dimension_semantics<parallel>], iteration_bounds = array<i64: 6>, scalar_prefetch = 0 : i64, scratch_operands = 1 : i64, tpu.core_type = #tpu.core_type<tc>, window_params = [{transform_indices = @transform_0, window_bounds = array<i64: 1, 8, 32>}, {transform_indices = @transform_1, window_bounds = array<i64: 1, 1, 8>}, {pipeline_mode = #tpu.pipeline_mode<synchronous>, transform_indices = @transform_2, window_bounds = array<i64: 32, 96>}, {pipeline_mode = #tpu.pipeline_mode<synchronous>, transform_indices = @transform_3, window_bounds = array<i64: 1, 96>}, {pipeline_mode = #tpu.pipeline_mode<synchronous>, transform_indices = @transform_4, window_bounds = array<i64: 32, 32>}, {pipeline_mode = #tpu.pipeline_mode<synchronous>, transform_indices = @transform_5, window_bounds = array<i64: 1, 32>}, {pipeline_mode = #tpu.pipeline_mode<synchronous>, transform_indices = @transform_6, window_bounds = array<i64: 1, 32>}, {pipeline_mode = #tpu.pipeline_mode<synchronous>, transform_indices = @transform_7, window_bounds = array<i64: 1, 32>}, {pipeline_mode = #tpu.pipeline_mode<synchronous>, transform_indices = @transform_8, window_bounds = array<i64: 32, 64>}, {pipeline_mode = #tpu.pipeline_mode<synchronous>, transform_indices = @transform_9, window_bounds = array<i64: 1, 64>}, {pipeline_mode = #tpu.pipeline_mode<synchronous>, transform_indices = @transform_10, window_bounds = array<i64: 64, 32>}, {pipeline_mode = #tpu.pipeline_mode<synchronous>, transform_indices = @transform_11, window_bounds = array<i64: 1, 32>}, {pipeline_mode = #tpu.pipeline_mode<synchronous>, transform_indices = @transform_12, window_bounds = array<i64: 1, 32>}, {pipeline_mode = #tpu.pipeline_mode<synchronous>, transform_indices = @transform_13, window_bounds = array<i64: 1, 32>}, {transform_indices = @transform_14, window_bounds = array<i64: 1, 1, 32>}]} {
    %c0 = arith.constant 0 : index
    %c0_0 = arith.constant 0 : index
    %c0_1 = arith.constant 0 : index
    %0 = vector.load %arg1[%c0, %c0_0, %c0_1] : memref<1x8x32xbf16, #tpu.memory_space<vmem>>, vector<1x8x32xbf16>
    %1 = vector.shape_cast %0 : vector<1x8x32xbf16> to vector<8x32xbf16>
    %2 = arith.extf %1 : vector<8x32xbf16> to vector<8x32xf32>
    %c0_2 = arith.constant 0 : index
    %c0_3 = arith.constant 0 : index
    %3 = vector.load %arg3[%c0_2, %c0_3] : memref<32x96xbf16, #tpu.memory_space<vmem>>, vector<32x96xbf16>
    %cst = arith.constant dense<0.000000e+00> : vector<8x96xf32>
    %4 = tpu.matmul %1, %3, %cst {dimension_numbers = #tpu.dot_dimension_numbers<[1], [0], [0], [1], [0, 0, 1, 1], [], []>} : vector<8x32xbf16>, vector<32x96xbf16>, vector<8x96xf32> -> vector<8x96xf32>
    %c0_4 = arith.constant 0 : index
    %c0_5 = arith.constant 0 : index
    %5 = vector.load %arg4[%c0_4, %c0_5] : memref<1x96xf32, #tpu.memory_space<vmem>>, vector<1x96xf32>
    %6 = vector.broadcast %5 : vector<1x96xf32> to vector<8x96xf32>
    %7 = arith.addf %4, %6 : vector<8x96xf32>
    %c0_6 = arith.constant 0 : index
    %c0_7 = arith.constant 0 : index
    %c0_8 = arith.constant 0 : index
    %8 = vector.load %arg2[%c0_6, %c0_7, %c0_8] : memref<1x1x8xf32, #tpu.memory_space<vmem>>, vector<1x1x8xf32>
    %9 = vector.shape_cast %8 : vector<1x1x8xf32> to vector<1x8xf32>
    %10 = vector.extract_strided_slice %7 {offsets = [0, 0], sizes = [8, 8], strides = [1, 1]} : vector<8x96xf32> to vector<8x8xf32>
    %11 = arith.truncf %10 : vector<8x8xf32> to vector<8x8xbf16>
    %12 = vector.extract_strided_slice %7 {offsets = [0, 32], sizes = [8, 8], strides = [1, 1]} : vector<8x96xf32> to vector<8x8xf32>
    %13 = arith.truncf %12 : vector<8x8xf32> to vector<8x8xbf16>
    %14 = vector.extract_strided_slice %7 {offsets = [0, 64], sizes = [8, 8], strides = [1, 1]} : vector<8x96xf32> to vector<8x8xf32>
    %15 = arith.truncf %14 : vector<8x8xf32> to vector<8x8xbf16>
    %16 = tpu.transpose %13, [1, 0] : vector<8x8xbf16> -> vector<8x8xbf16>
    %cst_9 = arith.constant dense<0.000000e+00> : vector<8x8xf32>
    %17 = tpu.matmul %11, %16, %cst_9 {dimension_numbers = #tpu.dot_dimension_numbers<[1], [0], [0], [1], [0, 0, 1, 1], [], []>} : vector<8x8xbf16>, vector<8x8xbf16>, vector<8x8xf32> -> vector<8x8xf32>
    %18 = vector.broadcast %9 : vector<1x8xf32> to vector<8x8xf32>
    %19 = arith.addf %17, %18 : vector<8x8xf32>
    %cst_10 = arith.constant dense<0xFF800000> : vector<8xf32>
    %20 = vector.multi_reduction <maximumf>, %19, %cst_10 [1] : vector<8x8xf32> to vector<8xf32>
    %21 = vector.shape_cast %20 : vector<8xf32> to vector<8x1xf32>
    %22 = vector.broadcast %21 : vector<8x1xf32> to vector<8x8xf32>
    %23 = arith.subf %19, %22 : vector<8x8xf32>
    %24 = math.exp %23 : vector<8x8xf32>
    %cst_11 = arith.constant dense<0.000000e+00> : vector<8xf32>
    %25 = vector.multi_reduction <add>, %24, %cst_11 [1] : vector<8x8xf32> to vector<8xf32>
    %26 = vector.shape_cast %25 : vector<8xf32> to vector<8x1xf32>
    %27 = arith.truncf %24 : vector<8x8xf32> to vector<8x8xbf16>
    %cst_12 = arith.constant dense<0.000000e+00> : vector<8x8xf32>
    %28 = tpu.matmul %27, %15, %cst_12 {dimension_numbers = #tpu.dot_dimension_numbers<[1], [0], [0], [1], [0, 0, 1, 1], [], []>} : vector<8x8xbf16>, vector<8x8xbf16>, vector<8x8xf32> -> vector<8x8xf32>
    %29 = tpu.reciprocal %26 {approx = true} : vector<8x1xf32> -> vector<8x1xf32>
    %30 = vector.broadcast %29 : vector<8x1xf32> to vector<8x8xf32>
    %31 = arith.mulf %28, %30 : vector<8x8xf32>
    %c0_13 = arith.constant 0 : index
    %c0_14 = arith.constant 0 : index
    %32 = vector.load %arg16[%c0_13, %c0_14] : memref<8x32xf32, #tpu.memory_space<vmem>>, vector<8x8xf32>
    tpu.vector_store %arg16[%c0_13, %c0_14], %31 {strides = array<i32>} : memref<8x32xf32, #tpu.memory_space<vmem>>, vector<8x8xf32>,
    %33 = vector.extract_strided_slice %7 {offsets = [0, 8], sizes = [8, 8], strides = [1, 1]} : vector<8x96xf32> to vector<8x8xf32>
    %34 = arith.truncf %33 : vector<8x8xf32> to vector<8x8xbf16>
    %35 = vector.extract_strided_slice %7 {offsets = [0, 40], sizes = [8, 8], strides = [1, 1]} : vector<8x96xf32> to vector<8x8xf32>
    %36 = arith.truncf %35 : vector<8x8xf32> to vector<8x8xbf16>
    %37 = vector.extract_strided_slice %7 {offsets = [0, 72], sizes = [8, 8], strides = [1, 1]} : vector<8x96xf32> to vector<8x8xf32>
    %38 = arith.truncf %37 : vector<8x8xf32> to vector<8x8xbf16>
    %39 = tpu.transpose %36, [1, 0] : vector<8x8xbf16> -> vector<8x8xbf16>
    %cst_15 = arith.constant dense<0.000000e+00> : vector<8x8xf32>
    %40 = tpu.matmul %34, %39, %cst_15 {dimension_numbers = #tpu.dot_dimension_numbers<[1], [0], [0], [1], [0, 0, 1, 1], [], []>} : vector<8x8xbf16>, vector<8x8xbf16>, vector<8x8xf32> -> vector<8x8xf32>
    %41 = vector.broadcast %9 : vector<1x8xf32> to vector<8x8xf32>
    %42 = arith.addf %40, %41 : vector<8x8xf32>
    %cst_16 = arith.constant dense<0xFF800000> : vector<8xf32>
    %43 = vector.multi_reduction <maximumf>, %42, %cst_16 [1] : vector<8x8xf32> to vector<8xf32>
    %44 = vector.shape_cast %43 : vector<8xf32> to vector<8x1xf32>
    %45 = vector.broadcast %44 : vector<8x1xf32> to vector<8x8xf32>
    %46 = arith.subf %42, %45 : vector<8x8xf32>
    %47 = math.exp %46 : vector<8x8xf32>
    %cst_17 = arith.constant dense<0.000000e+00> : vector<8xf32>
    %48 = vector.multi_reduction <add>, %47, %cst_17 [1] : vector<8x8xf32> to vector<8xf32>
    %49 = vector.shape_cast %48 : vector<8xf32> to vector<8x1xf32>
    %50 = arith.truncf %47 : vector<8x8xf32> to vector<8x8xbf16>
    %cst_18 = arith.constant dense<0.000000e+00> : vector<8x8xf32>
    %51 = tpu.matmul %50, %38, %cst_18 {dimension_numbers = #tpu.dot_dimension_numbers<[1], [0], [0], [1], [0, 0, 1, 1], [], []>} : vector<8x8xbf16>, vector<8x8xbf16>, vector<8x8xf32> -> vector<8x8xf32>
    %52 = tpu.reciprocal %49 {approx = true} : vector<8x1xf32> -> vector<8x1xf32>
    %53 = vector.broadcast %52 : vector<8x1xf32> to vector<8x8xf32>
    %54 = arith.mulf %51, %53 : vector<8x8xf32>
    %c0_19 = arith.constant 0 : index
    %c8 = arith.constant 8 : index
    %55 = vector.load %arg16[%c0_19, %c8] : memref<8x32xf32, #tpu.memory_space<vmem>>, vector<8x8xf32>
    tpu.vector_store %arg16[%c0_19, %c8], %54 {strides = array<i32>} : memref<8x32xf32, #tpu.memory_space<vmem>>, vector<8x8xf32>,
    %56 = vector.extract_strided_slice %7 {offsets = [0, 16], sizes = [8, 8], strides = [1, 1]} : vector<8x96xf32> to vector<8x8xf32>
    %57 = arith.truncf %56 : vector<8x8xf32> to vector<8x8xbf16>
    %58 = vector.extract_strided_slice %7 {offsets = [0, 48], sizes = [8, 8], strides = [1, 1]} : vector<8x96xf32> to vector<8x8xf32>
    %59 = arith.truncf %58 : vector<8x8xf32> to vector<8x8xbf16>
    %60 = vector.extract_strided_slice %7 {offsets = [0, 80], sizes = [8, 8], strides = [1, 1]} : vector<8x96xf32> to vector<8x8xf32>
    %61 = arith.truncf %60 : vector<8x8xf32> to vector<8x8xbf16>
    %62 = tpu.transpose %59, [1, 0] : vector<8x8xbf16> -> vector<8x8xbf16>
    %cst_20 = arith.constant dense<0.000000e+00> : vector<8x8xf32>
    %63 = tpu.matmul %57, %62, %cst_20 {dimension_numbers = #tpu.dot_dimension_numbers<[1], [0], [0], [1], [0, 0, 1, 1], [], []>} : vector<8x8xbf16>, vector<8x8xbf16>, vector<8x8xf32> -> vector<8x8xf32>
    %64 = vector.broadcast %9 : vector<1x8xf32> to vector<8x8xf32>
    %65 = arith.addf %63, %64 : vector<8x8xf32>
    %cst_21 = arith.constant dense<0xFF800000> : vector<8xf32>
    %66 = vector.multi_reduction <maximumf>, %65, %cst_21 [1] : vector<8x8xf32> to vector<8xf32>
    %67 = vector.shape_cast %66 : vector<8xf32> to vector<8x1xf32>
    %68 = vector.broadcast %67 : vector<8x1xf32> to vector<8x8xf32>
    %69 = arith.subf %65, %68 : vector<8x8xf32>
    %70 = math.exp %69 : vector<8x8xf32>
    %cst_22 = arith.constant dense<0.000000e+00> : vector<8xf32>
    %71 = vector.multi_reduction <add>, %70, %cst_22 [1] : vector<8x8xf32> to vector<8xf32>
    %72 = vector.shape_cast %71 : vector<8xf32> to vector<8x1xf32>
    %73 = arith.truncf %70 : vector<8x8xf32> to vector<8x8xbf16>
    %cst_23 = arith.constant dense<0.000000e+00> : vector<8x8xf32>
    %74 = tpu.matmul %73, %61, %cst_23 {dimension_numbers = #tpu.dot_dimension_numbers<[1], [0], [0], [1], [0, 0, 1, 1], [], []>} : vector<8x8xbf16>, vector<8x8xbf16>, vector<8x8xf32> -> vector<8x8xf32>
    %75 = tpu.reciprocal %72 {approx = true} : vector<8x1xf32> -> vector<8x1xf32>
    %76 = vector.broadcast %75 : vector<8x1xf32> to vector<8x8xf32>
    %77 = arith.mulf %74, %76 : vector<8x8xf32>
    %c0_24 = arith.constant 0 : index
    %c16 = arith.constant 16 : index
    %78 = vector.load %arg16[%c0_24, %c16] : memref<8x32xf32, #tpu.memory_space<vmem>>, vector<8x8xf32>
    tpu.vector_store %arg16[%c0_24, %c16], %77 {strides = array<i32>} : memref<8x32xf32, #tpu.memory_space<vmem>>, vector<8x8xf32>,
    %79 = vector.extract_strided_slice %7 {offsets = [0, 24], sizes = [8, 8], strides = [1, 1]} : vector<8x96xf32> to vector<8x8xf32>
    %80 = arith.truncf %79 : vector<8x8xf32> to vector<8x8xbf16>
    %81 = vector.extract_strided_slice %7 {offsets = [0, 56], sizes = [8, 8], strides = [1, 1]} : vector<8x96xf32> to vector<8x8xf32>
    %82 = arith.truncf %81 : vector<8x8xf32> to vector<8x8xbf16>
    %83 = vector.extract_strided_slice %7 {offsets = [0, 88], sizes = [8, 8], strides = [1, 1]} : vector<8x96xf32> to vector<8x8xf32>
    %84 = arith.truncf %83 : vector<8x8xf32> to vector<8x8xbf16>
    %85 = tpu.transpose %82, [1, 0] : vector<8x8xbf16> -> vector<8x8xbf16>
    %cst_25 = arith.constant dense<0.000000e+00> : vector<8x8xf32>
    %86 = tpu.matmul %80, %85, %cst_25 {dimension_numbers = #tpu.dot_dimension_numbers<[1], [0], [0], [1], [0, 0, 1, 1], [], []>} : vector<8x8xbf16>, vector<8x8xbf16>, vector<8x8xf32> -> vector<8x8xf32>
    %87 = vector.broadcast %9 : vector<1x8xf32> to vector<8x8xf32>
    %88 = arith.addf %86, %87 : vector<8x8xf32>
    %cst_26 = arith.constant dense<0xFF800000> : vector<8xf32>
    %89 = vector.multi_reduction <maximumf>, %88, %cst_26 [1] : vector<8x8xf32> to vector<8xf32>
    %90 = vector.shape_cast %89 : vector<8xf32> to vector<8x1xf32>
    %91 = vector.broadcast %90 : vector<8x1xf32> to vector<8x8xf32>
    %92 = arith.subf %88, %91 : vector<8x8xf32>
    %93 = math.exp %92 : vector<8x8xf32>
    %cst_27 = arith.constant dense<0.000000e+00> : vector<8xf32>
    %94 = vector.multi_reduction <add>, %93, %cst_27 [1] : vector<8x8xf32> to vector<8xf32>
    %95 = vector.shape_cast %94 : vector<8xf32> to vector<8x1xf32>
    %96 = arith.truncf %93 : vector<8x8xf32> to vector<8x8xbf16>
    %cst_28 = arith.constant dense<0.000000e+00> : vector<8x8xf32>
    %97 = tpu.matmul %96, %84, %cst_28 {dimension_numbers = #tpu.dot_dimension_numbers<[1], [0], [0], [1], [0, 0, 1, 1], [], []>} : vector<8x8xbf16>, vector<8x8xbf16>, vector<8x8xf32> -> vector<8x8xf32>
    %98 = tpu.reciprocal %95 {approx = true} : vector<8x1xf32> -> vector<8x1xf32>
    %99 = vector.broadcast %98 : vector<8x1xf32> to vector<8x8xf32>
    %100 = arith.mulf %97, %99 : vector<8x8xf32>
    %c0_29 = arith.constant 0 : index
    %c24 = arith.constant 24 : index
    %101 = vector.load %arg16[%c0_29, %c24] : memref<8x32xf32, #tpu.memory_space<vmem>>, vector<8x8xf32>
    tpu.vector_store %arg16[%c0_29, %c24], %100 {strides = array<i32>} : memref<8x32xf32, #tpu.memory_space<vmem>>, vector<8x8xf32>,
    %c0_30 = arith.constant 0 : index
    %c0_31 = arith.constant 0 : index
    %102 = vector.load %arg16[%c0_30, %c0_31] : memref<8x32xf32, #tpu.memory_space<vmem>>, vector<8x32xf32>
    %103 = arith.truncf %102 : vector<8x32xf32> to vector<8x32xbf16>
    %c0_32 = arith.constant 0 : index
    %c0_33 = arith.constant 0 : index
    %104 = vector.load %arg5[%c0_32, %c0_33] : memref<32x32xbf16, #tpu.memory_space<vmem>>, vector<32x32xbf16>
    %cst_34 = arith.constant dense<0.000000e+00> : vector<8x32xf32>
    %105 = tpu.matmul %103, %104, %cst_34 {dimension_numbers = #tpu.dot_dimension_numbers<[1], [0], [0], [1], [0, 0, 1, 1], [], []>} : vector<8x32xbf16>, vector<32x32xbf16>, vector<8x32xf32> -> vector<8x32xf32>
    %c0_35 = arith.constant 0 : index
    %c0_36 = arith.constant 0 : index
    %106 = vector.load %arg6[%c0_35, %c0_36] : memref<1x32xf32, #tpu.memory_space<vmem>>, vector<1x32xf32>
    %107 = vector.broadcast %106 : vector<1x32xf32> to vector<8x32xf32>
    %108 = arith.addf %105, %107 : vector<8x32xf32>
    %109 = arith.addf %2, %108 : vector<8x32xf32>
    %c0_37 = arith.constant 0 : index
    %c0_38 = arith.constant 0 : index
    %110 = vector.load %arg7[%c0_37, %c0_38] : memref<1x32xf32, #tpu.memory_space<vmem>>, vector<1x32xf32>
    %c0_39 = arith.constant 0 : index
    %c0_40 = arith.constant 0 : index
    %111 = vector.load %arg8[%c0_39, %c0_40] : memref<1x32xf32, #tpu.memory_space<vmem>>, vector<1x32xf32>
    %cst_41 = arith.constant dense<0.000000e+00> : vector<8xf32>
    %112 = vector.multi_reduction <add>, %109, %cst_41 [1] : vector<8x32xf32> to vector<8xf32>
    %113 = vector.shape_cast %112 : vector<8xf32> to vector<8x1xf32>
    %cst_42 = arith.constant 3.200000e+01 : f32
    %114 = vector.broadcast %cst_42 : f32 to vector<8x1xf32>
    %115 = arith.divf %113, %114 : vector<8x1xf32>
    %116 = vector.broadcast %115 : vector<8x1xf32> to vector<8x32xf32>
    %117 = arith.subf %109, %116 : vector<8x32xf32>
    %118 = arith.mulf %117, %117 : vector<8x32xf32>
    %cst_43 = arith.constant dense<0.000000e+00> : vector<8xf32>
    %119 = vector.multi_reduction <add>, %118, %cst_43 [1] : vector<8x32xf32> to vector<8xf32>
    %120 = vector.shape_cast %119 : vector<8xf32> to vector<8x1xf32>
    %cst_44 = arith.constant 3.200000e+01 : f32
    %121 = vector.broadcast %cst_44 : f32 to vector<8x1xf32>
    %122 = arith.divf %120, %121 : vector<8x1xf32>
    %123 = vector.broadcast %115 : vector<8x1xf32> to vector<8x32xf32>
    %124 = arith.subf %109, %123 : vector<8x32xf32>
    %cst_45 = arith.constant 9.99999996E-13 : f32
    %125 = vector.broadcast %cst_45 : f32 to vector<8x1xf32>
    %126 = arith.addf %122, %125 : vector<8x1xf32>
    %127 = math.rsqrt %126 : vector<8x1xf32>
    %128 = vector.broadcast %127 : vector<8x1xf32> to vector<8x32xf32>
    %129 = arith.mulf %124, %128 : vector<8x32xf32>
    %130 = vector.broadcast %110 : vector<1x32xf32> to vector<8x32xf32>
    %131 = arith.mulf %129, %130 : vector<8x32xf32>
    %132 = vector.broadcast %111 : vector<1x32xf32> to vector<8x32xf32>
    %133 = arith.addf %131, %132 : vector<8x32xf32>
    %134 = arith.truncf %133 : vector<8x32xf32> to vector<8x32xbf16>
    %c0_46 = arith.constant 0 : index
    %c0_47 = arith.constant 0 : index
    %135 = vector.load %arg9[%c0_46, %c0_47] : memref<32x64xbf16, #tpu.memory_space<vmem>>, vector<32x64xbf16>
    %cst_48 = arith.constant dense<0.000000e+00> : vector<8x64xf32>
    %136 = tpu.matmul %134, %135, %cst_48 {dimension_numbers = #tpu.dot_dimension_numbers<[1], [0], [0], [1], [0, 0, 1, 1], [], []>} : vector<8x32xbf16>, vector<32x64xbf16>, vector<8x64xf32> -> vector<8x64xf32>
    %c0_49 = arith.constant 0 : index
    %c0_50 = arith.constant 0 : index
    %137 = vector.load %arg10[%c0_49, %c0_50] : memref<1x64xf32, #tpu.memory_space<vmem>>, vector<1x64xf32>
    %138 = vector.broadcast %137 : vector<1x64xf32> to vector<8x64xf32>
    %139 = arith.addf %136, %138 : vector<8x64xf32>
    %140 = arith.mulf %139, %139 : vector<8x64xf32>
    %141 = arith.mulf %139, %140 : vector<8x64xf32>
    %cst_51 = arith.constant 4.471500e-02 : f32
    %142 = vector.broadcast %cst_51 : f32 to vector<8x64xf32>
    %143 = arith.mulf %142, %141 : vector<8x64xf32>
    %144 = arith.addf %139, %143 : vector<8x64xf32>
    %cst_52 = arith.constant 0.797884583 : f32
    %145 = vector.broadcast %cst_52 : f32 to vector<8x64xf32>
    %146 = arith.mulf %145, %144 : vector<8x64xf32>
    %147 = math.tanh %146 : vector<8x64xf32>
    %cst_53 = arith.constant 1.000000e+00 : f32
    %148 = vector.broadcast %cst_53 : f32 to vector<8x64xf32>
    %149 = arith.addf %148, %147 : vector<8x64xf32>
    %cst_54 = arith.constant 5.000000e-01 : f32
    %150 = vector.broadcast %cst_54 : f32 to vector<8x64xf32>
    %151 = arith.mulf %150, %149 : vector<8x64xf32>
    %152 = arith.mulf %139, %151 : vector<8x64xf32>
    %153 = arith.truncf %152 : vector<8x64xf32> to vector<8x64xbf16>
    %c0_55 = arith.constant 0 : index
    %c0_56 = arith.constant 0 : index
    %154 = vector.load %arg11[%c0_55, %c0_56] : memref<64x32xbf16, #tpu.memory_space<vmem>>, vector<64x32xbf16>
    %cst_57 = arith.constant dense<0.000000e+00> : vector<8x32xf32>
    %155 = tpu.matmul %153, %154, %cst_57 {dimension_numbers = #tpu.dot_dimension_numbers<[1], [0], [0], [1], [0, 0, 1, 1], [], []>} : vector<8x64xbf16>, vector<64x32xbf16>, vector<8x32xf32> -> vector<8x32xf32>
    %c0_58 = arith.constant 0 : index
    %c0_59 = arith.constant 0 : index
    %156 = vector.load %arg12[%c0_58, %c0_59] : memref<1x32xf32, #tpu.memory_space<vmem>>, vector<1x32xf32>
    %157 = vector.broadcast %156 : vector<1x32xf32> to vector<8x32xf32>
    %158 = arith.addf %155, %157 : vector<8x32xf32>
    %159 = arith.addf %133, %158 : vector<8x32xf32>
    %c0_60 = arith.constant 0 : index
    %c0_61 = arith.constant 0 : index
    %160 = vector.load %arg13[%c0_60, %c0_61] : memref<1x32xf32, #tpu.memory_space<vmem>>, vector<1x32xf32>
    %c0_62 = arith.constant 0 : index
    %c0_63 = arith.constant 0 : index
    %161 = vector.load %arg14[%c0_62, %c0_63] : memref<1x32xf32, #tpu.memory_space<vmem>>, vector<1x32xf32>
    %cst_64 = arith.constant dense<0.000000e+00> : vector<8xf32>
    %162 = vector.multi_reduction <add>, %159, %cst_64 [1] : vector<8x32xf32> to vector<8xf32>
    %163 = vector.shape_cast %162 : vector<8xf32> to vector<8x1xf32>
    %cst_65 = arith.constant 3.200000e+01 : f32
    %164 = vector.broadcast %cst_65 : f32 to vector<8x1xf32>
    %165 = arith.divf %163, %164 : vector<8x1xf32>
    %166 = vector.broadcast %165 : vector<8x1xf32> to vector<8x32xf32>
    %167 = arith.subf %159, %166 : vector<8x32xf32>
    %168 = arith.mulf %167, %167 : vector<8x32xf32>
    %cst_66 = arith.constant dense<0.000000e+00> : vector<8xf32>
    %169 = vector.multi_reduction <add>, %168, %cst_66 [1] : vector<8x32xf32> to vector<8xf32>
    %170 = vector.shape_cast %169 : vector<8xf32> to vector<8x1xf32>
    %cst_67 = arith.constant 3.200000e+01 : f32
    %171 = vector.broadcast %cst_67 : f32 to vector<8x1xf32>
    %172 = arith.divf %170, %171 : vector<8x1xf32>
    %173 = vector.broadcast %165 : vector<8x1xf32> to vector<8x32xf32>
    %174 = arith.subf %159, %173 : vector<8x32xf32>
    %cst_68 = arith.constant 9.99999996E-13 : f32
    %175 = vector.broadcast %cst_68 : f32 to vector<8x1xf32>
    %176 = arith.addf %172, %175 : vector<8x1xf32>
    %177 = math.rsqrt %176 : vector<8x1xf32>
    %178 = vector.broadcast %177 : vector<8x1xf32> to vector<8x32xf32>
    %179 = arith.mulf %174, %178 : vector<8x32xf32>
    %180 = vector.broadcast %160 : vector<1x32xf32> to vector<8x32xf32>
    %181 = arith.mulf %179, %180 : vector<8x32xf32>
    %182 = vector.broadcast %161 : vector<1x32xf32> to vector<8x32xf32>
    %183 = arith.addf %181, %182 : vector<8x32xf32>
    %cst_69 = arith.constant dense<0.000000e+00> : vector<32xf32>
    %184 = vector.multi_reduction <add>, %183, %cst_69 [0] : vector<8x32xf32> to vector<32xf32>
    %185 = vector.shape_cast %184 : vector<32xf32> to vector<1x32xf32>
    %cst_70 = arith.constant 8.000000e+00 : f32
    %186 = vector.broadcast %cst_70 : f32 to vector<1x32xf32>
    %187 = arith.divf %185, %186 : vector<1x32xf32>
    %c0_71 = arith.constant 0 : index
    %c0_72 = arith.constant 0 : index
    %c0_73 = arith.constant 0 : index
    %188 = vector.load %arg15[%c0_71, %c0_72, %c0_73] : memref<1x1x32xf32, #tpu.memory_space<vmem>>, vector<1x1x32xf32>
    %189 = vector.shape_cast %188 : vector<1x1x32xf32> to vector<1x32xf32>
    %190 = vector.shape_cast %187 : vector<1x32xf32> to vector<1x1x32xf32>
    tpu.vector_store %arg15[%c0_71, %c0_72, %c0_73], %190 {strides = array<i32>} : memref<1x1x32xf32, #tpu.memory_space<vmem>>, vector<1x1x32xf32>,
    return
  }
  func.func @transform_0(%arg0: i32) -> (i32, i32, i32) {
    %c0_i32 = arith.constant 0 : i32
    %c0_i32_0 = arith.constant 0 : i32
    %c0_i32_1 = arith.constant 0 : i32
    return %arg0, %c0_i32, %c0_i32_0 : i32, i32, i32
  }
  func.func @transform_1(%arg0: i32) -> (i32, i32, i32) {
    %c0_i32 = arith.constant 0 : i32
    %c0_i32_0 = arith.constant 0 : i32
    %c0_i32_1 = arith.constant 0 : i32
    return %arg0, %c0_i32, %c0_i32_0 : i32, i32, i32
  }
  func.func @transform_2(%arg0: i32) -> (i32, i32) {
    %c0_i32 = arith.constant 0 : i32
    %c0_i32_0 = arith.constant 0 : i32
    %c0_i32_1 = arith.constant 0 : i32
    return %c0_i32, %c0_i32_0 : i32, i32
  }
  func.func @transform_3(%arg0: i32) -> (i32, i32) {
    %c0_i32 = arith.constant 0 : i32
    %c0_i32_0 = arith.constant 0 : i32
    %c0_i32_1 = arith.constant 0 : i32
    return %c0_i32, %c0_i32_0 : i32, i32
  }
  func.func @transform_4(%arg0: i32) -> (i32, i32) {
    %c0_i32 = arith.constant 0 : i32
    %c0_i32_0 = arith.constant 0 : i32
    %c0_i32_1 = arith.constant 0 : i32
    return %c0_i32, %c0_i32_0 : i32, i32
  }
  func.func @transform_5(%arg0: i32) -> (i32, i32) {
    %c0_i32 = arith.constant 0 : i32
    %c0_i32_0 = arith.constant 0 : i32
    %c0_i32_1 = arith.constant 0 : i32
    return %c0_i32, %c0_i32_0 : i32, i32
  }
  func.func @transform_6(%arg0: i32) -> (i32, i32) {
    %c0_i32 = arith.constant 0 : i32
    %c0_i32_0 = arith.constant 0 : i32
    %c0_i32_1 = arith.constant 0 : i32
    return %c0_i32, %c0_i32_0 : i32, i32
  }
  func.func @transform_7(%arg0: i32) -> (i32, i32) {
    %c0_i32 = arith.constant 0 : i32
    %c0_i32_0 = arith.constant 0 : i32
    %c0_i32_1 = arith.constant 0 : i32
    return %c0_i32, %c0_i32_0 : i32, i32
  }
  func.func @transform_8(%arg0: i32) -> (i32, i32) {
    %c0_i32 = arith.constant 0 : i32
    %c0_i32_0 = arith.constant 0 : i32
    %c0_i32_1 = arith.constant 0 : i32
    return %c0_i32, %c0_i32_0 : i32, i32
  }
  func.func @transform_9(%arg0: i32) -> (i32, i32) {
    %c0_i32 = arith.constant 0 : i32
    %c0_i32_0 = arith.constant 0 : i32
    %c0_i32_1 = arith.constant 0 : i32
    return %c0_i32, %c0_i32_0 : i32, i32
  }
  func.func @transform_10(%arg0: i32) -> (i32, i32) {
    %c0_i32 = arith.constant 0 : i32
    %c0_i32_0 = arith.constant 0 : i32
    %c0_i32_1 = arith.constant 0 : i32
    return %c0_i32, %c0_i32_0 : i32, i32
  }
  func.func @transform_11(%arg0: i32) -> (i32, i32) {
    %c0_i32 = arith.constant 0 : i32
    %c0_i32_0 = arith.constant 0 : i32
    %c0_i32_1 = arith.constant 0 : i32
    return %c0_i32, %c0_i32_0 : i32, i32
  }
  func.func @transform_12(%arg0: i32) -> (i32, i32) {
    %c0_i32 = arith.constant 0 : i32
    %c0_i32_0 = arith.constant 0 : i32
    %c0_i32_1 = arith.constant 0 : i32
    return %c0_i32, %c0_i32_0 : i32, i32
  }
  func.func @transform_13(%arg0: i32) -> (i32, i32) {
    %c0_i32 = arith.constant 0 : i32
    %c0_i32_0 = arith.constant 0 : i32
    %c0_i32_1 = arith.constant 0 : i32
    return %c0_i32, %c0_i32_0 : i32, i32
  }
  func.func @transform_14(%arg0: i32) -> (i32, i32, i32) {
    %c0_i32 = arith.constant 0 : i32
    %c0_i32_0 = arith.constant 0 : i32
    %c0_i32_1 = arith.constant 0 : i32
    return %arg0, %c0_i32, %c0_i32_0 : i32, i32, i32
  }
}

module attributes {stable_mosaic.version = 11 : i64} {
  func.func @_pool_head_kernel(%arg0: memref<2x3x32xf32, #tpu.memory_space<vmem>>, %arg1: memref<32x1xf32, #tpu.memory_space<vmem>>, %arg2: memref<1x1xf32, #tpu.memory_space<vmem>>, %arg3: memref<2x1xf32, #tpu.memory_space<vmem>>) attributes {dimension_semantics = [], scalar_prefetch = 0 : i64, scratch_operands = 0 : i64, tpu.core_type = #tpu.core_type<tc>} {
    %c0 = arith.constant 0 : index
    %c0_0 = arith.constant 0 : index
    %c0_1 = arith.constant 0 : index
    %0 = vector.load %arg0[%c0, %c0_0, %c0_1] : memref<2x3x32xf32, #tpu.memory_space<vmem>>, vector<2x3x32xf32>
    %cst = arith.constant dense<0.000000e+00> : vector<2x32xf32>
    %1 = vector.multi_reduction <add>, %0, %cst [1] : vector<2x3x32xf32> to vector<2x32xf32>
    %cst_2 = arith.constant 3.000000e+00 : f32
    %2 = vector.broadcast %cst_2 : f32 to vector<2x32xf32>
    %3 = arith.divf %1, %2 : vector<2x32xf32>
    %c0_3 = arith.constant 0 : index
    %c0_4 = arith.constant 0 : index
    %4 = vector.load %arg1[%c0_3, %c0_4] : memref<32x1xf32, #tpu.memory_space<vmem>>, vector<32x1xf32>
    %cst_5 = arith.constant dense<0.000000e+00> : vector<2x1xf32>
    %5 = tpu.matmul %3, %4, %cst_5 {dimension_numbers = #tpu.dot_dimension_numbers<[1], [0], [0], [1], [0, 0, 1, 1], [], []>} : vector<2x32xf32>, vector<32x1xf32>, vector<2x1xf32> -> vector<2x1xf32>
    %c0_6 = arith.constant 0 : index
    %c0_7 = arith.constant 0 : index
    %6 = vector.load %arg2[%c0_6, %c0_7] : memref<1x1xf32, #tpu.memory_space<vmem>>, vector<1x1xf32>
    %7 = vector.broadcast %6 : vector<1x1xf32> to vector<2x1xf32>
    %8 = arith.addf %5, %7 : vector<2x1xf32>
    %9 = arith.negf %8 : vector<2x1xf32>
    %10 = math.exp %9 : vector<2x1xf32>
    %cst_8 = arith.constant 1.000000e+00 : f32
    %11 = vector.broadcast %cst_8 : f32 to vector<2x1xf32>
    %12 = arith.addf %11, %10 : vector<2x1xf32>
    %13 = arith.divf %11, %12 : vector<2x1xf32>
    %c0_9 = arith.constant 0 : index
    %c0_10 = arith.constant 0 : index
    %14 = vector.load %arg3[%c0_9, %c0_10] : memref<2x1xf32, #tpu.memory_space<vmem>>, vector<2x1xf32>
    tpu.vector_store %arg3[%c0_9, %c0_10], %13 {strides = array<i32>} : memref<2x1xf32, #tpu.memory_space<vmem>>, vector<2x1xf32>,
    return
  }
}

</mosaic_0001>

<llo_original>
// kernel: simplified_html_forward.4
$region0: #{simplified_html_forward.4}
  #allocation0 [shape = 'u32[]', space=smem, size = 0x4, offset = 0x4, fixed_abs, tag = 'smem constant byte address 0x4 - core index']
  #allocation1 [shape = 'u32[144,128]{1,0:T(1,128)}', space=vmem, size = 0x12000, scoped, tag = 'internal scratch']
  %s0 = inlined_call_operand.vmem [shape: f32[48,32], index: 0, kind: input, shape index: {}]
  %s1 = inlined_call_operand.vmem [shape: f32[1,32], index: 1, kind: input, shape index: {}]
  %s2 = inlined_call_operand.vmem [shape: f32[1,32], index: 2, kind: input, shape index: {}]
  %s3 = inlined_call_operand.vmem [shape: bf16[48,32], index: 3, kind: output, shape index: {}]
  %s4 = sld [smem:[#allocation0]]
  $region45: #{simplified_html_forward.4} parent=0
    _
  %s6 = ssub.s32 1, %s4
  %s7 = scalar_select 0, %s6, %s4
  loop: start=0, step=1, limit=5
  $region2: #{simplified_html_forward.4} parent=0 // loop_pre_header
    _
  $region3: #{simplified_html_forward.4} parent=0 // loop_header
    %s9 = sphi 0, %s13
    %p10 = scmp.ge.s32.totalorder %s9, 5
    %s19 = sphi 0, %s21
    %s22 = sphi 0, %s19
    %s23 = sphi 0, %s22
    %s39 = sphi 0, %s23
    %s43 = sphi 0, %s43
    %s45 = sphi 0, %s43
    %s46 = sphi 0, %s45
    %s60 = sphi 0, %s46
    %s64 = sphi 0, %s64
    %s66 = sphi 0, %s64
    %s67 = sphi 0, %s66
    %s81 = sphi 0, %s67
    %s87 = sphi 0, %s89
    %s90 = sphi 0, %s87
    %s91 = sphi 0, %s90
    %s107 = sphi 0, %s91
  $region4: #{simplified_html_forward.4} parent=0 // loop_header_branch
    %12 = sbr.rel (%p10) target = $region8
  $region5: #{simplified_html_forward.4} parent=0 // loop_body
    %s14 = ssub.s32 %s9, 1
    %s15 = ssub.s32 %s9, 2
    %s16 = sadd.s32 %s9, 1
    %s17 = ssub.s32 %s9, %s16
    %p18 = scmp.eq.s32.totalorder %s17, 0
    %s20 = sadd.s32 %s19, 1
    %s21 = scalar_select %p18, %s19, %s20
    %p24 = pneg %p18
    %p25 = scmp.eq.s32.totalorder %s9, 2
    %p26 = por %p24, %p25
    %p27 = scmp.ne.s32.totalorder %s19, %s22
    %p28 = scmp.eq.s32.totalorder %s9, 0
    %p29 = por %p27, %p28
    %p30 = scmp.ne.s32.totalorder %s19, %s22
    %p31 = scmp.eq.s32.totalorder %s14, 2
    %p32 = por %p30, %p31
    %p33 = scmp.ne.s32.totalorder %s22, %s23
    %p34 = scmp.eq.s32.totalorder %s14, 0
    %p35 = por %p33, %p34
    %p36 = scmp.ne.s32.totalorder %s22, %s23
    %p37 = scmp.eq.s32.totalorder %s15, 2
    %p38 = por %p36, %p37
    %p40 = scmp.ne.s32.totalorder %s23, %s39
    %p41 = scmp.eq.s32.totalorder %s15, 0
    %p42 = por %p40, %p41
    %s44 = sadd.s32 %s43, 1
    %p47 = scmp.eq.s32.totalorder %s9, 2
    %p48 = scmp.ne.s32.totalorder %s43, %s45
    %p49 = scmp.eq.s32.totalorder %s9, 0
    %p50 = por %p48, %p49
    %p51 = scmp.ne.s32.totalorder %s43, %s45
    %p52 = scmp.eq.s32.totalorder %s14, 2
    %p53 = por %p51, %p52
    %p54 = scmp.ne.s32.totalorder %s45, %s46
    %p55 = scmp.eq.s32.totalorder %s14, 0
    %p56 = por %p54, %p55
    %p57 = scmp.ne.s32.totalorder %s45, %s46
    %p58 = scmp.eq.s32.totalorder %s15, 2
    %p59 = por %p57, %p58
    %p61 = scmp.ne.s32.totalorder %s46, %s60
    %p62 = scmp.eq.s32.totalorder %s15, 0
    %p63 = por %p61, %p62
    %s65 = sadd.s32 %s64, 1
    %p68 = scmp.eq.s32.totalorder %s9, 2
    %p69 = scmp.ne.s32.totalorder %s64, %s66
    %p70 = scmp.eq.s32.totalorder %s9, 0
    %p71 = por %p69, %p70
    %p72 = scmp.ne.s32.totalorder %s64, %s66
    %p73 = scmp.eq.s32.totalorder %s14, 2
    %p74 = por %p72, %p73
    %p75 = scmp.ne.s32.totalorder %s66, %s67
    %p76 = scmp.eq.s32.totalorder %s14, 0
    %p77 = por %p75, %p76
    %p78 = scmp.ne.s32.totalorder %s66, %s67
    %p79 = scmp.eq.s32.totalorder %s15, 2
    %p80 = por %p78, %p79
    %p82 = scmp.ne.s32.totalorder %s67, %s81
    %p83 = scmp.eq.s32.totalorder %s15, 0
    %p84 = por %p82, %p83
    %s85 = ssub.s32 %s9, %s16
    %p86 = scmp.eq.s32.totalorder %s85, 0
    %s88 = sadd.s32 %s87, 1
    %s89 = scalar_select %p86, %s87, %s88
    %p92 = pneg %p86
    %p93 = scmp.eq.s32.totalorder %s9, 2
    %p94 = por %p92, %p93
    %p95 = scmp.ne.s32.totalorder %s87, %s90
    %p96 = scmp.eq.s32.totalorder %s9, 0
    %p97 = por %p95, %p96
    %p98 = scmp.ne.s32.totalorder %s87, %s90
    %p99 = scmp.eq.s32.totalorder %s14, 2
    %p100 = por %p98, %p99
    %p101 = scmp.ne.s32.totalorder %s90, %s91
    %p102 = scmp.eq.s32.totalorder %s14, 0
    %p103 = por %p101, %p102
    %p104 = scmp.ne.s32.totalorder %s90, %s91
    %p105 = scmp.eq.s32.totalorder %s15, 2
    %p106 = por %p104, %p105
    %p108 = scmp.ne.s32.totalorder %s91, %s107
    %p109 = scmp.eq.s32.totalorder %s15, 0
    %p110 = por %p108, %p109
    %p111 = scmp.le.s32.totalorder 1, %s9
    %p112 = scmp.lt.s32.totalorder %s9, 4
    %p113 = pnand %p111, %p112
    %p114 = pneg %p113
    // Predicated region
    $region9: #{simplified_html_forward.4} parent=5 // pred_check
      _
    $region10: #{simplified_html_forward.4} parent=5 // pred_check_branch
      %116 = sbr.rel (%p113) target = $region12
    $region11: #{simplified_html_forward.4} parent=5 // pred_region
      %s117 = ssub.s32 %s9, 1
      // Predicated region
      $region13: #{simplified_html_forward.4} parent=11 // pred_check
        %p118 = pneg %p56
      $region14: #{simplified_html_forward.4} parent=11 // pred_check_branch
        %120 = sbr.rel (%p118) target = $region16
      $region15: #{simplified_html_forward.4} parent=11 // pred_region
        _
      $region16: #{simplified_html_forward.4} parent=11 // pred_fallthru
        _
      // Predicated region
      $region17: #{simplified_html_forward.4} parent=11 // pred_check
        %p121 = pneg %p77
      $region18: #{simplified_html_forward.4} parent=11 // pred_check_branch
        %123 = sbr.rel (%p121) target = $region20
      $region19: #{simplified_html_forward.4} parent=11 // pred_region
        _
      $region20: #{simplified_html_forward.4} parent=11 // pred_fallthru
        _
    $region12: #{simplified_html_forward.4} parent=5 // pred_fallthru
      _
    %p124 = scmp.lt.s32.totalorder %s9, 3
    // Predicated region
    $region21: #{simplified_html_forward.4} parent=5 // pred_check
      %p125 = pneg %p124
    $region22: #{simplified_html_forward.4} parent=5 // pred_check_branch
      %127 = sbr.rel (%p125) target = $region24
    $region23: #{simplified_html_forward.4} parent=5 // pred_region
      // Predicated region
      $region25: #{simplified_html_forward.4} parent=23 // pred_check
        %p128 = pneg %p29
      $region26: #{simplified_html_forward.4} parent=23 // pred_check_branch
        %130 = sbr.rel (%p128) target = $region28
      $region27: #{simplified_html_forward.4} parent=23 // pred_region
        %s131 = smul.u32 2, %s9
        %p132 = scmp.lt.s32.totalorder %s131, 5
        %s133 = scalar_select %p132, %s131, 5
        %s134 = smul.addr %s133, 8
        %s135 = scalar_lea.vmem %s0, %s134
        %s136 = smul.u32 2, %s9
      $region28: #{simplified_html_forward.4} parent=23 // pred_fallthru
        _
    $region24: #{simplified_html_forward.4} parent=5 // pred_fallthru
      _
    %p137 = scmp.le.s32.totalorder 1, %s9
    %p138 = scmp.lt.s32.totalorder %s9, 4
    %p139 = pnand %p137, %p138
    %p140 = pneg %p139
    // Predicated region
    $region29: #{simplified_html_forward.4} parent=5 // pred_check
      _
    $region30: #{simplified_html_forward.4} parent=5 // pred_check_branch
      %142 = sbr.rel (%p139) target = $region32
    $region31: #{simplified_html_forward.4} parent=5 // pred_region
      %s143 = ssub.s32 %s9, 1
      %s144 = smul.u32 2, %s14
      %p145 = scmp.lt.s32.totalorder %s144, 5
      %s146 = scalar_select %p145, %s144, 5
      %s147 = smul.addr %s146, 8
      %s148 = scalar_lea.vmem %s0, %s147
      %p149 = pneg %p35
      %p150 = pneg %p32
      %p151 = pneg %p56
      %p152 = pneg %p53
      %p153 = pneg %p77
      %p154 = pneg %p74
      %p155 = pneg %p103
      %p156 = pneg %p100
      %s157 = smul.u32 2, %s14
      %p158 = scmp.lt.s32.totalorder %s157, 5
      %s159 = scalar_select %p158, %s157, 5
      %s160 = smul.addr %s159, 4
      %s161 = scalar_lea.vmem %s3, %s160
      %s162 = smul.u32 2, %s14
      %p163 = scmp.lt.s32.totalorder %s162, 5
      %s164 = scalar_select %p163, %s162, 5
      %s165 = smul.addr %s164, 8
      %s166 = scalar_lea.vmem %s0, %s165
      %s167 = smul.u32 2, %s14
      %s168 = smul.u32 2, %s14
      %p169 = scmp.lt.s32.totalorder %s168, 5
      %s170 = scalar_select %p169, %s168, 5
      %s171 = smul.addr %s170, 4
      %s172 = scalar_lea.vmem %s3, %s171
      %s173 = smul.u32 2, %s14
      %v174 = vld [vmem:[%s166] sm:$0xff]
      %v175 = vld [vmem:[%s166 + $0x8] sm:$0xff]
      %vm176 = vcmask 261120
      %v177 = vsel %vm176, %v174, 0.0
      %178 = vadd.xlane.f32.xlu0 %v177
      %v179 = vpop.xlane.xlu0 %178
      %v180 = vsel %vm176, %v175, 0.0
      %181 = vadd.xlane.f32.xlu0 %v180
      %v182 = vpop.xlane.xlu0 %181
      %v183 = vrcp.pop 32.0
      %v184 = vmul.f32 %v179, %v183
      %v185 = vmul.f32 %v182, %v183
      %v186 = vsub.f32 %v174, %v184
      %v187 = vsub.f32 %v175, %v185
      %v188 = vmul.f32 %v186, %v186
      %v189 = vmul.f32 %v187, %v187
      %v190 = vsel %vm176, %v188, 0.0
      %191 = vadd.xlane.f32.xlu0 %v190
      %v192 = vpop.xlane.xlu0 %191
      %v193 = vsel %vm176, %v189, 0.0
      %194 = vadd.xlane.f32.xlu0 %v193
      %v195 = vpop.xlane.xlu0 %194
      %v196 = vmul.f32 %v192, %v183
      %v197 = vmul.f32 %v195, %v183
      %v198 = vadd.f32 %v196, 1e-12
      %v199 = vadd.f32 %v197, 1e-12
      %v200 = vrsqrt.pop %v198
      %v201 = vrsqrt.pop %v199
      %v202 = vmul.f32 %v186, %v200
      %v203 = vmul.f32 %v187, %v201
      %v204 = vld [vmem:[%s1] sm:$0x1]
      %v206 = vlaneseq
      %v207 = vshrl.u32 %v206, 7
      %v208 = vsub.s32 0, %v207
      %v209 = vrot.slane %v204, %v208
      %v211 = vmul.f32 %v202, %v209
      %v212 = vmul.f32 %v203, %v209
      %v213 = vld [vmem:[%s2] sm:$0x1]
      %v215 = vlaneseq
      %v216 = vshrl.u32 %v215, 7
      %v217 = vsub.s32 0, %v216
      %v218 = vrot.slane %v213, %v217
      %v220 = vadd.f32 %v211, %v218
      %v221 = vadd.f32 %v212, %v218
      %v222 = vpack.c.bf16 %v221, %v220
      %v224 = vunpack.c.l.b16 %v222
      %v225 = vunpack.c.h.b16 %v222
      %v226 = vpack.c.b16 %v224, %v224
      %v227 = vpack.c.b16 %v225, %v225
      %vm230 = vcmask 257024
      %231 = vst.msk [vmem:[%s172] sm:$0xf] %vm230, %v226
      %232 = vst.msk [vmem:[%s172 + $0x4] sm:$0xf] %vm230, %v227
      %s233 = smul.u32 2, %s14
      %p234 = scmp.lt.s32.totalorder %s233, 5
      %s235 = scalar_select %p234, %s233, 5
      %s236 = smul.addr %s235, 4
      %s237 = scalar_lea.vmem %s3, %s236
      // Predicated region
      $region33: #{simplified_html_forward.4} parent=31 // pred_check
        %p238 = pneg %p100
      $region34: #{simplified_html_forward.4} parent=31 // pred_check_branch
        %240 = sbr.rel (%p238) target = $region36
      $region35: #{simplified_html_forward.4} parent=31 // pred_region
        %s241 = smul.u32 2, %s14
      $region36: #{simplified_html_forward.4} parent=31 // pred_fallthru
        _
    $region32: #{simplified_html_forward.4} parent=5 // pred_fallthru
      _
    %p242 = scmp.le.s32.totalorder 2, %s9
    // Predicated region
    $region37: #{simplified_html_forward.4} parent=5 // pred_check
      %p243 = pneg %p242
    $region38: #{simplified_html_forward.4} parent=5 // pred_check_branch
      %245 = sbr.rel (%p243) target = $region40
    $region39: #{simplified_html_forward.4} parent=5 // pred_region
      %s246 = ssub.s32 %s9, 2
      // Predicated region
      $region41: #{simplified_html_forward.4} parent=39 // pred_check
        %p247 = pneg %p106
      $region42: #{simplified_html_forward.4} parent=39 // pred_check_branch
        %249 = sbr.rel (%p247) target = $region44
      $region43: #{simplified_html_forward.4} parent=39 // pred_region
        %s250 = smul.u32 2, %s15
        %p251 = scmp.lt.s32.totalorder %s250, 5
        %s252 = scalar_select %p251, %s250, 5
        %s253 = smul.addr %s252, 4
        %s254 = scalar_lea.vmem %s3, %s253
      $region44: #{simplified_html_forward.4} parent=39 // pred_fallthru
        _
    $region40: #{simplified_html_forward.4} parent=5 // pred_fallthru
      _
  $region6: #{simplified_html_forward.4} parent=0 // loop_footer
    %s13 = sadd.s32 1, %s9
  $region7: #{simplified_html_forward.4} parent=0 // loop_footer_branch
    %8 = sbr.rel target = $region3
  $region8: #{simplified_html_forward.4} parent=0 // loop_exit
    _

// kernel: simplified_html_forward.7
$region0: #{simplified_html_forward.7}
  #allocation0 [shape = 'u32[]', space=smem, size = 0x4, offset = 0x4, fixed_abs, tag = 'smem constant byte address 0x4 - core index']
  #allocation1 [shape = 'u32[144,128]{1,0:T(1,128)}', space=vmem, size = 0x12000, scoped, tag = 'internal scratch']
  #allocation2 [shape = 'f32[1,1]{1,0:T(1,128)S(1)}', space=vmem, size = 0x200, scoped, tag = 'scoped memory for simplified_html_forward.7']
  %s0 = inlined_call_operand.vmem [shape: f32[2,3,32], index: 0, kind: input, shape index: {}]
  %s1 = inlined_call_operand.vmem [shape: f32[32,1], index: 1, kind: input, shape index: {}]
  %s2 = inlined_call_operand.<no memory space> [shape: f32[1,1], index: 2, kind: input, shape index: {}]
  %s3 = inlined_call_operand.vmem [shape: f32[2,1], index: 3, kind: output, shape index: {}]
  %s4 = sld [smem:[#allocation0]]
  $region22: #{simplified_html_forward.7} parent=0
    _
  %s6 = ssub.s32 1, %s4
  %s7 = scalar_select 0, %s6, %s4
  %v8 = vstv %s2
  %9 = vst [vmem:[#allocation2] sm:$0x1] %v8
  // Predicated region
  $region2: #{simplified_html_forward.7} parent=0 // pred_check
    _
  $region3: #{simplified_html_forward.7} parent=0 // pred_check_branch
    %11 = sbr.rel (0) target = $region5
  $region4: #{simplified_html_forward.7} parent=0 // pred_region
    _
  $region5: #{simplified_html_forward.7} parent=0 // pred_fallthru
    _
  // Predicated region
  $region6: #{simplified_html_forward.7} parent=0 // pred_check
    _
  $region7: #{simplified_html_forward.7} parent=0 // pred_check_branch
    %13 = sbr.rel (0) target = $region9
  $region8: #{simplified_html_forward.7} parent=0 // pred_region
    _
  $region9: #{simplified_html_forward.7} parent=0 // pred_fallthru
    _
  // Predicated region
  $region10: #{simplified_html_forward.7} parent=0 // pred_check
    _
  $region11: #{simplified_html_forward.7} parent=0 // pred_check_branch
    %15 = sbr.rel (0) target = $region13
  $region12: #{simplified_html_forward.7} parent=0 // pred_region
    _
  $region13: #{simplified_html_forward.7} parent=0 // pred_fallthru
    _
  %v16 = vld [vmem:[%s0] sm:$0x7]
  %v17 = vld [vmem:[%s0 + $0x4] sm:$0x7]
  %vm18 = vcmask 256000
  %v19 = vsel %vm18, %v16, 0.0
  %v20 = vrot.slane %v19, 4
  %v21 = vadd.f32 %v19, %v20
  %v22 = vrot.slane %v21, 2
  %v23 = vadd.f32 %v21, %v22
  %v24 = vrot.slane %v23, 1
  %v25 = vadd.f32 %v23, %v24
  %v26 = vsel %vm18, %v17, 0.0
  %v27 = vrot.slane %v26, 4
  %v28 = vadd.f32 %v26, %v27
  %v29 = vrot.slane %v28, 2
  %v30 = vadd.f32 %v28, %v29
  %v31 = vrot.slane %v30, 1
  %v32 = vadd.f32 %v30, %v31
  %v33 = vrcp.pop 3.0
  %v34 = vmul.f32 %v25, %v33
  %v35 = vmul.f32 %v32, %v33
  %v36 = vld [vmem:[%s1] sm:$0xff]
  %v37 = vld [vmem:[%s1 + $0x8] sm:$0xff]
  %v38 = vld [vmem:[%s1 + $0x10] sm:$0xff]
  %v39 = vld [vmem:[%s1 + $0x18] sm:$0xff]
  %v40 = vld [vmem:[#allocation2] sm:$0x1]
  %v42 = vlaneseq
  %v43 = vshrl.u32 %v42, 7
  %v44 = vsub.s32 0, %v43
  %v45 = vrot.slane %v40, %v44
  %vm49 = vcmask 1041409
  %v50 = vsel %vm49, %v35, %v34
  %vm51 = vcmask 261120
  %v52 = vsel %vm51, %v50, 0
  %54 = vmatprep.subr.mxu0 0.0
  %55 = vmatpush1.msra.mxu0 0.0
  %56 = vmatprep.subr.mxu0 0.0
  %57 = vmatpush1.msra.mxu0 0.0
  %58 = vmatprep.subr.mxu0 0.0
  %59 = vmatpush1.msra.mxu0 0.0
  %60 = vmatprep.subr.mxu0 0.0
  %61 = vmatpush1.msra.mxu0 0.0
  %62 = vmatprep.subr.mxu0 0.0
  %63 = vmatpush1.msra.mxu0 0.0
  %64 = vmatprep.subr.mxu0 0.0
  %65 = vmatpush1.msra.mxu0 0.0
  %66 = vmatprep.subr.mxu0 0.0
  %67 = vmatpush1.msra.mxu0 0.0
  %68 = vmatprep.subr.mxu0 0.0
  %69 = vmatpush1.msra.mxu0 0.0
  %70 = vmatprep.subr.mxu0 0.0
  %71 = vmatpush1.msra.mxu0 0.0
  %72 = vmatprep.subr.mxu0 0.0
  %73 = vmatpush1.msra.mxu0 0.0
  %74 = vmatprep.subr.mxu0 0.0
  %75 = vmatpush1.msra.mxu0 0.0
  %76 = vmatprep.subr.mxu0 0.0
  %77 = vmatpush1.msra.mxu0 0.0
  %78 = vmatprep.subr.mxu0 0.0
  %79 = vmatpush1.msra.mxu0 %v39
  %80 = vmatprep.subr.mxu0 0.0
  %81 = vmatpush1.msra.mxu0 %v38
  %82 = vmatprep.subr.mxu0 0.0
  %83 = vmatpush1.msra.mxu0 %v37
  %84 = vmatprep.subr.mxu0 0.0
  %85 = vmatpush1.msra.mxu0 %v36
  %86 = vmatprep.subr.mxu0 0.0
  %87 = vmatpush2.msra.mxu0 0.0
  %88 = vmatprep.subr.mxu0 0.0
  %89 = vmatpush2.msra.mxu0 0.0
  %90 = vmatprep.subr.mxu0 0.0
  %91 = vmatpush2.msra.mxu0 0.0
  %92 = vmatprep.subr.mxu0 0.0
  %93 = vmatpush2.msra.mxu0 0.0
  %94 = vmatprep.subr.mxu0 0.0
  %95 = vmatpush2.msra.mxu0 0.0
  %96 = vmatprep.subr.mxu0 0.0
  %97 = vmatpush2.msra.mxu0 0.0
  %98 = vmatprep.subr.mxu0 0.0
  %99 = vmatpush2.msra.mxu0 0.0
  %100 = vmatprep.subr.mxu0 0.0
  %101 = vmatpush2.msra.mxu0 0.0
  %102 = vmatprep.subr.mxu0 0.0
  %103 = vmatpush2.msra.mxu0 0.0
  %104 = vmatprep.subr.mxu0 0.0
  %105 = vmatpush2.msra.mxu0 0.0
  %106 = vmatprep.subr.mxu0 0.0
  %107 = vmatpush2.msra.mxu0 0.0
  %108 = vmatprep.subr.mxu0 0.0
  %109 = vmatpush2.msra.mxu0 0.0
  %110 = vmatprep.subr.mxu0 0.0
  %111 = vmatpush2.msra.mxu0 0.0
  %112 = vmatprep.subr.mxu0 0.0
  %113 = vmatpush2.msra.mxu0 0.0
  %114 = vmatprep.subr.mxu0 0.0
  %115 = vmatpush2.msra.mxu0 0.0
  %116 = vmatprep.subr.mxu0 0.0
  %117 = vmatpush2.msra.mxu0 0.0
  %118 = vmatprep.mubr.f32.mxu0 0.0
  %119 = vmatmul.mubr.f32.gmra.mxu0 %v52
  %v120 = vpop.f32.mrf.mxu0
  %v121 = vadd.f32 %v45, %v120
  %v122 = vpop.f32.mrf.mxu0
  %123 = vdwg.mxu0
  %v124 = vxor.u32 %v121, 2147483648
  %v125 = vmul.f32 %v124, 1.442695
  %v126 = vpow.pop %v125
  %v127 = vadd.f32 %v126, 1.0
  %v128 = vrcp.pop %v127
  %v129 = vmul.f32 1.0, %v128
  %vm130 = vcmask 1024
  %131 = vst.msk [vmem:[%s3] sm:$0x3] %vm130, %v129
  // Predicated region
  $region14: #{simplified_html_forward.7} parent=0 // pred_check
    _
  $region15: #{simplified_html_forward.7} parent=0 // pred_check_branch
    %133 = sbr.rel (0) target = $region17
  $region16: #{simplified_html_forward.7} parent=0 // pred_region
    _
  $region17: #{simplified_html_forward.7} parent=0 // pred_fallthru
    _
  // Predicated region
  $region18: #{simplified_html_forward.7} parent=0 // pred_check
    _
  $region19: #{simplified_html_forward.7} parent=0 // pred_check_branch
    %135 = sbr.rel (0) target = $region21
  $region20: #{simplified_html_forward.7} parent=0 // pred_region
    _
  $region21: #{simplified_html_forward.7} parent=0 // pred_fallthru
    _

// kernel: simplified_html_forward.5
$region0: #{simplified_html_forward.5}
  #allocation0 [shape = 'u32[]', space=smem, size = 0x4, offset = 0x4, fixed_abs, tag = 'smem constant byte address 0x4 - core index']
  #allocation1 [shape = 'u32[144,128]{1,0:T(1,128)}', space=vmem, size = 0x12000, scoped, tag = 'internal scratch']
  #allocation2 [shape = 'f32[8,32]{1,0:T(8,128)}', space=vmem, size = 0x1000, scoped, tag = 'scratch operand']
  %s0 = inlined_call_operand.vmem [shape: bf16[6,8,32], index: 0, kind: input, shape index: {}]
  %s1 = inlined_call_operand.vmem [shape: f32[6,1,8], index: 1, kind: input, shape index: {}]
  %s2 = inlined_call_operand.vmem [shape: bf16[32,96], index: 2, kind: input, shape index: {}]
  %s3 = inlined_call_operand.vmem [shape: f32[1,96], index: 3, kind: input, shape index: {}]
  %s4 = inlined_call_operand.vmem [shape: bf16[32,32], index: 4, kind: input, shape index: {}]
  %s5 = inlined_call_operand.vmem [shape: f32[1,32], index: 5, kind: input, shape index: {}]
  %s6 = inlined_call_operand.vmem [shape: f32[1,32], index: 6, kind: input, shape index: {}]
  %s7 = inlined_call_operand.vmem [shape: f32[1,32], index: 7, kind: input, shape index: {}]
  %s8 = inlined_call_operand.vmem [shape: bf16[32,64], index: 8, kind: input, shape index: {}]
  %s9 = inlined_call_operand.vmem [shape: f32[1,64], index: 9, kind: input, shape index: {}]
  %s10 = inlined_call_operand.vmem [shape: bf16[64,32], index: 10, kind: input, shape index: {}]
  %s11 = inlined_call_operand.vmem [shape: f32[1,32], index: 11, kind: input, shape index: {}]
  %s12 = inlined_call_operand.vmem [shape: f32[1,32], index: 12, kind: input, shape index: {}]
  %s13 = inlined_call_operand.vmem [shape: f32[1,32], index: 13, kind: input, shape index: {}]
  %s14 = inlined_call_operand.vmem [shape: bf16[6,8,32], index: 14, kind: output, shape index: {}]
  %s15 = sld [smem:[#allocation0]]
  $region89: #{simplified_html_forward.5} parent=0
    _
  %s17 = ssub.s32 1, %s15
  %s18 = scalar_select 0, %s17, %s15
  loop: start=0, step=1, limit=8
  $region2: #{simplified_html_forward.5} parent=0 // loop_pre_header
    _
  $region3: #{simplified_html_forward.5} parent=0 // loop_header
    %s20 = sphi 0, %s24
    %p21 = scmp.ge.s32.totalorder %s20, 8
    %s30 = sphi 0, %s32
    %s33 = sphi 0, %s30
    %s34 = sphi 0, %s33
    %s50 = sphi 0, %s34
    %s56 = sphi 0, %s58
    %s59 = sphi 0, %s56
    %s60 = sphi 0, %s59
    %s76 = sphi 0, %s60
    %s80 = sphi 0, %s80
    %s82 = sphi 0, %s80
    %s83 = sphi 0, %s82
    %s97 = sphi 0, %s83
    %s101 = sphi 0, %s101
    %s103 = sphi 0, %s101
    %s104 = sphi 0, %s103
    %s118 = sphi 0, %s104
    %s122 = sphi 0, %s122
    %s124 = sphi 0, %s122
    %s125 = sphi 0, %s124
    %s139 = sphi 0, %s125
    %s143 = sphi 0, %s143
    %s145 = sphi 0, %s143
    %s146 = sphi 0, %s145
    %s160 = sphi 0, %s146
    %s164 = sphi 0, %s164
    %s166 = sphi 0, %s164
    %s167 = sphi 0, %s166
    %s181 = sphi 0, %s167
    %s185 = sphi 0, %s185
    %s187 = sphi 0, %s185
    %s188 = sphi 0, %s187
    %s202 = sphi 0, %s188
    %s206 = sphi 0, %s206
    %s208 = sphi 0, %s206
    %s209 = sphi 0, %s208
    %s223 = sphi 0, %s209
    %s227 = sphi 0, %s227
    %s229 = sphi 0, %s227
    %s230 = sphi 0, %s229
    %s244 = sphi 0, %s230
    %s248 = sphi 0, %s248
    %s250 = sphi 0, %s248
    %s251 = sphi 0, %s250
    %s265 = sphi 0, %s251
    %s269 = sphi 0, %s269
    %s271 = sphi 0, %s269
    %s272 = sphi 0, %s271
    %s286 = sphi 0, %s272
    %s290 = sphi 0, %s290
    %s292 = sphi 0, %s290
    %s293 = sphi 0, %s292
    %s307 = sphi 0, %s293
    %s311 = sphi 0, %s311
    %s313 = sphi 0, %s311
    %s314 = sphi 0, %s313
    %s328 = sphi 0, %s314
    %s334 = sphi 0, %s336
    %s337 = sphi 0, %s334
    %s338 = sphi 0, %s337
    %s354 = sphi 0, %s338
  $region4: #{simplified_html_forward.5} parent=0 // loop_header_branch
    %23 = sbr.rel (%p21) target = $region8
  $region5: #{simplified_html_forward.5} parent=0 // loop_body
    %s25 = ssub.s32 %s20, 1
    %s26 = ssub.s32 %s20, 2
    %s27 = sadd.s32 %s20, 1
    %s28 = ssub.s32 %s20, %s27
    %p29 = scmp.eq.s32.totalorder %s28, 0
    %s31 = sadd.s32 %s30, 1
    %s32 = scalar_select %p29, %s30, %s31
    %p35 = pneg %p29
    %p36 = scmp.eq.s32.totalorder %s20, 5
    %p37 = por %p35, %p36
    %p38 = scmp.ne.s32.totalorder %s30, %s33
    %p39 = scmp.eq.s32.totalorder %s20, 0
    %p40 = por %p38, %p39
    %p41 = scmp.ne.s32.totalorder %s30, %s33
    %p42 = scmp.eq.s32.totalorder %s25, 5
    %p43 = por %p41, %p42
    %p44 = scmp.ne.s32.totalorder %s33, %s34
    %p45 = scmp.eq.s32.totalorder %s25, 0
    %p46 = por %p44, %p45
    %p47 = scmp.ne.s32.totalorder %s33, %s34
    %p48 = scmp.eq.s32.totalorder %s26, 5
    %p49 = por %p47, %p48
    %p51 = scmp.ne.s32.totalorder %s34, %s50
    %p52 = scmp.eq.s32.totalorder %s26, 0
    %p53 = por %p51, %p52
    %s54 = ssub.s32 %s20, %s27
    %p55 = scmp.eq.s32.totalorder %s54, 0
    %s57 = sadd.s32 %s56, 1
    %s58 = scalar_select %p55, %s56, %s57
    %p61 = pneg %p55
    %p62 = scmp.eq.s32.totalorder %s20, 5
    %p63 = por %p61, %p62
    %p64 = scmp.ne.s32.totalorder %s56, %s59
    %p65 = scmp.eq.s32.totalorder %s20, 0
    %p66 = por %p64, %p65
    %p67 = scmp.ne.s32.totalorder %s56, %s59
    %p68 = scmp.eq.s32.totalorder %s25, 5
    %p69 = por %p67, %p68
    %p70 = scmp.ne.s32.totalorder %s59, %s60
    %p71 = scmp.eq.s32.totalorder %s25, 0
    %p72 = por %p70, %p71
    %p73 = scmp.ne.s32.totalorder %s59, %s60
    %p74 = scmp.eq.s32.totalorder %s26, 5
    %p75 = por %p73, %p74
    %p77 = scmp.ne.s32.totalorder %s60, %s76
    %p78 = scmp.eq.s32.totalorder %s26, 0
    %p79 = por %p77, %p78
    %s81 = sadd.s32 %s80, 1
    %p84 = scmp.eq.s32.totalorder %s20, 5
    %p85 = scmp.ne.s32.totalorder %s80, %s82
    %p86 = scmp.eq.s32.totalorder %s20, 0
    %p87 = por %p85, %p86
    %p88 = scmp.ne.s32.totalorder %s80, %s82
    %p89 = scmp.eq.s32.totalorder %s25, 5
    %p90 = por %p88, %p89
    %p91 = scmp.ne.s32.totalorder %s82, %s83
    %p92 = scmp.eq.s32.totalorder %s25, 0
    %p93 = por %p91, %p92
    %p94 = scmp.ne.s32.totalorder %s82, %s83
    %p95 = scmp.eq.s32.totalorder %s26, 5
    %p96 = por %p94, %p95
    %p98 = scmp.ne.s32.totalorder %s83, %s97
    %p99 = scmp.eq.s32.totalorder %s26, 0
    %p100 = por %p98, %p99
    %s102 = sadd.s32 %s101, 1
    %p105 = scmp.eq.s32.totalorder %s20, 5
    %p106 = scmp.ne.s32.totalorder %s101, %s103
    %p107 = scmp.eq.s32.totalorder %s20, 0
    %p108 = por %p106, %p107
    %p109 = scmp.ne.s32.totalorder %s101, %s103
    %p110 = scmp.eq.s32.totalorder %s25, 5
    %p111 = por %p109, %p110
    %p112 = scmp.ne.s32.totalorder %s103, %s104
    %p113 = scmp.eq.s32.totalorder %s25, 0
    %p114 = por %p112, %p113
    %p115 = scmp.ne.s32.totalorder %s103, %s104
    %p116 = scmp.eq.s32.totalorder %s26, 5
    %p117 = por %p115, %p116
    %p119 = scmp.ne.s32.totalorder %s104, %s118
    %p120 = scmp.eq.s32.totalorder %s26, 0
    %p121 = por %p119, %p120
    %s123 = sadd.s32 %s122, 1
    %p126 = scmp.eq.s32.totalorder %s20, 5
    %p127 = scmp.ne.s32.totalorder %s122, %s124
    %p128 = scmp.eq.s32.totalorder %s20, 0
    %p129 = por %p127, %p128
    %p130 = scmp.ne.s32.totalorder %s122, %s124
    %p131 = scmp.eq.s32.totalorder %s25, 5
    %p132 = por %p130, %p131
    %p133 = scmp.ne.s32.totalorder %s124, %s125
    %p134 = scmp.eq.s32.totalorder %s25, 0
    %p135 = por %p133, %p134
    %p136 = scmp.ne.s32.totalorder %s124, %s125
    %p137 = scmp.eq.s32.totalorder %s26, 5
    %p138 = por %p136, %p137
    %p140 = scmp.ne.s32.totalorder %s125, %s139
    %p141 = scmp.eq.s32.totalorder %s26, 0
    %p142 = por %p140, %p141
    %s144 = sadd.s32 %s143, 1
    %p147 = scmp.eq.s32.totalorder %s20, 5
    %p148 = scmp.ne.s32.totalorder %s143, %s145
    %p149 = scmp.eq.s32.totalorder %s20, 0
    %p150 = por %p148, %p149
    %p151 = scmp.ne.s32.totalorder %s143, %s145
    %p152 = scmp.eq.s32.totalorder %s25, 5
    %p153 = por %p151, %p152
    %p154 = scmp.ne.s32.totalorder %s145, %s146
    %p155 = scmp.eq.s32.totalorder %s25, 0
    %p156 = por %p154, %p155
    %p157 = scmp.ne.s32.totalorder %s145, %s146
    %p158 = scmp.eq.s32.totalorder %s26, 5
    %p159 = por %p157, %p158
    %p161 = scmp.ne.s32.totalorder %s146, %s160
    %p162 = scmp.eq.s32.totalorder %s26, 0
    %p163 = por %p161, %p162
    %s165 = sadd.s32 %s164, 1
    %p168 = scmp.eq.s32.totalorder %s20, 5
    %p169 = scmp.ne.s32.totalorder %s164, %s166
    %p170 = scmp.eq.s32.totalorder %s20, 0
    %p171 = por %p169, %p170
    %p172 = scmp.ne.s32.totalorder %s164, %s166
    %p173 = scmp.eq.s32.totalorder %s25, 5
    %p174 = por %p172, %p173
    %p175 = scmp.ne.s32.totalorder %s166, %s167
    %p176 = scmp.eq.s32.totalorder %s25, 0
    %p177 = por %p175, %p176
    %p178 = scmp.ne.s32.totalorder %s166, %s167
    %p179 = scmp.eq.s32.totalorder %s26, 5
    %p180 = por %p178, %p179
    %p182 = scmp.ne.s32.totalorder %s167, %s181
    %p183 = scmp.eq.s32.totalorder %s26, 0
    %p184 = por %p182, %p183
    %s186 = sadd.s32 %s185, 1
    %p189 = scmp.eq.s32.totalorder %s20, 5
    %p190 = scmp.ne.s32.totalorder %s185, %s187
    %p191 = scmp.eq.s32.totalorder %s20, 0
    %p192 = por %p190, %p191
    %p193 = scmp.ne.s32.totalorder %s185, %s187
    %p194 = scmp.eq.s32.totalorder %s25, 5
    %p195 = por %p193, %p194
    %p196 = scmp.ne.s32.totalorder %s187, %s188
    %p197 = scmp.eq.s32.totalorder %s25, 0
    %p198 = por %p196, %p197
    %p199 = scmp.ne.s32.totalorder %s187, %s188
    %p200 = scmp.eq.s32.totalorder %s26, 5
    %p201 = por %p199, %p200
    %p203 = scmp.ne.s32.totalorder %s188, %s202
    %p204 = scmp.eq.s32.totalorder %s26, 0
    %p205 = por %p203, %p204
    %s207 = sadd.s32 %s206, 1
    %p210 = scmp.eq.s32.totalorder %s20, 5
    %p211 = scmp.ne.s32.totalorder %s206, %s208
    %p212 = scmp.eq.s32.totalorder %s20, 0
    %p213 = por %p211, %p212
    %p214 = scmp.ne.s32.totalorder %s206, %s208
    %p215 = scmp.eq.s32.totalorder %s25, 5
    %p216 = por %p214, %p215
    %p217 = scmp.ne.s32.totalorder %s208, %s209
    %p218 = scmp.eq.s32.totalorder %s25, 0
    %p219 = por %p217, %p218
    %p220 = scmp.ne.s32.totalorder %s208, %s209
    %p221 = scmp.eq.s32.totalorder %s26, 5
    %p222 = por %p220, %p221
    %p224 = scmp.ne.s32.totalorder %s209, %s223
    %p225 = scmp.eq.s32.totalorder %s26, 0
    %p226 = por %p224, %p225
    %s228 = sadd.s32 %s227, 1
    %p231 = scmp.eq.s32.totalorder %s20, 5
    %p232 = scmp.ne.s32.totalorder %s227, %s229
    %p233 = scmp.eq.s32.totalorder %s20, 0
    %p234 = por %p232, %p233
    %p235 = scmp.ne.s32.totalorder %s227, %s229
    %p236 = scmp.eq.s32.totalorder %s25, 5
    %p237 = por %p235, %p236
    %p238 = scmp.ne.s32.totalorder %s229, %s230
    %p239 = scmp.eq.s32.totalorder %s25, 0
    %p240 = por %p238, %p239
    %p241 = scmp.ne.s32.totalorder %s229, %s230
    %p242 = scmp.eq.s32.totalorder %s26, 5
    %p243 = por %p241, %p242
    %p245 = scmp.ne.s32.totalorder %s230, %s244
    %p246 = scmp.eq.s32.totalorder %s26, 0
    %p247 = por %p245, %p246
    %s249 = sadd.s32 %s248, 1
    %p252 = scmp.eq.s32.totalorder %s20, 5
    %p253 = scmp.ne.s32.totalorder %s248, %s250
    %p254 = scmp.eq.s32.totalorder %s20, 0
    %p255 = por %p253, %p254
    %p256 = scmp.ne.s32.totalorder %s248, %s250
    %p257 = scmp.eq.s32.totalorder %s25, 5
    %p258 = por %p256, %p257
    %p259 = scmp.ne.s32.totalorder %s250, %s251
    %p260 = scmp.eq.s32.totalorder %s25, 0
    %p261 = por %p259, %p260
    %p262 = scmp.ne.s32.totalorder %s250, %s251
    %p263 = scmp.eq.s32.totalorder %s26, 5
    %p264 = por %p262, %p263
    %p266 = scmp.ne.s32.totalorder %s251, %s265
    %p267 = scmp.eq.s32.totalorder %s26, 0
    %p268 = por %p266, %p267
    %s270 = sadd.s32 %s269, 1
    %p273 = scmp.eq.s32.totalorder %s20, 5
    %p274 = scmp.ne.s32.totalorder %s269, %s271
    %p275 = scmp.eq.s32.totalorder %s20, 0
    %p276 = por %p274, %p275
    %p277 = scmp.ne.s32.totalorder %s269, %s271
    %p278 = scmp.eq.s32.totalorder %s25, 5
    %p279 = por %p277, %p278
    %p280 = scmp.ne.s32.totalorder %s271, %s272
    %p281 = scmp.eq.s32.totalorder %s25, 0
    %p282 = por %p280, %p281
    %p283 = scmp.ne.s32.totalorder %s271, %s272
    %p284 = scmp.eq.s32.totalorder %s26, 5
    %p285 = por %p283, %p284
    %p287 = scmp.ne.s32.totalorder %s272, %s286
    %p288 = scmp.eq.s32.totalorder %s26, 0
    %p289 = por %p287, %p288
    %s291 = sadd.s32 %s290, 1
    %p294 = scmp.eq.s32.totalorder %s20, 5
    %p295 = scmp.ne.s32.totalorder %s290, %s292
    %p296 = scmp.eq.s32.totalorder %s20, 0
    %p297 = por %p295, %p296
    %p298 = scmp.ne.s32.totalorder %s290, %s292
    %p299 = scmp.eq.s32.totalorder %s25, 5
    %p300 = por %p298, %p299
    %p301 = scmp.ne.s32.totalorder %s292, %s293
    %p302 = scmp.eq.s32.totalorder %s25, 0
    %p303 = por %p301, %p302
    %p304 = scmp.ne.s32.totalorder %s292, %s293
    %p305 = scmp.eq.s32.totalorder %s26, 5
    %p306 = por %p304, %p305
    %p308 = scmp.ne.s32.totalorder %s293, %s307
    %p309 = scmp.eq.s32.totalorder %s26, 0
    %p310 = por %p308, %p309
    %s312 = sadd.s32 %s311, 1
    %p315 = scmp.eq.s32.totalorder %s20, 5
    %p316 = scmp.ne.s32.totalorder %s311, %s313
    %p317 = scmp.eq.s32.totalorder %s20, 0
    %p318 = por %p316, %p317
    %p319 = scmp.ne.s32.totalorder %s311, %s313
    %p320 = scmp.eq.s32.totalorder %s25, 5
    %p321 = por %p319, %p320
    %p322 = scmp.ne.s32.totalorder %s313, %s314
    %p323 = scmp.eq.s32.totalorder %s25, 0
    %p324 = por %p322, %p323
    %p325 = scmp.ne.s32.totalorder %s313, %s314
    %p326 = scmp.eq.s32.totalorder %s26, 5
    %p327 = por %p325, %p326
    %p329 = scmp.ne.s32.totalorder %s314, %s328
    %p330 = scmp.eq.s32.totalorder %s26, 0
    %p331 = por %p329, %p330
    %s332 = ssub.s32 %s20, %s27
    %p333 = scmp.eq.s32.totalorder %s332, 0
    %s335 = sadd.s32 %s334, 1
    %s336 = scalar_select %p333, %s334, %s335
    %p339 = pneg %p333
    %p340 = scmp.eq.s32.totalorder %s20, 5
    %p341 = por %p339, %p340
    %p342 = scmp.ne.s32.totalorder %s334, %s337
    %p343 = scmp.eq.s32.totalorder %s20, 0
    %p344 = por %p342, %p343
    %p345 = scmp.ne.s32.totalorder %s334, %s337
    %p346 = scmp.eq.s32.totalorder %s25, 5
    %p347 = por %p345, %p346
    %p348 = scmp.ne.s32.totalorder %s337, %s338
    %p349 = scmp.eq.s32.totalorder %s25, 0
    %p350 = por %p348, %p349
    %p351 = scmp.ne.s32.totalorder %s337, %s338
    %p352 = scmp.eq.s32.totalorder %s26, 5
    %p353 = por %p351, %p352
    %p355 = scmp.ne.s32.totalorder %s338, %s354
    %p356 = scmp.eq.s32.totalorder %s26, 0
    %p357 = por %p355, %p356
    %p358 = scmp.le.s32.totalorder 1, %s20
    %p359 = scmp.lt.s32.totalorder %s20, 7
    %p360 = pnand %p358, %p359
    %p361 = pneg %p360
    // Predicated region
    $region9: #{simplified_html_forward.5} parent=5 // pred_check
      _
    $region10: #{simplified_html_forward.5} parent=5 // pred_check_branch
      %363 = sbr.rel (%p360) target = $region12
    $region11: #{simplified_html_forward.5} parent=5 // pred_region
      %s364 = ssub.s32 %s20, 1
      // Predicated region
      $region13: #{simplified_html_forward.5} parent=11 // pred_check
        %p365 = pneg %p93
      $region14: #{simplified_html_forward.5} parent=11 // pred_check_branch
        %367 = sbr.rel (%p365) target = $region16
      $region15: #{simplified_html_forward.5} parent=11 // pred_region
        _
      $region16: #{simplified_html_forward.5} parent=11 // pred_fallthru
        _
      // Predicated region
      $region17: #{simplified_html_forward.5} parent=11 // pred_check
        %p368 = pneg %p114
      $region18: #{simplified_html_forward.5} parent=11 // pred_check_branch
        %370 = sbr.rel (%p368) target = $region20
      $region19: #{simplified_html_forward.5} parent=11 // pred_region
        _
      $region20: #{simplified_html_forward.5} parent=11 // pred_fallthru
        _
      // Predicated region
      $region21: #{simplified_html_forward.5} parent=11 // pred_check
        %p371 = pneg %p135
      $region22: #{simplified_html_forward.5} parent=11 // pred_check_branch
        %373 = sbr.rel (%p371) target = $region24
      $region23: #{simplified_html_forward.5} parent=11 // pred_region
        _
      $region24: #{simplified_html_forward.5} parent=11 // pred_fallthru
        _
      // Predicated region
      $region25: #{simplified_html_forward.5} parent=11 // pred_check
        %p374 = pneg %p156
      $region26: #{simplified_html_forward.5} parent=11 // pred_check_branch
        %376 = sbr.rel (%p374) target = $region28
      $region27: #{simplified_html_forward.5} parent=11 // pred_region
        _
      $region28: #{simplified_html_forward.5} parent=11 // pred_fallthru
        _
      // Predicated region
      $region29: #{simplified_html_forward.5} parent=11 // pred_check
        %p377 = pneg %p177
      $region30: #{simplified_html_forward.5} parent=11 // pred_check_branch
        %379 = sbr.rel (%p377) target = $region32
      $region31: #{simplified_html_forward.5} parent=11 // pred_region
        _
      $region32: #{simplified_html_forward.5} parent=11 // pred_fallthru
        _
      // Predicated region
      $region33: #{simplified_html_forward.5} parent=11 // pred_check
        %p380 = pneg %p198
      $region34: #{simplified_html_forward.5} parent=11 // pred_check_branch
        %382 = sbr.rel (%p380) target = $region36
      $region35: #{simplified_html_forward.5} parent=11 // pred_region
        _
      $region36: #{simplified_html_forward.5} parent=11 // pred_fallthru
        _
      // Predicated region
      $region37: #{simplified_html_forward.5} parent=11 // pred_check
        %p383 = pneg %p219
      $region38: #{simplified_html_forward.5} parent=11 // pred_check_branch
        %385 = sbr.rel (%p383) target = $region40
      $region39: #{simplified_html_forward.5} parent=11 // pred_region
        _
      $region40: #{simplified_html_forward.5} parent=11 // pred_fallthru
        _
      // Predicated region
      $region41: #{simplified_html_forward.5} parent=11 // pred_check
        %p386 = pneg %p240
      $region42: #{simplified_html_forward.5} parent=11 // pred_check_branch
        %388 = sbr.rel (%p386) target = $region44
      $region43: #{simplified_html_forward.5} parent=11 // pred_region
        _
      $region44: #{simplified_html_forward.5} parent=11 // pred_fallthru
        _
      // Predicated region
      $region45: #{simplified_html_forward.5} parent=11 // pred_check
        %p389 = pneg %p261
      $region46: #{simplified_html_forward.5} parent=11 // pred_check_branch
        %391 = sbr.rel (%p389) target = $region48
      $region47: #{simplified_html_forward.5} parent=11 // pred_region
        _
      $region48: #{simplified_html_forward.5} parent=11 // pred_fallthru
        _
      // Predicated region
      $region49: #{simplified_html_forward.5} parent=11 // pred_check
        %p392 = pneg %p282
      $region50: #{simplified_html_forward.5} parent=11 // pred_check_branch
        %394 = sbr.rel (%p392) target = $region52
      $region51: #{simplified_html_forward.5} parent=11 // pred_region
        _
      $region52: #{simplified_html_forward.5} parent=11 // pred_fallthru
        _
      // Predicated region
      $region53: #{simplified_html_forward.5} parent=11 // pred_check
        %p395 = pneg %p303
      $region54: #{simplified_html_forward.5} parent=11 // pred_check_branch
        %397 = sbr.rel (%p395) target = $region56
      $region55: #{simplified_html_forward.5} parent=11 // pred_region
        _
      $region56: #{simplified_html_forward.5} parent=11 // pred_fallthru
        _
      // Predicated region
      $region57: #{simplified_html_forward.5} parent=11 // pred_check
        %p398 = pneg %p324
      $region58: #{simplified_html_forward.5} parent=11 // pred_check_branch
        %400 = sbr.rel (%p398) target = $region60
      $region59: #{simplified_html_forward.5} parent=11 // pred_region
        _
      $region60: #{simplified_html_forward.5} parent=11 // pred_fallthru
        _
    $region12: #{simplified_html_forward.5} parent=5 // pred_fallthru
      _
    %p401 = scmp.lt.s32.totalorder %s20, 6
    // Predicated region
    $region61: #{simplified_html_forward.5} parent=5 // pred_check
      %p402 = pneg %p401
    $region62: #{simplified_html_forward.5} parent=5 // pred_check_branch
      %404 = sbr.rel (%p402) target = $region64
    $region63: #{simplified_html_forward.5} parent=5 // pred_region
      // Predicated region
      $region65: #{simplified_html_forward.5} parent=63 // pred_check
        %p405 = pneg %p40
      $region66: #{simplified_html_forward.5} parent=63 // pred_check_branch
        %407 = sbr.rel (%p405) target = $region68
      $region67: #{simplified_html_forward.5} parent=63 // pred_region
        %p408 = scmp.lt.s32.totalorder %s20, 5
        %s409 = scalar_select %p408, %s20, 5
        %s410 = smul.addr %s409, 4
        %s411 = scalar_lea.vmem %s0, %s410
      $region68: #{simplified_html_forward.5} parent=63 // pred_fallthru
        _
      // Predicated region
      $region69: #{simplified_html_forward.5} parent=63 // pred_check
        %p412 = pneg %p66
      $region70: #{simplified_html_forward.5} parent=63 // pred_check_branch
        %414 = sbr.rel (%p412) target = $region72
      $region71: #{simplified_html_forward.5} parent=63 // pred_region
        %p415 = scmp.lt.s32.totalorder %s20, 5
        %s416 = scalar_select %p415, %s20, 5
        %s417 = scalar_lea.vmem %s1, %s416
      $region72: #{simplified_html_forward.5} parent=63 // pred_fallthru
        _
    $region64: #{simplified_html_forward.5} parent=5 // pred_fallthru
      _
    %p418 = scmp.le.s32.totalorder 1, %s20
    %p419 = scmp.lt.s32.totalorder %s20, 7
    %p420 = pnand %p418, %p419
    %p421 = pneg %p420
    // Predicated region
    $region73: #{simplified_html_forward.5} parent=5 // pred_check
      _
    $region74: #{simplified_html_forward.5} parent=5 // pred_check_branch
      %423 = sbr.rel (%p420) target = $region76
    $region75: #{simplified_html_forward.5} parent=5 // pred_region
      %s424 = ssub.s32 %s20, 1
      %p425 = scmp.lt.s32.totalorder %s25, 5
      %s426 = scalar_select %p425, %s25, 5
      %s427 = smul.addr %s426, 4
      %s428 = scalar_lea.vmem %s0, %s427
      %p429 = pneg %p46
      %p430 = pneg %p43
      %p431 = scmp.lt.s32.totalorder %s25, 5
      %s432 = scalar_select %p431, %s25, 5
      %s433 = scalar_lea.vmem %s1, %s432
      %p434 = pneg %p72
      %p435 = pneg %p69
      %p436 = pneg %p93
      %p437 = pneg %p90
      %p438 = pneg %p114
      %p439 = pneg %p111
      %p440 = pneg %p135
      %p441 = pneg %p132
      %p442 = pneg %p156
      %p443 = pneg %p153
      %p444 = pneg %p177
      %p445 = pneg %p174
      %p446 = pneg %p198
      %p447 = pneg %p195
      %p448 = pneg %p219
      %p449 = pneg %p216
      %p450 = pneg %p240
      %p451 = pneg %p237
      %p452 = pneg %p261
      %p453 = pneg %p258
      %p454 = pneg %p282
      %p455 = pneg %p279
      %p456 = pneg %p303
      %p457 = pneg %p300
      %p458 = pneg %p324
      %p459 = pneg %p321
      %p460 = pneg %p350
      %p461 = pneg %p347
      %p462 = scmp.lt.s32.totalorder %s25, 5
      %s463 = scalar_select %p462, %s25, 5
      %s464 = smul.addr %s463, 4
      %s465 = scalar_lea.vmem %s14, %s464
      %p466 = scmp.lt.s32.totalorder %s25, 5
      %s467 = scalar_select %p466, %s25, 5
      %s468 = smul.addr %s467, 4
      %s469 = scalar_lea.vmem %s0, %s468
      %p470 = scmp.lt.s32.totalorder %s25, 5
      %s471 = scalar_select %p470, %s25, 5
      %s472 = scalar_lea.vmem %s1, %s471
      %p473 = scmp.lt.s32.totalorder %s25, 5
      %s474 = scalar_select %p473, %s25, 5
      %s475 = smul.addr %s474, 4
      %s476 = scalar_lea.vmem %s14, %s475
      %v478 = vld [vmem:[%s469] sm:$0xf]
      %v479 = vunpack.c.l.bf16 %v478
      %v480 = vld [vmem:[%s2] sm:$0xf]
      %v481 = vld [vmem:[%s2 + $0x4] sm:$0xf]
      %v482 = vld [vmem:[%s2 + $0x8] sm:$0xf]
      %v483 = vld [vmem:[%s2 + $0xc] sm:$0xf]
      %v484 = vld [vmem:[%s3] sm:$0x1]
      %v486 = vlaneseq
      %v487 = vshrl.u32 %v486, 7
      %v488 = vsub.s32 0, %v487
      %v489 = vrot.slane %v484, %v488
      %v495 = vunpack.c.l.b16 %v480
      %v496 = vunpack.c.l.b16 %v481
      %v497 = vunpack.c.l.b16 %v482
      %v498 = vunpack.c.l.b16 %v483
      %v499 = vpack.c.b16 %v496, %v495
      %v500 = vpack.c.b16 %v498, %v497
      %vm503 = vcmask 261120
      %v505 = vsel %vm503, %v478, 0
      %507 = vmatprep.subr.bf16.mxu0 0
      %508 = vmatpush1.bf16.msra.mxu0 0
      %509 = vmatprep.subr.bf16.mxu0 0
      %510 = vmatpush1.bf16.msra.mxu0 0
      %511 = vmatprep.subr.bf16.mxu0 0
      %512 = vmatpush1.bf16.msra.mxu0 0
      %513 = vmatprep.subr.bf16.mxu0 0
      %514 = vmatpush1.bf16.msra.mxu0 0
      %515 = vmatprep.subr.bf16.mxu0 0
      %516 = vmatpush1.bf16.msra.mxu0 0
      %517 = vmatprep.subr.bf16.mxu0 0
      %518 = vmatpush1.bf16.msra.mxu0 0
      %519 = vmatprep.subr.bf16.mxu0 0
      %520 = vmatpush1.bf16.msra.mxu0 %v500
      %521 = vmatprep.subr.bf16.mxu0 0
      %522 = vmatpush1.bf16.msra.mxu0 %v499
      %523 = vmatprep.subr.bf16.mxu0 0
      %524 = vmatpush2.bf16.msra.mxu0 0
      %525 = vmatprep.subr.bf16.mxu0 0
      %526 = vmatpush2.bf16.msra.mxu0 0
      %527 = vmatprep.subr.bf16.mxu0 0
      %528 = vmatpush2.bf16.msra.mxu0 0
      %529 = vmatprep.subr.bf16.mxu0 0
      %530 = vmatpush2.bf16.msra.mxu0 0
      %531 = vmatprep.subr.bf16.mxu0 0
      %532 = vmatpush2.bf16.msra.mxu0 0
      %533 = vmatprep.subr.bf16.mxu0 0
      %534 = vmatpush2.bf16.msra.mxu0 0
      %535 = vmatprep.subr.bf16.mxu0 0
      %536 = vmatpush2.bf16.msra.mxu0 0
      %537 = vmatprep.subr.bf16.mxu0 0
      %538 = vmatpush2.bf16.msra.mxu0 0
      %539 = vmatprep.mubr.bf16.mxu0 0
      %540 = vmatmul.mubr.bf16.gmra.mxu0 %v505
      %v541 = vpop.f32.mrf.mxu0
      %v542 = vadd.f32 %v489, %v541
      %v543 = vpop.f32.mrf.mxu0
      %v544 = vpop.f32.mrf.mxu0
      %v545 = vpop.f32.mrf.mxu0
      %546 = vdwg.mxu0
      %v547 = vld [vmem:[%s472] sm:$0x1]
      %v548 = vpack.c.bf16 %v542, %v542
      %v550 = vlaneseq
      %v551 = vshrl.u32 %v550, 7
      %v552 = vsub.s32 0, %v551
      %v553 = vrot.slane %v547, %v552
      %556 = vrot.lane.b32.xlu0 %v548, 96
      %v557 = vpop.permute.xlu0 %556
      %vm558 = vcmask 64512
      %v560 = vsel %vm558, %v548, 0
      %v563 = vsel %vm558, %v557, 0
      %565 = vmatprep.subr.bf16.mxu0 0
      %566 = vmatpush1.bf16.xpose.msra.mxu0 0
      %567 = vmatprep.subr.bf16.mxu0 0
      %568 = vmatpush1.bf16.xpose.msra.mxu0 0
      %569 = vmatprep.subr.bf16.mxu0 0
      %570 = vmatpush1.bf16.xpose.msra.mxu0 0
      %571 = vmatprep.subr.bf16.mxu0 0
      %572 = vmatpush1.bf16.xpose.msra.mxu0 0
      %573 = vmatprep.subr.bf16.mxu0 0
      %574 = vmatpush1.bf16.xpose.msra.mxu0 0
      %575 = vmatprep.subr.bf16.mxu0 0
      %576 = vmatpush1.bf16.xpose.msra.mxu0 0
      %577 = vmatprep.subr.bf16.mxu0 0
      %578 = vmatpush1.bf16.xpose.msra.mxu0 0
      %579 = vmatprep.subr.bf16.mxu0 0
      %580 = vmatpush1.bf16.xpose.msra.mxu0 %v563
      %581 = vmatprep.subr.bf16.mxu0 0
      %582 = vmatpush2.bf16.xpose.msra.mxu0 0
      %583 = vmatprep.subr.bf16.mxu0 0
      %584 = vmatpush2.bf16.xpose.msra.mxu0 0
      %585 = vmatprep.subr.bf16.mxu0 0
      %586 = vmatpush2.bf16.xpose.msra.mxu0 0
      %587 = vmatprep.subr.bf16.mxu0 0
      %588 = vmatpush2.bf16.xpose.msra.mxu0 0
      %589 = vmatprep.subr.bf16.mxu0 0
      %590 = vmatpush2.bf16.xpose.msra.mxu0 0
      %591 = vmatprep.subr.bf16.mxu0 0
      %592 = vmatpush2.bf16.xpose.msra.mxu0 0
      %593 = vmatprep.subr.bf16.mxu0 0
      %594 = vmatpush2.bf16.xpose.msra.mxu0 0
      %595 = vmatprep.subr.bf16.mxu0 0
      %596 = vmatpush2.bf16.xpose.msra.mxu0 0
      %597 = vmatprep.mubr.bf16.mxu0 0
      %598 = vmatmul.mubr.bf16.gmra.mxu0 %v560
      %v599 = vpop.f32.mrf.mxu0
      %v600 = vadd.f32 %v553, %v599
      %v601 = vpop.f32.mrf.mxu0
      %v602 = vpop.f32.mrf.mxu0
      %v603 = vpop.f32.mrf.mxu0
      %604 = vdwg.mxu0
      %v605 = vsel %vm558, %v600, -inf
      %606 = vmax.xlane.f32.xlu0 %v605
      %v607 = vpop.xlane.xlu0 %606
      %v608 = vsub.f32 %v600, %v607
      %v609 = vmul.f32 %v608, 1.442695
      %v610 = vpow.pop %v609
      %v611 = vsel %vm558, %v610, 0.0
      %612 = vadd.xlane.f32.xlu0 %v611
      %v613 = vpop.xlane.xlu0 %612
      %v614 = vpack.c.bf16 %v610, %v610
      %615 = vrot.lane.b32.xlu0 %v548, 64
      %v616 = vpop.permute.xlu0 %615
      %v618 = vsel %vm558, %v614, 0
      %vm620 = vcmask 1043456
      %v622 = vsel %vm620, %v616, 0
      %624 = vmatprep.subr.bf16.mxu0 0
      %625 = vmatpush1.bf16.msra.mxu0 0
      %626 = vmatprep.subr.bf16.mxu0 0
      %627 = vmatpush1.bf16.msra.mxu0 0
      %628 = vmatprep.subr.bf16.mxu0 0
      %629 = vmatpush1.bf16.msra.mxu0 0
      %630 = vmatprep.subr.bf16.mxu0 0
      %631 = vmatpush1.bf16.msra.mxu0 0
      %632 = vmatprep.subr.bf16.mxu0 0
      %633 = vmatpush1.bf16.msra.mxu0 0
      %634 = vmatprep.subr.bf16.mxu0 0
      %635 = vmatpush1.bf16.msra.mxu0 0
      %636 = vmatprep.subr.bf16.mxu0 0
      %637 = vmatpush1.bf16.msra.mxu0 0
      %638 = vmatprep.subr.bf16.mxu0 0
      %639 = vmatpush1.bf16.msra.mxu0 %v622
      %640 = vmatprep.subr.bf16.mxu0 0
      %641 = vmatpush2.bf16.msra.mxu0 0
      %642 = vmatprep.subr.bf16.mxu0 0
      %643 = vmatpush2.bf16.msra.mxu0 0
      %644 = vmatprep.subr.bf16.mxu0 0
      %645 = vmatpush2.bf16.msra.mxu0 0
      %646 = vmatprep.subr.bf16.mxu0 0
      %647 = vmatpush2.bf16.msra.mxu0 0
      %648 = vmatprep.subr.bf16.mxu0 0
      %649 = vmatpush2.bf16.msra.mxu0 0
      %650 = vmatprep.subr.bf16.mxu0 0
      %651 = vmatpush2.bf16.msra.mxu0 0
      %652 = vmatprep.subr.bf16.mxu0 0
      %653 = vmatpush2.bf16.msra.mxu0 0
      %654 = vmatprep.subr.bf16.mxu0 0
      %655 = vmatpush2.bf16.msra.mxu0 0
      %656 = vmatprep.mubr.bf16.mxu0 0
      %657 = vmatmul.mubr.bf16.gmra.mxu0 %v618
      %v658 = vpop.f32.mrf.mxu0
      %v659 = vadd.f32 0.0, %v658
      %v660 = vpop.f32.mrf.mxu0
      %v661 = vpop.f32.mrf.mxu0
      %v662 = vpop.f32.mrf.mxu0
      %663 = vdwg.mxu0
      %v664 = vrcp.pop %v613
      %v665 = vmul.f32 %v659, %v664
      %666 = vst.msk [vmem:[#allocation2] sm:$0xff] %vm558, %v665
      %667 = vrot.lane.b32.xlu0 %v548, 120
      %v668 = vpop.permute.xlu0 %667
      %669 = vrot.lane.b32.xlu0 %v548, 88
      %v670 = vpop.permute.xlu0 %669
      %v672 = vsel %vm558, %v668, 0
      %v675 = vsel %vm558, %v670, 0
      %677 = vmatprep.subr.bf16.mxu0 0
      %678 = vmatpush1.bf16.xpose.msra.mxu0 0
      %679 = vmatprep.subr.bf16.mxu0 0
      %680 = vmatpush1.bf16.xpose.msra.mxu0 0
      %681 = vmatprep.subr.bf16.mxu0 0
      %682 = vmatpush1.bf16.xpose.msra.mxu0 0
      %683 = vmatprep.subr.bf16.mxu0 0
      %684 = vmatpush1.bf16.xpose.msra.mxu0 0
      %685 = vmatprep.subr.bf16.mxu0 0
      %686 = vmatpush1.bf16.xpose.msra.mxu0 0
      %687 = vmatprep.subr.bf16.mxu0 0
      %688 = vmatpush1.bf16.xpose.msra.mxu0 0
      %689 = vmatprep.subr.bf16.mxu0 0
      %690 = vmatpush1.bf16.xpose.msra.mxu0 0
      %691 = vmatprep.subr.bf16.mxu0 0
      %692 = vmatpush1.bf16.xpose.msra.mxu0 %v675
      %693 = vmatprep.subr.bf16.mxu0 0
      %694 = vmatpush2.bf16.xpose.msra.mxu0 0
      %695 = vmatprep.subr.bf16.mxu0 0
      %696 = vmatpush2.bf16.xpose.msra.mxu0 0
      %697 = vmatprep.subr.bf16.mxu0 0
      %698 = vmatpush2.bf16.xpose.msra.mxu0 0
      %699 = vmatprep.subr.bf16.mxu0 0
      %700 = vmatpush2.bf16.xpose.msra.mxu0 0
      %701 = vmatprep.subr.bf16.mxu0 0
      %702 = vmatpush2.bf16.xpose.msra.mxu0 0
      %703 = vmatprep.subr.bf16.mxu0 0
      %704 = vmatpush2.bf16.xpose.msra.mxu0 0
      %705 = vmatprep.subr.bf16.mxu0 0
      %706 = vmatpush2.bf16.xpose.msra.mxu0 0
      %707 = vmatprep.subr.bf16.mxu0 0
      %708 = vmatpush2.bf16.xpose.msra.mxu0 0
      %709 = vmatprep.mubr.bf16.mxu0 0
      %710 = vmatmul.mubr.bf16.gmra.mxu0 %v672
      %v711 = vpop.f32.mrf.mxu0
      %v712 = vadd.f32 %v553, %v711
      %v713 = vpop.f32.mrf.mxu0
      %v714 = vpop.f32.mrf.mxu0
      %v715 = vpop.f32.mrf.mxu0
      %716 = vdwg.mxu0
      %v717 = vsel %vm558, %v712, -inf
      %718 = vmax.xlane.f32.xlu0 %v717
      %v719 = vpop.xlane.xlu0 %718
      %v720 = vsub.f32 %v712, %v719
      %v721 = vmul.f32 %v720, 1.442695
      %v722 = vpow.pop %v721
      %v723 = vsel %vm558, %v722, 0.0
      %724 = vadd.xlane.f32.xlu0 %v723
      %v725 = vpop.xlane.xlu0 %724
      %v726 = vpack.c.bf16 %v722, %v722
      %727 = vrot.lane.b32.xlu0 %v548, 56
      %v728 = vpop.permute.xlu0 %727
      %v730 = vsel %vm558, %v726, 0
      %v733 = vsel %vm620, %v728, 0
      %735 = vmatprep.subr.bf16.mxu0 0
      %736 = vmatpush1.bf16.msra.mxu0 0
      %737 = vmatprep.subr.bf16.mxu0 0
      %738 = vmatpush1.bf16.msra.mxu0 0
      %739 = vmatprep.subr.bf16.mxu0 0
      %740 = vmatpush1.bf16.msra.mxu0 0
      %741 = vmatprep.subr.bf16.mxu0 0
      %742 = vmatpush1.bf16.msra.mxu0 0
      %743 = vmatprep.subr.bf16.mxu0 0
      %744 = vmatpush1.bf16.msra.mxu0 0
      %745 = vmatprep.subr.bf16.mxu0 0
      %746 = vmatpush1.bf16.msra.mxu0 0
      %747 = vmatprep.subr.bf16.mxu0 0
      %748 = vmatpush1.bf16.msra.mxu0 0
      %749 = vmatprep.subr.bf16.mxu0 0
      %750 = vmatpush1.bf16.msra.mxu0 %v733
      %751 = vmatprep.subr.bf16.mxu0 0
      %752 = vmatpush2.bf16.msra.mxu0 0
      %753 = vmatprep.subr.bf16.mxu0 0
      %754 = vmatpush2.bf16.msra.mxu0 0
      %755 = vmatprep.subr.bf16.mxu0 0
      %756 = vmatpush2.bf16.msra.mxu0 0
      %757 = vmatprep.subr.bf16.mxu0 0
      %758 = vmatpush2.bf16.msra.mxu0 0
      %759 = vmatprep.subr.bf16.mxu0 0
      %760 = vmatpush2.bf16.msra.mxu0 0
      %761 = vmatprep.subr.bf16.mxu0 0
      %762 = vmatpush2.bf16.msra.mxu0 0
      %763 = vmatprep.subr.bf16.mxu0 0
      %764 = vmatpush2.bf16.msra.mxu0 0
      %765 = vmatprep.subr.bf16.mxu0 0
      %766 = vmatpush2.bf16.msra.mxu0 0
      %767 = vmatprep.mubr.bf16.mxu0 0
      %768 = vmatmul.mubr.bf16.gmra.mxu0 %v730
      %v769 = vpop.f32.mrf.mxu0
      %v770 = vadd.f32 0.0, %v769
      %v771 = vpop.f32.mrf.mxu0
      %v772 = vpop.f32.mrf.mxu0
      %v773 = vpop.f32.mrf.mxu0
      %774 = vdwg.mxu0
      %v775 = vrcp.pop %v725
      %v776 = vmul.f32 %v770, %v775
      %778 = vrot.lane.b32.xlu0 %v776, 8
      %v779 = vpop.permute.xlu0 %778
      %vm781 = vcmask 130112
      %782 = vst.msk [vmem:[#allocation2] sm:$0xff] %vm781, %v779
      %783 = vrot.lane.b32.xlu0 %v548, 112
      %v784 = vpop.permute.xlu0 %783
      %785 = vrot.lane.b32.xlu0 %v548, 80
      %v786 = vpop.permute.xlu0 %785
      %v788 = vsel %vm558, %v784, 0
      %v791 = vsel %vm558, %v786, 0
      %793 = vmatprep.subr.bf16.mxu0 0
      %794 = vmatpush1.bf16.xpose.msra.mxu0 0
      %795 = vmatprep.subr.bf16.mxu0 0
      %796 = vmatpush1.bf16.xpose.msra.mxu0 0
      %797 = vmatprep.subr.bf16.mxu0 0
      %798 = vmatpush1.bf16.xpose.msra.mxu0 0
      %799 = vmatprep.subr.bf16.mxu0 0
      %800 = vmatpush1.bf16.xpose.msra.mxu0 0
      %801 = vmatprep.subr.bf16.mxu0 0
      %802 = vmatpush1.bf16.xpose.msra.mxu0 0
      %803 = vmatprep.subr.bf16.mxu0 0
      %804 = vmatpush1.bf16.xpose.msra.mxu0 0
      %805 = vmatprep.subr.bf16.mxu0 0
      %806 = vmatpush1.bf16.xpose.msra.mxu0 0
      %807 = vmatprep.subr.bf16.mxu0 0
      %808 = vmatpush1.bf16.xpose.msra.mxu0 %v791
      %809 = vmatprep.subr.bf16.mxu0 0
      %810 = vmatpush2.bf16.xpose.msra.mxu0 0
      %811 = vmatprep.subr.bf16.mxu0 0
      %812 = vmatpush2.bf16.xpose.msra.mxu0 0
      %813 = vmatprep.subr.bf16.mxu0 0
      %814 = vmatpush2.bf16.xpose.msra.mxu0 0
      %815 = vmatprep.subr.bf16.mxu0 0
      %816 = vmatpush2.bf16.xpose.msra.mxu0 0
      %817 = vmatprep.subr.bf16.mxu0 0
      %818 = vmatpush2.bf16.xpose.msra.mxu0 0
      %819 = vmatprep.subr.bf16.mxu0 0
      %820 = vmatpush2.bf16.xpose.msra.mxu0 0
      %821 = vmatprep.subr.bf16.mxu0 0
      %822 = vmatpush2.bf16.xpose.msra.mxu0 0
      %823 = vmatprep.subr.bf16.mxu0 0
      %824 = vmatpush2.bf16.xpose.msra.mxu0 0
      %825 = vmatprep.mubr.bf16.mxu0 0
      %826 = vmatmul.mubr.bf16.gmra.mxu0 %v788
      %v827 = vpop.f32.mrf.mxu0
      %v828 = vadd.f32 %v553, %v827
      %v829 = vpop.f32.mrf.mxu0
      %v830 = vpop.f32.mrf.mxu0
      %v831 = vpop.f32.mrf.mxu0
      %832 = vdwg.mxu0
      %v833 = vsel %vm558, %v828, -inf
      %834 = vmax.xlane.f32.xlu0 %v833
      %v835 = vpop.xlane.xlu0 %834
      %v836 = vsub.f32 %v828, %v835
      %v837 = vmul.f32 %v836, 1.442695
      %v838 = vpow.pop %v837
      %v839 = vsel %vm558, %v838, 0.0
      %840 = vadd.xlane.f32.xlu0 %v839
      %v841 = vpop.xlane.xlu0 %840
      %v842 = vpack.c.bf16 %v838, %v838
      %843 = vrot.lane.b32.xlu0 %v548, 48
      %v844 = vpop.permute.xlu0 %843
      %v846 = vsel %vm558, %v842, 0
      %v849 = vsel %vm620, %v844, 0
      %851 = vmatprep.subr.bf16.mxu0 0
      %852 = vmatpush1.bf16.msra.mxu0 0
      %853 = vmatprep.subr.bf16.mxu0 0
      %854 = vmatpush1.bf16.msra.mxu0 0
      %855 = vmatprep.subr.bf16.mxu0 0
      %856 = vmatpush1.bf16.msra.mxu0 0
      %857 = vmatprep.subr.bf16.mxu0 0
      %858 = vmatpush1.bf16.msra.mxu0 0
      %859 = vmatprep.subr.bf16.mxu0 0
      %860 = vmatpush1.bf16.msra.mxu0 0
      %861 = vmatprep.subr.bf16.mxu0 0
      %862 = vmatpush1.bf16.msra.mxu0 0
      %863 = vmatprep.subr.bf16.mxu0 0
      %864 = vmatpush1.bf16.msra.mxu0 0
      %865 = vmatprep.subr.bf16.mxu0 0
      %866 = vmatpush1.bf16.msra.mxu0 %v849
      %867 = vmatprep.subr.bf16.mxu0 0
      %868 = vmatpush2.bf16.msra.mxu0 0
      %869 = vmatprep.subr.bf16.mxu0 0
      %870 = vmatpush2.bf16.msra.mxu0 0
      %871 = vmatprep.subr.bf16.mxu0 0
      %872 = vmatpush2.bf16.msra.mxu0 0
      %873 = vmatprep.subr.bf16.mxu0 0
      %874 = vmatpush2.bf16.msra.mxu0 0
      %875 = vmatprep.subr.bf16.mxu0 0
      %876 = vmatpush2.bf16.msra.mxu0 0
      %877 = vmatprep.subr.bf16.mxu0 0
      %878 = vmatpush2.bf16.msra.mxu0 0
      %879 = vmatprep.subr.bf16.mxu0 0
      %880 = vmatpush2.bf16.msra.mxu0 0
      %881 = vmatprep.subr.bf16.mxu0 0
      %882 = vmatpush2.bf16.msra.mxu0 0
      %883 = vmatprep.mubr.bf16.mxu0 0
      %884 = vmatmul.mubr.bf16.gmra.mxu0 %v846
      %v885 = vpop.f32.mrf.mxu0
      %v886 = vadd.f32 0.0, %v885
      %v887 = vpop.f32.mrf.mxu0
      %v888 = vpop.f32.mrf.mxu0
      %v889 = vpop.f32.mrf.mxu0
      %890 = vdwg.mxu0
      %v891 = vrcp.pop %v841
      %v892 = vmul.f32 %v886, %v891
      %894 = vrot.lane.b32.xlu0 %v892, 16
      %v895 = vpop.permute.xlu0 %894
      %vm897 = vcmask 195712
      %898 = vst.msk [vmem:[#allocation2] sm:$0xff] %vm897, %v895
      %899 = vrot.lane.b32.xlu0 %v548, 104
      %v900 = vpop.permute.xlu0 %899
      %901 = vrot.lane.b32.xlu0 %v548, 72
      %v902 = vpop.permute.xlu0 %901
      %v904 = vsel %vm558, %v900, 0
      %v907 = vsel %vm558, %v902, 0
      %909 = vmatprep.subr.bf16.mxu0 0
      %910 = vmatpush1.bf16.xpose.msra.mxu0 0
      %911 = vmatprep.subr.bf16.mxu0 0
      %912 = vmatpush1.bf16.xpose.msra.mxu0 0
      %913 = vmatprep.subr.bf16.mxu0 0
      %914 = vmatpush1.bf16.xpose.msra.mxu0 0
      %915 = vmatprep.subr.bf16.mxu0 0
      %916 = vmatpush1.bf16.xpose.msra.mxu0 0
      %917 = vmatprep.subr.bf16.mxu0 0
      %918 = vmatpush1.bf16.xpose.msra.mxu0 0
      %919 = vmatprep.subr.bf16.mxu0 0
      %920 = vmatpush1.bf16.xpose.msra.mxu0 0
      %921 = vmatprep.subr.bf16.mxu0 0
      %922 = vmatpush1.bf16.xpose.msra.mxu0 0
      %923 = vmatprep.subr.bf16.mxu0 0
      %924 = vmatpush1.bf16.xpose.msra.mxu0 %v907
      %925 = vmatprep.subr.bf16.mxu0 0
      %926 = vmatpush2.bf16.xpose.msra.mxu0 0
      %927 = vmatprep.subr.bf16.mxu0 0
      %928 = vmatpush2.bf16.xpose.msra.mxu0 0
      %929 = vmatprep.subr.bf16.mxu0 0
      %930 = vmatpush2.bf16.xpose.msra.mxu0 0
      %931 = vmatprep.subr.bf16.mxu0 0
      %932 = vmatpush2.bf16.xpose.msra.mxu0 0
      %933 = vmatprep.subr.bf16.mxu0 0
      %934 = vmatpush2.bf16.xpose.msra.mxu0 0
      %935 = vmatprep.subr.bf16.mxu0 0
      %936 = vmatpush2.bf16.xpose.msra.mxu0 0
      %937 = vmatprep.subr.bf16.mxu0 0
      %938 = vmatpush2.bf16.xpose.msra.mxu0 0
      %939 = vmatprep.subr.bf16.mxu0 0
      %940 = vmatpush2.bf16.xpose.msra.mxu0 0
      %941 = vmatprep.mubr.bf16.mxu0 0
      %942 = vmatmul.mubr.bf16.gmra.mxu0 %v904
      %v943 = vpop.f32.mrf.mxu0
      %v944 = vadd.f32 %v553, %v943
      %v945 = vpop.f32.mrf.mxu0
      %v946 = vpop.f32.mrf.mxu0
      %v947 = vpop.f32.mrf.mxu0
      %948 = vdwg.mxu0
      %v949 = vsel %vm558, %v944, -inf
      %950 = vmax.xlane.f32.xlu0 %v949
      %v951 = vpop.xlane.xlu0 %950
      %v952 = vsub.f32 %v944, %v951
      %v953 = vmul.f32 %v952, 1.442695
      %v954 = vpow.pop %v953
      %v955 = vsel %vm558, %v954, 0.0
      %956 = vadd.xlane.f32.xlu0 %v955
      %v957 = vpop.xlane.xlu0 %956
      %v958 = vpack.c.bf16 %v954, %v954
      %959 = vrot.lane.b32.xlu0 %v548, 40
      %v960 = vpop.permute.xlu0 %959
      %v962 = vsel %vm558, %v958, 0
      %v965 = vsel %vm620, %v960, 0
      %967 = vmatprep.subr.bf16.mxu0 0
      %968 = vmatpush1.bf16.msra.mxu0 0
      %969 = vmatprep.subr.bf16.mxu0 0
      %970 = vmatpush1.bf16.msra.mxu0 0
      %971 = vmatprep.subr.bf16.mxu0 0
      %972 = vmatpush1.bf16.msra.mxu0 0
      %973 = vmatprep.subr.bf16.mxu0 0
      %974 = vmatpush1.bf16.msra.mxu0 0
      %975 = vmatprep.subr.bf16.mxu0 0
      %976 = vmatpush1.bf16.msra.mxu0 0
      %977 = vmatprep.subr.bf16.mxu0 0
      %978 = vmatpush1.bf16.msra.mxu0 0
      %979 = vmatprep.subr.bf16.mxu0 0
      %980 = vmatpush1.bf16.msra.mxu0 0
      %981 = vmatprep.subr.bf16.mxu0 0
      %982 = vmatpush1.bf16.msra.mxu0 %v965
      %983 = vmatprep.subr.bf16.mxu0 0
      %984 = vmatpush2.bf16.msra.mxu0 0
      %985 = vmatprep.subr.bf16.mxu0 0
      %986 = vmatpush2.bf16.msra.mxu0 0
      %987 = vmatprep.subr.bf16.mxu0 0
      %988 = vmatpush2.bf16.msra.mxu0 0
      %989 = vmatprep.subr.bf16.mxu0 0
      %990 = vmatpush2.bf16.msra.mxu0 0
      %991 = vmatprep.subr.bf16.mxu0 0
      %992 = vmatpush2.bf16.msra.mxu0 0
      %993 = vmatprep.subr.bf16.mxu0 0
      %994 = vmatpush2.bf16.msra.mxu0 0
      %995 = vmatprep.subr.bf16.mxu0 0
      %996 = vmatpush2.bf16.msra.mxu0 0
      %997 = vmatprep.subr.bf16.mxu0 0
      %998 = vmatpush2.bf16.msra.mxu0 0
      %999 = vmatprep.mubr.bf16.mxu0 0
      %1000 = vmatmul.mubr.bf16.gmra.mxu0 %v962
      %v1001 = vpop.f32.mrf.mxu0
      %v1002 = vadd.f32 0.0, %v1001
      %v1003 = vpop.f32.mrf.mxu0
      %v1004 = vpop.f32.mrf.mxu0
      %v1005 = vpop.f32.mrf.mxu0
      %1006 = vdwg.mxu0
      %v1007 = vrcp.pop %v957
      %v1008 = vmul.f32 %v1002, %v1007
      %1010 = vrot.lane.b32.xlu0 %v1008, 24
      %v1011 = vpop.permute.xlu0 %1010
      %vm1013 = vcmask 261312
      %1014 = vst.msk [vmem:[#allocation2] sm:$0xff] %vm1013, %v1011
      %v1015 = vld [vmem:[#allocation2] sm:$0xff]
      %v1016 = vpack.c.bf16 %v1015, %v1015
      %v1017 = vld [vmem:[%s4] sm:$0xf]
      %v1018 = vld [vmem:[%s4 + $0x4] sm:$0xf]
      %v1019 = vld [vmem:[%s4 + $0x8] sm:$0xf]
      %v1020 = vld [vmem:[%s4 + $0xc] sm:$0xf]
      %v1021 = vld [vmem:[%s5] sm:$0x1]
      %v1023 = vlaneseq
      %v1024 = vshrl.u32 %v1023, 7
      %v1025 = vsub.s32 0, %v1024
      %v1026 = vrot.slane %v1021, %v1025
      %v1032 = vunpack.c.l.b16 %v1017
      %v1033 = vunpack.c.l.b16 %v1018
      %v1034 = vunpack.c.l.b16 %v1019
      %v1035 = vunpack.c.l.b16 %v1020
      %v1036 = vpack.c.b16 %v1033, %v1032
      %v1037 = vpack.c.b16 %v1035, %v1034
      %v1041 = vsel %vm503, %v1016, 0
      %1043 = vmatprep.subr.bf16.mxu0 0
      %1044 = vmatpush1.bf16.msra.mxu0 0
      %1045 = vmatprep.subr.bf16.mxu0 0
      %1046 = vmatpush1.bf16.msra.mxu0 0
      %1047 = vmatprep.subr.bf16.mxu0 0
      %1048 = vmatpush1.bf16.msra.mxu0 0
      %1049 = vmatprep.subr.bf16.mxu0 0
      %1050 = vmatpush1.bf16.msra.mxu0 0
      %1051 = vmatprep.subr.bf16.mxu0 0
      %1052 = vmatpush1.bf16.msra.mxu0 0
      %1053 = vmatprep.subr.bf16.mxu0 0
      %1054 = vmatpush1.bf16.msra.mxu0 0
      %1055 = vmatprep.subr.bf16.mxu0 0
      %1056 = vmatpush1.bf16.msra.mxu0 %v1037
      %1057 = vmatprep.subr.bf16.mxu0 0
      %1058 = vmatpush1.bf16.msra.mxu0 %v1036
      %1059 = vmatprep.subr.bf16.mxu0 0
      %1060 = vmatpush2.bf16.msra.mxu0 0
      %1061 = vmatprep.subr.bf16.mxu0 0
      %1062 = vmatpush2.bf16.msra.mxu0 0
      %1063 = vmatprep.subr.bf16.mxu0 0
      %1064 = vmatpush2.bf16.msra.mxu0 0
      %1065 = vmatprep.subr.bf16.mxu0 0
      %1066 = vmatpush2.bf16.msra.mxu0 0
      %1067 = vmatprep.subr.bf16.mxu0 0
      %1068 = vmatpush2.bf16.msra.mxu0 0
      %1069 = vmatprep.subr.bf16.mxu0 0
      %1070 = vmatpush2.bf16.msra.mxu0 0
      %1071 = vmatprep.subr.bf16.mxu0 0
      %1072 = vmatpush2.bf16.msra.mxu0 0
      %1073 = vmatprep.subr.bf16.mxu0 0
      %1074 = vmatpush2.bf16.msra.mxu0 0
      %1075 = vmatprep.mubr.bf16.mxu0 0
      %1076 = vmatmul.mubr.bf16.gmra.mxu0 %v1041
      %v1077 = vpop.f32.mrf.mxu0
      %v1078 = vadd.f32 %v1026, %v1077
      %v1079 = vpop.f32.mrf.mxu0
      %v1080 = vpop.f32.mrf.mxu0
      %v1081 = vpop.f32.mrf.mxu0
      %1082 = vdwg.mxu0
      %v1083 = vadd.f32 %v479, %v1078
      %v1084 = vld [vmem:[%s6] sm:$0x1]
      %v1085 = vld [vmem:[%s7] sm:$0x1]
      %v1086 = vsel %vm503, %v1083, 0.0
      %1087 = vadd.xlane.f32.xlu0 %v1086
      %v1088 = vpop.xlane.xlu0 %1087
      %v1089 = vrcp.pop 32.0
      %v1090 = vmul.f32 %v1088, %v1089
      %v1091 = vsub.f32 %v1083, %v1090
      %v1092 = vmul.f32 %v1091, %v1091
      %v1093 = vsel %vm503, %v1092, 0.0
      %1094 = vadd.xlane.f32.xlu0 %v1093
      %v1095 = vpop.xlane.xlu0 %1094
      %v1096 = vmul.f32 %v1095, %v1089
      %v1097 = vadd.f32 %v1096, 1e-12
      %v1098 = vrsqrt.pop %v1097
      %v1099 = vmul.f32 %v1091, %v1098
      %v1101 = vlaneseq
      %v1102 = vshrl.u32 %v1101, 7
      %v1103 = vsub.s32 0, %v1102
      %v1104 = vrot.slane %v1084, %v1103
      %v1106 = vmul.f32 %v1099, %v1104
      %v1108 = vlaneseq
      %v1109 = vshrl.u32 %v1108, 7
      %v1110 = vsub.s32 0, %v1109
      %v1111 = vrot.slane %v1085, %v1110
      %v1113 = vadd.f32 %v1106, %v1111
      %v1114 = vpack.c.bf16 %v1113, %v1113
      %v1115 = vld [vmem:[%s8] sm:$0xf]
      %v1116 = vld [vmem:[%s8 + $0x4] sm:$0xf]
      %v1117 = vld [vmem:[%s8 + $0x8] sm:$0xf]
      %v1118 = vld [vmem:[%s8 + $0xc] sm:$0xf]
      %v1119 = vld [vmem:[%s9] sm:$0x1]
      %v1121 = vlaneseq
      %v1122 = vshrl.u32 %v1121, 7
      %v1123 = vsub.s32 0, %v1122
      %v1124 = vrot.slane %v1119, %v1123
      %v1130 = vunpack.c.l.b16 %v1115
      %v1131 = vunpack.c.l.b16 %v1116
      %v1132 = vunpack.c.l.b16 %v1117
      %v1133 = vunpack.c.l.b16 %v1118
      %v1134 = vpack.c.b16 %v1131, %v1130
      %v1135 = vpack.c.b16 %v1133, %v1132
      %v1139 = vsel %vm503, %v1114, 0
      %1141 = vmatprep.subr.bf16.mxu0 0
      %1142 = vmatpush1.bf16.msra.mxu0 0
      %1143 = vmatprep.subr.bf16.mxu0 0
      %1144 = vmatpush1.bf16.msra.mxu0 0
      %1145 = vmatprep.subr.bf16.mxu0 0
      %1146 = vmatpush1.bf16.msra.mxu0 0
      %1147 = vmatprep.subr.bf16.mxu0 0
      %1148 = vmatpush1.bf16.msra.mxu0 0
      %1149 = vmatprep.subr.bf16.mxu0 0
      %1150 = vmatpush1.bf16.msra.mxu0 0
      %1151 = vmatprep.subr.bf16.mxu0 0
      %1152 = vmatpush1.bf16.msra.mxu0 0
      %1153 = vmatprep.subr.bf16.mxu0 0
      %1154 = vmatpush1.bf16.msra.mxu0 %v1135
      %1155 = vmatprep.subr.bf16.mxu0 0
      %1156 = vmatpush1.bf16.msra.mxu0 %v1134
      %1157 = vmatprep.subr.bf16.mxu0 0
      %1158 = vmatpush2.bf16.msra.mxu0 0
      %1159 = vmatprep.subr.bf16.mxu0 0
      %1160 = vmatpush2.bf16.msra.mxu0 0
      %1161 = vmatprep.subr.bf16.mxu0 0
      %1162 = vmatpush2.bf16.msra.mxu0 0
      %1163 = vmatprep.subr.bf16.mxu0 0
      %1164 = vmatpush2.bf16.msra.mxu0 0
      %1165 = vmatprep.subr.bf16.mxu0 0
      %1166 = vmatpush2.bf16.msra.mxu0 0
      %1167 = vmatprep.subr.bf16.mxu0 0
      %1168 = vmatpush2.bf16.msra.mxu0 0
      %1169 = vmatprep.subr.bf16.mxu0 0
      %1170 = vmatpush2.bf16.msra.mxu0 0
      %1171 = vmatprep.subr.bf16.mxu0 0
      %1172 = vmatpush2.bf16.msra.mxu0 0
      %1173 = vmatprep.mubr.bf16.mxu0 0
      %1174 = vmatmul.mubr.bf16.gmra.mxu0 %v1139
      %v1175 = vpop.f32.mrf.mxu0
      %v1176 = vadd.f32 %v1124, %v1175
      %v1177 = vpop.f32.mrf.mxu0
      %v1178 = vpop.f32.mrf.mxu0
      %v1179 = vpop.f32.mrf.mxu0
      %1180 = vdwg.mxu0
      %v1181 = vmul.f32 %v1176, %v1176
      %v1182 = vmul.f32 %v1176, %v1181
      %v1183 = vmul.f32 %v1182, 0.044715
      %v1184 = vadd.f32 %v1176, %v1183
      %v1185 = vmul.f32 %v1184, 0.7978846
      %v1186 = vtanh.pop %v1185
      %v1187 = vadd.f32 %v1186, 1.0
      %v1188 = vmul.f32 %v1187, 0.5
      %v1189 = vmul.f32 %v1176, %v1188
      %v1190 = vpack.c.bf16 %v1189, %v1189
      %v1191 = vld [vmem:[%s10] sm:$0xf]
      %v1192 = vld [vmem:[%s10 + $0x4] sm:$0xf]
      %v1193 = vld [vmem:[%s10 + $0x8] sm:$0xf]
      %v1194 = vld [vmem:[%s10 + $0xc] sm:$0xf]
      %v1195 = vld [vmem:[%s10 + $0x10] sm:$0xf]
      %v1196 = vld [vmem:[%s10 + $0x14] sm:$0xf]
      %v1197 = vld [vmem:[%s10 + $0x18] sm:$0xf]
      %v1198 = vld [vmem:[%s10 + $0x1c] sm:$0xf]
      %v1199 = vld [vmem:[%s11] sm:$0x1]
      %v1201 = vlaneseq
      %v1202 = vshrl.u32 %v1201, 7
      %v1203 = vsub.s32 0, %v1202
      %v1204 = vrot.slane %v1199, %v1203
      %v1214 = vunpack.c.l.b16 %v1191
      %v1215 = vunpack.c.l.b16 %v1192
      %v1216 = vunpack.c.l.b16 %v1193
      %v1217 = vunpack.c.l.b16 %v1194
      %v1218 = vunpack.c.l.b16 %v1195
      %v1219 = vunpack.c.l.b16 %v1196
      %v1220 = vunpack.c.l.b16 %v1197
      %v1221 = vunpack.c.l.b16 %v1198
      %v1222 = vpack.c.b16 %v1215, %v1214
      %v1223 = vpack.c.b16 %v1217, %v1216
      %v1224 = vpack.c.b16 %v1219, %v1218
      %v1225 = vpack.c.b16 %v1221, %v1220
      %vm1230 = vcmask 523264
      %v1232 = vsel %vm1230, %v1190, 0
      %1234 = vmatprep.subr.bf16.mxu0 0
      %1235 = vmatpush1.bf16.msra.mxu0 0
      %1236 = vmatprep.subr.bf16.mxu0 0
      %1237 = vmatpush1.bf16.msra.mxu0 0
      %1238 = vmatprep.subr.bf16.mxu0 0
      %1239 = vmatpush1.bf16.msra.mxu0 0
      %1240 = vmatprep.subr.bf16.mxu0 0
      %1241 = vmatpush1.bf16.msra.mxu0 0
      %1242 = vmatprep.subr.bf16.mxu0 0
      %1243 = vmatpush1.bf16.msra.mxu0 %v1225
      %1244 = vmatprep.subr.bf16.mxu0 0
      %1245 = vmatpush1.bf16.msra.mxu0 %v1224
      %1246 = vmatprep.subr.bf16.mxu0 0
      %1247 = vmatpush1.bf16.msra.mxu0 %v1223
      %1248 = vmatprep.subr.bf16.mxu0 0
      %1249 = vmatpush1.bf16.msra.mxu0 %v1222
      %1250 = vmatprep.subr.bf16.mxu0 0
      %1251 = vmatpush2.bf16.msra.mxu0 0
      %1252 = vmatprep.subr.bf16.mxu0 0
      %1253 = vmatpush2.bf16.msra.mxu0 0
      %1254 = vmatprep.subr.bf16.mxu0 0
      %1255 = vmatpush2.bf16.msra.mxu0 0
      %1256 = vmatprep.subr.bf16.mxu0 0
      %1257 = vmatpush2.bf16.msra.mxu0 0
      %1258 = vmatprep.subr.bf16.mxu0 0
      %1259 = vmatpush2.bf16.msra.mxu0 0
      %1260 = vmatprep.subr.bf16.mxu0 0
      %1261 = vmatpush2.bf16.msra.mxu0 0
      %1262 = vmatprep.subr.bf16.mxu0 0
      %1263 = vmatpush2.bf16.msra.mxu0 0
      %1264 = vmatprep.subr.bf16.mxu0 0
      %1265 = vmatpush2.bf16.msra.mxu0 0
      %1266 = vmatprep.mubr.bf16.mxu0 0
      %1267 = vmatmul.mubr.bf16.gmra.mxu0 %v1232
      %v1268 = vpop.f32.mrf.mxu0
      %v1269 = vadd.f32 %v1204, %v1268
      %v1270 = vpop.f32.mrf.mxu0
      %v1271 = vpop.f32.mrf.mxu0
      %v1272 = vpop.f32.mrf.mxu0
      %1273 = vdwg.mxu0
      %v1274 = vadd.f32 %v1113, %v1269
      %v1275 = vld [vmem:[%s12] sm:$0x1]
      %v1276 = vld [vmem:[%s13] sm:$0x1]
      %v1277 = vsel %vm503, %v1274, 0.0
      %1278 = vadd.xlane.f32.xlu0 %v1277
      %v1279 = vpop.xlane.xlu0 %1278
      %v1280 = vmul.f32 %v1279, %v1089
      %v1281 = vsub.f32 %v1274, %v1280
      %v1282 = vmul.f32 %v1281, %v1281
      %v1283 = vsel %vm503, %v1282, 0.0
      %1284 = vadd.xlane.f32.xlu0 %v1283
      %v1285 = vpop.xlane.xlu0 %1284
      %v1286 = vmul.f32 %v1285, %v1089
      %v1287 = vadd.f32 %v1286, 1e-12
      %v1288 = vrsqrt.pop %v1287
      %v1289 = vmul.f32 %v1281, %v1288
      %v1291 = vlaneseq
      %v1292 = vshrl.u32 %v1291, 7
      %v1293 = vsub.s32 0, %v1292
      %v1294 = vrot.slane %v1275, %v1293
      %v1296 = vmul.f32 %v1289, %v1294
      %v1298 = vlaneseq
      %v1299 = vshrl.u32 %v1298, 7
      %v1300 = vsub.s32 0, %v1299
      %v1301 = vrot.slane %v1276, %v1300
      %v1303 = vadd.f32 %v1296, %v1301
      %v1304 = vpack.c.bf16 %v1303, %v1303
      %vm1305 = vcmask 257024
      %1306 = vst.msk [vmem:[%s476] sm:$0xf] %vm1305, %v1304
      %p1307 = scmp.lt.s32.totalorder %s25, 5
      %s1308 = scalar_select %p1307, %s25, 5
      %s1309 = smul.addr %s1308, 4
      %s1310 = scalar_lea.vmem %s14, %s1309
      // Predicated region
      $region77: #{simplified_html_forward.5} parent=75 // pred_check
        %p1311 = pneg %p347
      $region78: #{simplified_html_forward.5} parent=75 // pred_check_branch
        %1313 = sbr.rel (%p1311) target = $region80
      $region79: #{simplified_html_forward.5} parent=75 // pred_region
        _
      $region80: #{simplified_html_forward.5} parent=75 // pred_fallthru
        _
    $region76: #{simplified_html_forward.5} parent=5 // pred_fallthru
      _
    %p1314 = scmp.le.s32.totalorder 2, %s20
    // Predicated region
    $region81: #{simplified_html_forward.5} parent=5 // pred_check
      %p1315 = pneg %p1314
    $region82: #{simplified_html_forward.5} parent=5 // pred_check_branch
      %1317 = sbr.rel (%p1315) target = $region84
    $region83: #{simplified_html_forward.5} parent=5 // pred_region
      %s1318 = ssub.s32 %s20, 2
      // Predicated region
      $region85: #{simplified_html_forward.5} parent=83 // pred_check
        %p1319 = pneg %p353
      $region86: #{simplified_html_forward.5} parent=83 // pred_check_branch
        %1321 = sbr.rel (%p1319) target = $region88
      $region87: #{simplified_html_forward.5} parent=83 // pred_region
        %p1322 = scmp.lt.s32.totalorder %s26, 5
        %s1323 = scalar_select %p1322, %s26, 5
        %s1324 = smul.addr %s1323, 4
        %s1325 = scalar_lea.vmem %s14, %s1324
      $region88: #{simplified_html_forward.5} parent=83 // pred_fallthru
        _
    $region84: #{simplified_html_forward.5} parent=5 // pred_fallthru
      _
  $region6: #{simplified_html_forward.5} parent=0 // loop_footer
    %s24 = sadd.s32 1, %s20
  $region7: #{simplified_html_forward.5} parent=0 // loop_footer_branch
    %19 = sbr.rel target = $region3
  $region8: #{simplified_html_forward.5} parent=0 // loop_exit
    _

// kernel: simplified_html_forward.6
$region0: #{simplified_html_forward.6}
  #allocation0 [shape = 'u32[]', space=smem, size = 0x4, offset = 0x4, fixed_abs, tag = 'smem constant byte address 0x4 - core index']
  #allocation1 [shape = 'u32[144,128]{1,0:T(1,128)}', space=vmem, size = 0x12000, scoped, tag = 'internal scratch']
  #allocation2 [shape = 'f32[8,32]{1,0:T(8,128)}', space=vmem, size = 0x1000, scoped, tag = 'scratch operand']
  %s0 = inlined_call_operand.vmem [shape: bf16[6,8,32], index: 0, kind: input, shape index: {}]
  %s1 = inlined_call_operand.vmem [shape: f32[6,1,8], index: 1, kind: input, shape index: {}]
  %s2 = inlined_call_operand.vmem [shape: bf16[32,96], index: 2, kind: input, shape index: {}]
  %s3 = inlined_call_operand.vmem [shape: f32[1,96], index: 3, kind: input, shape index: {}]
  %s4 = inlined_call_operand.vmem [shape: bf16[32,32], index: 4, kind: input, shape index: {}]
  %s5 = inlined_call_operand.vmem [shape: f32[1,32], index: 5, kind: input, shape index: {}]
  %s6 = inlined_call_operand.vmem [shape: f32[1,32], index: 6, kind: input, shape index: {}]
  %s7 = inlined_call_operand.vmem [shape: f32[1,32], index: 7, kind: input, shape index: {}]
  %s8 = inlined_call_operand.vmem [shape: bf16[32,64], index: 8, kind: input, shape index: {}]
  %s9 = inlined_call_operand.vmem [shape: f32[1,64], index: 9, kind: input, shape index: {}]
  %s10 = inlined_call_operand.vmem [shape: bf16[64,32], index: 10, kind: input, shape index: {}]
  %s11 = inlined_call_operand.vmem [shape: f32[1,32], index: 11, kind: input, shape index: {}]
  %s12 = inlined_call_operand.vmem [shape: f32[1,32], index: 12, kind: input, shape index: {}]
  %s13 = inlined_call_operand.vmem [shape: f32[1,32], index: 13, kind: input, shape index: {}]
  %s14 = inlined_call_operand.vmem [shape: f32[6,1,32], index: 14, kind: output, shape index: {}]
  %s15 = sld [smem:[#allocation0]]
  $region89: #{simplified_html_forward.6} parent=0
    _
  %s17 = ssub.s32 1, %s15
  %s18 = scalar_select 0, %s17, %s15
  loop: start=0, step=1, limit=8
  $region2: #{simplified_html_forward.6} parent=0 // loop_pre_header
    _
  $region3: #{simplified_html_forward.6} parent=0 // loop_header
    %s20 = sphi 0, %s24
    %p21 = scmp.ge.s32.totalorder %s20, 8
    %s30 = sphi 0, %s32
    %s33 = sphi 0, %s30
    %s34 = sphi 0, %s33
    %s50 = sphi 0, %s34
    %s56 = sphi 0, %s58
    %s59 = sphi 0, %s56
    %s60 = sphi 0, %s59
    %s76 = sphi 0, %s60
    %s80 = sphi 0, %s80
    %s82 = sphi 0, %s80
    %s83 = sphi 0, %s82
    %s97 = sphi 0, %s83
    %s101 = sphi 0, %s101
    %s103 = sphi 0, %s101
    %s104 = sphi 0, %s103
    %s118 = sphi 0, %s104
    %s122 = sphi 0, %s122
    %s124 = sphi 0, %s122
    %s125 = sphi 0, %s124
    %s139 = sphi 0, %s125
    %s143 = sphi 0, %s143
    %s145 = sphi 0, %s143
    %s146 = sphi 0, %s145
    %s160 = sphi 0, %s146
    %s164 = sphi 0, %s164
    %s166 = sphi 0, %s164
    %s167 = sphi 0, %s166
    %s181 = sphi 0, %s167
    %s185 = sphi 0, %s185
    %s187 = sphi 0, %s185
    %s188 = sphi 0, %s187
    %s202 = sphi 0, %s188
    %s206 = sphi 0, %s206
    %s208 = sphi 0, %s206
    %s209 = sphi 0, %s208
    %s223 = sphi 0, %s209
    %s227 = sphi 0, %s227
    %s229 = sphi 0, %s227
    %s230 = sphi 0, %s229
    %s244 = sphi 0, %s230
    %s248 = sphi 0, %s248
    %s250 = sphi 0, %s248
    %s251 = sphi 0, %s250
    %s265 = sphi 0, %s251
    %s269 = sphi 0, %s269
    %s271 = sphi 0, %s269
    %s272 = sphi 0, %s271
    %s286 = sphi 0, %s272
    %s290 = sphi 0, %s290
    %s292 = sphi 0, %s290
    %s293 = sphi 0, %s292
    %s307 = sphi 0, %s293
    %s311 = sphi 0, %s311
    %s313 = sphi 0, %s311
    %s314 = sphi 0, %s313
    %s328 = sphi 0, %s314
    %s334 = sphi 0, %s336
    %s337 = sphi 0, %s334
    %s338 = sphi 0, %s337
    %s354 = sphi 0, %s338
  $region4: #{simplified_html_forward.6} parent=0 // loop_header_branch
    %23 = sbr.rel (%p21) target = $region8
  $region5: #{simplified_html_forward.6} parent=0 // loop_body
    %s25 = ssub.s32 %s20, 1
    %s26 = ssub.s32 %s20, 2
    %s27 = sadd.s32 %s20, 1
    %s28 = ssub.s32 %s20, %s27
    %p29 = scmp.eq.s32.totalorder %s28, 0
    %s31 = sadd.s32 %s30, 1
    %s32 = scalar_select %p29, %s30, %s31
    %p35 = pneg %p29
    %p36 = scmp.eq.s32.totalorder %s20, 5
    %p37 = por %p35, %p36
    %p38 = scmp.ne.s32.totalorder %s30, %s33
    %p39 = scmp.eq.s32.totalorder %s20, 0
    %p40 = por %p38, %p39
    %p41 = scmp.ne.s32.totalorder %s30, %s33
    %p42 = scmp.eq.s32.totalorder %s25, 5
    %p43 = por %p41, %p42
    %p44 = scmp.ne.s32.totalorder %s33, %s34
    %p45 = scmp.eq.s32.totalorder %s25, 0
    %p46 = por %p44, %p45
    %p47 = scmp.ne.s32.totalorder %s33, %s34
    %p48 = scmp.eq.s32.totalorder %s26, 5
    %p49 = por %p47, %p48
    %p51 = scmp.ne.s32.totalorder %s34, %s50
    %p52 = scmp.eq.s32.totalorder %s26, 0
    %p53 = por %p51, %p52
    %s54 = ssub.s32 %s20, %s27
    %p55 = scmp.eq.s32.totalorder %s54, 0
    %s57 = sadd.s32 %s56, 1
    %s58 = scalar_select %p55, %s56, %s57
    %p61 = pneg %p55
    %p62 = scmp.eq.s32.totalorder %s20, 5
    %p63 = por %p61, %p62
    %p64 = scmp.ne.s32.totalorder %s56, %s59
    %p65 = scmp.eq.s32.totalorder %s20, 0
    %p66 = por %p64, %p65
    %p67 = scmp.ne.s32.totalorder %s56, %s59
    %p68 = scmp.eq.s32.totalorder %s25, 5
    %p69 = por %p67, %p68
    %p70 = scmp.ne.s32.totalorder %s59, %s60
    %p71 = scmp.eq.s32.totalorder %s25, 0
    %p72 = por %p70, %p71
    %p73 = scmp.ne.s32.totalorder %s59, %s60
    %p74 = scmp.eq.s32.totalorder %s26, 5
    %p75 = por %p73, %p74
    %p77 = scmp.ne.s32.totalorder %s60, %s76
    %p78 = scmp.eq.s32.totalorder %s26, 0
    %p79 = por %p77, %p78
    %s81 = sadd.s32 %s80, 1
    %p84 = scmp.eq.s32.totalorder %s20, 5
    %p85 = scmp.ne.s32.totalorder %s80, %s82
    %p86 = scmp.eq.s32.totalorder %s20, 0
    %p87 = por %p85, %p86
    %p88 = scmp.ne.s32.totalorder %s80, %s82
    %p89 = scmp.eq.s32.totalorder %s25, 5
    %p90 = por %p88, %p89
    %p91 = scmp.ne.s32.totalorder %s82, %s83
    %p92 = scmp.eq.s32.totalorder %s25, 0
    %p93 = por %p91, %p92
    %p94 = scmp.ne.s32.totalorder %s82, %s83
    %p95 = scmp.eq.s32.totalorder %s26, 5
    %p96 = por %p94, %p95
    %p98 = scmp.ne.s32.totalorder %s83, %s97
    %p99 = scmp.eq.s32.totalorder %s26, 0
    %p100 = por %p98, %p99
    %s102 = sadd.s32 %s101, 1
    %p105 = scmp.eq.s32.totalorder %s20, 5
    %p106 = scmp.ne.s32.totalorder %s101, %s103
    %p107 = scmp.eq.s32.totalorder %s20, 0
    %p108 = por %p106, %p107
    %p109 = scmp.ne.s32.totalorder %s101, %s103
    %p110 = scmp.eq.s32.totalorder %s25, 5
    %p111 = por %p109, %p110
    %p112 = scmp.ne.s32.totalorder %s103, %s104
    %p113 = scmp.eq.s32.totalorder %s25, 0
    %p114 = por %p112, %p113
    %p115 = scmp.ne.s32.totalorder %s103, %s104
    %p116 = scmp.eq.s32.totalorder %s26, 5
    %p117 = por %p115, %p116
    %p119 = scmp.ne.s32.totalorder %s104, %s118
    %p120 = scmp.eq.s32.totalorder %s26, 0
    %p121 = por %p119, %p120
    %s123 = sadd.s32 %s122, 1
    %p126 = scmp.eq.s32.totalorder %s20, 5
    %p127 = scmp.ne.s32.totalorder %s122, %s124
    %p128 = scmp.eq.s32.totalorder %s20, 0
    %p129 = por %p127, %p128
    %p130 = scmp.ne.s32.totalorder %s122, %s124
    %p131 = scmp.eq.s32.totalorder %s25, 5
    %p132 = por %p130, %p131
    %p133 = scmp.ne.s32.totalorder %s124, %s125
    %p134 = scmp.eq.s32.totalorder %s25, 0
    %p135 = por %p133, %p134
    %p136 = scmp.ne.s32.totalorder %s124, %s125
    %p137 = scmp.eq.s32.totalorder %s26, 5
    %p138 = por %p136, %p137
    %p140 = scmp.ne.s32.totalorder %s125, %s139
    %p141 = scmp.eq.s32.totalorder %s26, 0
    %p142 = por %p140, %p141
    %s144 = sadd.s32 %s143, 1
    %p147 = scmp.eq.s32.totalorder %s20, 5
    %p148 = scmp.ne.s32.totalorder %s143, %s145
    %p149 = scmp.eq.s32.totalorder %s20, 0
    %p150 = por %p148, %p149
    %p151 = scmp.ne.s32.totalorder %s143, %s145
    %p152 = scmp.eq.s32.totalorder %s25, 5
    %p153 = por %p151, %p152
    %p154 = scmp.ne.s32.totalorder %s145, %s146
    %p155 = scmp.eq.s32.totalorder %s25, 0
    %p156 = por %p154, %p155
    %p157 = scmp.ne.s32.totalorder %s145, %s146
    %p158 = scmp.eq.s32.totalorder %s26, 5
    %p159 = por %p157, %p158
    %p161 = scmp.ne.s32.totalorder %s146, %s160
    %p162 = scmp.eq.s32.totalorder %s26, 0
    %p163 = por %p161, %p162
    %s165 = sadd.s32 %s164, 1
    %p168 = scmp.eq.s32.totalorder %s20, 5
    %p169 = scmp.ne.s32.totalorder %s164, %s166
    %p170 = scmp.eq.s32.totalorder %s20, 0
    %p171 = por %p169, %p170
    %p172 = scmp.ne.s32.totalorder %s164, %s166
    %p173 = scmp.eq.s32.totalorder %s25, 5
    %p174 = por %p172, %p173
    %p175 = scmp.ne.s32.totalorder %s166, %s167
    %p176 = scmp.eq.s32.totalorder %s25, 0
    %p177 = por %p175, %p176
    %p178 = scmp.ne.s32.totalorder %s166, %s167
    %p179 = scmp.eq.s32.totalorder %s26, 5
    %p180 = por %p178, %p179
    %p182 = scmp.ne.s32.totalorder %s167, %s181
    %p183 = scmp.eq.s32.totalorder %s26, 0
    %p184 = por %p182, %p183
    %s186 = sadd.s32 %s185, 1
    %p189 = scmp.eq.s32.totalorder %s20, 5
    %p190 = scmp.ne.s32.totalorder %s185, %s187
    %p191 = scmp.eq.s32.totalorder %s20, 0
    %p192 = por %p190, %p191
    %p193 = scmp.ne.s32.totalorder %s185, %s187
    %p194 = scmp.eq.s32.totalorder %s25, 5
    %p195 = por %p193, %p194
    %p196 = scmp.ne.s32.totalorder %s187, %s188
    %p197 = scmp.eq.s32.totalorder %s25, 0
    %p198 = por %p196, %p197
    %p199 = scmp.ne.s32.totalorder %s187, %s188
    %p200 = scmp.eq.s32.totalorder %s26, 5
    %p201 = por %p199, %p200
    %p203 = scmp.ne.s32.totalorder %s188, %s202
    %p204 = scmp.eq.s32.totalorder %s26, 0
    %p205 = por %p203, %p204
    %s207 = sadd.s32 %s206, 1
    %p210 = scmp.eq.s32.totalorder %s20, 5
    %p211 = scmp.ne.s32.totalorder %s206, %s208
    %p212 = scmp.eq.s32.totalorder %s20, 0
    %p213 = por %p211, %p212
    %p214 = scmp.ne.s32.totalorder %s206, %s208
    %p215 = scmp.eq.s32.totalorder %s25, 5
    %p216 = por %p214, %p215
    %p217 = scmp.ne.s32.totalorder %s208, %s209
    %p218 = scmp.eq.s32.totalorder %s25, 0
    %p219 = por %p217, %p218
    %p220 = scmp.ne.s32.totalorder %s208, %s209
    %p221 = scmp.eq.s32.totalorder %s26, 5
    %p222 = por %p220, %p221
    %p224 = scmp.ne.s32.totalorder %s209, %s223
    %p225 = scmp.eq.s32.totalorder %s26, 0
    %p226 = por %p224, %p225
    %s228 = sadd.s32 %s227, 1
    %p231 = scmp.eq.s32.totalorder %s20, 5
    %p232 = scmp.ne.s32.totalorder %s227, %s229
    %p233 = scmp.eq.s32.totalorder %s20, 0
    %p234 = por %p232, %p233
    %p235 = scmp.ne.s32.totalorder %s227, %s229
    %p236 = scmp.eq.s32.totalorder %s25, 5
    %p237 = por %p235, %p236
    %p238 = scmp.ne.s32.totalorder %s229, %s230
    %p239 = scmp.eq.s32.totalorder %s25, 0
    %p240 = por %p238, %p239
    %p241 = scmp.ne.s32.totalorder %s229, %s230
    %p242 = scmp.eq.s32.totalorder %s26, 5
    %p243 = por %p241, %p242
    %p245 = scmp.ne.s32.totalorder %s230, %s244
    %p246 = scmp.eq.s32.totalorder %s26, 0
    %p247 = por %p245, %p246
    %s249 = sadd.s32 %s248, 1
    %p252 = scmp.eq.s32.totalorder %s20, 5
    %p253 = scmp.ne.s32.totalorder %s248, %s250
    %p254 = scmp.eq.s32.totalorder %s20, 0
    %p255 = por %p253, %p254
    %p256 = scmp.ne.s32.totalorder %s248, %s250
    %p257 = scmp.eq.s32.totalorder %s25, 5
    %p258 = por %p256, %p257
    %p259 = scmp.ne.s32.totalorder %s250, %s251
    %p260 = scmp.eq.s32.totalorder %s25, 0
    %p261 = por %p259, %p260
    %p262 = scmp.ne.s32.totalorder %s250, %s251
    %p263 = scmp.eq.s32.totalorder %s26, 5
    %p264 = por %p262, %p263
    %p266 = scmp.ne.s32.totalorder %s251, %s265
    %p267 = scmp.eq.s32.totalorder %s26, 0
    %p268 = por %p266, %p267
    %s270 = sadd.s32 %s269, 1
    %p273 = scmp.eq.s32.totalorder %s20, 5
    %p274 = scmp.ne.s32.totalorder %s269, %s271
    %p275 = scmp.eq.s32.totalorder %s20, 0
    %p276 = por %p274, %p275
    %p277 = scmp.ne.s32.totalorder %s269, %s271
    %p278 = scmp.eq.s32.totalorder %s25, 5
    %p279 = por %p277, %p278
    %p280 = scmp.ne.s32.totalorder %s271, %s272
    %p281 = scmp.eq.s32.totalorder %s25, 0
    %p282 = por %p280, %p281
    %p283 = scmp.ne.s32.totalorder %s271, %s272
    %p284 = scmp.eq.s32.totalorder %s26, 5
    %p285 = por %p283, %p284
    %p287 = scmp.ne.s32.totalorder %s272, %s286
    %p288 = scmp.eq.s32.totalorder %s26, 0
    %p289 = por %p287, %p288
    %s291 = sadd.s32 %s290, 1
    %p294 = scmp.eq.s32.totalorder %s20, 5
    %p295 = scmp.ne.s32.totalorder %s290, %s292
    %p296 = scmp.eq.s32.totalorder %s20, 0
    %p297 = por %p295, %p296
    %p298 = scmp.ne.s32.totalorder %s290, %s292
    %p299 = scmp.eq.s32.totalorder %s25, 5
    %p300 = por %p298, %p299
    %p301 = scmp.ne.s32.totalorder %s292, %s293
    %p302 = scmp.eq.s32.totalorder %s25, 0
    %p303 = por %p301, %p302
    %p304 = scmp.ne.s32.totalorder %s292, %s293
    %p305 = scmp.eq.s32.totalorder %s26, 5
    %p306 = por %p304, %p305
    %p308 = scmp.ne.s32.totalorder %s293, %s307
    %p309 = scmp.eq.s32.totalorder %s26, 0
    %p310 = por %p308, %p309
    %s312 = sadd.s32 %s311, 1
    %p315 = scmp.eq.s32.totalorder %s20, 5
    %p316 = scmp.ne.s32.totalorder %s311, %s313
    %p317 = scmp.eq.s32.totalorder %s20, 0
    %p318 = por %p316, %p317
    %p319 = scmp.ne.s32.totalorder %s311, %s313
    %p320 = scmp.eq.s32.totalorder %s25, 5
    %p321 = por %p319, %p320
    %p322 = scmp.ne.s32.totalorder %s313, %s314
    %p323 = scmp.eq.s32.totalorder %s25, 0
    %p324 = por %p322, %p323
    %p325 = scmp.ne.s32.totalorder %s313, %s314
    %p326 = scmp.eq.s32.totalorder %s26, 5
    %p327 = por %p325, %p326
    %p329 = scmp.ne.s32.totalorder %s314, %s328
    %p330 = scmp.eq.s32.totalorder %s26, 0
    %p331 = por %p329, %p330
    %s332 = ssub.s32 %s20, %s27
    %p333 = scmp.eq.s32.totalorder %s332, 0
    %s335 = sadd.s32 %s334, 1
    %s336 = scalar_select %p333, %s334, %s335
    %p339 = pneg %p333
    %p340 = scmp.eq.s32.totalorder %s20, 5
    %p341 = por %p339, %p340
    %p342 = scmp.ne.s32.totalorder %s334, %s337
    %p343 = scmp.eq.s32.totalorder %s20, 0
    %p344 = por %p342, %p343
    %p345 = scmp.ne.s32.totalorder %s334, %s337
    %p346 = scmp.eq.s32.totalorder %s25, 5
    %p347 = por %p345, %p346
    %p348 = scmp.ne.s32.totalorder %s337, %s338
    %p349 = scmp.eq.s32.totalorder %s25, 0
    %p350 = por %p348, %p349
    %p351 = scmp.ne.s32.totalorder %s337, %s338
    %p352 = scmp.eq.s32.totalorder %s26, 5
    %p353 = por %p351, %p352
    %p355 = scmp.ne.s32.totalorder %s338, %s354
    %p356 = scmp.eq.s32.totalorder %s26, 0
    %p357 = por %p355, %p356
    %p358 = scmp.le.s32.totalorder 1, %s20
    %p359 = scmp.lt.s32.totalorder %s20, 7
    %p360 = pnand %p358, %p359
    %p361 = pneg %p360
    // Predicated region
    $region9: #{simplified_html_forward.6} parent=5 // pred_check
      _
    $region10: #{simplified_html_forward.6} parent=5 // pred_check_branch
      %363 = sbr.rel (%p360) target = $region12
    $region11: #{simplified_html_forward.6} parent=5 // pred_region
      %s364 = ssub.s32 %s20, 1
      // Predicated region
      $region13: #{simplified_html_forward.6} parent=11 // pred_check
        %p365 = pneg %p93
      $region14: #{simplified_html_forward.6} parent=11 // pred_check_branch
        %367 = sbr.rel (%p365) target = $region16
      $region15: #{simplified_html_forward.6} parent=11 // pred_region
        _
      $region16: #{simplified_html_forward.6} parent=11 // pred_fallthru
        _
      // Predicated region
      $region17: #{simplified_html_forward.6} parent=11 // pred_check
        %p368 = pneg %p114
      $region18: #{simplified_html_forward.6} parent=11 // pred_check_branch
        %370 = sbr.rel (%p368) target = $region20
      $region19: #{simplified_html_forward.6} parent=11 // pred_region
        _
      $region20: #{simplified_html_forward.6} parent=11 // pred_fallthru
        _
      // Predicated region
      $region21: #{simplified_html_forward.6} parent=11 // pred_check
        %p371 = pneg %p135
      $region22: #{simplified_html_forward.6} parent=11 // pred_check_branch
        %373 = sbr.rel (%p371) target = $region24
      $region23: #{simplified_html_forward.6} parent=11 // pred_region
        _
      $region24: #{simplified_html_forward.6} parent=11 // pred_fallthru
        _
      // Predicated region
      $region25: #{simplified_html_forward.6} parent=11 // pred_check
        %p374 = pneg %p156
      $region26: #{simplified_html_forward.6} parent=11 // pred_check_branch
        %376 = sbr.rel (%p374) target = $region28
      $region27: #{simplified_html_forward.6} parent=11 // pred_region
        _
      $region28: #{simplified_html_forward.6} parent=11 // pred_fallthru
        _
      // Predicated region
      $region29: #{simplified_html_forward.6} parent=11 // pred_check
        %p377 = pneg %p177
      $region30: #{simplified_html_forward.6} parent=11 // pred_check_branch
        %379 = sbr.rel (%p377) target = $region32
      $region31: #{simplified_html_forward.6} parent=11 // pred_region
        _
      $region32: #{simplified_html_forward.6} parent=11 // pred_fallthru
        _
      // Predicated region
      $region33: #{simplified_html_forward.6} parent=11 // pred_check
        %p380 = pneg %p198
      $region34: #{simplified_html_forward.6} parent=11 // pred_check_branch
        %382 = sbr.rel (%p380) target = $region36
      $region35: #{simplified_html_forward.6} parent=11 // pred_region
        _
      $region36: #{simplified_html_forward.6} parent=11 // pred_fallthru
        _
      // Predicated region
      $region37: #{simplified_html_forward.6} parent=11 // pred_check
        %p383 = pneg %p219
      $region38: #{simplified_html_forward.6} parent=11 // pred_check_branch
        %385 = sbr.rel (%p383) target = $region40
      $region39: #{simplified_html_forward.6} parent=11 // pred_region
        _
      $region40: #{simplified_html_forward.6} parent=11 // pred_fallthru
        _
      // Predicated region
      $region41: #{simplified_html_forward.6} parent=11 // pred_check
        %p386 = pneg %p240
      $region42: #{simplified_html_forward.6} parent=11 // pred_check_branch
        %388 = sbr.rel (%p386) target = $region44
      $region43: #{simplified_html_forward.6} parent=11 // pred_region
        _
      $region44: #{simplified_html_forward.6} parent=11 // pred_fallthru
        _
      // Predicated region
      $region45: #{simplified_html_forward.6} parent=11 // pred_check
        %p389 = pneg %p261
      $region46: #{simplified_html_forward.6} parent=11 // pred_check_branch
        %391 = sbr.rel (%p389) target = $region48
      $region47: #{simplified_html_forward.6} parent=11 // pred_region
        _
      $region48: #{simplified_html_forward.6} parent=11 // pred_fallthru
        _
      // Predicated region
      $region49: #{simplified_html_forward.6} parent=11 // pred_check
        %p392 = pneg %p282
      $region50: #{simplified_html_forward.6} parent=11 // pred_check_branch
        %394 = sbr.rel (%p392) target = $region52
      $region51: #{simplified_html_forward.6} parent=11 // pred_region
        _
      $region52: #{simplified_html_forward.6} parent=11 // pred_fallthru
        _
      // Predicated region
      $region53: #{simplified_html_forward.6} parent=11 // pred_check
        %p395 = pneg %p303
      $region54: #{simplified_html_forward.6} parent=11 // pred_check_branch
        %397 = sbr.rel (%p395) target = $region56
      $region55: #{simplified_html_forward.6} parent=11 // pred_region
        _
      $region56: #{simplified_html_forward.6} parent=11 // pred_fallthru
        _
      // Predicated region
      $region57: #{simplified_html_forward.6} parent=11 // pred_check
        %p398 = pneg %p324
      $region58: #{simplified_html_forward.6} parent=11 // pred_check_branch
        %400 = sbr.rel (%p398) target = $region60
      $region59: #{simplified_html_forward.6} parent=11 // pred_region
        _
      $region60: #{simplified_html_forward.6} parent=11 // pred_fallthru
        _
    $region12: #{simplified_html_forward.6} parent=5 // pred_fallthru
      _
    %p401 = scmp.lt.s32.totalorder %s20, 6
    // Predicated region
    $region61: #{simplified_html_forward.6} parent=5 // pred_check
      %p402 = pneg %p401
    $region62: #{simplified_html_forward.6} parent=5 // pred_check_branch
      %404 = sbr.rel (%p402) target = $region64
    $region63: #{simplified_html_forward.6} parent=5 // pred_region
      // Predicated region
      $region65: #{simplified_html_forward.6} parent=63 // pred_check
        %p405 = pneg %p40
      $region66: #{simplified_html_forward.6} parent=63 // pred_check_branch
        %407 = sbr.rel (%p405) target = $region68
      $region67: #{simplified_html_forward.6} parent=63 // pred_region
        %p408 = scmp.lt.s32.totalorder %s20, 5
        %s409 = scalar_select %p408, %s20, 5
        %s410 = smul.addr %s409, 4
        %s411 = scalar_lea.vmem %s0, %s410
      $region68: #{simplified_html_forward.6} parent=63 // pred_fallthru
        _
      // Predicated region
      $region69: #{simplified_html_forward.6} parent=63 // pred_check
        %p412 = pneg %p66
      $region70: #{simplified_html_forward.6} parent=63 // pred_check_branch
        %414 = sbr.rel (%p412) target = $region72
      $region71: #{simplified_html_forward.6} parent=63 // pred_region
        %p415 = scmp.lt.s32.totalorder %s20, 5
        %s416 = scalar_select %p415, %s20, 5
        %s417 = scalar_lea.vmem %s1, %s416
      $region72: #{simplified_html_forward.6} parent=63 // pred_fallthru
        _
    $region64: #{simplified_html_forward.6} parent=5 // pred_fallthru
      _
    %p418 = scmp.le.s32.totalorder 1, %s20
    %p419 = scmp.lt.s32.totalorder %s20, 7
    %p420 = pnand %p418, %p419
    %p421 = pneg %p420
    // Predicated region
    $region73: #{simplified_html_forward.6} parent=5 // pred_check
      _
    $region74: #{simplified_html_forward.6} parent=5 // pred_check_branch
      %423 = sbr.rel (%p420) target = $region76
    $region75: #{simplified_html_forward.6} parent=5 // pred_region
      %s424 = ssub.s32 %s20, 1
      %p425 = scmp.lt.s32.totalorder %s25, 5
      %s426 = scalar_select %p425, %s25, 5
      %s427 = smul.addr %s426, 4
      %s428 = scalar_lea.vmem %s0, %s427
      %p429 = pneg %p46
      %p430 = pneg %p43
      %p431 = scmp.lt.s32.totalorder %s25, 5
      %s432 = scalar_select %p431, %s25, 5
      %s433 = scalar_lea.vmem %s1, %s432
      %p434 = pneg %p72
      %p435 = pneg %p69
      %p436 = pneg %p93
      %p437 = pneg %p90
      %p438 = pneg %p114
      %p439 = pneg %p111
      %p440 = pneg %p135
      %p441 = pneg %p132
      %p442 = pneg %p156
      %p443 = pneg %p153
      %p444 = pneg %p177
      %p445 = pneg %p174
      %p446 = pneg %p198
      %p447 = pneg %p195
      %p448 = pneg %p219
      %p449 = pneg %p216
      %p450 = pneg %p240
      %p451 = pneg %p237
      %p452 = pneg %p261
      %p453 = pneg %p258
      %p454 = pneg %p282
      %p455 = pneg %p279
      %p456 = pneg %p303
      %p457 = pneg %p300
      %p458 = pneg %p324
      %p459 = pneg %p321
      %p460 = pneg %p350
      %p461 = pneg %p347
      %p462 = scmp.lt.s32.totalorder %s25, 5
      %s463 = scalar_select %p462, %s25, 5
      %s464 = scalar_lea.vmem %s14, %s463
      %p465 = scmp.lt.s32.totalorder %s25, 5
      %s466 = scalar_select %p465, %s25, 5
      %s467 = smul.addr %s466, 4
      %s468 = scalar_lea.vmem %s0, %s467
      %p469 = scmp.lt.s32.totalorder %s25, 5
      %s470 = scalar_select %p469, %s25, 5
      %s471 = scalar_lea.vmem %s1, %s470
      %p472 = scmp.lt.s32.totalorder %s25, 5
      %s473 = scalar_select %p472, %s25, 5
      %s474 = scalar_lea.vmem %s14, %s473
      %v476 = vld [vmem:[%s468] sm:$0xf]
      %v477 = vunpack.c.l.bf16 %v476
      %v478 = vld [vmem:[%s2] sm:$0xf]
      %v479 = vld [vmem:[%s2 + $0x4] sm:$0xf]
      %v480 = vld [vmem:[%s2 + $0x8] sm:$0xf]
      %v481 = vld [vmem:[%s2 + $0xc] sm:$0xf]
      %v482 = vld [vmem:[%s3] sm:$0x1]
      %v484 = vlaneseq
      %v485 = vshrl.u32 %v484, 7
      %v486 = vsub.s32 0, %v485
      %v487 = vrot.slane %v482, %v486
      %v493 = vunpack.c.l.b16 %v478
      %v494 = vunpack.c.l.b16 %v479
      %v495 = vunpack.c.l.b16 %v480
      %v496 = vunpack.c.l.b16 %v481
      %v497 = vpack.c.b16 %v494, %v493
      %v498 = vpack.c.b16 %v496, %v495
      %vm501 = vcmask 261120
      %v503 = vsel %vm501, %v476, 0
      %505 = vmatprep.subr.bf16.mxu0 0
      %506 = vmatpush1.bf16.msra.mxu0 0
      %507 = vmatprep.subr.bf16.mxu0 0
      %508 = vmatpush1.bf16.msra.mxu0 0
      %509 = vmatprep.subr.bf16.mxu0 0
      %510 = vmatpush1.bf16.msra.mxu0 0
      %511 = vmatprep.subr.bf16.mxu0 0
      %512 = vmatpush1.bf16.msra.mxu0 0
      %513 = vmatprep.subr.bf16.mxu0 0
      %514 = vmatpush1.bf16.msra.mxu0 0
      %515 = vmatprep.subr.bf16.mxu0 0
      %516 = vmatpush1.bf16.msra.mxu0 0
      %517 = vmatprep.subr.bf16.mxu0 0
      %518 = vmatpush1.bf16.msra.mxu0 %v498
      %519 = vmatprep.subr.bf16.mxu0 0
      %520 = vmatpush1.bf16.msra.mxu0 %v497
      %521 = vmatprep.subr.bf16.mxu0 0
      %522 = vmatpush2.bf16.msra.mxu0 0
      %523 = vmatprep.subr.bf16.mxu0 0
      %524 = vmatpush2.bf16.msra.mxu0 0
      %525 = vmatprep.subr.bf16.mxu0 0
      %526 = vmatpush2.bf16.msra.mxu0 0
      %527 = vmatprep.subr.bf16.mxu0 0
      %528 = vmatpush2.bf16.msra.mxu0 0
      %529 = vmatprep.subr.bf16.mxu0 0
      %530 = vmatpush2.bf16.msra.mxu0 0
      %531 = vmatprep.subr.bf16.mxu0 0
      %532 = vmatpush2.bf16.msra.mxu0 0
      %533 = vmatprep.subr.bf16.mxu0 0
      %534 = vmatpush2.bf16.msra.mxu0 0
      %535 = vmatprep.subr.bf16.mxu0 0
      %536 = vmatpush2.bf16.msra.mxu0 0
      %537 = vmatprep.mubr.bf16.mxu0 0
      %538 = vmatmul.mubr.bf16.gmra.mxu0 %v503
      %v539 = vpop.f32.mrf.mxu0
      %v540 = vadd.f32 %v487, %v539
      %v541 = vpop.f32.mrf.mxu0
      %v542 = vpop.f32.mrf.mxu0
      %v543 = vpop.f32.mrf.mxu0
      %544 = vdwg.mxu0
      %v545 = vld [vmem:[%s471] sm:$0x1]
      %v546 = vpack.c.bf16 %v540, %v540
      %v548 = vlaneseq
      %v549 = vshrl.u32 %v548, 7
      %v550 = vsub.s32 0, %v549
      %v551 = vrot.slane %v545, %v550
      %554 = vrot.lane.b32.xlu0 %v546, 96
      %v555 = vpop.permute.xlu0 %554
      %vm556 = vcmask 64512
      %v558 = vsel %vm556, %v546, 0
      %v561 = vsel %vm556, %v555, 0
      %563 = vmatprep.subr.bf16.mxu0 0
      %564 = vmatpush1.bf16.xpose.msra.mxu0 0
      %565 = vmatprep.subr.bf16.mxu0 0
      %566 = vmatpush1.bf16.xpose.msra.mxu0 0
      %567 = vmatprep.subr.bf16.mxu0 0
      %568 = vmatpush1.bf16.xpose.msra.mxu0 0
      %569 = vmatprep.subr.bf16.mxu0 0
      %570 = vmatpush1.bf16.xpose.msra.mxu0 0
      %571 = vmatprep.subr.bf16.mxu0 0
      %572 = vmatpush1.bf16.xpose.msra.mxu0 0
      %573 = vmatprep.subr.bf16.mxu0 0
      %574 = vmatpush1.bf16.xpose.msra.mxu0 0
      %575 = vmatprep.subr.bf16.mxu0 0
      %576 = vmatpush1.bf16.xpose.msra.mxu0 0
      %577 = vmatprep.subr.bf16.mxu0 0
      %578 = vmatpush1.bf16.xpose.msra.mxu0 %v561
      %579 = vmatprep.subr.bf16.mxu0 0
      %580 = vmatpush2.bf16.xpose.msra.mxu0 0
      %581 = vmatprep.subr.bf16.mxu0 0
      %582 = vmatpush2.bf16.xpose.msra.mxu0 0
      %583 = vmatprep.subr.bf16.mxu0 0
      %584 = vmatpush2.bf16.xpose.msra.mxu0 0
      %585 = vmatprep.subr.bf16.mxu0 0
      %586 = vmatpush2.bf16.xpose.msra.mxu0 0
      %587 = vmatprep.subr.bf16.mxu0 0
      %588 = vmatpush2.bf16.xpose.msra.mxu0 0
      %589 = vmatprep.subr.bf16.mxu0 0
      %590 = vmatpush2.bf16.xpose.msra.mxu0 0
      %591 = vmatprep.subr.bf16.mxu0 0
      %592 = vmatpush2.bf16.xpose.msra.mxu0 0
      %593 = vmatprep.subr.bf16.mxu0 0
      %594 = vmatpush2.bf16.xpose.msra.mxu0 0
      %595 = vmatprep.mubr.bf16.mxu0 0
      %596 = vmatmul.mubr.bf16.gmra.mxu0 %v558
      %v597 = vpop.f32.mrf.mxu0
      %v598 = vadd.f32 %v551, %v597
      %v599 = vpop.f32.mrf.mxu0
      %v600 = vpop.f32.mrf.mxu0
      %v601 = vpop.f32.mrf.mxu0
      %602 = vdwg.mxu0
      %v603 = vsel %vm556, %v598, -inf
      %604 = vmax.xlane.f32.xlu0 %v603
      %v605 = vpop.xlane.xlu0 %604
      %v606 = vsub.f32 %v598, %v605
      %v607 = vmul.f32 %v606, 1.442695
      %v608 = vpow.pop %v607
      %v609 = vsel %vm556, %v608, 0.0
      %610 = vadd.xlane.f32.xlu0 %v609
      %v611 = vpop.xlane.xlu0 %610
      %v612 = vpack.c.bf16 %v608, %v608
      %613 = vrot.lane.b32.xlu0 %v546, 64
      %v614 = vpop.permute.xlu0 %613
      %v616 = vsel %vm556, %v612, 0
      %vm618 = vcmask 1043456
      %v620 = vsel %vm618, %v614, 0
      %622 = vmatprep.subr.bf16.mxu0 0
      %623 = vmatpush1.bf16.msra.mxu0 0
      %624 = vmatprep.subr.bf16.mxu0 0
      %625 = vmatpush1.bf16.msra.mxu0 0
      %626 = vmatprep.subr.bf16.mxu0 0
      %627 = vmatpush1.bf16.msra.mxu0 0
      %628 = vmatprep.subr.bf16.mxu0 0
      %629 = vmatpush1.bf16.msra.mxu0 0
      %630 = vmatprep.subr.bf16.mxu0 0
      %631 = vmatpush1.bf16.msra.mxu0 0
      %632 = vmatprep.subr.bf16.mxu0 0
      %633 = vmatpush1.bf16.msra.mxu0 0
      %634 = vmatprep.subr.bf16.mxu0 0
      %635 = vmatpush1.bf16.msra.mxu0 0
      %636 = vmatprep.subr.bf16.mxu0 0
      %637 = vmatpush1.bf16.msra.mxu0 %v620
      %638 = vmatprep.subr.bf16.mxu0 0
      %639 = vmatpush2.bf16.msra.mxu0 0
      %640 = vmatprep.subr.bf16.mxu0 0
      %641 = vmatpush2.bf16.msra.mxu0 0
      %642 = vmatprep.subr.bf16.mxu0 0
      %643 = vmatpush2.bf16.msra.mxu0 0
      %644 = vmatprep.subr.bf16.mxu0 0
      %645 = vmatpush2.bf16.msra.mxu0 0
      %646 = vmatprep.subr.bf16.mxu0 0
      %647 = vmatpush2.bf16.msra.mxu0 0
      %648 = vmatprep.subr.bf16.mxu0 0
      %649 = vmatpush2.bf16.msra.mxu0 0
      %650 = vmatprep.subr.bf16.mxu0 0
      %651 = vmatpush2.bf16.msra.mxu0 0
      %652 = vmatprep.subr.bf16.mxu0 0
      %653 = vmatpush2.bf16.msra.mxu0 0
      %654 = vmatprep.mubr.bf16.mxu0 0
      %655 = vmatmul.mubr.bf16.gmra.mxu0 %v616
      %v656 = vpop.f32.mrf.mxu0
      %v657 = vadd.f32 0.0, %v656
      %v658 = vpop.f32.mrf.mxu0
      %v659 = vpop.f32.mrf.mxu0
      %v660 = vpop.f32.mrf.mxu0
      %661 = vdwg.mxu0
      %v662 = vrcp.pop %v611
      %v663 = vmul.f32 %v657, %v662
      %664 = vst.msk [vmem:[#allocation2] sm:$0xff] %vm556, %v663
      %665 = vrot.lane.b32.xlu0 %v546, 120
      %v666 = vpop.permute.xlu0 %665
      %667 = vrot.lane.b32.xlu0 %v546, 88
      %v668 = vpop.permute.xlu0 %667
      %v670 = vsel %vm556, %v666, 0
      %v673 = vsel %vm556, %v668, 0
      %675 = vmatprep.subr.bf16.mxu0 0
      %676 = vmatpush1.bf16.xpose.msra.mxu0 0
      %677 = vmatprep.subr.bf16.mxu0 0
      %678 = vmatpush1.bf16.xpose.msra.mxu0 0
      %679 = vmatprep.subr.bf16.mxu0 0
      %680 = vmatpush1.bf16.xpose.msra.mxu0 0
      %681 = vmatprep.subr.bf16.mxu0 0
      %682 = vmatpush1.bf16.xpose.msra.mxu0 0
      %683 = vmatprep.subr.bf16.mxu0 0
      %684 = vmatpush1.bf16.xpose.msra.mxu0 0
      %685 = vmatprep.subr.bf16.mxu0 0
      %686 = vmatpush1.bf16.xpose.msra.mxu0 0
      %687 = vmatprep.subr.bf16.mxu0 0
      %688 = vmatpush1.bf16.xpose.msra.mxu0 0
      %689 = vmatprep.subr.bf16.mxu0 0
      %690 = vmatpush1.bf16.xpose.msra.mxu0 %v673
      %691 = vmatprep.subr.bf16.mxu0 0
      %692 = vmatpush2.bf16.xpose.msra.mxu0 0
      %693 = vmatprep.subr.bf16.mxu0 0
      %694 = vmatpush2.bf16.xpose.msra.mxu0 0
      %695 = vmatprep.subr.bf16.mxu0 0
      %696 = vmatpush2.bf16.xpose.msra.mxu0 0
      %697 = vmatprep.subr.bf16.mxu0 0
      %698 = vmatpush2.bf16.xpose.msra.mxu0 0
      %699 = vmatprep.subr.bf16.mxu0 0
      %700 = vmatpush2.bf16.xpose.msra.mxu0 0
      %701 = vmatprep.subr.bf16.mxu0 0
      %702 = vmatpush2.bf16.xpose.msra.mxu0 0
      %703 = vmatprep.subr.bf16.mxu0 0
      %704 = vmatpush2.bf16.xpose.msra.mxu0 0
      %705 = vmatprep.subr.bf16.mxu0 0
      %706 = vmatpush2.bf16.xpose.msra.mxu0 0
      %707 = vmatprep.mubr.bf16.mxu0 0
      %708 = vmatmul.mubr.bf16.gmra.mxu0 %v670
      %v709 = vpop.f32.mrf.mxu0
      %v710 = vadd.f32 %v551, %v709
      %v711 = vpop.f32.mrf.mxu0
      %v712 = vpop.f32.mrf.mxu0
      %v713 = vpop.f32.mrf.mxu0
      %714 = vdwg.mxu0
      %v715 = vsel %vm556, %v710, -inf
      %716 = vmax.xlane.f32.xlu0 %v715
      %v717 = vpop.xlane.xlu0 %716
      %v718 = vsub.f32 %v710, %v717
      %v719 = vmul.f32 %v718, 1.442695
      %v720 = vpow.pop %v719
      %v721 = vsel %vm556, %v720, 0.0
      %722 = vadd.xlane.f32.xlu0 %v721
      %v723 = vpop.xlane.xlu0 %722
      %v724 = vpack.c.bf16 %v720, %v720
      %725 = vrot.lane.b32.xlu0 %v546, 56
      %v726 = vpop.permute.xlu0 %725
      %v728 = vsel %vm556, %v724, 0
      %v731 = vsel %vm618, %v726, 0
      %733 = vmatprep.subr.bf16.mxu0 0
      %734 = vmatpush1.bf16.msra.mxu0 0
      %735 = vmatprep.subr.bf16.mxu0 0
      %736 = vmatpush1.bf16.msra.mxu0 0
      %737 = vmatprep.subr.bf16.mxu0 0
      %738 = vmatpush1.bf16.msra.mxu0 0
      %739 = vmatprep.subr.bf16.mxu0 0
      %740 = vmatpush1.bf16.msra.mxu0 0
      %741 = vmatprep.subr.bf16.mxu0 0
      %742 = vmatpush1.bf16.msra.mxu0 0
      %743 = vmatprep.subr.bf16.mxu0 0
      %744 = vmatpush1.bf16.msra.mxu0 0
      %745 = vmatprep.subr.bf16.mxu0 0
      %746 = vmatpush1.bf16.msra.mxu0 0
      %747 = vmatprep.subr.bf16.mxu0 0
      %748 = vmatpush1.bf16.msra.mxu0 %v731
      %749 = vmatprep.subr.bf16.mxu0 0
      %750 = vmatpush2.bf16.msra.mxu0 0
      %751 = vmatprep.subr.bf16.mxu0 0
      %752 = vmatpush2.bf16.msra.mxu0 0
      %753 = vmatprep.subr.bf16.mxu0 0
      %754 = vmatpush2.bf16.msra.mxu0 0
      %755 = vmatprep.subr.bf16.mxu0 0
      %756 = vmatpush2.bf16.msra.mxu0 0
      %757 = vmatprep.subr.bf16.mxu0 0
      %758 = vmatpush2.bf16.msra.mxu0 0
      %759 = vmatprep.subr.bf16.mxu0 0
      %760 = vmatpush2.bf16.msra.mxu0 0
      %761 = vmatprep.subr.bf16.mxu0 0
      %762 = vmatpush2.bf16.msra.mxu0 0
      %763 = vmatprep.subr.bf16.mxu0 0
      %764 = vmatpush2.bf16.msra.mxu0 0
      %765 = vmatprep.mubr.bf16.mxu0 0
      %766 = vmatmul.mubr.bf16.gmra.mxu0 %v728
      %v767 = vpop.f32.mrf.mxu0
      %v768 = vadd.f32 0.0, %v767
      %v769 = vpop.f32.mrf.mxu0
      %v770 = vpop.f32.mrf.mxu0
      %v771 = vpop.f32.mrf.mxu0
      %772 = vdwg.mxu0
      %v773 = vrcp.pop %v723
      %v774 = vmul.f32 %v768, %v773
      %776 = vrot.lane.b32.xlu0 %v774, 8
      %v777 = vpop.permute.xlu0 %776
      %vm779 = vcmask 130112
      %780 = vst.msk [vmem:[#allocation2] sm:$0xff] %vm779, %v777
      %781 = vrot.lane.b32.xlu0 %v546, 112
      %v782 = vpop.permute.xlu0 %781
      %783 = vrot.lane.b32.xlu0 %v546, 80
      %v784 = vpop.permute.xlu0 %783
      %v786 = vsel %vm556, %v782, 0
      %v789 = vsel %vm556, %v784, 0
      %791 = vmatprep.subr.bf16.mxu0 0
      %792 = vmatpush1.bf16.xpose.msra.mxu0 0
      %793 = vmatprep.subr.bf16.mxu0 0
      %794 = vmatpush1.bf16.xpose.msra.mxu0 0
      %795 = vmatprep.subr.bf16.mxu0 0
      %796 = vmatpush1.bf16.xpose.msra.mxu0 0
      %797 = vmatprep.subr.bf16.mxu0 0
      %798 = vmatpush1.bf16.xpose.msra.mxu0 0
      %799 = vmatprep.subr.bf16.mxu0 0
      %800 = vmatpush1.bf16.xpose.msra.mxu0 0
      %801 = vmatprep.subr.bf16.mxu0 0
      %802 = vmatpush1.bf16.xpose.msra.mxu0 0
      %803 = vmatprep.subr.bf16.mxu0 0
      %804 = vmatpush1.bf16.xpose.msra.mxu0 0
      %805 = vmatprep.subr.bf16.mxu0 0
      %806 = vmatpush1.bf16.xpose.msra.mxu0 %v789
      %807 = vmatprep.subr.bf16.mxu0 0
      %808 = vmatpush2.bf16.xpose.msra.mxu0 0
      %809 = vmatprep.subr.bf16.mxu0 0
      %810 = vmatpush2.bf16.xpose.msra.mxu0 0
      %811 = vmatprep.subr.bf16.mxu0 0
      %812 = vmatpush2.bf16.xpose.msra.mxu0 0
      %813 = vmatprep.subr.bf16.mxu0 0
      %814 = vmatpush2.bf16.xpose.msra.mxu0 0
      %815 = vmatprep.subr.bf16.mxu0 0
      %816 = vmatpush2.bf16.xpose.msra.mxu0 0
      %817 = vmatprep.subr.bf16.mxu0 0
      %818 = vmatpush2.bf16.xpose.msra.mxu0 0
      %819 = vmatprep.subr.bf16.mxu0 0
      %820 = vmatpush2.bf16.xpose.msra.mxu0 0
      %821 = vmatprep.subr.bf16.mxu0 0
      %822 = vmatpush2.bf16.xpose.msra.mxu0 0
      %823 = vmatprep.mubr.bf16.mxu0 0
      %824 = vmatmul.mubr.bf16.gmra.mxu0 %v786
      %v825 = vpop.f32.mrf.mxu0
      %v826 = vadd.f32 %v551, %v825
      %v827 = vpop.f32.mrf.mxu0
      %v828 = vpop.f32.mrf.mxu0
      %v829 = vpop.f32.mrf.mxu0
      %830 = vdwg.mxu0
      %v831 = vsel %vm556, %v826, -inf
      %832 = vmax.xlane.f32.xlu0 %v831
      %v833 = vpop.xlane.xlu0 %832
      %v834 = vsub.f32 %v826, %v833
      %v835 = vmul.f32 %v834, 1.442695
      %v836 = vpow.pop %v835
      %v837 = vsel %vm556, %v836, 0.0
      %838 = vadd.xlane.f32.xlu0 %v837
      %v839 = vpop.xlane.xlu0 %838
      %v840 = vpack.c.bf16 %v836, %v836
      %841 = vrot.lane.b32.xlu0 %v546, 48
      %v842 = vpop.permute.xlu0 %841
      %v844 = vsel %vm556, %v840, 0
      %v847 = vsel %vm618, %v842, 0
      %849 = vmatprep.subr.bf16.mxu0 0
      %850 = vmatpush1.bf16.msra.mxu0 0
      %851 = vmatprep.subr.bf16.mxu0 0
      %852 = vmatpush1.bf16.msra.mxu0 0
      %853 = vmatprep.subr.bf16.mxu0 0
      %854 = vmatpush1.bf16.msra.mxu0 0
      %855 = vmatprep.subr.bf16.mxu0 0
      %856 = vmatpush1.bf16.msra.mxu0 0
      %857 = vmatprep.subr.bf16.mxu0 0
      %858 = vmatpush1.bf16.msra.mxu0 0
      %859 = vmatprep.subr.bf16.mxu0 0
      %860 = vmatpush1.bf16.msra.mxu0 0
      %861 = vmatprep.subr.bf16.mxu0 0
      %862 = vmatpush1.bf16.msra.mxu0 0
      %863 = vmatprep.subr.bf16.mxu0 0
      %864 = vmatpush1.bf16.msra.mxu0 %v847
      %865 = vmatprep.subr.bf16.mxu0 0
      %866 = vmatpush2.bf16.msra.mxu0 0
      %867 = vmatprep.subr.bf16.mxu0 0
      %868 = vmatpush2.bf16.msra.mxu0 0
      %869 = vmatprep.subr.bf16.mxu0 0
      %870 = vmatpush2.bf16.msra.mxu0 0
      %871 = vmatprep.subr.bf16.mxu0 0
      %872 = vmatpush2.bf16.msra.mxu0 0
      %873 = vmatprep.subr.bf16.mxu0 0
      %874 = vmatpush2.bf16.msra.mxu0 0
      %875 = vmatprep.subr.bf16.mxu0 0
      %876 = vmatpush2.bf16.msra.mxu0 0
      %877 = vmatprep.subr.bf16.mxu0 0
      %878 = vmatpush2.bf16.msra.mxu0 0
      %879 = vmatprep.subr.bf16.mxu0 0
      %880 = vmatpush2.bf16.msra.mxu0 0
      %881 = vmatprep.mubr.bf16.mxu0 0
      %882 = vmatmul.mubr.bf16.gmra.mxu0 %v844
      %v883 = vpop.f32.mrf.mxu0
      %v884 = vadd.f32 0.0, %v883
      %v885 = vpop.f32.mrf.mxu0
      %v886 = vpop.f32.mrf.mxu0
      %v887 = vpop.f32.mrf.mxu0
      %888 = vdwg.mxu0
      %v889 = vrcp.pop %v839
      %v890 = vmul.f32 %v884, %v889
      %892 = vrot.lane.b32.xlu0 %v890, 16
      %v893 = vpop.permute.xlu0 %892
      %vm895 = vcmask 195712
      %896 = vst.msk [vmem:[#allocation2] sm:$0xff] %vm895, %v893
      %897 = vrot.lane.b32.xlu0 %v546, 104
      %v898 = vpop.permute.xlu0 %897
      %899 = vrot.lane.b32.xlu0 %v546, 72
      %v900 = vpop.permute.xlu0 %899
      %v902 = vsel %vm556, %v898, 0
      %v905 = vsel %vm556, %v900, 0
      %907 = vmatprep.subr.bf16.mxu0 0
      %908 = vmatpush1.bf16.xpose.msra.mxu0 0
      %909 = vmatprep.subr.bf16.mxu0 0
      %910 = vmatpush1.bf16.xpose.msra.mxu0 0
      %911 = vmatprep.subr.bf16.mxu0 0
      %912 = vmatpush1.bf16.xpose.msra.mxu0 0
      %913 = vmatprep.subr.bf16.mxu0 0
      %914 = vmatpush1.bf16.xpose.msra.mxu0 0
      %915 = vmatprep.subr.bf16.mxu0 0
      %916 = vmatpush1.bf16.xpose.msra.mxu0 0
      %917 = vmatprep.subr.bf16.mxu0 0
      %918 = vmatpush1.bf16.xpose.msra.mxu0 0
      %919 = vmatprep.subr.bf16.mxu0 0
      %920 = vmatpush1.bf16.xpose.msra.mxu0 0
      %921 = vmatprep.subr.bf16.mxu0 0
      %922 = vmatpush1.bf16.xpose.msra.mxu0 %v905
      %923 = vmatprep.subr.bf16.mxu0 0
      %924 = vmatpush2.bf16.xpose.msra.mxu0 0
      %925 = vmatprep.subr.bf16.mxu0 0
      %926 = vmatpush2.bf16.xpose.msra.mxu0 0
      %927 = vmatprep.subr.bf16.mxu0 0
      %928 = vmatpush2.bf16.xpose.msra.mxu0 0
      %929 = vmatprep.subr.bf16.mxu0 0
      %930 = vmatpush2.bf16.xpose.msra.mxu0 0
      %931 = vmatprep.subr.bf16.mxu0 0
      %932 = vmatpush2.bf16.xpose.msra.mxu0 0
      %933 = vmatprep.subr.bf16.mxu0 0
      %934 = vmatpush2.bf16.xpose.msra.mxu0 0
      %935 = vmatprep.subr.bf16.mxu0 0
      %936 = vmatpush2.bf16.xpose.msra.mxu0 0
      %937 = vmatprep.subr.bf16.mxu0 0
      %938 = vmatpush2.bf16.xpose.msra.mxu0 0
      %939 = vmatprep.mubr.bf16.mxu0 0
      %940 = vmatmul.mubr.bf16.gmra.mxu0 %v902
      %v941 = vpop.f32.mrf.mxu0
      %v942 = vadd.f32 %v551, %v941
      %v943 = vpop.f32.mrf.mxu0
      %v944 = vpop.f32.mrf.mxu0
      %v945 = vpop.f32.mrf.mxu0
      %946 = vdwg.mxu0
      %v947 = vsel %vm556, %v942, -inf
      %948 = vmax.xlane.f32.xlu0 %v947
      %v949 = vpop.xlane.xlu0 %948
      %v950 = vsub.f32 %v942, %v949
      %v951 = vmul.f32 %v950, 1.442695
      %v952 = vpow.pop %v951
      %v953 = vsel %vm556, %v952, 0.0
      %954 = vadd.xlane.f32.xlu0 %v953
      %v955 = vpop.xlane.xlu0 %954
      %v956 = vpack.c.bf16 %v952, %v952
      %957 = vrot.lane.b32.xlu0 %v546, 40
      %v958 = vpop.permute.xlu0 %957
      %v960 = vsel %vm556, %v956, 0
      %v963 = vsel %vm618, %v958, 0
      %965 = vmatprep.subr.bf16.mxu0 0
      %966 = vmatpush1.bf16.msra.mxu0 0
      %967 = vmatprep.subr.bf16.mxu0 0
      %968 = vmatpush1.bf16.msra.mxu0 0
      %969 = vmatprep.subr.bf16.mxu0 0
      %970 = vmatpush1.bf16.msra.mxu0 0
      %971 = vmatprep.subr.bf16.mxu0 0
      %972 = vmatpush1.bf16.msra.mxu0 0
      %973 = vmatprep.subr.bf16.mxu0 0
      %974 = vmatpush1.bf16.msra.mxu0 0
      %975 = vmatprep.subr.bf16.mxu0 0
      %976 = vmatpush1.bf16.msra.mxu0 0
      %977 = vmatprep.subr.bf16.mxu0 0
      %978 = vmatpush1.bf16.msra.mxu0 0
      %979 = vmatprep.subr.bf16.mxu0 0
      %980 = vmatpush1.bf16.msra.mxu0 %v963
      %981 = vmatprep.subr.bf16.mxu0 0
      %982 = vmatpush2.bf16.msra.mxu0 0
      %983 = vmatprep.subr.bf16.mxu0 0
      %984 = vmatpush2.bf16.msra.mxu0 0
      %985 = vmatprep.subr.bf16.mxu0 0
      %986 = vmatpush2.bf16.msra.mxu0 0
      %987 = vmatprep.subr.bf16.mxu0 0
      %988 = vmatpush2.bf16.msra.mxu0 0
      %989 = vmatprep.subr.bf16.mxu0 0
      %990 = vmatpush2.bf16.msra.mxu0 0
      %991 = vmatprep.subr.bf16.mxu0 0
      %992 = vmatpush2.bf16.msra.mxu0 0
      %993 = vmatprep.subr.bf16.mxu0 0
      %994 = vmatpush2.bf16.msra.mxu0 0
      %995 = vmatprep.subr.bf16.mxu0 0
      %996 = vmatpush2.bf16.msra.mxu0 0
      %997 = vmatprep.mubr.bf16.mxu0 0
      %998 = vmatmul.mubr.bf16.gmra.mxu0 %v960
      %v999 = vpop.f32.mrf.mxu0
      %v1000 = vadd.f32 0.0, %v999
      %v1001 = vpop.f32.mrf.mxu0
      %v1002 = vpop.f32.mrf.mxu0
      %v1003 = vpop.f32.mrf.mxu0
      %1004 = vdwg.mxu0
      %v1005 = vrcp.pop %v955
      %v1006 = vmul.f32 %v1000, %v1005
      %1008 = vrot.lane.b32.xlu0 %v1006, 24
      %v1009 = vpop.permute.xlu0 %1008
      %vm1011 = vcmask 261312
      %1012 = vst.msk [vmem:[#allocation2] sm:$0xff] %vm1011, %v1009
      %v1013 = vld [vmem:[#allocation2] sm:$0xff]
      %v1014 = vpack.c.bf16 %v1013, %v1013
      %v1015 = vld [vmem:[%s4] sm:$0xf]
      %v1016 = vld [vmem:[%s4 + $0x4] sm:$0xf]
      %v1017 = vld [vmem:[%s4 + $0x8] sm:$0xf]
      %v1018 = vld [vmem:[%s4 + $0xc] sm:$0xf]
      %v1019 = vld [vmem:[%s5] sm:$0x1]
      %v1021 = vlaneseq
      %v1022 = vshrl.u32 %v1021, 7
      %v1023 = vsub.s32 0, %v1022
      %v1024 = vrot.slane %v1019, %v1023
      %v1030 = vunpack.c.l.b16 %v1015
      %v1031 = vunpack.c.l.b16 %v1016
      %v1032 = vunpack.c.l.b16 %v1017
      %v1033 = vunpack.c.l.b16 %v1018
      %v1034 = vpack.c.b16 %v1031, %v1030
      %v1035 = vpack.c.b16 %v1033, %v1032
      %v1039 = vsel %vm501, %v1014, 0
      %1041 = vmatprep.subr.bf16.mxu0 0
      %1042 = vmatpush1.bf16.msra.mxu0 0
      %1043 = vmatprep.subr.bf16.mxu0 0
      %1044 = vmatpush1.bf16.msra.mxu0 0
      %1045 = vmatprep.subr.bf16.mxu0 0
      %1046 = vmatpush1.bf16.msra.mxu0 0
      %1047 = vmatprep.subr.bf16.mxu0 0
      %1048 = vmatpush1.bf16.msra.mxu0 0
      %1049 = vmatprep.subr.bf16.mxu0 0
      %1050 = vmatpush1.bf16.msra.mxu0 0
      %1051 = vmatprep.subr.bf16.mxu0 0
      %1052 = vmatpush1.bf16.msra.mxu0 0
      %1053 = vmatprep.subr.bf16.mxu0 0
      %1054 = vmatpush1.bf16.msra.mxu0 %v1035
      %1055 = vmatprep.subr.bf16.mxu0 0
      %1056 = vmatpush1.bf16.msra.mxu0 %v1034
      %1057 = vmatprep.subr.bf16.mxu0 0
      %1058 = vmatpush2.bf16.msra.mxu0 0
      %1059 = vmatprep.subr.bf16.mxu0 0
      %1060 = vmatpush2.bf16.msra.mxu0 0
      %1061 = vmatprep.subr.bf16.mxu0 0
      %1062 = vmatpush2.bf16.msra.mxu0 0
      %1063 = vmatprep.subr.bf16.mxu0 0
      %1064 = vmatpush2.bf16.msra.mxu0 0
      %1065 = vmatprep.subr.bf16.mxu0 0
      %1066 = vmatpush2.bf16.msra.mxu0 0
      %1067 = vmatprep.subr.bf16.mxu0 0
      %1068 = vmatpush2.bf16.msra.mxu0 0
      %1069 = vmatprep.subr.bf16.mxu0 0
      %1070 = vmatpush2.bf16.msra.mxu0 0
      %1071 = vmatprep.subr.bf16.mxu0 0
      %1072 = vmatpush2.bf16.msra.mxu0 0
      %1073 = vmatprep.mubr.bf16.mxu0 0
      %1074 = vmatmul.mubr.bf16.gmra.mxu0 %v1039
      %v1075 = vpop.f32.mrf.mxu0
      %v1076 = vadd.f32 %v1024, %v1075
      %v1077 = vpop.f32.mrf.mxu0
      %v1078 = vpop.f32.mrf.mxu0
      %v1079 = vpop.f32.mrf.mxu0
      %1080 = vdwg.mxu0
      %v1081 = vadd.f32 %v477, %v1076
      %v1082 = vld [vmem:[%s6] sm:$0x1]
      %v1083 = vld [vmem:[%s7] sm:$0x1]
      %v1084 = vsel %vm501, %v1081, 0.0
      %1085 = vadd.xlane.f32.xlu0 %v1084
      %v1086 = vpop.xlane.xlu0 %1085
      %v1087 = vrcp.pop 32.0
      %v1088 = vmul.f32 %v1086, %v1087
      %v1089 = vsub.f32 %v1081, %v1088
      %v1090 = vmul.f32 %v1089, %v1089
      %v1091 = vsel %vm501, %v1090, 0.0
      %1092 = vadd.xlane.f32.xlu0 %v1091
      %v1093 = vpop.xlane.xlu0 %1092
      %v1094 = vmul.f32 %v1093, %v1087
      %v1095 = vadd.f32 %v1094, 1e-12
      %v1096 = vrsqrt.pop %v1095
      %v1097 = vmul.f32 %v1089, %v1096
      %v1099 = vlaneseq
      %v1100 = vshrl.u32 %v1099, 7
      %v1101 = vsub.s32 0, %v1100
      %v1102 = vrot.slane %v1082, %v1101
      %v1104 = vmul.f32 %v1097, %v1102
      %v1106 = vlaneseq
      %v1107 = vshrl.u32 %v1106, 7
      %v1108 = vsub.s32 0, %v1107
      %v1109 = vrot.slane %v1083, %v1108
      %v1111 = vadd.f32 %v1104, %v1109
      %v1112 = vpack.c.bf16 %v1111, %v1111
      %v1113 = vld [vmem:[%s8] sm:$0xf]
      %v1114 = vld [vmem:[%s8 + $0x4] sm:$0xf]
      %v1115 = vld [vmem:[%s8 + $0x8] sm:$0xf]
      %v1116 = vld [vmem:[%s8 + $0xc] sm:$0xf]
      %v1117 = vld [vmem:[%s9] sm:$0x1]
      %v1119 = vlaneseq
      %v1120 = vshrl.u32 %v1119, 7
      %v1121 = vsub.s32 0, %v1120
      %v1122 = vrot.slane %v1117, %v1121
      %v1128 = vunpack.c.l.b16 %v1113
      %v1129 = vunpack.c.l.b16 %v1114
      %v1130 = vunpack.c.l.b16 %v1115
      %v1131 = vunpack.c.l.b16 %v1116
      %v1132 = vpack.c.b16 %v1129, %v1128
      %v1133 = vpack.c.b16 %v1131, %v1130
      %v1137 = vsel %vm501, %v1112, 0
      %1139 = vmatprep.subr.bf16.mxu0 0
      %1140 = vmatpush1.bf16.msra.mxu0 0
      %1141 = vmatprep.subr.bf16.mxu0 0
      %1142 = vmatpush1.bf16.msra.mxu0 0
      %1143 = vmatprep.subr.bf16.mxu0 0
      %1144 = vmatpush1.bf16.msra.mxu0 0
      %1145 = vmatprep.subr.bf16.mxu0 0
      %1146 = vmatpush1.bf16.msra.mxu0 0
      %1147 = vmatprep.subr.bf16.mxu0 0
      %1148 = vmatpush1.bf16.msra.mxu0 0
      %1149 = vmatprep.subr.bf16.mxu0 0
      %1150 = vmatpush1.bf16.msra.mxu0 0
      %1151 = vmatprep.subr.bf16.mxu0 0
      %1152 = vmatpush1.bf16.msra.mxu0 %v1133
      %1153 = vmatprep.subr.bf16.mxu0 0
      %1154 = vmatpush1.bf16.msra.mxu0 %v1132
      %1155 = vmatprep.subr.bf16.mxu0 0
      %1156 = vmatpush2.bf16.msra.mxu0 0
      %1157 = vmatprep.subr.bf16.mxu0 0
      %1158 = vmatpush2.bf16.msra.mxu0 0
      %1159 = vmatprep.subr.bf16.mxu0 0
      %1160 = vmatpush2.bf16.msra.mxu0 0
      %1161 = vmatprep.subr.bf16.mxu0 0
      %1162 = vmatpush2.bf16.msra.mxu0 0
      %1163 = vmatprep.subr.bf16.mxu0 0
      %1164 = vmatpush2.bf16.msra.mxu0 0
      %1165 = vmatprep.subr.bf16.mxu0 0
      %1166 = vmatpush2.bf16.msra.mxu0 0
      %1167 = vmatprep.subr.bf16.mxu0 0
      %1168 = vmatpush2.bf16.msra.mxu0 0
      %1169 = vmatprep.subr.bf16.mxu0 0
      %1170 = vmatpush2.bf16.msra.mxu0 0
      %1171 = vmatprep.mubr.bf16.mxu0 0
      %1172 = vmatmul.mubr.bf16.gmra.mxu0 %v1137
      %v1173 = vpop.f32.mrf.mxu0
      %v1174 = vadd.f32 %v1122, %v1173
      %v1175 = vpop.f32.mrf.mxu0
      %v1176 = vpop.f32.mrf.mxu0
      %v1177 = vpop.f32.mrf.mxu0
      %1178 = vdwg.mxu0
      %v1179 = vmul.f32 %v1174, %v1174
      %v1180 = vmul.f32 %v1174, %v1179
      %v1181 = vmul.f32 %v1180, 0.044715
      %v1182 = vadd.f32 %v1174, %v1181
      %v1183 = vmul.f32 %v1182, 0.7978846
      %v1184 = vtanh.pop %v1183
      %v1185 = vadd.f32 %v1184, 1.0
      %v1186 = vmul.f32 %v1185, 0.5
      %v1187 = vmul.f32 %v1174, %v1186
      %v1188 = vpack.c.bf16 %v1187, %v1187
      %v1189 = vld [vmem:[%s10] sm:$0xf]
      %v1190 = vld [vmem:[%s10 + $0x4] sm:$0xf]
      %v1191 = vld [vmem:[%s10 + $0x8] sm:$0xf]
      %v1192 = vld [vmem:[%s10 + $0xc] sm:$0xf]
      %v1193 = vld [vmem:[%s10 + $0x10] sm:$0xf]
      %v1194 = vld [vmem:[%s10 + $0x14] sm:$0xf]
      %v1195 = vld [vmem:[%s10 + $0x18] sm:$0xf]
      %v1196 = vld [vmem:[%s10 + $0x1c] sm:$0xf]
      %v1197 = vld [vmem:[%s11] sm:$0x1]
      %v1199 = vlaneseq
      %v1200 = vshrl.u32 %v1199, 7
      %v1201 = vsub.s32 0, %v1200
      %v1202 = vrot.slane %v1197, %v1201
      %v1212 = vunpack.c.l.b16 %v1189
      %v1213 = vunpack.c.l.b16 %v1190
      %v1214 = vunpack.c.l.b16 %v1191
      %v1215 = vunpack.c.l.b16 %v1192
      %v1216 = vunpack.c.l.b16 %v1193
      %v1217 = vunpack.c.l.b16 %v1194
      %v1218 = vunpack.c.l.b16 %v1195
      %v1219 = vunpack.c.l.b16 %v1196
      %v1220 = vpack.c.b16 %v1213, %v1212
      %v1221 = vpack.c.b16 %v1215, %v1214
      %v1222 = vpack.c.b16 %v1217, %v1216
      %v1223 = vpack.c.b16 %v1219, %v1218
      %vm1228 = vcmask 523264
      %v1230 = vsel %vm1228, %v1188, 0
      %1232 = vmatprep.subr.bf16.mxu0 0
      %1233 = vmatpush1.bf16.msra.mxu0 0
      %1234 = vmatprep.subr.bf16.mxu0 0
      %1235 = vmatpush1.bf16.msra.mxu0 0
      %1236 = vmatprep.subr.bf16.mxu0 0
      %1237 = vmatpush1.bf16.msra.mxu0 0
      %1238 = vmatprep.subr.bf16.mxu0 0
      %1239 = vmatpush1.bf16.msra.mxu0 0
      %1240 = vmatprep.subr.bf16.mxu0 0
      %1241 = vmatpush1.bf16.msra.mxu0 %v1223
      %1242 = vmatprep.subr.bf16.mxu0 0
      %1243 = vmatpush1.bf16.msra.mxu0 %v1222
      %1244 = vmatprep.subr.bf16.mxu0 0
      %1245 = vmatpush1.bf16.msra.mxu0 %v1221
      %1246 = vmatprep.subr.bf16.mxu0 0
      %1247 = vmatpush1.bf16.msra.mxu0 %v1220
      %1248 = vmatprep.subr.bf16.mxu0 0
      %1249 = vmatpush2.bf16.msra.mxu0 0
      %1250 = vmatprep.subr.bf16.mxu0 0
      %1251 = vmatpush2.bf16.msra.mxu0 0
      %1252 = vmatprep.subr.bf16.mxu0 0
      %1253 = vmatpush2.bf16.msra.mxu0 0
      %1254 = vmatprep.subr.bf16.mxu0 0
      %1255 = vmatpush2.bf16.msra.mxu0 0
      %1256 = vmatprep.subr.bf16.mxu0 0
      %1257 = vmatpush2.bf16.msra.mxu0 0
      %1258 = vmatprep.subr.bf16.mxu0 0
      %1259 = vmatpush2.bf16.msra.mxu0 0
      %1260 = vmatprep.subr.bf16.mxu0 0
      %1261 = vmatpush2.bf16.msra.mxu0 0
      %1262 = vmatprep.subr.bf16.mxu0 0
      %1263 = vmatpush2.bf16.msra.mxu0 0
      %1264 = vmatprep.mubr.bf16.mxu0 0
      %1265 = vmatmul.mubr.bf16.gmra.mxu0 %v1230
      %v1266 = vpop.f32.mrf.mxu0
      %v1267 = vadd.f32 %v1202, %v1266
      %v1268 = vpop.f32.mrf.mxu0
      %v1269 = vpop.f32.mrf.mxu0
      %v1270 = vpop.f32.mrf.mxu0
      %1271 = vdwg.mxu0
      %v1272 = vadd.f32 %v1111, %v1267
      %v1273 = vld [vmem:[%s12] sm:$0x1]
      %v1274 = vld [vmem:[%s13] sm:$0x1]
      %v1275 = vsel %vm501, %v1272, 0.0
      %1276 = vadd.xlane.f32.xlu0 %v1275
      %v1277 = vpop.xlane.xlu0 %1276
      %v1278 = vmul.f32 %v1277, %v1087
      %v1279 = vsub.f32 %v1272, %v1278
      %v1280 = vmul.f32 %v1279, %v1279
      %v1281 = vsel %vm501, %v1280, 0.0
      %1282 = vadd.xlane.f32.xlu0 %v1281
      %v1283 = vpop.xlane.xlu0 %1282
      %v1284 = vmul.f32 %v1283, %v1087
      %v1285 = vadd.f32 %v1284, 1e-12
      %v1286 = vrsqrt.pop %v1285
      %v1287 = vmul.f32 %v1279, %v1286
      %v1289 = vlaneseq
      %v1290 = vshrl.u32 %v1289, 7
      %v1291 = vsub.s32 0, %v1290
      %v1292 = vrot.slane %v1273, %v1291
      %v1294 = vmul.f32 %v1287, %v1292
      %v1296 = vlaneseq
      %v1297 = vshrl.u32 %v1296, 7
      %v1298 = vsub.s32 0, %v1297
      %v1299 = vrot.slane %v1274, %v1298
      %v1301 = vadd.f32 %v1294, %v1299
      %v1302 = vsel %vm501, %v1301, 0.0
      %v1303 = vrot.slane %v1302, 4
      %v1304 = vadd.f32 %v1302, %v1303
      %v1305 = vrot.slane %v1304, 2
      %v1306 = vadd.f32 %v1304, %v1305
      %v1307 = vrot.slane %v1306, 1
      %v1308 = vadd.f32 %v1306, %v1307
      %v1309 = vrcp.pop 8.0
      %v1310 = vmul.f32 %v1308, %v1309
      %vm1311 = vcmask 253952
      %1312 = vst.msk [vmem:[%s474] sm:$0x1] %vm1311, %v1310
      %p1313 = scmp.lt.s32.totalorder %s25, 5
      %s1314 = scalar_select %p1313, %s25, 5
      %s1315 = scalar_lea.vmem %s14, %s1314
      // Predicated region
      $region77: #{simplified_html_forward.6} parent=75 // pred_check
        %p1316 = pneg %p347
      $region78: #{simplified_html_forward.6} parent=75 // pred_check_branch
        %1318 = sbr.rel (%p1316) target = $region80
      $region79: #{simplified_html_forward.6} parent=75 // pred_region
        _
      $region80: #{simplified_html_forward.6} parent=75 // pred_fallthru
        _
    $region76: #{simplified_html_forward.6} parent=5 // pred_fallthru
      _
    %p1319 = scmp.le.s32.totalorder 2, %s20
    // Predicated region
    $region81: #{simplified_html_forward.6} parent=5 // pred_check
      %p1320 = pneg %p1319
    $region82: #{simplified_html_forward.6} parent=5 // pred_check_branch
      %1322 = sbr.rel (%p1320) target = $region84
    $region83: #{simplified_html_forward.6} parent=5 // pred_region
      %s1323 = ssub.s32 %s20, 2
      // Predicated region
      $region85: #{simplified_html_forward.6} parent=83 // pred_check
        %p1324 = pneg %p353
      $region86: #{simplified_html_forward.6} parent=83 // pred_check_branch
        %1326 = sbr.rel (%p1324) target = $region88
      $region87: #{simplified_html_forward.6} parent=83 // pred_region
        %p1327 = scmp.lt.s32.totalorder %s26, 5
        %s1328 = scalar_select %p1327, %s26, 5
        %s1329 = scalar_lea.vmem %s14, %s1328
      $region88: #{simplified_html_forward.6} parent=83 // pred_fallthru
        _
    $region84: #{simplified_html_forward.6} parent=5 // pred_fallthru
      _
  $region6: #{simplified_html_forward.6} parent=0 // loop_footer
    %s24 = sadd.s32 1, %s20
  $region7: #{simplified_html_forward.6} parent=0 // loop_footer_branch
    %19 = sbr.rel target = $region3
  $region8: #{simplified_html_forward.6} parent=0 // loop_exit
    _

// kernel: simplified_html_forward.4
$region0: #{simplified_html_forward.4}
  #allocation0 [shape = 'u32[]', space=smem, size = 0x4, offset = 0x4, fixed_abs, tag = 'smem constant byte address 0x4 - core index']
  #allocation1 [shape = 'u32[144,128]{1,0:T(1,128)}', space=vmem, size = 0x12000, scoped, tag = 'internal scratch']
  %s0 = inlined_call_operand.vmem [shape: f32[48,32], index: 0, kind: input, shape index: {}]
  %s1 = inlined_call_operand.vmem [shape: f32[1,32], index: 1, kind: input, shape index: {}]
  %s2 = inlined_call_operand.vmem [shape: f32[1,32], index: 2, kind: input, shape index: {}]
  %s3 = inlined_call_operand.vmem [shape: bf16[48,32], index: 3, kind: output, shape index: {}]
  %s4 = sld [smem:[#allocation0]]
  $region45: #{simplified_html_forward.4} parent=0
    _
  %s6 = ssub.s32 1, %s4
  %s7 = scalar_select 0, %s6, %s4
  loop: start=0, step=1, limit=5
  $region2: #{simplified_html_forward.4} parent=0 // loop_pre_header
    _
  $region3: #{simplified_html_forward.4} parent=0 // loop_header
    %s9 = sphi 0, %s13
    %p10 = scmp.ge.s32.totalorder %s9, 5
    %s19 = sphi 0, %s21
    %s22 = sphi 0, %s19
    %s23 = sphi 0, %s22
    %s39 = sphi 0, %s23
    %s43 = sphi 0, %s43
    %s45 = sphi 0, %s43
    %s46 = sphi 0, %s45
    %s60 = sphi 0, %s46
    %s64 = sphi 0, %s64
    %s66 = sphi 0, %s64
    %s67 = sphi 0, %s66
    %s81 = sphi 0, %s67
    %s87 = sphi 0, %s89
    %s90 = sphi 0, %s87
    %s91 = sphi 0, %s90
    %s107 = sphi 0, %s91
  $region4: #{simplified_html_forward.4} parent=0 // loop_header_branch
    %12 = sbr.rel (%p10) target = $region8
  $region5: #{simplified_html_forward.4} parent=0 // loop_body
    %s14 = ssub.s32 %s9, 1
    %s15 = ssub.s32 %s9, 2
    %s16 = sadd.s32 %s9, 1
    %s17 = ssub.s32 %s9, %s16
    %p18 = scmp.eq.s32.totalorder %s17, 0
    %s20 = sadd.s32 %s19, 1
    %s21 = scalar_select %p18, %s19, %s20
    %p24 = pneg %p18
    %p25 = scmp.eq.s32.totalorder %s9, 2
    %p26 = por %p24, %p25
    %p27 = scmp.ne.s32.totalorder %s19, %s22
    %p28 = scmp.eq.s32.totalorder %s9, 0
    %p29 = por %p27, %p28
    %p30 = scmp.ne.s32.totalorder %s19, %s22
    %p31 = scmp.eq.s32.totalorder %s14, 2
    %p32 = por %p30, %p31
    %p33 = scmp.ne.s32.totalorder %s22, %s23
    %p34 = scmp.eq.s32.totalorder %s14, 0
    %p35 = por %p33, %p34
    %p36 = scmp.ne.s32.totalorder %s22, %s23
    %p37 = scmp.eq.s32.totalorder %s15, 2
    %p38 = por %p36, %p37
    %p40 = scmp.ne.s32.totalorder %s23, %s39
    %p41 = scmp.eq.s32.totalorder %s15, 0
    %p42 = por %p40, %p41
    %s44 = sadd.s32 %s43, 1
    %p47 = scmp.eq.s32.totalorder %s9, 2
    %p48 = scmp.ne.s32.totalorder %s43, %s45
    %p49 = scmp.eq.s32.totalorder %s9, 0
    %p50 = por %p48, %p49
    %p51 = scmp.ne.s32.totalorder %s43, %s45
    %p52 = scmp.eq.s32.totalorder %s14, 2
    %p53 = por %p51, %p52
    %p54 = scmp.ne.s32.totalorder %s45, %s46
    %p55 = scmp.eq.s32.totalorder %s14, 0
    %p56 = por %p54, %p55
    %p57 = scmp.ne.s32.totalorder %s45, %s46
    %p58 = scmp.eq.s32.totalorder %s15, 2
    %p59 = por %p57, %p58
    %p61 = scmp.ne.s32.totalorder %s46, %s60
    %p62 = scmp.eq.s32.totalorder %s15, 0
    %p63 = por %p61, %p62
    %s65 = sadd.s32 %s64, 1
    %p68 = scmp.eq.s32.totalorder %s9, 2
    %p69 = scmp.ne.s32.totalorder %s64, %s66
    %p70 = scmp.eq.s32.totalorder %s9, 0
    %p71 = por %p69, %p70
    %p72 = scmp.ne.s32.totalorder %s64, %s66
    %p73 = scmp.eq.s32.totalorder %s14, 2
    %p74 = por %p72, %p73
    %p75 = scmp.ne.s32.totalorder %s66, %s67
    %p76 = scmp.eq.s32.totalorder %s14, 0
    %p77 = por %p75, %p76
    %p78 = scmp.ne.s32.totalorder %s66, %s67
    %p79 = scmp.eq.s32.totalorder %s15, 2
    %p80 = por %p78, %p79
    %p82 = scmp.ne.s32.totalorder %s67, %s81
    %p83 = scmp.eq.s32.totalorder %s15, 0
    %p84 = por %p82, %p83
    %s85 = ssub.s32 %s9, %s16
    %p86 = scmp.eq.s32.totalorder %s85, 0
    %s88 = sadd.s32 %s87, 1
    %s89 = scalar_select %p86, %s87, %s88
    %p92 = pneg %p86
    %p93 = scmp.eq.s32.totalorder %s9, 2
    %p94 = por %p92, %p93
    %p95 = scmp.ne.s32.totalorder %s87, %s90
    %p96 = scmp.eq.s32.totalorder %s9, 0
    %p97 = por %p95, %p96
    %p98 = scmp.ne.s32.totalorder %s87, %s90
    %p99 = scmp.eq.s32.totalorder %s14, 2
    %p100 = por %p98, %p99
    %p101 = scmp.ne.s32.totalorder %s90, %s91
    %p102 = scmp.eq.s32.totalorder %s14, 0
    %p103 = por %p101, %p102
    %p104 = scmp.ne.s32.totalorder %s90, %s91
    %p105 = scmp.eq.s32.totalorder %s15, 2
    %p106 = por %p104, %p105
    %p108 = scmp.ne.s32.totalorder %s91, %s107
    %p109 = scmp.eq.s32.totalorder %s15, 0
    %p110 = por %p108, %p109
    %p111 = scmp.le.s32.totalorder 1, %s9
    %p112 = scmp.lt.s32.totalorder %s9, 4
    %p113 = pnand %p111, %p112
    %p114 = pneg %p113
    // Predicated region
    $region9: #{simplified_html_forward.4} parent=5 // pred_check
      _
    $region10: #{simplified_html_forward.4} parent=5 // pred_check_branch
      %116 = sbr.rel (%p113) target = $region12
    $region11: #{simplified_html_forward.4} parent=5 // pred_region
      %s117 = ssub.s32 %s9, 1
      // Predicated region
      $region13: #{simplified_html_forward.4} parent=11 // pred_check
        %p118 = pneg %p56
      $region14: #{simplified_html_forward.4} parent=11 // pred_check_branch
        %120 = sbr.rel (%p118) target = $region16
      $region15: #{simplified_html_forward.4} parent=11 // pred_region
        _
      $region16: #{simplified_html_forward.4} parent=11 // pred_fallthru
        _
      // Predicated region
      $region17: #{simplified_html_forward.4} parent=11 // pred_check
        %p121 = pneg %p77
      $region18: #{simplified_html_forward.4} parent=11 // pred_check_branch
        %123 = sbr.rel (%p121) target = $region20
      $region19: #{simplified_html_forward.4} parent=11 // pred_region
        _
      $region20: #{simplified_html_forward.4} parent=11 // pred_fallthru
        _
    $region12: #{simplified_html_forward.4} parent=5 // pred_fallthru
      _
    %p124 = scmp.lt.s32.totalorder %s9, 3
    // Predicated region
    $region21: #{simplified_html_forward.4} parent=5 // pred_check
      %p125 = pneg %p124
    $region22: #{simplified_html_forward.4} parent=5 // pred_check_branch
      %127 = sbr.rel (%p125) target = $region24
    $region23: #{simplified_html_forward.4} parent=5 // pred_region
      // Predicated region
      $region25: #{simplified_html_forward.4} parent=23 // pred_check
        %p128 = pneg %p29
      $region26: #{simplified_html_forward.4} parent=23 // pred_check_branch
        %130 = sbr.rel (%p128) target = $region28
      $region27: #{simplified_html_forward.4} parent=23 // pred_region
        %s131 = smul.u32 2, %s9
        %p132 = scmp.lt.s32.totalorder %s131, 5
        %s133 = scalar_select %p132, %s131, 5
        %s134 = smul.addr %s133, 8
        %s135 = scalar_lea.vmem %s0, %s134
        %s136 = smul.u32 2, %s9
      $region28: #{simplified_html_forward.4} parent=23 // pred_fallthru
        _
    $region24: #{simplified_html_forward.4} parent=5 // pred_fallthru
      _
    %p137 = scmp.le.s32.totalorder 1, %s9
    %p138 = scmp.lt.s32.totalorder %s9, 4
    %p139 = pnand %p137, %p138
    %p140 = pneg %p139
    // Predicated region
    $region29: #{simplified_html_forward.4} parent=5 // pred_check
      _
    $region30: #{simplified_html_forward.4} parent=5 // pred_check_branch
      %142 = sbr.rel (%p139) target = $region32
    $region31: #{simplified_html_forward.4} parent=5 // pred_region
      %s143 = ssub.s32 %s9, 1
      %s144 = smul.u32 2, %s14
      %p145 = scmp.lt.s32.totalorder %s144, 5
      %s146 = scalar_select %p145, %s144, 5
      %s147 = smul.addr %s146, 8
      %s148 = scalar_lea.vmem %s0, %s147
      %p149 = pneg %p35
      %p150 = pneg %p32
      %p151 = pneg %p56
      %p152 = pneg %p53
      %p153 = pneg %p77
      %p154 = pneg %p74
      %p155 = pneg %p103
      %p156 = pneg %p100
      %s157 = smul.u32 2, %s14
      %p158 = scmp.lt.s32.totalorder %s157, 5
      %s159 = scalar_select %p158, %s157, 5
      %s160 = smul.addr %s159, 4
      %s161 = scalar_lea.vmem %s3, %s160
      %s162 = smul.u32 2, %s14
      %p163 = scmp.lt.s32.totalorder %s162, 5
      %s164 = scalar_select %p163, %s162, 5
      %s165 = smul.addr %s164, 8
      %s166 = scalar_lea.vmem %s0, %s165
      %s167 = smul.u32 2, %s14
      %s168 = smul.u32 2, %s14
      %p169 = scmp.lt.s32.totalorder %s168, 5
      %s170 = scalar_select %p169, %s168, 5
      %s171 = smul.addr %s170, 4
      %s172 = scalar_lea.vmem %s3, %s171
      %s173 = smul.u32 2, %s14
      %v174 = vld [vmem:[%s166] sm:$0xff]
      %v175 = vld [vmem:[%s166 + $0x8] sm:$0xff]
      %vm176 = vcmask 261120
      %v177 = vsel %vm176, %v174, 0.0
      %178 = vadd.xlane.f32.xlu0 %v177
      %v179 = vpop.xlane.xlu0 %178
      %v180 = vsel %vm176, %v175, 0.0
      %181 = vadd.xlane.f32.xlu0 %v180
      %v182 = vpop.xlane.xlu0 %181
      %v183 = vrcp.pop 32.0
      %v184 = vmul.f32 %v179, %v183
      %v185 = vmul.f32 %v182, %v183
      %v186 = vsub.f32 %v174, %v184
      %v187 = vsub.f32 %v175, %v185
      %v188 = vmul.f32 %v186, %v186
      %v189 = vmul.f32 %v187, %v187
      %v190 = vsel %vm176, %v188, 0.0
      %191 = vadd.xlane.f32.xlu0 %v190
      %v192 = vpop.xlane.xlu0 %191
      %v193 = vsel %vm176, %v189, 0.0
      %194 = vadd.xlane.f32.xlu0 %v193
      %v195 = vpop.xlane.xlu0 %194
      %v196 = vmul.f32 %v192, %v183
      %v197 = vmul.f32 %v195, %v183
      %v198 = vadd.f32 %v196, 1e-12
      %v199 = vadd.f32 %v197, 1e-12
      %v200 = vrsqrt.pop %v198
      %v201 = vrsqrt.pop %v199
      %v202 = vmul.f32 %v186, %v200
      %v203 = vmul.f32 %v187, %v201
      %v204 = vld [vmem:[%s1] sm:$0x1]
      %v206 = vlaneseq
      %v207 = vshrl.u32 %v206, 7
      %v208 = vsub.s32 0, %v207
      %v209 = vrot.slane %v204, %v208
      %v211 = vmul.f32 %v202, %v209
      %v212 = vmul.f32 %v203, %v209
      %v213 = vld [vmem:[%s2] sm:$0x1]
      %v215 = vlaneseq
      %v216 = vshrl.u32 %v215, 7
      %v217 = vsub.s32 0, %v216
      %v218 = vrot.slane %v213, %v217
      %v220 = vadd.f32 %v211, %v218
      %v221 = vadd.f32 %v212, %v218
      %v222 = vpack.c.bf16 %v221, %v220
      %v224 = vunpack.c.l.b16 %v222
      %v225 = vunpack.c.h.b16 %v222
      %v226 = vpack.c.b16 %v224, %v224
      %v227 = vpack.c.b16 %v225, %v225
      %vm230 = vcmask 257024
      %231 = vst.msk [vmem:[%s172] sm:$0xf] %vm230, %v226
      %232 = vst.msk [vmem:[%s172 + $0x4] sm:$0xf] %vm230, %v227
      %s233 = smul.u32 2, %s14
      %p234 = scmp.lt.s32.totalorder %s233, 5
      %s235 = scalar_select %p234, %s233, 5
      %s236 = smul.addr %s235, 4
      %s237 = scalar_lea.vmem %s3, %s236
      // Predicated region
      $region33: #{simplified_html_forward.4} parent=31 // pred_check
        %p238 = pneg %p100
      $region34: #{simplified_html_forward.4} parent=31 // pred_check_branch
        %240 = sbr.rel (%p238) target = $region36
      $region35: #{simplified_html_forward.4} parent=31 // pred_region
        %s241 = smul.u32 2, %s14
      $region36: #{simplified_html_forward.4} parent=31 // pred_fallthru
        _
    $region32: #{simplified_html_forward.4} parent=5 // pred_fallthru
      _
    %p242 = scmp.le.s32.totalorder 2, %s9
    // Predicated region
    $region37: #{simplified_html_forward.4} parent=5 // pred_check
      %p243 = pneg %p242
    $region38: #{simplified_html_forward.4} parent=5 // pred_check_branch
      %245 = sbr.rel (%p243) target = $region40
    $region39: #{simplified_html_forward.4} parent=5 // pred_region
      %s246 = ssub.s32 %s9, 2
      // Predicated region
      $region41: #{simplified_html_forward.4} parent=39 // pred_check
        %p247 = pneg %p106
      $region42: #{simplified_html_forward.4} parent=39 // pred_check_branch
        %249 = sbr.rel (%p247) target = $region44
      $region43: #{simplified_html_forward.4} parent=39 // pred_region
        %s250 = smul.u32 2, %s15
        %p251 = scmp.lt.s32.totalorder %s250, 5
        %s252 = scalar_select %p251, %s250, 5
        %s253 = smul.addr %s252, 4
        %s254 = scalar_lea.vmem %s3, %s253
      $region44: #{simplified_html_forward.4} parent=39 // pred_fallthru
        _
    $region40: #{simplified_html_forward.4} parent=5 // pred_fallthru
      _
  $region6: #{simplified_html_forward.4} parent=0 // loop_footer
    %s13 = sadd.s32 1, %s9
  $region7: #{simplified_html_forward.4} parent=0 // loop_footer_branch
    %8 = sbr.rel target = $region3
  $region8: #{simplified_html_forward.4} parent=0 // loop_exit
    _

// kernel: simplified_html_forward.5
$region0: #{simplified_html_forward.5}
  #allocation0 [shape = 'u32[]', space=smem, size = 0x4, offset = 0x4, fixed_abs, tag = 'smem constant byte address 0x4 - core index']
  #allocation1 [shape = 'u32[144,128]{1,0:T(1,128)}', space=vmem, size = 0x12000, scoped, tag = 'internal scratch']
  #allocation2 [shape = 'f32[8,32]{1,0:T(8,128)}', space=vmem, size = 0x1000, scoped, tag = 'scratch operand']
  %s0 = inlined_call_operand.vmem [shape: bf16[6,8,32], index: 0, kind: input, shape index: {}]
  %s1 = inlined_call_operand.vmem [shape: f32[6,1,8], index: 1, kind: input, shape index: {}]
  %s2 = inlined_call_operand.vmem [shape: bf16[32,96], index: 2, kind: input, shape index: {}]
  %s3 = inlined_call_operand.vmem [shape: f32[1,96], index: 3, kind: input, shape index: {}]
  %s4 = inlined_call_operand.vmem [shape: bf16[32,32], index: 4, kind: input, shape index: {}]
  %s5 = inlined_call_operand.vmem [shape: f32[1,32], index: 5, kind: input, shape index: {}]
  %s6 = inlined_call_operand.vmem [shape: f32[1,32], index: 6, kind: input, shape index: {}]
  %s7 = inlined_call_operand.vmem [shape: f32[1,32], index: 7, kind: input, shape index: {}]
  %s8 = inlined_call_operand.vmem [shape: bf16[32,64], index: 8, kind: input, shape index: {}]
  %s9 = inlined_call_operand.vmem [shape: f32[1,64], index: 9, kind: input, shape index: {}]
  %s10 = inlined_call_operand.vmem [shape: bf16[64,32], index: 10, kind: input, shape index: {}]
  %s11 = inlined_call_operand.vmem [shape: f32[1,32], index: 11, kind: input, shape index: {}]
  %s12 = inlined_call_operand.vmem [shape: f32[1,32], index: 12, kind: input, shape index: {}]
  %s13 = inlined_call_operand.vmem [shape: f32[1,32], index: 13, kind: input, shape index: {}]
  %s14 = inlined_call_operand.vmem [shape: bf16[6,8,32], index: 14, kind: output, shape index: {}]
  %s15 = sld [smem:[#allocation0]]
  $region89: #{simplified_html_forward.5} parent=0
    _
  %s17 = ssub.s32 1, %s15
  %s18 = scalar_select 0, %s17, %s15
  loop: start=0, step=1, limit=8
  $region2: #{simplified_html_forward.5} parent=0 // loop_pre_header
    _
  $region3: #{simplified_html_forward.5} parent=0 // loop_header
    %s20 = sphi 0, %s24
    %p21 = scmp.ge.s32.totalorder %s20, 8
    %s30 = sphi 0, %s32
    %s33 = sphi 0, %s30
    %s34 = sphi 0, %s33
    %s50 = sphi 0, %s34
    %s56 = sphi 0, %s58
    %s59 = sphi 0, %s56
    %s60 = sphi 0, %s59
    %s76 = sphi 0, %s60
    %s80 = sphi 0, %s80
    %s82 = sphi 0, %s80
    %s83 = sphi 0, %s82
    %s97 = sphi 0, %s83
    %s101 = sphi 0, %s101
    %s103 = sphi 0, %s101
    %s104 = sphi 0, %s103
    %s118 = sphi 0, %s104
    %s122 = sphi 0, %s122
    %s124 = sphi 0, %s122
    %s125 = sphi 0, %s124
    %s139 = sphi 0, %s125
    %s143 = sphi 0, %s143
    %s145 = sphi 0, %s143
    %s146 = sphi 0, %s145
    %s160 = sphi 0, %s146
    %s164 = sphi 0, %s164
    %s166 = sphi 0, %s164
    %s167 = sphi 0, %s166
    %s181 = sphi 0, %s167
    %s185 = sphi 0, %s185
    %s187 = sphi 0, %s185
    %s188 = sphi 0, %s187
    %s202 = sphi 0, %s188
    %s206 = sphi 0, %s206
    %s208 = sphi 0, %s206
    %s209 = sphi 0, %s208
    %s223 = sphi 0, %s209
    %s227 = sphi 0, %s227
    %s229 = sphi 0, %s227
    %s230 = sphi 0, %s229
    %s244 = sphi 0, %s230
    %s248 = sphi 0, %s248
    %s250 = sphi 0, %s248
    %s251 = sphi 0, %s250
    %s265 = sphi 0, %s251
    %s269 = sphi 0, %s269
    %s271 = sphi 0, %s269
    %s272 = sphi 0, %s271
    %s286 = sphi 0, %s272
    %s290 = sphi 0, %s290
    %s292 = sphi 0, %s290
    %s293 = sphi 0, %s292
    %s307 = sphi 0, %s293
    %s311 = sphi 0, %s311
    %s313 = sphi 0, %s311
    %s314 = sphi 0, %s313
    %s328 = sphi 0, %s314
    %s334 = sphi 0, %s336
    %s337 = sphi 0, %s334
    %s338 = sphi 0, %s337
    %s354 = sphi 0, %s338
  $region4: #{simplified_html_forward.5} parent=0 // loop_header_branch
    %23 = sbr.rel (%p21) target = $region8
  $region5: #{simplified_html_forward.5} parent=0 // loop_body
    %s25 = ssub.s32 %s20, 1
    %s26 = ssub.s32 %s20, 2
    %s27 = sadd.s32 %s20, 1
    %s28 = ssub.s32 %s20, %s27
    %p29 = scmp.eq.s32.totalorder %s28, 0
    %s31 = sadd.s32 %s30, 1
    %s32 = scalar_select %p29, %s30, %s31
    %p35 = pneg %p29
    %p36 = scmp.eq.s32.totalorder %s20, 5
    %p37 = por %p35, %p36
    %p38 = scmp.ne.s32.totalorder %s30, %s33
    %p39 = scmp.eq.s32.totalorder %s20, 0
    %p40 = por %p38, %p39
    %p41 = scmp.ne.s32.totalorder %s30, %s33
    %p42 = scmp.eq.s32.totalorder %s25, 5
    %p43 = por %p41, %p42
    %p44 = scmp.ne.s32.totalorder %s33, %s34
    %p45 = scmp.eq.s32.totalorder %s25, 0
    %p46 = por %p44, %p45
    %p47 = scmp.ne.s32.totalorder %s33, %s34
    %p48 = scmp.eq.s32.totalorder %s26, 5
    %p49 = por %p47, %p48
    %p51 = scmp.ne.s32.totalorder %s34, %s50
    %p52 = scmp.eq.s32.totalorder %s26, 0
    %p53 = por %p51, %p52
    %s54 = ssub.s32 %s20, %s27
    %p55 = scmp.eq.s32.totalorder %s54, 0
    %s57 = sadd.s32 %s56, 1
    %s58 = scalar_select %p55, %s56, %s57
    %p61 = pneg %p55
    %p62 = scmp.eq.s32.totalorder %s20, 5
    %p63 = por %p61, %p62
    %p64 = scmp.ne.s32.totalorder %s56, %s59
    %p65 = scmp.eq.s32.totalorder %s20, 0
    %p66 = por %p64, %p65
    %p67 = scmp.ne.s32.totalorder %s56, %s59
    %p68 = scmp.eq.s32.totalorder %s25, 5
    %p69 = por %p67, %p68
    %p70 = scmp.ne.s32.totalorder %s59, %s60
    %p71 = scmp.eq.s32.totalorder %s25, 0
    %p72 = por %p70, %p71
    %p73 = scmp.ne.s32.totalorder %s59, %s60
    %p74 = scmp.eq.s32.totalorder %s26, 5
    %p75 = por %p73, %p74
    %p77 = scmp.ne.s32.totalorder %s60, %s76
    %p78 = scmp.eq.s32.totalorder %s26, 0
    %p79 = por %p77, %p78
    %s81 = sadd.s32 %s80, 1
    %p84 = scmp.eq.s32.totalorder %s20, 5
    %p85 = scmp.ne.s32.totalorder %s80, %s82
    %p86 = scmp.eq.s32.totalorder %s20, 0
    %p87 = por %p85, %p86
    %p88 = scmp.ne.s32.totalorder %s80, %s82
    %p89 = scmp.eq.s32.totalorder %s25, 5
    %p90 = por %p88, %p89
    %p91 = scmp.ne.s32.totalorder %s82, %s83
    %p92 = scmp.eq.s32.totalorder %s25, 0
    %p93 = por %p91, %p92
    %p94 = scmp.ne.s32.totalorder %s82, %s83
    %p95 = scmp.eq.s32.totalorder %s26, 5
    %p96 = por %p94, %p95
    %p98 = scmp.ne.s32.totalorder %s83, %s97
    %p99 = scmp.eq.s32.totalorder %s26, 0
    %p100 = por %p98, %p99
    %s102 = sadd.s32 %s101, 1
    %p105 = scmp.eq.s32.totalorder %s20, 5
    %p106 = scmp.ne.s32.totalorder %s101, %s103
    %p107 = scmp.eq.s32.totalorder %s20, 0
    %p108 = por %p106, %p107
    %p109 = scmp.ne.s32.totalorder %s101, %s103
    %p110 = scmp.eq.s32.totalorder %s25, 5
    %p111 = por %p109, %p110
    %p112 = scmp.ne.s32.totalorder %s103, %s104
    %p113 = scmp.eq.s32.totalorder %s25, 0
    %p114 = por %p112, %p113
    %p115 = scmp.ne.s32.totalorder %s103, %s104
    %p116 = scmp.eq.s32.totalorder %s26, 5
    %p117 = por %p115, %p116
    %p119 = scmp.ne.s32.totalorder %s104, %s118
    %p120 = scmp.eq.s32.totalorder %s26, 0
    %p121 = por %p119, %p120
    %s123 = sadd.s32 %s122, 1
    %p126 = scmp.eq.s32.totalorder %s20, 5
    %p127 = scmp.ne.s32.totalorder %s122, %s124
    %p128 = scmp.eq.s32.totalorder %s20, 0
    %p129 = por %p127, %p128
    %p130 = scmp.ne.s32.totalorder %s122, %s124
    %p131 = scmp.eq.s32.totalorder %s25, 5
    %p132 = por %p130, %p131
    %p133 = scmp.ne.s32.totalorder %s124, %s125
    %p134 = scmp.eq.s32.totalorder %s25, 0
    %p135 = por %p133, %p134
    %p136 = scmp.ne.s32.totalorder %s124, %s125
    %p137 = scmp.eq.s32.totalorder %s26, 5
    %p138 = por %p136, %p137
    %p140 = scmp.ne.s32.totalorder %s125, %s139
    %p141 = scmp.eq.s32.totalorder %s26, 0
    %p142 = por %p140, %p141
    %s144 = sadd.s32 %s143, 1
    %p147 = scmp.eq.s32.totalorder %s20, 5
    %p148 = scmp.ne.s32.totalorder %s143, %s145
    %p149 = scmp.eq.s32.totalorder %s20, 0
    %p150 = por %p148, %p149
    %p151 = scmp.ne.s32.totalorder %s143, %s145
    %p152 = scmp.eq.s32.totalorder %s25, 5
    %p153 = por %p151, %p152
    %p154 = scmp.ne.s32.totalorder %s145, %s146
    %p155 = scmp.eq.s32.totalorder %s25, 0
    %p156 = por %p154, %p155
    %p157 = scmp.ne.s32.totalorder %s145, %s146
    %p158 = scmp.eq.s32.totalorder %s26, 5
    %p159 = por %p157, %p158
    %p161 = scmp.ne.s32.totalorder %s146, %s160
    %p162 = scmp.eq.s32.totalorder %s26, 0
    %p163 = por %p161, %p162
    %s165 = sadd.s32 %s164, 1
    %p168 = scmp.eq.s32.totalorder %s20, 5
    %p169 = scmp.ne.s32.totalorder %s164, %s166
    %p170 = scmp.eq.s32.totalorder %s20, 0
    %p171 = por %p169, %p170
    %p172 = scmp.ne.s32.totalorder %s164, %s166
    %p173 = scmp.eq.s32.totalorder %s25, 5
    %p174 = por %p172, %p173
    %p175 = scmp.ne.s32.totalorder %s166, %s167
    %p176 = scmp.eq.s32.totalorder %s25, 0
    %p177 = por %p175, %p176
    %p178 = scmp.ne.s32.totalorder %s166, %s167
    %p179 = scmp.eq.s32.totalorder %s26, 5
    %p180 = por %p178, %p179
    %p182 = scmp.ne.s32.totalorder %s167, %s181
    %p183 = scmp.eq.s32.totalorder %s26, 0
    %p184 = por %p182, %p183
    %s186 = sadd.s32 %s185, 1
    %p189 = scmp.eq.s32.totalorder %s20, 5
    %p190 = scmp.ne.s32.totalorder %s185, %s187
    %p191 = scmp.eq.s32.totalorder %s20, 0
    %p192 = por %p190, %p191
    %p193 = scmp.ne.s32.totalorder %s185, %s187
    %p194 = scmp.eq.s32.totalorder %s25, 5
    %p195 = por %p193, %p194
    %p196 = scmp.ne.s32.totalorder %s187, %s188
    %p197 = scmp.eq.s32.totalorder %s25, 0
    %p198 = por %p196, %p197
    %p199 = scmp.ne.s32.totalorder %s187, %s188
    %p200 = scmp.eq.s32.totalorder %s26, 5
    %p201 = por %p199, %p200
    %p203 = scmp.ne.s32.totalorder %s188, %s202
    %p204 = scmp.eq.s32.totalorder %s26, 0
    %p205 = por %p203, %p204
    %s207 = sadd.s32 %s206, 1
    %p210 = scmp.eq.s32.totalorder %s20, 5
    %p211 = scmp.ne.s32.totalorder %s206, %s208
    %p212 = scmp.eq.s32.totalorder %s20, 0
    %p213 = por %p211, %p212
    %p214 = scmp.ne.s32.totalorder %s206, %s208
    %p215 = scmp.eq.s32.totalorder %s25, 5
    %p216 = por %p214, %p215
    %p217 = scmp.ne.s32.totalorder %s208, %s209
    %p218 = scmp.eq.s32.totalorder %s25, 0
    %p219 = por %p217, %p218
    %p220 = scmp.ne.s32.totalorder %s208, %s209
    %p221 = scmp.eq.s32.totalorder %s26, 5
    %p222 = por %p220, %p221
    %p224 = scmp.ne.s32.totalorder %s209, %s223
    %p225 = scmp.eq.s32.totalorder %s26, 0
    %p226 = por %p224, %p225
    %s228 = sadd.s32 %s227, 1
    %p231 = scmp.eq.s32.totalorder %s20, 5
    %p232 = scmp.ne.s32.totalorder %s227, %s229
    %p233 = scmp.eq.s32.totalorder %s20, 0
    %p234 = por %p232, %p233
    %p235 = scmp.ne.s32.totalorder %s227, %s229
    %p236 = scmp.eq.s32.totalorder %s25, 5
    %p237 = por %p235, %p236
    %p238 = scmp.ne.s32.totalorder %s229, %s230
    %p239 = scmp.eq.s32.totalorder %s25, 0
    %p240 = por %p238, %p239
    %p241 = scmp.ne.s32.totalorder %s229, %s230
    %p242 = scmp.eq.s32.totalorder %s26, 5
    %p243 = por %p241, %p242
    %p245 = scmp.ne.s32.totalorder %s230, %s244
    %p246 = scmp.eq.s32.totalorder %s26, 0
    %p247 = por %p245, %p246
    %s249 = sadd.s32 %s248, 1
    %p252 = scmp.eq.s32.totalorder %s20, 5
    %p253 = scmp.ne.s32.totalorder %s248, %s250
    %p254 = scmp.eq.s32.totalorder %s20, 0
    %p255 = por %p253, %p254
    %p256 = scmp.ne.s32.totalorder %s248, %s250
    %p257 = scmp.eq.s32.totalorder %s25, 5
    %p258 = por %p256, %p257
    %p259 = scmp.ne.s32.totalorder %s250, %s251
    %p260 = scmp.eq.s32.totalorder %s25, 0
    %p261 = por %p259, %p260
    %p262 = scmp.ne.s32.totalorder %s250, %s251
    %p263 = scmp.eq.s32.totalorder %s26, 5
    %p264 = por %p262, %p263
    %p266 = scmp.ne.s32.totalorder %s251, %s265
    %p267 = scmp.eq.s32.totalorder %s26, 0
    %p268 = por %p266, %p267
    %s270 = sadd.s32 %s269, 1
    %p273 = scmp.eq.s32.totalorder %s20, 5
    %p274 = scmp.ne.s32.totalorder %s269, %s271
    %p275 = scmp.eq.s32.totalorder %s20, 0
    %p276 = por %p274, %p275
    %p277 = scmp.ne.s32.totalorder %s269, %s271
    %p278 = scmp.eq.s32.totalorder %s25, 5
    %p279 = por %p277, %p278
    %p280 = scmp.ne.s32.totalorder %s271, %s272
    %p281 = scmp.eq.s32.totalorder %s25, 0
    %p282 = por %p280, %p281
    %p283 = scmp.ne.s32.totalorder %s271, %s272
    %p284 = scmp.eq.s32.totalorder %s26, 5
    %p285 = por %p283, %p284
    %p287 = scmp.ne.s32.totalorder %s272, %s286
    %p288 = scmp.eq.s32.totalorder %s26, 0
    %p289 = por %p287, %p288
    %s291 = sadd.s32 %s290, 1
    %p294 = scmp.eq.s32.totalorder %s20, 5
    %p295 = scmp.ne.s32.totalorder %s290, %s292
    %p296 = scmp.eq.s32.totalorder %s20, 0
    %p297 = por %p295, %p296
    %p298 = scmp.ne.s32.totalorder %s290, %s292
    %p299 = scmp.eq.s32.totalorder %s25, 5
    %p300 = por %p298, %p299
    %p301 = scmp.ne.s32.totalorder %s292, %s293
    %p302 = scmp.eq.s32.totalorder %s25, 0
    %p303 = por %p301, %p302
    %p304 = scmp.ne.s32.totalorder %s292, %s293
    %p305 = scmp.eq.s32.totalorder %s26, 5
    %p306 = por %p304, %p305
    %p308 = scmp.ne.s32.totalorder %s293, %s307
    %p309 = scmp.eq.s32.totalorder %s26, 0
    %p310 = por %p308, %p309
    %s312 = sadd.s32 %s311, 1
    %p315 = scmp.eq.s32.totalorder %s20, 5
    %p316 = scmp.ne.s32.totalorder %s311, %s313
    %p317 = scmp.eq.s32.totalorder %s20, 0
    %p318 = por %p316, %p317
    %p319 = scmp.ne.s32.totalorder %s311, %s313
    %p320 = scmp.eq.s32.totalorder %s25, 5
    %p321 = por %p319, %p320
    %p322 = scmp.ne.s32.totalorder %s313, %s314
    %p323 = scmp.eq.s32.totalorder %s25, 0
    %p324 = por %p322, %p323
    %p325 = scmp.ne.s32.totalorder %s313, %s314
    %p326 = scmp.eq.s32.totalorder %s26, 5
    %p327 = por %p325, %p326
    %p329 = scmp.ne.s32.totalorder %s314, %s328
    %p330 = scmp.eq.s32.totalorder %s26, 0
    %p331 = por %p329, %p330
    %s332 = ssub.s32 %s20, %s27
    %p333 = scmp.eq.s32.totalorder %s332, 0
    %s335 = sadd.s32 %s334, 1
    %s336 = scalar_select %p333, %s334, %s335
    %p339 = pneg %p333
    %p340 = scmp.eq.s32.totalorder %s20, 5
    %p341 = por %p339, %p340
    %p342 = scmp.ne.s32.totalorder %s334, %s337
    %p343 = scmp.eq.s32.totalorder %s20, 0
    %p344 = por %p342, %p343
    %p345 = scmp.ne.s32.totalorder %s334, %s337
    %p346 = scmp.eq.s32.totalorder %s25, 5
    %p347 = por %p345, %p346
    %p348 = scmp.ne.s32.totalorder %s337, %s338
    %p349 = scmp.eq.s32.totalorder %s25, 0
    %p350 = por %p348, %p349
    %p351 = scmp.ne.s32.totalorder %s337, %s338
    %p352 = scmp.eq.s32.totalorder %s26, 5
    %p353 = por %p351, %p352
    %p355 = scmp.ne.s32.totalorder %s338, %s354
    %p356 = scmp.eq.s32.totalorder %s26, 0
    %p357 = por %p355, %p356
    %p358 = scmp.le.s32.totalorder 1, %s20
    %p359 = scmp.lt.s32.totalorder %s20, 7
    %p360 = pnand %p358, %p359
    %p361 = pneg %p360
    // Predicated region
    $region9: #{simplified_html_forward.5} parent=5 // pred_check
      _
    $region10: #{simplified_html_forward.5} parent=5 // pred_check_branch
      %363 = sbr.rel (%p360) target = $region12
    $region11: #{simplified_html_forward.5} parent=5 // pred_region
      %s364 = ssub.s32 %s20, 1
      // Predicated region
      $region13: #{simplified_html_forward.5} parent=11 // pred_check
        %p365 = pneg %p93
      $region14: #{simplified_html_forward.5} parent=11 // pred_check_branch
        %367 = sbr.rel (%p365) target = $region16
      $region15: #{simplified_html_forward.5} parent=11 // pred_region
        _
      $region16: #{simplified_html_forward.5} parent=11 // pred_fallthru
        _
      // Predicated region
      $region17: #{simplified_html_forward.5} parent=11 // pred_check
        %p368 = pneg %p114
      $region18: #{simplified_html_forward.5} parent=11 // pred_check_branch
        %370 = sbr.rel (%p368) target = $region20
      $region19: #{simplified_html_forward.5} parent=11 // pred_region
        _
      $region20: #{simplified_html_forward.5} parent=11 // pred_fallthru
        _
      // Predicated region
      $region21: #{simplified_html_forward.5} parent=11 // pred_check
        %p371 = pneg %p135
      $region22: #{simplified_html_forward.5} parent=11 // pred_check_branch
        %373 = sbr.rel (%p371) target = $region24
      $region23: #{simplified_html_forward.5} parent=11 // pred_region
        _
      $region24: #{simplified_html_forward.5} parent=11 // pred_fallthru
        _
      // Predicated region
      $region25: #{simplified_html_forward.5} parent=11 // pred_check
        %p374 = pneg %p156
      $region26: #{simplified_html_forward.5} parent=11 // pred_check_branch
        %376 = sbr.rel (%p374) target = $region28
      $region27: #{simplified_html_forward.5} parent=11 // pred_region
        _
      $region28: #{simplified_html_forward.5} parent=11 // pred_fallthru
        _
      // Predicated region
      $region29: #{simplified_html_forward.5} parent=11 // pred_check
        %p377 = pneg %p177
      $region30: #{simplified_html_forward.5} parent=11 // pred_check_branch
        %379 = sbr.rel (%p377) target = $region32
      $region31: #{simplified_html_forward.5} parent=11 // pred_region
        _
      $region32: #{simplified_html_forward.5} parent=11 // pred_fallthru
        _
      // Predicated region
      $region33: #{simplified_html_forward.5} parent=11 // pred_check
        %p380 = pneg %p198
      $region34: #{simplified_html_forward.5} parent=11 // pred_check_branch
        %382 = sbr.rel (%p380) target = $region36
      $region35: #{simplified_html_forward.5} parent=11 // pred_region
        _
      $region36: #{simplified_html_forward.5} parent=11 // pred_fallthru
        _
      // Predicated region
      $region37: #{simplified_html_forward.5} parent=11 // pred_check
        %p383 = pneg %p219
      $region38: #{simplified_html_forward.5} parent=11 // pred_check_branch
        %385 = sbr.rel (%p383) target = $region40
      $region39: #{simplified_html_forward.5} parent=11 // pred_region
        _
      $region40: #{simplified_html_forward.5} parent=11 // pred_fallthru
        _
      // Predicated region
      $region41: #{simplified_html_forward.5} parent=11 // pred_check
        %p386 = pneg %p240
      $region42: #{simplified_html_forward.5} parent=11 // pred_check_branch
        %388 = sbr.rel (%p386) target = $region44
      $region43: #{simplified_html_forward.5} parent=11 // pred_region
        _
      $region44: #{simplified_html_forward.5} parent=11 // pred_fallthru
        _
      // Predicated region
      $region45: #{simplified_html_forward.5} parent=11 // pred_check
        %p389 = pneg %p261
      $region46: #{simplified_html_forward.5} parent=11 // pred_check_branch
        %391 = sbr.rel (%p389) target = $region48
      $region47: #{simplified_html_forward.5} parent=11 // pred_region
        _
      $region48: #{simplified_html_forward.5} parent=11 // pred_fallthru
        _
      // Predicated region
      $region49: #{simplified_html_forward.5} parent=11 // pred_check
        %p392 = pneg %p282
      $region50: #{simplified_html_forward.5} parent=11 // pred_check_branch
        %394 = sbr.rel (%p392) target = $region52
      $region51: #{simplified_html_forward.5} parent=11 // pred_region
        _
      $region52: #{simplified_html_forward.5} parent=11 // pred_fallthru
        _
      // Predicated region
      $region53: #{simplified_html_forward.5} parent=11 // pred_check
        %p395 = pneg %p303
      $region54: #{simplified_html_forward.5} parent=11 // pred_check_branch
        %397 = sbr.rel (%p395) target = $region56
      $region55: #{simplified_html_forward.5} parent=11 // pred_region
        _
      $region56: #{simplified_html_forward.5} parent=11 // pred_fallthru
        _
      // Predicated region
      $region57: #{simplified_html_forward.5} parent=11 // pred_check
        %p398 = pneg %p324
      $region58: #{simplified_html_forward.5} parent=11 // pred_check_branch
        %400 = sbr.rel (%p398) target = $region60
      $region59: #{simplified_html_forward.5} parent=11 // pred_region
        _
      $region60: #{simplified_html_forward.5} parent=11 // pred_fallthru
        _
    $region12: #{simplified_html_forward.5} parent=5 // pred_fallthru
      _
    %p401 = scmp.lt.s32.totalorder %s20, 6
    // Predicated region
    $region61: #{simplified_html_forward.5} parent=5 // pred_check
      %p402 = pneg %p401
    $region62: #{simplified_html_forward.5} parent=5 // pred_check_branch
      %404 = sbr.rel (%p402) target = $region64
    $region63: #{simplified_html_forward.5} parent=5 // pred_region
      // Predicated region
      $region65: #{simplified_html_forward.5} parent=63 // pred_check
        %p405 = pneg %p40
      $region66: #{simplified_html_forward.5} parent=63 // pred_check_branch
        %407 = sbr.rel (%p405) target = $region68
      $region67: #{simplified_html_forward.5} parent=63 // pred_region
        %p408 = scmp.lt.s32.totalorder %s20, 5
        %s409 = scalar_select %p408, %s20, 5
        %s410 = smul.addr %s409, 4
        %s411 = scalar_lea.vmem %s0, %s410
      $region68: #{simplified_html_forward.5} parent=63 // pred_fallthru
        _
      // Predicated region
      $region69: #{simplified_html_forward.5} parent=63 // pred_check
        %p412 = pneg %p66
      $region70: #{simplified_html_forward.5} parent=63 // pred_check_branch
        %414 = sbr.rel (%p412) target = $region72
      $region71: #{simplified_html_forward.5} parent=63 // pred_region
        %p415 = scmp.lt.s32.totalorder %s20, 5
        %s416 = scalar_select %p415, %s20, 5
        %s417 = scalar_lea.vmem %s1, %s416
      $region72: #{simplified_html_forward.5} parent=63 // pred_fallthru
        _
    $region64: #{simplified_html_forward.5} parent=5 // pred_fallthru
      _
    %p418 = scmp.le.s32.totalorder 1, %s20
    %p419 = scmp.lt.s32.totalorder %s20, 7
    %p420 = pnand %p418, %p419
    %p421 = pneg %p420
    // Predicated region
    $region73: #{simplified_html_forward.5} parent=5 // pred_check
      _
    $region74: #{simplified_html_forward.5} parent=5 // pred_check_branch
      %423 = sbr.rel (%p420) target = $region76
    $region75: #{simplified_html_forward.5} parent=5 // pred_region
      %s424 = ssub.s32 %s20, 1
      %p425 = scmp.lt.s32.totalorder %s25, 5
      %s426 = scalar_select %p425, %s25, 5
      %s427 = smul.addr %s426, 4
      %s428 = scalar_lea.vmem %s0, %s427
      %p429 = pneg %p46
      %p430 = pneg %p43
      %p431 = scmp.lt.s32.totalorder %s25, 5
      %s432 = scalar_select %p431, %s25, 5
      %s433 = scalar_lea.vmem %s1, %s432
      %p434 = pneg %p72
      %p435 = pneg %p69
      %p436 = pneg %p93
      %p437 = pneg %p90
      %p438 = pneg %p114
      %p439 = pneg %p111
      %p440 = pneg %p135
      %p441 = pneg %p132
      %p442 = pneg %p156
      %p443 = pneg %p153
      %p444 = pneg %p177
      %p445 = pneg %p174
      %p446 = pneg %p198
      %p447 = pneg %p195
      %p448 = pneg %p219
      %p449 = pneg %p216
      %p450 = pneg %p240
      %p451 = pneg %p237
      %p452 = pneg %p261
      %p453 = pneg %p258
      %p454 = pneg %p282
      %p455 = pneg %p279
      %p456 = pneg %p303
      %p457 = pneg %p300
      %p458 = pneg %p324
      %p459 = pneg %p321
      %p460 = pneg %p350
      %p461 = pneg %p347
      %p462 = scmp.lt.s32.totalorder %s25, 5
      %s463 = scalar_select %p462, %s25, 5
      %s464 = smul.addr %s463, 4
      %s465 = scalar_lea.vmem %s14, %s464
      %p466 = scmp.lt.s32.totalorder %s25, 5
      %s467 = scalar_select %p466, %s25, 5
      %s468 = smul.addr %s467, 4
      %s469 = scalar_lea.vmem %s0, %s468
      %p470 = scmp.lt.s32.totalorder %s25, 5
      %s471 = scalar_select %p470, %s25, 5
      %s472 = scalar_lea.vmem %s1, %s471
      %p473 = scmp.lt.s32.totalorder %s25, 5
      %s474 = scalar_select %p473, %s25, 5
      %s475 = smul.addr %s474, 4
      %s476 = scalar_lea.vmem %s14, %s475
      %v478 = vld [vmem:[%s469] sm:$0xf]
      %v479 = vunpack.c.l.bf16 %v478
      %v480 = vld [vmem:[%s2] sm:$0xf]
      %v481 = vld [vmem:[%s2 + $0x4] sm:$0xf]
      %v482 = vld [vmem:[%s2 + $0x8] sm:$0xf]
      %v483 = vld [vmem:[%s2 + $0xc] sm:$0xf]
      %v484 = vld [vmem:[%s3] sm:$0x1]
      %v486 = vlaneseq
      %v487 = vshrl.u32 %v486, 7
      %v488 = vsub.s32 0, %v487
      %v489 = vrot.slane %v484, %v488
      %v495 = vunpack.c.l.b16 %v480
      %v496 = vunpack.c.l.b16 %v481
      %v497 = vunpack.c.l.b16 %v482
      %v498 = vunpack.c.l.b16 %v483
      %v499 = vpack.c.b16 %v496, %v495
      %v500 = vpack.c.b16 %v498, %v497
      %vm503 = vcmask 261120
      %v505 = vsel %vm503, %v478, 0
      %507 = vmatprep.subr.bf16.mxu0 0
      %508 = vmatpush1.bf16.msra.mxu0 0
      %509 = vmatprep.subr.bf16.mxu0 0
      %510 = vmatpush1.bf16.msra.mxu0 0
      %511 = vmatprep.subr.bf16.mxu0 0
      %512 = vmatpush1.bf16.msra.mxu0 0
      %513 = vmatprep.subr.bf16.mxu0 0
      %514 = vmatpush1.bf16.msra.mxu0 0
      %515 = vmatprep.subr.bf16.mxu0 0
      %516 = vmatpush1.bf16.msra.mxu0 0
      %517 = vmatprep.subr.bf16.mxu0 0
      %518 = vmatpush1.bf16.msra.mxu0 0
      %519 = vmatprep.subr.bf16.mxu0 0
      %520 = vmatpush1.bf16.msra.mxu0 %v500
      %521 = vmatprep.subr.bf16.mxu0 0
      %522 = vmatpush1.bf16.msra.mxu0 %v499
      %523 = vmatprep.subr.bf16.mxu0 0
      %524 = vmatpush2.bf16.msra.mxu0 0
      %525 = vmatprep.subr.bf16.mxu0 0
      %526 = vmatpush2.bf16.msra.mxu0 0
      %527 = vmatprep.subr.bf16.mxu0 0
      %528 = vmatpush2.bf16.msra.mxu0 0
      %529 = vmatprep.subr.bf16.mxu0 0
      %530 = vmatpush2.bf16.msra.mxu0 0
      %531 = vmatprep.subr.bf16.mxu0 0
      %532 = vmatpush2.bf16.msra.mxu0 0
      %533 = vmatprep.subr.bf16.mxu0 0
      %534 = vmatpush2.bf16.msra.mxu0 0
      %535 = vmatprep.subr.bf16.mxu0 0
      %536 = vmatpush2.bf16.msra.mxu0 0
      %537 = vmatprep.subr.bf16.mxu0 0
      %538 = vmatpush2.bf16.msra.mxu0 0
      %539 = vmatprep.mubr.bf16.mxu0 0
      %540 = vmatmul.mubr.bf16.gmra.mxu0 %v505
      %v541 = vpop.f32.mrf.mxu0
      %v542 = vadd.f32 %v489, %v541
      %v543 = vpop.f32.mrf.mxu0
      %v544 = vpop.f32.mrf.mxu0
      %v545 = vpop.f32.mrf.mxu0
      %546 = vdwg.mxu0
      %v547 = vld [vmem:[%s472] sm:$0x1]
      %v548 = vpack.c.bf16 %v542, %v542
      %v550 = vlaneseq
      %v551 = vshrl.u32 %v550, 7
      %v552 = vsub.s32 0, %v551
      %v553 = vrot.slane %v547, %v552
      %556 = vrot.lane.b32.xlu0 %v548, 96
      %v557 = vpop.permute.xlu0 %556
      %vm558 = vcmask 64512
      %v560 = vsel %vm558, %v548, 0
      %v563 = vsel %vm558, %v557, 0
      %565 = vmatprep.subr.bf16.mxu0 0
      %566 = vmatpush1.bf16.xpose.msra.mxu0 0
      %567 = vmatprep.subr.bf16.mxu0 0
      %568 = vmatpush1.bf16.xpose.msra.mxu0 0
      %569 = vmatprep.subr.bf16.mxu0 0
      %570 = vmatpush1.bf16.xpose.msra.mxu0 0
      %571 = vmatprep.subr.bf16.mxu0 0
      %572 = vmatpush1.bf16.xpose.msra.mxu0 0
      %573 = vmatprep.subr.bf16.mxu0 0
      %574 = vmatpush1.bf16.xpose.msra.mxu0 0
      %575 = vmatprep.subr.bf16.mxu0 0
      %576 = vmatpush1.bf16.xpose.msra.mxu0 0
      %577 = vmatprep.subr.bf16.mxu0 0
      %578 = vmatpush1.bf16.xpose.msra.mxu0 0
      %579 = vmatprep.subr.bf16.mxu0 0
      %580 = vmatpush1.bf16.xpose.msra.mxu0 %v563
      %581 = vmatprep.subr.bf16.mxu0 0
      %582 = vmatpush2.bf16.xpose.msra.mxu0 0
      %583 = vmatprep.subr.bf16.mxu0 0
      %584 = vmatpush2.bf16.xpose.msra.mxu0 0
      %585 = vmatprep.subr.bf16.mxu0 0
      %586 = vmatpush2.bf16.xpose.msra.mxu0 0
      %587 = vmatprep.subr.bf16.mxu0 0
      %588 = vmatpush2.bf16.xpose.msra.mxu0 0
      %589 = vmatprep.subr.bf16.mxu0 0
      %590 = vmatpush2.bf16.xpose.msra.mxu0 0
      %591 = vmatprep.subr.bf16.mxu0 0
      %592 = vmatpush2.bf16.xpose.msra.mxu0 0
      %593 = vmatprep.subr.bf16.mxu0 0
      %594 = vmatpush2.bf16.xpose.msra.mxu0 0
      %595 = vmatprep.subr.bf16.mxu0 0
      %596 = vmatpush2.bf16.xpose.msra.mxu0 0
      %597 = vmatprep.mubr.bf16.mxu0 0
      %598 = vmatmul.mubr.bf16.gmra.mxu0 %v560
      %v599 = vpop.f32.mrf.mxu0
      %v600 = vadd.f32 %v553, %v599
      %v601 = vpop.f32.mrf.mxu0
      %v602 = vpop.f32.mrf.mxu0
      %v603 = vpop.f32.mrf.mxu0
      %604 = vdwg.mxu0
      %v605 = vsel %vm558, %v600, -inf
      %606 = vmax.xlane.f32.xlu0 %v605
      %v607 = vpop.xlane.xlu0 %606
      %v608 = vsub.f32 %v600, %v607
      %v609 = vmul.f32 %v608, 1.442695
      %v610 = vpow.pop %v609
      %v611 = vsel %vm558, %v610, 0.0
      %612 = vadd.xlane.f32.xlu0 %v611
      %v613 = vpop.xlane.xlu0 %612
      %v614 = vpack.c.bf16 %v610, %v610
      %615 = vrot.lane.b32.xlu0 %v548, 64
      %v616 = vpop.permute.xlu0 %615
      %v618 = vsel %vm558, %v614, 0
      %vm620 = vcmask 1043456
      %v622 = vsel %vm620, %v616, 0
      %624 = vmatprep.subr.bf16.mxu0 0
      %625 = vmatpush1.bf16.msra.mxu0 0
      %626 = vmatprep.subr.bf16.mxu0 0
      %627 = vmatpush1.bf16.msra.mxu0 0
      %628 = vmatprep.subr.bf16.mxu0 0
      %629 = vmatpush1.bf16.msra.mxu0 0
      %630 = vmatprep.subr.bf16.mxu0 0
      %631 = vmatpush1.bf16.msra.mxu0 0
      %632 = vmatprep.subr.bf16.mxu0 0
      %633 = vmatpush1.bf16.msra.mxu0 0
      %634 = vmatprep.subr.bf16.mxu0 0
      %635 = vmatpush1.bf16.msra.mxu0 0
      %636 = vmatprep.subr.bf16.mxu0 0
      %637 = vmatpush1.bf16.msra.mxu0 0
      %638 = vmatprep.subr.bf16.mxu0 0
      %639 = vmatpush1.bf16.msra.mxu0 %v622
      %640 = vmatprep.subr.bf16.mxu0 0
      %641 = vmatpush2.bf16.msra.mxu0 0
      %642 = vmatprep.subr.bf16.mxu0 0
      %643 = vmatpush2.bf16.msra.mxu0 0
      %644 = vmatprep.subr.bf16.mxu0 0
      %645 = vmatpush2.bf16.msra.mxu0 0
      %646 = vmatprep.subr.bf16.mxu0 0
      %647 = vmatpush2.bf16.msra.mxu0 0
      %648 = vmatprep.subr.bf16.mxu0 0
      %649 = vmatpush2.bf16.msra.mxu0 0
      %650 = vmatprep.subr.bf16.mxu0 0
      %651 = vmatpush2.bf16.msra.mxu0 0
      %652 = vmatprep.subr.bf16.mxu0 0
      %653 = vmatpush2.bf16.msra.mxu0 0
      %654 = vmatprep.subr.bf16.mxu0 0
      %655 = vmatpush2.bf16.msra.mxu0 0
      %656 = vmatprep.mubr.bf16.mxu0 0
      %657 = vmatmul.mubr.bf16.gmra.mxu0 %v618
      %v658 = vpop.f32.mrf.mxu0
      %v659 = vadd.f32 0.0, %v658
      %v660 = vpop.f32.mrf.mxu0
      %v661 = vpop.f32.mrf.mxu0
      %v662 = vpop.f32.mrf.mxu0
      %663 = vdwg.mxu0
      %v664 = vrcp.pop %v613
      %v665 = vmul.f32 %v659, %v664
      %666 = vst.msk [vmem:[#allocation2] sm:$0xff] %vm558, %v665
      %667 = vrot.lane.b32.xlu0 %v548, 120
      %v668 = vpop.permute.xlu0 %667
      %669 = vrot.lane.b32.xlu0 %v548, 88
      %v670 = vpop.permute.xlu0 %669
      %v672 = vsel %vm558, %v668, 0
      %v675 = vsel %vm558, %v670, 0
      %677 = vmatprep.subr.bf16.mxu0 0
      %678 = vmatpush1.bf16.xpose.msra.mxu0 0
      %679 = vmatprep.subr.bf16.mxu0 0
      %680 = vmatpush1.bf16.xpose.msra.mxu0 0
      %681 = vmatprep.subr.bf16.mxu0 0
      %682 = vmatpush1.bf16.xpose.msra.mxu0 0
      %683 = vmatprep.subr.bf16.mxu0 0
      %684 = vmatpush1.bf16.xpose.msra.mxu0 0
      %685 = vmatprep.subr.bf16.mxu0 0
      %686 = vmatpush1.bf16.xpose.msra.mxu0 0
      %687 = vmatprep.subr.bf16.mxu0 0
      %688 = vmatpush1.bf16.xpose.msra.mxu0 0
      %689 = vmatprep.subr.bf16.mxu0 0
      %690 = vmatpush1.bf16.xpose.msra.mxu0 0
      %691 = vmatprep.subr.bf16.mxu0 0
      %692 = vmatpush1.bf16.xpose.msra.mxu0 %v675
      %693 = vmatprep.subr.bf16.mxu0 0
      %694 = vmatpush2.bf16.xpose.msra.mxu0 0
      %695 = vmatprep.subr.bf16.mxu0 0
      %696 = vmatpush2.bf16.xpose.msra.mxu0 0
      %697 = vmatprep.subr.bf16.mxu0 0
      %698 = vmatpush2.bf16.xpose.msra.mxu0 0
      %699 = vmatprep.subr.bf16.mxu0 0
      %700 = vmatpush2.bf16.xpose.msra.mxu0 0
      %701 = vmatprep.subr.bf16.mxu0 0
      %702 = vmatpush2.bf16.xpose.msra.mxu0 0
      %703 = vmatprep.subr.bf16.mxu0 0
      %704 = vmatpush2.bf16.xpose.msra.mxu0 0
      %705 = vmatprep.subr.bf16.mxu0 0
      %706 = vmatpush2.bf16.xpose.msra.mxu0 0
      %707 = vmatprep.subr.bf16.mxu0 0
      %708 = vmatpush2.bf16.xpose.msra.mxu0 0
      %709 = vmatprep.mubr.bf16.mxu0 0
      %710 = vmatmul.mubr.bf16.gmra.mxu0 %v672
      %v711 = vpop.f32.mrf.mxu0
      %v712 = vadd.f32 %v553, %v711
      %v713 = vpop.f32.mrf.mxu0
      %v714 = vpop.f32.mrf.mxu0
      %v715 = vpop.f32.mrf.mxu0
      %716 = vdwg.mxu0
      %v717 = vsel %vm558, %v712, -inf
      %718 = vmax.xlane.f32.xlu0 %v717
      %v719 = vpop.xlane.xlu0 %718
      %v720 = vsub.f32 %v712, %v719
      %v721 = vmul.f32 %v720, 1.442695
      %v722 = vpow.pop %v721
      %v723 = vsel %vm558, %v722, 0.0
      %724 = vadd.xlane.f32.xlu0 %v723
      %v725 = vpop.xlane.xlu0 %724
      %v726 = vpack.c.bf16 %v722, %v722
      %727 = vrot.lane.b32.xlu0 %v548, 56
      %v728 = vpop.permute.xlu0 %727
      %v730 = vsel %vm558, %v726, 0
      %v733 = vsel %vm620, %v728, 0
      %735 = vmatprep.subr.bf16.mxu0 0
      %736 = vmatpush1.bf16.msra.mxu0 0
      %737 = vmatprep.subr.bf16.mxu0 0
      %738 = vmatpush1.bf16.msra.mxu0 0
      %739 = vmatprep.subr.bf16.mxu0 0
      %740 = vmatpush1.bf16.msra.mxu0 0
      %741 = vmatprep.subr.bf16.mxu0 0
      %742 = vmatpush1.bf16.msra.mxu0 0
      %743 = vmatprep.subr.bf16.mxu0 0
      %744 = vmatpush1.bf16.msra.mxu0 0
      %745 = vmatprep.subr.bf16.mxu0 0
      %746 = vmatpush1.bf16.msra.mxu0 0
      %747 = vmatprep.subr.bf16.mxu0 0
      %748 = vmatpush1.bf16.msra.mxu0 0
      %749 = vmatprep.subr.bf16.mxu0 0
      %750 = vmatpush1.bf16.msra.mxu0 %v733
      %751 = vmatprep.subr.bf16.mxu0 0
      %752 = vmatpush2.bf16.msra.mxu0 0
      %753 = vmatprep.subr.bf16.mxu0 0
      %754 = vmatpush2.bf16.msra.mxu0 0
      %755 = vmatprep.subr.bf16.mxu0 0
      %756 = vmatpush2.bf16.msra.mxu0 0
      %757 = vmatprep.subr.bf16.mxu0 0
      %758 = vmatpush2.bf16.msra.mxu0 0
      %759 = vmatprep.subr.bf16.mxu0 0
      %760 = vmatpush2.bf16.msra.mxu0 0
      %761 = vmatprep.subr.bf16.mxu0 0
      %762 = vmatpush2.bf16.msra.mxu0 0
      %763 = vmatprep.subr.bf16.mxu0 0
      %764 = vmatpush2.bf16.msra.mxu0 0
      %765 = vmatprep.subr.bf16.mxu0 0
      %766 = vmatpush2.bf16.msra.mxu0 0
      %767 = vmatprep.mubr.bf16.mxu0 0
      %768 = vmatmul.mubr.bf16.gmra.mxu0 %v730
      %v769 = vpop.f32.mrf.mxu0
      %v770 = vadd.f32 0.0, %v769
      %v771 = vpop.f32.mrf.mxu0
      %v772 = vpop.f32.mrf.mxu0
      %v773 = vpop.f32.mrf.mxu0
      %774 = vdwg.mxu0
      %v775 = vrcp.pop %v725
      %v776 = vmul.f32 %v770, %v775
      %778 = vrot.lane.b32.xlu0 %v776, 8
      %v779 = vpop.permute.xlu0 %778
      %vm781 = vcmask 130112
      %782 = vst.msk [vmem:[#allocation2] sm:$0xff] %vm781, %v779
      %783 = vrot.lane.b32.xlu0 %v548, 112
      %v784 = vpop.permute.xlu0 %783
      %785 = vrot.lane.b32.xlu0 %v548, 80
      %v786 = vpop.permute.xlu0 %785
      %v788 = vsel %vm558, %v784, 0
      %v791 = vsel %vm558, %v786, 0
      %793 = vmatprep.subr.bf16.mxu0 0
      %794 = vmatpush1.bf16.xpose.msra.mxu0 0
      %795 = vmatprep.subr.bf16.mxu0 0
      %796 = vmatpush1.bf16.xpose.msra.mxu0 0
      %797 = vmatprep.subr.bf16.mxu0 0
      %798 = vmatpush1.bf16.xpose.msra.mxu0 0
      %799 = vmatprep.subr.bf16.mxu0 0
      %800 = vmatpush1.bf16.xpose.msra.mxu0 0
      %801 = vmatprep.subr.bf16.mxu0 0
      %802 = vmatpush1.bf16.xpose.msra.mxu0 0
      %803 = vmatprep.subr.bf16.mxu0 0
      %804 = vmatpush1.bf16.xpose.msra.mxu0 0
      %805 = vmatprep.subr.bf16.mxu0 0
      %806 = vmatpush1.bf16.xpose.msra.mxu0 0
      %807 = vmatprep.subr.bf16.mxu0 0
      %808 = vmatpush1.bf16.xpose.msra.mxu0 %v791
      %809 = vmatprep.subr.bf16.mxu0 0
      %810 = vmatpush2.bf16.xpose.msra.mxu0 0
      %811 = vmatprep.subr.bf16.mxu0 0
      %812 = vmatpush2.bf16.xpose.msra.mxu0 0
      %813 = vmatprep.subr.bf16.mxu0 0
      %814 = vmatpush2.bf16.xpose.msra.mxu0 0
      %815 = vmatprep.subr.bf16.mxu0 0
      %816 = vmatpush2.bf16.xpose.msra.mxu0 0
      %817 = vmatprep.subr.bf16.mxu0 0
      %818 = vmatpush2.bf16.xpose.msra.mxu0 0
      %819 = vmatprep.subr.bf16.mxu0 0
      %820 = vmatpush2.bf16.xpose.msra.mxu0 0
      %821 = vmatprep.subr.bf16.mxu0 0
      %822 = vmatpush2.bf16.xpose.msra.mxu0 0
      %823 = vmatprep.subr.bf16.mxu0 0
      %824 = vmatpush2.bf16.xpose.msra.mxu0 0
      %825 = vmatprep.mubr.bf16.mxu0 0
      %826 = vmatmul.mubr.bf16.gmra.mxu0 %v788
      %v827 = vpop.f32.mrf.mxu0
      %v828 = vadd.f32 %v553, %v827
      %v829 = vpop.f32.mrf.mxu0
      %v830 = vpop.f32.mrf.mxu0
      %v831 = vpop.f32.mrf.mxu0
      %832 = vdwg.mxu0
      %v833 = vsel %vm558, %v828, -inf
      %834 = vmax.xlane.f32.xlu0 %v833
      %v835 = vpop.xlane.xlu0 %834
      %v836 = vsub.f32 %v828, %v835
      %v837 = vmul.f32 %v836, 1.442695
      %v838 = vpow.pop %v837
      %v839 = vsel %vm558, %v838, 0.0
      %840 = vadd.xlane.f32.xlu0 %v839
      %v841 = vpop.xlane.xlu0 %840
      %v842 = vpack.c.bf16 %v838, %v838
      %843 = vrot.lane.b32.xlu0 %v548, 48
      %v844 = vpop.permute.xlu0 %843
      %v846 = vsel %vm558, %v842, 0
      %v849 = vsel %vm620, %v844, 0
      %851 = vmatprep.subr.bf16.mxu0 0
      %852 = vmatpush1.bf16.msra.mxu0 0
      %853 = vmatprep.subr.bf16.mxu0 0
      %854 = vmatpush1.bf16.msra.mxu0 0
      %855 = vmatprep.subr.bf16.mxu0 0
      %856 = vmatpush1.bf16.msra.mxu0 0
      %857 = vmatprep.subr.bf16.mxu0 0
      %858 = vmatpush1.bf16.msra.mxu0 0
      %859 = vmatprep.subr.bf16.mxu0 0
      %860 = vmatpush1.bf16.msra.mxu0 0
      %861 = vmatprep.subr.bf16.mxu0 0
      %862 = vmatpush1.bf16.msra.mxu0 0
      %863 = vmatprep.subr.bf16.mxu0 0
      %864 = vmatpush1.bf16.msra.mxu0 0
      %865 = vmatprep.subr.bf16.mxu0 0
      %866 = vmatpush1.bf16.msra.mxu0 %v849
      %867 = vmatprep.subr.bf16.mxu0 0
      %868 = vmatpush2.bf16.msra.mxu0 0
      %869 = vmatprep.subr.bf16.mxu0 0
      %870 = vmatpush2.bf16.msra.mxu0 0
      %871 = vmatprep.subr.bf16.mxu0 0
      %872 = vmatpush2.bf16.msra.mxu0 0
      %873 = vmatprep.subr.bf16.mxu0 0
      %874 = vmatpush2.bf16.msra.mxu0 0
      %875 = vmatprep.subr.bf16.mxu0 0
      %876 = vmatpush2.bf16.msra.mxu0 0
      %877 = vmatprep.subr.bf16.mxu0 0
      %878 = vmatpush2.bf16.msra.mxu0 0
      %879 = vmatprep.subr.bf16.mxu0 0
      %880 = vmatpush2.bf16.msra.mxu0 0
      %881 = vmatprep.subr.bf16.mxu0 0
      %882 = vmatpush2.bf16.msra.mxu0 0
      %883 = vmatprep.mubr.bf16.mxu0 0
      %884 = vmatmul.mubr.bf16.gmra.mxu0 %v846
      %v885 = vpop.f32.mrf.mxu0
      %v886 = vadd.f32 0.0, %v885
      %v887 = vpop.f32.mrf.mxu0
      %v888 = vpop.f32.mrf.mxu0
      %v889 = vpop.f32.mrf.mxu0
      %890 = vdwg.mxu0
      %v891 = vrcp.pop %v841
      %v892 = vmul.f32 %v886, %v891
      %894 = vrot.lane.b32.xlu0 %v892, 16
      %v895 = vpop.permute.xlu0 %894
      %vm897 = vcmask 195712
      %898 = vst.msk [vmem:[#allocation2] sm:$0xff] %vm897, %v895
      %899 = vrot.lane.b32.xlu0 %v548, 104
      %v900 = vpop.permute.xlu0 %899
      %901 = vrot.lane.b32.xlu0 %v548, 72
      %v902 = vpop.permute.xlu0 %901
      %v904 = vsel %vm558, %v900, 0
      %v907 = vsel %vm558, %v902, 0
      %909 = vmatprep.subr.bf16.mxu0 0
      %910 = vmatpush1.bf16.xpose.msra.mxu0 0
      %911 = vmatprep.subr.bf16.mxu0 0
      %912 = vmatpush1.bf16.xpose.msra.mxu0 0
      %913 = vmatprep.subr.bf16.mxu0 0
      %914 = vmatpush1.bf16.xpose.msra.mxu0 0
      %915 = vmatprep.subr.bf16.mxu0 0
      %916 = vmatpush1.bf16.xpose.msra.mxu0 0
      %917 = vmatprep.subr.bf16.mxu0 0
      %918 = vmatpush1.bf16.xpose.msra.mxu0 0
      %919 = vmatprep.subr.bf16.mxu0 0
      %920 = vmatpush1.bf16.xpose.msra.mxu0 0
      %921 = vmatprep.subr.bf16.mxu0 0
      %922 = vmatpush1.bf16.xpose.msra.mxu0 0
      %923 = vmatprep.subr.bf16.mxu0 0
      %924 = vmatpush1.bf16.xpose.msra.mxu0 %v907
      %925 = vmatprep.subr.bf16.mxu0 0
      %926 = vmatpush2.bf16.xpose.msra.mxu0 0
      %927 = vmatprep.subr.bf16.mxu0 0
      %928 = vmatpush2.bf16.xpose.msra.mxu0 0
      %929 = vmatprep.subr.bf16.mxu0 0
      %930 = vmatpush2.bf16.xpose.msra.mxu0 0
      %931 = vmatprep.subr.bf16.mxu0 0
      %932 = vmatpush2.bf16.xpose.msra.mxu0 0
      %933 = vmatprep.subr.bf16.mxu0 0
      %934 = vmatpush2.bf16.xpose.msra.mxu0 0
      %935 = vmatprep.subr.bf16.mxu0 0
      %936 = vmatpush2.bf16.xpose.msra.mxu0 0
      %937 = vmatprep.subr.bf16.mxu0 0
      %938 = vmatpush2.bf16.xpose.msra.mxu0 0
      %939 = vmatprep.subr.bf16.mxu0 0
      %940 = vmatpush2.bf16.xpose.msra.mxu0 0
      %941 = vmatprep.mubr.bf16.mxu0 0
      %942 = vmatmul.mubr.bf16.gmra.mxu0 %v904
      %v943 = vpop.f32.mrf.mxu0
      %v944 = vadd.f32 %v553, %v943
      %v945 = vpop.f32.mrf.mxu0
      %v946 = vpop.f32.mrf.mxu0
      %v947 = vpop.f32.mrf.mxu0
      %948 = vdwg.mxu0
      %v949 = vsel %vm558, %v944, -inf
      %950 = vmax.xlane.f32.xlu0 %v949
      %v951 = vpop.xlane.xlu0 %950
      %v952 = vsub.f32 %v944, %v951
      %v953 = vmul.f32 %v952, 1.442695
      %v954 = vpow.pop %v953
      %v955 = vsel %vm558, %v954, 0.0
      %956 = vadd.xlane.f32.xlu0 %v955
      %v957 = vpop.xlane.xlu0 %956
      %v958 = vpack.c.bf16 %v954, %v954
      %959 = vrot.lane.b32.xlu0 %v548, 40
      %v960 = vpop.permute.xlu0 %959
      %v962 = vsel %vm558, %v958, 0
      %v965 = vsel %vm620, %v960, 0
      %967 = vmatprep.subr.bf16.mxu0 0
      %968 = vmatpush1.bf16.msra.mxu0 0
      %969 = vmatprep.subr.bf16.mxu0 0
      %970 = vmatpush1.bf16.msra.mxu0 0
      %971 = vmatprep.subr.bf16.mxu0 0
      %972 = vmatpush1.bf16.msra.mxu0 0
      %973 = vmatprep.subr.bf16.mxu0 0
      %974 = vmatpush1.bf16.msra.mxu0 0
      %975 = vmatprep.subr.bf16.mxu0 0
      %976 = vmatpush1.bf16.msra.mxu0 0
      %977 = vmatprep.subr.bf16.mxu0 0
      %978 = vmatpush1.bf16.msra.mxu0 0
      %979 = vmatprep.subr.bf16.mxu0 0
      %980 = vmatpush1.bf16.msra.mxu0 0
      %981 = vmatprep.subr.bf16.mxu0 0
      %982 = vmatpush1.bf16.msra.mxu0 %v965
      %983 = vmatprep.subr.bf16.mxu0 0
      %984 = vmatpush2.bf16.msra.mxu0 0
      %985 = vmatprep.subr.bf16.mxu0 0
      %986 = vmatpush2.bf16.msra.mxu0 0
      %987 = vmatprep.subr.bf16.mxu0 0
      %988 = vmatpush2.bf16.msra.mxu0 0
      %989 = vmatprep.subr.bf16.mxu0 0
      %990 = vmatpush2.bf16.msra.mxu0 0
      %991 = vmatprep.subr.bf16.mxu0 0
      %992 = vmatpush2.bf16.msra.mxu0 0
      %993 = vmatprep.subr.bf16.mxu0 0
      %994 = vmatpush2.bf16.msra.mxu0 0
      %995 = vmatprep.subr.bf16.mxu0 0
      %996 = vmatpush2.bf16.msra.mxu0 0
      %997 = vmatprep.subr.bf16.mxu0 0
      %998 = vmatpush2.bf16.msra.mxu0 0
      %999 = vmatprep.mubr.bf16.mxu0 0
      %1000 = vmatmul.mubr.bf16.gmra.mxu0 %v962
      %v1001 = vpop.f32.mrf.mxu0
      %v1002 = vadd.f32 0.0, %v1001
      %v1003 = vpop.f32.mrf.mxu0
      %v1004 = vpop.f32.mrf.mxu0
      %v1005 = vpop.f32.mrf.mxu0
      %1006 = vdwg.mxu0
      %v1007 = vrcp.pop %v957
      %v1008 = vmul.f32 %v1002, %v1007
      %1010 = vrot.lane.b32.xlu0 %v1008, 24
      %v1011 = vpop.permute.xlu0 %1010
      %vm1013 = vcmask 261312
      %1014 = vst.msk [vmem:[#allocation2] sm:$0xff] %vm1013, %v1011
      %v1015 = vld [vmem:[#allocation2] sm:$0xff]
      %v1016 = vpack.c.bf16 %v1015, %v1015
      %v1017 = vld [vmem:[%s4] sm:$0xf]
      %v1018 = vld [vmem:[%s4 + $0x4] sm:$0xf]
      %v1019 = vld [vmem:[%s4 + $0x8] sm:$0xf]
      %v1020 = vld [vmem:[%s4 + $0xc] sm:$0xf]
      %v1021 = vld [vmem:[%s5] sm:$0x1]
      %v1023 = vlaneseq
      %v1024 = vshrl.u32 %v1023, 7
      %v1025 = vsub.s32 0, %v1024
      %v1026 = vrot.slane %v1021, %v1025
      %v1032 = vunpack.c.l.b16 %v1017
      %v1033 = vunpack.c.l.b16 %v1018
      %v1034 = vunpack.c.l.b16 %v1019
      %v1035 = vunpack.c.l.b16 %v1020
      %v1036 = vpack.c.b16 %v1033, %v1032
      %v1037 = vpack.c.b16 %v1035, %v1034
      %v1041 = vsel %vm503, %v1016, 0
      %1043 = vmatprep.subr.bf16.mxu0 0
      %1044 = vmatpush1.bf16.msra.mxu0 0
      %1045 = vmatprep.subr.bf16.mxu0 0
      %1046 = vmatpush1.bf16.msra.mxu0 0
      %1047 = vmatprep.subr.bf16.mxu0 0
      %1048 = vmatpush1.bf16.msra.mxu0 0
      %1049 = vmatprep.subr.bf16.mxu0 0
      %1050 = vmatpush1.bf16.msra.mxu0 0
      %1051 = vmatprep.subr.bf16.mxu0 0
      %1052 = vmatpush1.bf16.msra.mxu0 0
      %1053 = vmatprep.subr.bf16.mxu0 0
      %1054 = vmatpush1.bf16.msra.mxu0 0
      %1055 = vmatprep.subr.bf16.mxu0 0
      %1056 = vmatpush1.bf16.msra.mxu0 %v1037
      %1057 = vmatprep.subr.bf16.mxu0 0
      %1058 = vmatpush1.bf16.msra.mxu0 %v1036
      %1059 = vmatprep.subr.bf16.mxu0 0
      %1060 = vmatpush2.bf16.msra.mxu0 0
      %1061 = vmatprep.subr.bf16.mxu0 0
      %1062 = vmatpush2.bf16.msra.mxu0 0
      %1063 = vmatprep.subr.bf16.mxu0 0
      %1064 = vmatpush2.bf16.msra.mxu0 0
      %1065 = vmatprep.subr.bf16.mxu0 0
      %1066 = vmatpush2.bf16.msra.mxu0 0
      %1067 = vmatprep.subr.bf16.mxu0 0
      %1068 = vmatpush2.bf16.msra.mxu0 0
      %1069 = vmatprep.subr.bf16.mxu0 0
      %1070 = vmatpush2.bf16.msra.mxu0 0
      %1071 = vmatprep.subr.bf16.mxu0 0
      %1072 = vmatpush2.bf16.msra.mxu0 0
      %1073 = vmatprep.subr.bf16.mxu0 0
      %1074 = vmatpush2.bf16.msra.mxu0 0
      %1075 = vmatprep.mubr.bf16.mxu0 0
      %1076 = vmatmul.mubr.bf16.gmra.mxu0 %v1041
      %v1077 = vpop.f32.mrf.mxu0
      %v1078 = vadd.f32 %v1026, %v1077
      %v1079 = vpop.f32.mrf.mxu0
      %v1080 = vpop.f32.mrf.mxu0
      %v1081 = vpop.f32.mrf.mxu0
      %1082 = vdwg.mxu0
      %v1083 = vadd.f32 %v479, %v1078
      %v1084 = vld [vmem:[%s6] sm:$0x1]
      %v1085 = vld [vmem:[%s7] sm:$0x1]
      %v1086 = vsel %vm503, %v1083, 0.0
      %1087 = vadd.xlane.f32.xlu0 %v1086
      %v1088 = vpop.xlane.xlu0 %1087
      %v1089 = vrcp.pop 32.0
      %v1090 = vmul.f32 %v1088, %v1089
      %v1091 = vsub.f32 %v1083, %v1090
      %v1092 = vmul.f32 %v1091, %v1091
      %v1093 = vsel %vm503, %v1092, 0.0
      %1094 = vadd.xlane.f32.xlu0 %v1093
      %v1095 = vpop.xlane.xlu0 %1094
      %v1096 = vmul.f32 %v1095, %v1089
      %v1097 = vadd.f32 %v1096, 1e-12
      %v1098 = vrsqrt.pop %v1097
      %v1099 = vmul.f32 %v1091, %v1098
      %v1101 = vlaneseq
      %v1102 = vshrl.u32 %v1101, 7
      %v1103 = vsub.s32 0, %v1102
      %v1104 = vrot.slane %v1084, %v1103
      %v1106 = vmul.f32 %v1099, %v1104
      %v1108 = vlaneseq
      %v1109 = vshrl.u32 %v1108, 7
      %v1110 = vsub.s32 0, %v1109
      %v1111 = vrot.slane %v1085, %v1110
      %v1113 = vadd.f32 %v1106, %v1111
      %v1114 = vpack.c.bf16 %v1113, %v1113
      %v1115 = vld [vmem:[%s8] sm:$0xf]
      %v1116 = vld [vmem:[%s8 + $0x4] sm:$0xf]
      %v1117 = vld [vmem:[%s8 + $0x8] sm:$0xf]
      %v1118 = vld [vmem:[%s8 + $0xc] sm:$0xf]
      %v1119 = vld [vmem:[%s9] sm:$0x1]
      %v1121 = vlaneseq
      %v1122 = vshrl.u32 %v1121, 7
      %v1123 = vsub.s32 0, %v1122
      %v1124 = vrot.slane %v1119, %v1123
      %v1130 = vunpack.c.l.b16 %v1115
      %v1131 = vunpack.c.l.b16 %v1116
      %v1132 = vunpack.c.l.b16 %v1117
      %v1133 = vunpack.c.l.b16 %v1118
      %v1134 = vpack.c.b16 %v1131, %v1130
      %v1135 = vpack.c.b16 %v1133, %v1132
      %v1139 = vsel %vm503, %v1114, 0
      %1141 = vmatprep.subr.bf16.mxu0 0
      %1142 = vmatpush1.bf16.msra.mxu0 0
      %1143 = vmatprep.subr.bf16.mxu0 0
      %1144 = vmatpush1.bf16.msra.mxu0 0
      %1145 = vmatprep.subr.bf16.mxu0 0
      %1146 = vmatpush1.bf16.msra.mxu0 0
      %1147 = vmatprep.subr.bf16.mxu0 0
      %1148 = vmatpush1.bf16.msra.mxu0 0
      %1149 = vmatprep.subr.bf16.mxu0 0
      %1150 = vmatpush1.bf16.msra.mxu0 0
      %1151 = vmatprep.subr.bf16.mxu0 0
      %1152 = vmatpush1.bf16.msra.mxu0 0
      %1153 = vmatprep.subr.bf16.mxu0 0
      %1154 = vmatpush1.bf16.msra.mxu0 %v1135
      %1155 = vmatprep.subr.bf16.mxu0 0
      %1156 = vmatpush1.bf16.msra.mxu0 %v1134
      %1157 = vmatprep.subr.bf16.mxu0 0
      %1158 = vmatpush2.bf16.msra.mxu0 0
      %1159 = vmatprep.subr.bf16.mxu0 0
      %1160 = vmatpush2.bf16.msra.mxu0 0
      %1161 = vmatprep.subr.bf16.mxu0 0
      %1162 = vmatpush2.bf16.msra.mxu0 0
      %1163 = vmatprep.subr.bf16.mxu0 0
      %1164 = vmatpush2.bf16.msra.mxu0 0
      %1165 = vmatprep.subr.bf16.mxu0 0
      %1166 = vmatpush2.bf16.msra.mxu0 0
      %1167 = vmatprep.subr.bf16.mxu0 0
      %1168 = vmatpush2.bf16.msra.mxu0 0
      %1169 = vmatprep.subr.bf16.mxu0 0
      %1170 = vmatpush2.bf16.msra.mxu0 0
      %1171 = vmatprep.subr.bf16.mxu0 0
      %1172 = vmatpush2.bf16.msra.mxu0 0
      %1173 = vmatprep.mubr.bf16.mxu0 0
      %1174 = vmatmul.mubr.bf16.gmra.mxu0 %v1139
      %v1175 = vpop.f32.mrf.mxu0
      %v1176 = vadd.f32 %v1124, %v1175
      %v1177 = vpop.f32.mrf.mxu0
      %v1178 = vpop.f32.mrf.mxu0
      %v1179 = vpop.f32.mrf.mxu0
      %1180 = vdwg.mxu0
      %v1181 = vmul.f32 %v1176, %v1176
      %v1182 = vmul.f32 %v1176, %v1181
      %v1183 = vmul.f32 %v1182, 0.044715
      %v1184 = vadd.f32 %v1176, %v1183
      %v1185 = vmul.f32 %v1184, 0.7978846
      %v1186 = vtanh.pop %v1185
      %v1187 = vadd.f32 %v1186, 1.0
      %v1188 = vmul.f32 %v1187, 0.5
      %v1189 = vmul.f32 %v1176, %v1188
      %v1190 = vpack.c.bf16 %v1189, %v1189
      %v1191 = vld [vmem:[%s10] sm:$0xf]
      %v1192 = vld [vmem:[%s10 + $0x4] sm:$0xf]
      %v1193 = vld [vmem:[%s10 + $0x8] sm:$0xf]
      %v1194 = vld [vmem:[%s10 + $0xc] sm:$0xf]
      %v1195 = vld [vmem:[%s10 + $0x10] sm:$0xf]
      %v1196 = vld [vmem:[%s10 + $0x14] sm:$0xf]
      %v1197 = vld [vmem:[%s10 + $0x18] sm:$0xf]
      %v1198 = vld [vmem:[%s10 + $0x1c] sm:$0xf]
      %v1199 = vld [vmem:[%s11] sm:$0x1]
      %v1201 = vlaneseq
      %v1202 = vshrl.u32 %v1201, 7
      %v1203 = vsub.s32 0, %v1202
      %v1204 = vrot.slane %v1199, %v1203
      %v1214 = vunpack.c.l.b16 %v1191
      %v1215 = vunpack.c.l.b16 %v1192
      %v1216 = vunpack.c.l.b16 %v1193
      %v1217 = vunpack.c.l.b16 %v1194
      %v1218 = vunpack.c.l.b16 %v1195
      %v1219 = vunpack.c.l.b16 %v1196
      %v1220 = vunpack.c.l.b16 %v1197
      %v1221 = vunpack.c.l.b16 %v1198
      %v1222 = vpack.c.b16 %v1215, %v1214
      %v1223 = vpack.c.b16 %v1217, %v1216
      %v1224 = vpack.c.b16 %v1219, %v1218
      %v1225 = vpack.c.b16 %v1221, %v1220
      %vm1230 = vcmask 523264
      %v1232 = vsel %vm1230, %v1190, 0
      %1234 = vmatprep.subr.bf16.mxu0 0
      %1235 = vmatpush1.bf16.msra.mxu0 0
      %1236 = vmatprep.subr.bf16.mxu0 0
      %1237 = vmatpush1.bf16.msra.mxu0 0
      %1238 = vmatprep.subr.bf16.mxu0 0
      %1239 = vmatpush1.bf16.msra.mxu0 0
      %1240 = vmatprep.subr.bf16.mxu0 0
      %1241 = vmatpush1.bf16.msra.mxu0 0
      %1242 = vmatprep.subr.bf16.mxu0 0
      %1243 = vmatpush1.bf16.msra.mxu0 %v1225
      %1244 = vmatprep.subr.bf16.mxu0 0
      %1245 = vmatpush1.bf16.msra.mxu0 %v1224
      %1246 = vmatprep.subr.bf16.mxu0 0
      %1247 = vmatpush1.bf16.msra.mxu0 %v1223
      %1248 = vmatprep.subr.bf16.mxu0 0
      %1249 = vmatpush1.bf16.msra.mxu0 %v1222
      %1250 = vmatprep.subr.bf16.mxu0 0
      %1251 = vmatpush2.bf16.msra.mxu0 0
      %1252 = vmatprep.subr.bf16.mxu0 0
      %1253 = vmatpush2.bf16.msra.mxu0 0
      %1254 = vmatprep.subr.bf16.mxu0 0
      %1255 = vmatpush2.bf16.msra.mxu0 0
      %1256 = vmatprep.subr.bf16.mxu0 0
      %1257 = vmatpush2.bf16.msra.mxu0 0
      %1258 = vmatprep.subr.bf16.mxu0 0
      %1259 = vmatpush2.bf16.msra.mxu0 0
      %1260 = vmatprep.subr.bf16.mxu0 0
      %1261 = vmatpush2.bf16.msra.mxu0 0
      %1262 = vmatprep.subr.bf16.mxu0 0
      %1263 = vmatpush2.bf16.msra.mxu0 0
      %1264 = vmatprep.subr.bf16.mxu0 0
      %1265 = vmatpush2.bf16.msra.mxu0 0
      %1266 = vmatprep.mubr.bf16.mxu0 0
      %1267 = vmatmul.mubr.bf16.gmra.mxu0 %v1232
      %v1268 = vpop.f32.mrf.mxu0
      %v1269 = vadd.f32 %v1204, %v1268
      %v1270 = vpop.f32.mrf.mxu0
      %v1271 = vpop.f32.mrf.mxu0
      %v1272 = vpop.f32.mrf.mxu0
      %1273 = vdwg.mxu0
      %v1274 = vadd.f32 %v1113, %v1269
      %v1275 = vld [vmem:[%s12] sm:$0x1]
      %v1276 = vld [vmem:[%s13] sm:$0x1]
      %v1277 = vsel %vm503, %v1274, 0.0
      %1278 = vadd.xlane.f32.xlu0 %v1277
      %v1279 = vpop.xlane.xlu0 %1278
      %v1280 = vmul.f32 %v1279, %v1089
      %v1281 = vsub.f32 %v1274, %v1280
      %v1282 = vmul.f32 %v1281, %v1281
      %v1283 = vsel %vm503, %v1282, 0.0
      %1284 = vadd.xlane.f32.xlu0 %v1283
      %v1285 = vpop.xlane.xlu0 %1284
      %v1286 = vmul.f32 %v1285, %v1089
      %v1287 = vadd.f32 %v1286, 1e-12
      %v1288 = vrsqrt.pop %v1287
      %v1289 = vmul.f32 %v1281, %v1288
      %v1291 = vlaneseq
      %v1292 = vshrl.u32 %v1291, 7
      %v1293 = vsub.s32 0, %v1292
      %v1294 = vrot.slane %v1275, %v1293
      %v1296 = vmul.f32 %v1289, %v1294
      %v1298 = vlaneseq
      %v1299 = vshrl.u32 %v1298, 7
      %v1300 = vsub.s32 0, %v1299
      %v1301 = vrot.slane %v1276, %v1300
      %v1303 = vadd.f32 %v1296, %v1301
      %v1304 = vpack.c.bf16 %v1303, %v1303
      %vm1305 = vcmask 257024
      %1306 = vst.msk [vmem:[%s476] sm:$0xf] %vm1305, %v1304
      %p1307 = scmp.lt.s32.totalorder %s25, 5
      %s1308 = scalar_select %p1307, %s25, 5
      %s1309 = smul.addr %s1308, 4
      %s1310 = scalar_lea.vmem %s14, %s1309
      // Predicated region
      $region77: #{simplified_html_forward.5} parent=75 // pred_check
        %p1311 = pneg %p347
      $region78: #{simplified_html_forward.5} parent=75 // pred_check_branch
        %1313 = sbr.rel (%p1311) target = $region80
      $region79: #{simplified_html_forward.5} parent=75 // pred_region
        _
      $region80: #{simplified_html_forward.5} parent=75 // pred_fallthru
        _
    $region76: #{simplified_html_forward.5} parent=5 // pred_fallthru
      _
    %p1314 = scmp.le.s32.totalorder 2, %s20
    // Predicated region
    $region81: #{simplified_html_forward.5} parent=5 // pred_check
      %p1315 = pneg %p1314
    $region82: #{simplified_html_forward.5} parent=5 // pred_check_branch
      %1317 = sbr.rel (%p1315) target = $region84
    $region83: #{simplified_html_forward.5} parent=5 // pred_region
      %s1318 = ssub.s32 %s20, 2
      // Predicated region
      $region85: #{simplified_html_forward.5} parent=83 // pred_check
        %p1319 = pneg %p353
      $region86: #{simplified_html_forward.5} parent=83 // pred_check_branch
        %1321 = sbr.rel (%p1319) target = $region88
      $region87: #{simplified_html_forward.5} parent=83 // pred_region
        %p1322 = scmp.lt.s32.totalorder %s26, 5
        %s1323 = scalar_select %p1322, %s26, 5
        %s1324 = smul.addr %s1323, 4
        %s1325 = scalar_lea.vmem %s14, %s1324
      $region88: #{simplified_html_forward.5} parent=83 // pred_fallthru
        _
    $region84: #{simplified_html_forward.5} parent=5 // pred_fallthru
      _
  $region6: #{simplified_html_forward.5} parent=0 // loop_footer
    %s24 = sadd.s32 1, %s20
  $region7: #{simplified_html_forward.5} parent=0 // loop_footer_branch
    %19 = sbr.rel target = $region3
  $region8: #{simplified_html_forward.5} parent=0 // loop_exit
    _

// kernel: simplified_html_forward.6
$region0: #{simplified_html_forward.6}
  #allocation0 [shape = 'u32[]', space=smem, size = 0x4, offset = 0x4, fixed_abs, tag = 'smem constant byte address 0x4 - core index']
  #allocation1 [shape = 'u32[144,128]{1,0:T(1,128)}', space=vmem, size = 0x12000, scoped, tag = 'internal scratch']
  #allocation2 [shape = 'f32[8,32]{1,0:T(8,128)}', space=vmem, size = 0x1000, scoped, tag = 'scratch operand']
  %s0 = inlined_call_operand.vmem [shape: bf16[6,8,32], index: 0, kind: input, shape index: {}]
  %s1 = inlined_call_operand.vmem [shape: f32[6,1,8], index: 1, kind: input, shape index: {}]
  %s2 = inlined_call_operand.vmem [shape: bf16[32,96], index: 2, kind: input, shape index: {}]
  %s3 = inlined_call_operand.vmem [shape: f32[1,96], index: 3, kind: input, shape index: {}]
  %s4 = inlined_call_operand.vmem [shape: bf16[32,32], index: 4, kind: input, shape index: {}]
  %s5 = inlined_call_operand.vmem [shape: f32[1,32], index: 5, kind: input, shape index: {}]
  %s6 = inlined_call_operand.vmem [shape: f32[1,32], index: 6, kind: input, shape index: {}]
  %s7 = inlined_call_operand.vmem [shape: f32[1,32], index: 7, kind: input, shape index: {}]
  %s8 = inlined_call_operand.vmem [shape: bf16[32,64], index: 8, kind: input, shape index: {}]
  %s9 = inlined_call_operand.vmem [shape: f32[1,64], index: 9, kind: input, shape index: {}]
  %s10 = inlined_call_operand.vmem [shape: bf16[64,32], index: 10, kind: input, shape index: {}]
  %s11 = inlined_call_operand.vmem [shape: f32[1,32], index: 11, kind: input, shape index: {}]
  %s12 = inlined_call_operand.vmem [shape: f32[1,32], index: 12, kind: input, shape index: {}]
  %s13 = inlined_call_operand.vmem [shape: f32[1,32], index: 13, kind: input, shape index: {}]
  %s14 = inlined_call_operand.vmem [shape: f32[6,1,32], index: 14, kind: output, shape index: {}]
  %s15 = sld [smem:[#allocation0]]
  $region89: #{simplified_html_forward.6} parent=0
    _
  %s17 = ssub.s32 1, %s15
  %s18 = scalar_select 0, %s17, %s15
  loop: start=0, step=1, limit=8
  $region2: #{simplified_html_forward.6} parent=0 // loop_pre_header
    _
  $region3: #{simplified_html_forward.6} parent=0 // loop_header
    %s20 = sphi 0, %s24
    %p21 = scmp.ge.s32.totalorder %s20, 8
    %s30 = sphi 0, %s32
    %s33 = sphi 0, %s30
    %s34 = sphi 0, %s33
    %s50 = sphi 0, %s34
    %s56 = sphi 0, %s58
    %s59 = sphi 0, %s56
    %s60 = sphi 0, %s59
    %s76 = sphi 0, %s60
    %s80 = sphi 0, %s80
    %s82 = sphi 0, %s80
    %s83 = sphi 0, %s82
    %s97 = sphi 0, %s83
    %s101 = sphi 0, %s101
    %s103 = sphi 0, %s101
    %s104 = sphi 0, %s103
    %s118 = sphi 0, %s104
    %s122 = sphi 0, %s122
    %s124 = sphi 0, %s122
    %s125 = sphi 0, %s124
    %s139 = sphi 0, %s125
    %s143 = sphi 0, %s143
    %s145 = sphi 0, %s143
    %s146 = sphi 0, %s145
    %s160 = sphi 0, %s146
    %s164 = sphi 0, %s164
    %s166 = sphi 0, %s164
    %s167 = sphi 0, %s166
    %s181 = sphi 0, %s167
    %s185 = sphi 0, %s185
    %s187 = sphi 0, %s185
    %s188 = sphi 0, %s187
    %s202 = sphi 0, %s188
    %s206 = sphi 0, %s206
    %s208 = sphi 0, %s206
    %s209 = sphi 0, %s208
    %s223 = sphi 0, %s209
    %s227 = sphi 0, %s227
    %s229 = sphi 0, %s227
    %s230 = sphi 0, %s229
    %s244 = sphi 0, %s230
    %s248 = sphi 0, %s248
    %s250 = sphi 0, %s248
    %s251 = sphi 0, %s250
    %s265 = sphi 0, %s251
    %s269 = sphi 0, %s269
    %s271 = sphi 0, %s269
    %s272 = sphi 0, %s271
    %s286 = sphi 0, %s272
    %s290 = sphi 0, %s290
    %s292 = sphi 0, %s290
    %s293 = sphi 0, %s292
    %s307 = sphi 0, %s293
    %s311 = sphi 0, %s311
    %s313 = sphi 0, %s311
    %s314 = sphi 0, %s313
    %s328 = sphi 0, %s314
    %s334 = sphi 0, %s336
    %s337 = sphi 0, %s334
    %s338 = sphi 0, %s337
    %s354 = sphi 0, %s338
  $region4: #{simplified_html_forward.6} parent=0 // loop_header_branch
    %23 = sbr.rel (%p21) target = $region8
  $region5: #{simplified_html_forward.6} parent=0 // loop_body
    %s25 = ssub.s32 %s20, 1
    %s26 = ssub.s32 %s20, 2
    %s27 = sadd.s32 %s20, 1
    %s28 = ssub.s32 %s20, %s27
    %p29 = scmp.eq.s32.totalorder %s28, 0
    %s31 = sadd.s32 %s30, 1
    %s32 = scalar_select %p29, %s30, %s31
    %p35 = pneg %p29
    %p36 = scmp.eq.s32.totalorder %s20, 5
    %p37 = por %p35, %p36
    %p38 = scmp.ne.s32.totalorder %s30, %s33
    %p39 = scmp.eq.s32.totalorder %s20, 0
    %p40 = por %p38, %p39
    %p41 = scmp.ne.s32.totalorder %s30, %s33
    %p42 = scmp.eq.s32.totalorder %s25, 5
    %p43 = por %p41, %p42
    %p44 = scmp.ne.s32.totalorder %s33, %s34
    %p45 = scmp.eq.s32.totalorder %s25, 0
    %p46 = por %p44, %p45
    %p47 = scmp.ne.s32.totalorder %s33, %s34
    %p48 = scmp.eq.s32.totalorder %s26, 5
    %p49 = por %p47, %p48
    %p51 = scmp.ne.s32.totalorder %s34, %s50
    %p52 = scmp.eq.s32.totalorder %s26, 0
    %p53 = por %p51, %p52
    %s54 = ssub.s32 %s20, %s27
    %p55 = scmp.eq.s32.totalorder %s54, 0
    %s57 = sadd.s32 %s56, 1
    %s58 = scalar_select %p55, %s56, %s57
    %p61 = pneg %p55
    %p62 = scmp.eq.s32.totalorder %s20, 5
    %p63 = por %p61, %p62
    %p64 = scmp.ne.s32.totalorder %s56, %s59
    %p65 = scmp.eq.s32.totalorder %s20, 0
    %p66 = por %p64, %p65
    %p67 = scmp.ne.s32.totalorder %s56, %s59
    %p68 = scmp.eq.s32.totalorder %s25, 5
    %p69 = por %p67, %p68
    %p70 = scmp.ne.s32.totalorder %s59, %s60
    %p71 = scmp.eq.s32.totalorder %s25, 0
    %p72 = por %p70, %p71
    %p73 = scmp.ne.s32.totalorder %s59, %s60
    %p74 = scmp.eq.s32.totalorder %s26, 5
    %p75 = por %p73, %p74
    %p77 = scmp.ne.s32.totalorder %s60, %s76
    %p78 = scmp.eq.s32.totalorder %s26, 0
    %p79 = por %p77, %p78
    %s81 = sadd.s32 %s80, 1
    %p84 = scmp.eq.s32.totalorder %s20, 5
    %p85 = scmp.ne.s32.totalorder %s80, %s82
    %p86 = scmp.eq.s32.totalorder %s20, 0
    %p87 = por %p85, %p86
    %p88 = scmp.ne.s32.totalorder %s80, %s82
    %p89 = scmp.eq.s32.totalorder %s25, 5
    %p90 = por %p88, %p89
    %p91 = scmp.ne.s32.totalorder %s82, %s83
    %p92 = scmp.eq.s32.totalorder %s25, 0
    %p93 = por %p91, %p92
    %p94 = scmp.ne.s32.totalorder %s82, %s83
    %p95 = scmp.eq.s32.totalorder %s26, 5
    %p96 = por %p94, %p95
    %p98 = scmp.ne.s32.totalorder %s83, %s97
    %p99 = scmp.eq.s32.totalorder %s26, 0
    %p100 = por %p98, %p99
    %s102 = sadd.s32 %s101, 1
    %p105 = scmp.eq.s32.totalorder %s20, 5
    %p106 = scmp.ne.s32.totalorder %s101, %s103
    %p107 = scmp.eq.s32.totalorder %s20, 0
    %p108 = por %p106, %p107
    %p109 = scmp.ne.s32.totalorder %s101, %s103
    %p110 = scmp.eq.s32.totalorder %s25, 5
    %p111 = por %p109, %p110
    %p112 = scmp.ne.s32.totalorder %s103, %s104
    %p113 = scmp.eq.s32.totalorder %s25, 0
    %p114 = por %p112, %p113
    %p115 = scmp.ne.s32.totalorder %s103, %s104
    %p116 = scmp.eq.s32.totalorder %s26, 5
    %p117 = por %p115, %p116
    %p119 = scmp.ne.s32.totalorder %s104, %s118
    %p120 = scmp.eq.s32.totalorder %s26, 0
    %p121 = por %p119, %p120
    %s123 = sadd.s32 %s122, 1
    %p126 = scmp.eq.s32.totalorder %s20, 5
    %p127 = scmp.ne.s32.totalorder %s122, %s124
    %p128 = scmp.eq.s32.totalorder %s20, 0
    %p129 = por %p127, %p128
    %p130 = scmp.ne.s32.totalorder %s122, %s124
    %p131 = scmp.eq.s32.totalorder %s25, 5
    %p132 = por %p130, %p131
    %p133 = scmp.ne.s32.totalorder %s124, %s125
    %p134 = scmp.eq.s32.totalorder %s25, 0
    %p135 = por %p133, %p134
    %p136 = scmp.ne.s32.totalorder %s124, %s125
    %p137 = scmp.eq.s32.totalorder %s26, 5
    %p138 = por %p136, %p137
    %p140 = scmp.ne.s32.totalorder %s125, %s139
    %p141 = scmp.eq.s32.totalorder %s26, 0
    %p142 = por %p140, %p141
    %s144 = sadd.s32 %s143, 1
    %p147 = scmp.eq.s32.totalorder %s20, 5
    %p148 = scmp.ne.s32.totalorder %s143, %s145
    %p149 = scmp.eq.s32.totalorder %s20, 0
    %p150 = por %p148, %p149
    %p151 = scmp.ne.s32.totalorder %s143, %s145
    %p152 = scmp.eq.s32.totalorder %s25, 5
    %p153 = por %p151, %p152
    %p154 = scmp.ne.s32.totalorder %s145, %s146
    %p155 = scmp.eq.s32.totalorder %s25, 0
    %p156 = por %p154, %p155
    %p157 = scmp.ne.s32.totalorder %s145, %s146
    %p158 = scmp.eq.s32.totalorder %s26, 5
    %p159 = por %p157, %p158
    %p161 = scmp.ne.s32.totalorder %s146, %s160
    %p162 = scmp.eq.s32.totalorder %s26, 0
    %p163 = por %p161, %p162
    %s165 = sadd.s32 %s164, 1
    %p168 = scmp.eq.s32.totalorder %s20, 5
    %p169 = scmp.ne.s32.totalorder %s164, %s166
    %p170 = scmp.eq.s32.totalorder %s20, 0
    %p171 = por %p169, %p170
    %p172 = scmp.ne.s32.totalorder %s164, %s166
    %p173 = scmp.eq.s32.totalorder %s25, 5
    %p174 = por %p172, %p173
    %p175 = scmp.ne.s32.totalorder %s166, %s167
    %p176 = scmp.eq.s32.totalorder %s25, 0
    %p177 = por %p175, %p176
    %p178 = scmp.ne.s32.totalorder %s166, %s167
    %p179 = scmp.eq.s32.totalorder %s26, 5
    %p180 = por %p178, %p179
    %p182 = scmp.ne.s32.totalorder %s167, %s181
    %p183 = scmp.eq.s32.totalorder %s26, 0
    %p184 = por %p182, %p183
    %s186 = sadd.s32 %s185, 1
    %p189 = scmp.eq.s32.totalorder %s20, 5
    %p190 = scmp.ne.s32.totalorder %s185, %s187
    %p191 = scmp.eq.s32.totalorder %s20, 0
    %p192 = por %p190, %p191
    %p193 = scmp.ne.s32.totalorder %s185, %s187
    %p194 = scmp.eq.s32.totalorder %s25, 5
    %p195 = por %p193, %p194
    %p196 = scmp.ne.s32.totalorder %s187, %s188
    %p197 = scmp.eq.s32.totalorder %s25, 0
    %p198 = por %p196, %p197
    %p199 = scmp.ne.s32.totalorder %s187, %s188
    %p200 = scmp.eq.s32.totalorder %s26, 5
    %p201 = por %p199, %p200
    %p203 = scmp.ne.s32.totalorder %s188, %s202
    %p204 = scmp.eq.s32.totalorder %s26, 0
    %p205 = por %p203, %p204
    %s207 = sadd.s32 %s206, 1
    %p210 = scmp.eq.s32.totalorder %s20, 5
    %p211 = scmp.ne.s32.totalorder %s206, %s208
    %p212 = scmp.eq.s32.totalorder %s20, 0
    %p213 = por %p211, %p212
    %p214 = scmp.ne.s32.totalorder %s206, %s208
    %p215 = scmp.eq.s32.totalorder %s25, 5
    %p216 = por %p214, %p215
    %p217 = scmp.ne.s32.totalorder %s208, %s209
    %p218 = scmp.eq.s32.totalorder %s25, 0
    %p219 = por %p217, %p218
    %p220 = scmp.ne.s32.totalorder %s208, %s209
    %p221 = scmp.eq.s32.totalorder %s26, 5
    %p222 = por %p220, %p221
    %p224 = scmp.ne.s32.totalorder %s209, %s223
    %p225 = scmp.eq.s32.totalorder %s26, 0
    %p226 = por %p224, %p225
    %s228 = sadd.s32 %s227, 1
    %p231 = scmp.eq.s32.totalorder %s20, 5
    %p232 = scmp.ne.s32.totalorder %s227, %s229
    %p233 = scmp.eq.s32.totalorder %s20, 0
    %p234 = por %p232, %p233
    %p235 = scmp.ne.s32.totalorder %s227, %s229
    %p236 = scmp.eq.s32.totalorder %s25, 5
    %p237 = por %p235, %p236
    %p238 = scmp.ne.s32.totalorder %s229, %s230
    %p239 = scmp.eq.s32.totalorder %s25, 0
    %p240 = por %p238, %p239
    %p241 = scmp.ne.s32.totalorder %s229, %s230
    %p242 = scmp.eq.s32.totalorder %s26, 5
    %p243 = por %p241, %p242
    %p245 = scmp.ne.s32.totalorder %s230, %s244
    %p246 = scmp.eq.s32.totalorder %s26, 0
    %p247 = por %p245, %p246
    %s249 = sadd.s32 %s248, 1
    %p252 = scmp.eq.s32.totalorder %s20, 5
    %p253 = scmp.ne.s32.totalorder %s248, %s250
    %p254 = scmp.eq.s32.totalorder %s20, 0
    %p255 = por %p253, %p254
    %p256 = scmp.ne.s32.totalorder %s248, %s250
    %p257 = scmp.eq.s32.totalorder %s25, 5
    %p258 = por %p256, %p257
    %p259 = scmp.ne.s32.totalorder %s250, %s251
    %p260 = scmp.eq.s32.totalorder %s25, 0
    %p261 = por %p259, %p260
    %p262 = scmp.ne.s32.totalorder %s250, %s251
    %p263 = scmp.eq.s32.totalorder %s26, 5
    %p264 = por %p262, %p263
    %p266 = scmp.ne.s32.totalorder %s251, %s265
    %p267 = scmp.eq.s32.totalorder %s26, 0
    %p268 = por %p266, %p267
    %s270 = sadd.s32 %s269, 1
    %p273 = scmp.eq.s32.totalorder %s20, 5
    %p274 = scmp.ne.s32.totalorder %s269, %s271
    %p275 = scmp.eq.s32.totalorder %s20, 0
    %p276 = por %p274, %p275
    %p277 = scmp.ne.s32.totalorder %s269, %s271
    %p278 = scmp.eq.s32.totalorder %s25, 5
    %p279 = por %p277, %p278
    %p280 = scmp.ne.s32.totalorder %s271, %s272
    %p281 = scmp.eq.s32.totalorder %s25, 0
    %p282 = por %p280, %p281
    %p283 = scmp.ne.s32.totalorder %s271, %s272
    %p284 = scmp.eq.s32.totalorder %s26, 5
    %p285 = por %p283, %p284
    %p287 = scmp.ne.s32.totalorder %s272, %s286
    %p288 = scmp.eq.s32.totalorder %s26, 0
    %p289 = por %p287, %p288
    %s291 = sadd.s32 %s290, 1
    %p294 = scmp.eq.s32.totalorder %s20, 5
    %p295 = scmp.ne.s32.totalorder %s290, %s292
    %p296 = scmp.eq.s32.totalorder %s20, 0
    %p297 = por %p295, %p296
    %p298 = scmp.ne.s32.totalorder %s290, %s292
    %p299 = scmp.eq.s32.totalorder %s25, 5
    %p300 = por %p298, %p299
    %p301 = scmp.ne.s32.totalorder %s292, %s293
    %p302 = scmp.eq.s32.totalorder %s25, 0
    %p303 = por %p301, %p302
    %p304 = scmp.ne.s32.totalorder %s292, %s293
    %p305 = scmp.eq.s32.totalorder %s26, 5
    %p306 = por %p304, %p305
    %p308 = scmp.ne.s32.totalorder %s293, %s307
    %p309 = scmp.eq.s32.totalorder %s26, 0
    %p310 = por %p308, %p309
    %s312 = sadd.s32 %s311, 1
    %p315 = scmp.eq.s32.totalorder %s20, 5
    %p316 = scmp.ne.s32.totalorder %s311, %s313
    %p317 = scmp.eq.s32.totalorder %s20, 0
    %p318 = por %p316, %p317
    %p319 = scmp.ne.s32.totalorder %s311, %s313
    %p320 = scmp.eq.s32.totalorder %s25, 5
    %p321 = por %p319, %p320
    %p322 = scmp.ne.s32.totalorder %s313, %s314
    %p323 = scmp.eq.s32.totalorder %s25, 0
    %p324 = por %p322, %p323
    %p325 = scmp.ne.s32.totalorder %s313, %s314
    %p326 = scmp.eq.s32.totalorder %s26, 5
    %p327 = por %p325, %p326
    %p329 = scmp.ne.s32.totalorder %s314, %s328
    %p330 = scmp.eq.s32.totalorder %s26, 0
    %p331 = por %p329, %p330
    %s332 = ssub.s32 %s20, %s27
    %p333 = scmp.eq.s32.totalorder %s332, 0
    %s335 = sadd.s32 %s334, 1
    %s336 = scalar_select %p333, %s334, %s335
    %p339 = pneg %p333
    %p340 = scmp.eq.s32.totalorder %s20, 5
    %p341 = por %p339, %p340
    %p342 = scmp.ne.s32.totalorder %s334, %s337
    %p343 = scmp.eq.s32.totalorder %s20, 0
    %p344 = por %p342, %p343
    %p345 = scmp.ne.s32.totalorder %s334, %s337
    %p346 = scmp.eq.s32.totalorder %s25, 5
    %p347 = por %p345, %p346
    %p348 = scmp.ne.s32.totalorder %s337, %s338
    %p349 = scmp.eq.s32.totalorder %s25, 0
    %p350 = por %p348, %p349
    %p351 = scmp.ne.s32.totalorder %s337, %s338
    %p352 = scmp.eq.s32.totalorder %s26, 5
    %p353 = por %p351, %p352
    %p355 = scmp.ne.s32.totalorder %s338, %s354
    %p356 = scmp.eq.s32.totalorder %s26, 0
    %p357 = por %p355, %p356
    %p358 = scmp.le.s32.totalorder 1, %s20
    %p359 = scmp.lt.s32.totalorder %s20, 7
    %p360 = pnand %p358, %p359
    %p361 = pneg %p360
    // Predicated region
    $region9: #{simplified_html_forward.6} parent=5 // pred_check
      _
    $region10: #{simplified_html_forward.6} parent=5 // pred_check_branch
      %363 = sbr.rel (%p360) target = $region12
    $region11: #{simplified_html_forward.6} parent=5 // pred_region
      %s364 = ssub.s32 %s20, 1
      // Predicated region
      $region13: #{simplified_html_forward.6} parent=11 // pred_check
        %p365 = pneg %p93
      $region14: #{simplified_html_forward.6} parent=11 // pred_check_branch
        %367 = sbr.rel (%p365) target = $region16
      $region15: #{simplified_html_forward.6} parent=11 // pred_region
        _
      $region16: #{simplified_html_forward.6} parent=11 // pred_fallthru
        _
      // Predicated region
      $region17: #{simplified_html_forward.6} parent=11 // pred_check
        %p368 = pneg %p114
      $region18: #{simplified_html_forward.6} parent=11 // pred_check_branch
        %370 = sbr.rel (%p368) target = $region20
      $region19: #{simplified_html_forward.6} parent=11 // pred_region
        _
      $region20: #{simplified_html_forward.6} parent=11 // pred_fallthru
        _
      // Predicated region
      $region21: #{simplified_html_forward.6} parent=11 // pred_check
        %p371 = pneg %p135
      $region22: #{simplified_html_forward.6} parent=11 // pred_check_branch
        %373 = sbr.rel (%p371) target = $region24
      $region23: #{simplified_html_forward.6} parent=11 // pred_region
        _
      $region24: #{simplified_html_forward.6} parent=11 // pred_fallthru
        _
      // Predicated region
      $region25: #{simplified_html_forward.6} parent=11 // pred_check
        %p374 = pneg %p156
      $region26: #{simplified_html_forward.6} parent=11 // pred_check_branch
        %376 = sbr.rel (%p374) target = $region28
      $region27: #{simplified_html_forward.6} parent=11 // pred_region
        _
      $region28: #{simplified_html_forward.6} parent=11 // pred_fallthru
        _
      // Predicated region
      $region29: #{simplified_html_forward.6} parent=11 // pred_check
        %p377 = pneg %p177
      $region30: #{simplified_html_forward.6} parent=11 // pred_check_branch
        %379 = sbr.rel (%p377) target = $region32
      $region31: #{simplified_html_forward.6} parent=11 // pred_region
        _
      $region32: #{simplified_html_forward.6} parent=11 // pred_fallthru
        _
      // Predicated region
      $region33: #{simplified_html_forward.6} parent=11 // pred_check
        %p380 = pneg %p198
      $region34: #{simplified_html_forward.6} parent=11 // pred_check_branch
        %382 = sbr.rel (%p380) target = $region36
      $region35: #{simplified_html_forward.6} parent=11 // pred_region
        _
      $region36: #{simplified_html_forward.6} parent=11 // pred_fallthru
        _
      // Predicated region
      $region37: #{simplified_html_forward.6} parent=11 // pred_check
        %p383 = pneg %p219
      $region38: #{simplified_html_forward.6} parent=11 // pred_check_branch
        %385 = sbr.rel (%p383) target = $region40
      $region39: #{simplified_html_forward.6} parent=11 // pred_region
        _
      $region40: #{simplified_html_forward.6} parent=11 // pred_fallthru
        _
      // Predicated region
      $region41: #{simplified_html_forward.6} parent=11 // pred_check
        %p386 = pneg %p240
      $region42: #{simplified_html_forward.6} parent=11 // pred_check_branch
        %388 = sbr.rel (%p386) target = $region44
      $region43: #{simplified_html_forward.6} parent=11 // pred_region
        _
      $region44: #{simplified_html_forward.6} parent=11 // pred_fallthru
        _
      // Predicated region
      $region45: #{simplified_html_forward.6} parent=11 // pred_check
        %p389 = pneg %p261
      $region46: #{simplified_html_forward.6} parent=11 // pred_check_branch
        %391 = sbr.rel (%p389) target = $region48
      $region47: #{simplified_html_forward.6} parent=11 // pred_region
        _
      $region48: #{simplified_html_forward.6} parent=11 // pred_fallthru
        _
      // Predicated region
      $region49: #{simplified_html_forward.6} parent=11 // pred_check
        %p392 = pneg %p282
      $region50: #{simplified_html_forward.6} parent=11 // pred_check_branch
        %394 = sbr.rel (%p392) target = $region52
      $region51: #{simplified_html_forward.6} parent=11 // pred_region
        _
      $region52: #{simplified_html_forward.6} parent=11 // pred_fallthru
        _
      // Predicated region
      $region53: #{simplified_html_forward.6} parent=11 // pred_check
        %p395 = pneg %p303
      $region54: #{simplified_html_forward.6} parent=11 // pred_check_branch
        %397 = sbr.rel (%p395) target = $region56
      $region55: #{simplified_html_forward.6} parent=11 // pred_region
        _
      $region56: #{simplified_html_forward.6} parent=11 // pred_fallthru
        _
      // Predicated region
      $region57: #{simplified_html_forward.6} parent=11 // pred_check
        %p398 = pneg %p324
      $region58: #{simplified_html_forward.6} parent=11 // pred_check_branch
        %400 = sbr.rel (%p398) target = $region60
      $region59: #{simplified_html_forward.6} parent=11 // pred_region
        _
      $region60: #{simplified_html_forward.6} parent=11 // pred_fallthru
        _
    $region12: #{simplified_html_forward.6} parent=5 // pred_fallthru
      _
    %p401 = scmp.lt.s32.totalorder %s20, 6
    // Predicated region
    $region61: #{simplified_html_forward.6} parent=5 // pred_check
      %p402 = pneg %p401
    $region62: #{simplified_html_forward.6} parent=5 // pred_check_branch
      %404 = sbr.rel (%p402) target = $region64
    $region63: #{simplified_html_forward.6} parent=5 // pred_region
      // Predicated region
      $region65: #{simplified_html_forward.6} parent=63 // pred_check
        %p405 = pneg %p40
      $region66: #{simplified_html_forward.6} parent=63 // pred_check_branch
        %407 = sbr.rel (%p405) target = $region68
      $region67: #{simplified_html_forward.6} parent=63 // pred_region
        %p408 = scmp.lt.s32.totalorder %s20, 5
        %s409 = scalar_select %p408, %s20, 5
        %s410 = smul.addr %s409, 4
        %s411 = scalar_lea.vmem %s0, %s410
      $region68: #{simplified_html_forward.6} parent=63 // pred_fallthru
        _
      // Predicated region
      $region69: #{simplified_html_forward.6} parent=63 // pred_check
        %p412 = pneg %p66
      $region70: #{simplified_html_forward.6} parent=63 // pred_check_branch
        %414 = sbr.rel (%p412) target = $region72
      $region71: #{simplified_html_forward.6} parent=63 // pred_region
        %p415 = scmp.lt.s32.totalorder %s20, 5
        %s416 = scalar_select %p415, %s20, 5
        %s417 = scalar_lea.vmem %s1, %s416
      $region72: #{simplified_html_forward.6} parent=63 // pred_fallthru
        _
    $region64: #{simplified_html_forward.6} parent=5 // pred_fallthru
      _
    %p418 = scmp.le.s32.totalorder 1, %s20
    %p419 = scmp.lt.s32.totalorder %s20, 7
    %p420 = pnand %p418, %p419
    %p421 = pneg %p420
    // Predicated region
    $region73: #{simplified_html_forward.6} parent=5 // pred_check
      _
    $region74: #{simplified_html_forward.6} parent=5 // pred_check_branch
      %423 = sbr.rel (%p420) target = $region76
    $region75: #{simplified_html_forward.6} parent=5 // pred_region
      %s424 = ssub.s32 %s20, 1
      %p425 = scmp.lt.s32.totalorder %s25, 5
      %s426 = scalar_select %p425, %s25, 5
      %s427 = smul.addr %s426, 4
      %s428 = scalar_lea.vmem %s0, %s427
      %p429 = pneg %p46
      %p430 = pneg %p43
      %p431 = scmp.lt.s32.totalorder %s25, 5
      %s432 = scalar_select %p431, %s25, 5
      %s433 = scalar_lea.vmem %s1, %s432
      %p434 = pneg %p72
      %p435 = pneg %p69
      %p436 = pneg %p93
      %p437 = pneg %p90
      %p438 = pneg %p114
      %p439 = pneg %p111
      %p440 = pneg %p135
      %p441 = pneg %p132
      %p442 = pneg %p156
      %p443 = pneg %p153
      %p444 = pneg %p177
      %p445 = pneg %p174
      %p446 = pneg %p198
      %p447 = pneg %p195
      %p448 = pneg %p219
      %p449 = pneg %p216
      %p450 = pneg %p240
      %p451 = pneg %p237
      %p452 = pneg %p261
      %p453 = pneg %p258
      %p454 = pneg %p282
      %p455 = pneg %p279
      %p456 = pneg %p303
      %p457 = pneg %p300
      %p458 = pneg %p324
      %p459 = pneg %p321
      %p460 = pneg %p350
      %p461 = pneg %p347
      %p462 = scmp.lt.s32.totalorder %s25, 5
      %s463 = scalar_select %p462, %s25, 5
      %s464 = scalar_lea.vmem %s14, %s463
      %p465 = scmp.lt.s32.totalorder %s25, 5
      %s466 = scalar_select %p465, %s25, 5
      %s467 = smul.addr %s466, 4
      %s468 = scalar_lea.vmem %s0, %s467
      %p469 = scmp.lt.s32.totalorder %s25, 5
      %s470 = scalar_select %p469, %s25, 5
      %s471 = scalar_lea.vmem %s1, %s470
      %p472 = scmp.lt.s32.totalorder %s25, 5
      %s473 = scalar_select %p472, %s25, 5
      %s474 = scalar_lea.vmem %s14, %s473
      %v476 = vld [vmem:[%s468] sm:$0xf]
      %v477 = vunpack.c.l.bf16 %v476
      %v478 = vld [vmem:[%s2] sm:$0xf]
      %v479 = vld [vmem:[%s2 + $0x4] sm:$0xf]
      %v480 = vld [vmem:[%s2 + $0x8] sm:$0xf]
      %v481 = vld [vmem:[%s2 + $0xc] sm:$0xf]
      %v482 = vld [vmem:[%s3] sm:$0x1]
      %v484 = vlaneseq
      %v485 = vshrl.u32 %v484, 7
      %v486 = vsub.s32 0, %v485
      %v487 = vrot.slane %v482, %v486
      %v493 = vunpack.c.l.b16 %v478
      %v494 = vunpack.c.l.b16 %v479
      %v495 = vunpack.c.l.b16 %v480
      %v496 = vunpack.c.l.b16 %v481
      %v497 = vpack.c.b16 %v494, %v493
      %v498 = vpack.c.b16 %v496, %v495
      %vm501 = vcmask 261120
      %v503 = vsel %vm501, %v476, 0
      %505 = vmatprep.subr.bf16.mxu0 0
      %506 = vmatpush1.bf16.msra.mxu0 0
      %507 = vmatprep.subr.bf16.mxu0 0
      %508 = vmatpush1.bf16.msra.mxu0 0
      %509 = vmatprep.subr.bf16.mxu0 0
      %510 = vmatpush1.bf16.msra.mxu0 0
      %511 = vmatprep.subr.bf16.mxu0 0
      %512 = vmatpush1.bf16.msra.mxu0 0
      %513 = vmatprep.subr.bf16.mxu0 0
      %514 = vmatpush1.bf16.msra.mxu0 0
      %515 = vmatprep.subr.bf16.mxu0 0
      %516 = vmatpush1.bf16.msra.mxu0 0
      %517 = vmatprep.subr.bf16.mxu0 0
      %518 = vmatpush1.bf16.msra.mxu0 %v498
      %519 = vmatprep.subr.bf16.mxu0 0
      %520 = vmatpush1.bf16.msra.mxu0 %v497
      %521 = vmatprep.subr.bf16.mxu0 0
      %522 = vmatpush2.bf16.msra.mxu0 0
      %523 = vmatprep.subr.bf16.mxu0 0
      %524 = vmatpush2.bf16.msra.mxu0 0
      %525 = vmatprep.subr.bf16.mxu0 0
      %526 = vmatpush2.bf16.msra.mxu0 0
      %527 = vmatprep.subr.bf16.mxu0 0
      %528 = vmatpush2.bf16.msra.mxu0 0
      %529 = vmatprep.subr.bf16.mxu0 0
      %530 = vmatpush2.bf16.msra.mxu0 0
      %531 = vmatprep.subr.bf16.mxu0 0
      %532 = vmatpush2.bf16.msra.mxu0 0
      %533 = vmatprep.subr.bf16.mxu0 0
      %534 = vmatpush2.bf16.msra.mxu0 0
      %535 = vmatprep.subr.bf16.mxu0 0
      %536 = vmatpush2.bf16.msra.mxu0 0
      %537 = vmatprep.mubr.bf16.mxu0 0
      %538 = vmatmul.mubr.bf16.gmra.mxu0 %v503
      %v539 = vpop.f32.mrf.mxu0
      %v540 = vadd.f32 %v487, %v539
      %v541 = vpop.f32.mrf.mxu0
      %v542 = vpop.f32.mrf.mxu0
      %v543 = vpop.f32.mrf.mxu0
      %544 = vdwg.mxu0
      %v545 = vld [vmem:[%s471] sm:$0x1]
      %v546 = vpack.c.bf16 %v540, %v540
      %v548 = vlaneseq
      %v549 = vshrl.u32 %v548, 7
      %v550 = vsub.s32 0, %v549
      %v551 = vrot.slane %v545, %v550
      %554 = vrot.lane.b32.xlu0 %v546, 96
      %v555 = vpop.permute.xlu0 %554
      %vm556 = vcmask 64512
      %v558 = vsel %vm556, %v546, 0
      %v561 = vsel %vm556, %v555, 0
      %563 = vmatprep.subr.bf16.mxu0 0
      %564 = vmatpush1.bf16.xpose.msra.mxu0 0
      %565 = vmatprep.subr.bf16.mxu0 0
      %566 = vmatpush1.bf16.xpose.msra.mxu0 0
      %567 = vmatprep.subr.bf16.mxu0 0
      %568 = vmatpush1.bf16.xpose.msra.mxu0 0
      %569 = vmatprep.subr.bf16.mxu0 0
      %570 = vmatpush1.bf16.xpose.msra.mxu0 0
      %571 = vmatprep.subr.bf16.mxu0 0
      %572 = vmatpush1.bf16.xpose.msra.mxu0 0
      %573 = vmatprep.subr.bf16.mxu0 0
      %574 = vmatpush1.bf16.xpose.msra.mxu0 0
      %575 = vmatprep.subr.bf16.mxu0 0
      %576 = vmatpush1.bf16.xpose.msra.mxu0 0
      %577 = vmatprep.subr.bf16.mxu0 0
      %578 = vmatpush1.bf16.xpose.msra.mxu0 %v561
      %579 = vmatprep.subr.bf16.mxu0 0
      %580 = vmatpush2.bf16.xpose.msra.mxu0 0
      %581 = vmatprep.subr.bf16.mxu0 0
      %582 = vmatpush2.bf16.xpose.msra.mxu0 0
      %583 = vmatprep.subr.bf16.mxu0 0
      %584 = vmatpush2.bf16.xpose.msra.mxu0 0
      %585 = vmatprep.subr.bf16.mxu0 0
      %586 = vmatpush2.bf16.xpose.msra.mxu0 0
      %587 = vmatprep.subr.bf16.mxu0 0
      %588 = vmatpush2.bf16.xpose.msra.mxu0 0
      %589 = vmatprep.subr.bf16.mxu0 0
      %590 = vmatpush2.bf16.xpose.msra.mxu0 0
      %591 = vmatprep.subr.bf16.mxu0 0
      %592 = vmatpush2.bf16.xpose.msra.mxu0 0
      %593 = vmatprep.subr.bf16.mxu0 0
      %594 = vmatpush2.bf16.xpose.msra.mxu0 0
      %595 = vmatprep.mubr.bf16.mxu0 0
      %596 = vmatmul.mubr.bf16.gmra.mxu0 %v558
      %v597 = vpop.f32.mrf.mxu0
      %v598 = vadd.f32 %v551, %v597
      %v599 = vpop.f32.mrf.mxu0
      %v600 = vpop.f32.mrf.mxu0
      %v601 = vpop.f32.mrf.mxu0
      %602 = vdwg.mxu0
      %v603 = vsel %vm556, %v598, -inf
      %604 = vmax.xlane.f32.xlu0 %v603
      %v605 = vpop.xlane.xlu0 %604
      %v606 = vsub.f32 %v598, %v605
      %v607 = vmul.f32 %v606, 1.442695
      %v608 = vpow.pop %v607
      %v609 = vsel %vm556, %v608, 0.0
      %610 = vadd.xlane.f32.xlu0 %v609
      %v611 = vpop.xlane.xlu0 %610
      %v612 = vpack.c.bf16 %v608, %v608
      %613 = vrot.lane.b32.xlu0 %v546, 64
      %v614 = vpop.permute.xlu0 %613
      %v616 = vsel %vm556, %v612, 0
      %vm618 = vcmask 1043456
      %v620 = vsel %vm618, %v614, 0
      %622 = vmatprep.subr.bf16.mxu0 0
      %623 = vmatpush1.bf16.msra.mxu0 0
      %624 = vmatprep.subr.bf16.mxu0 0
      %625 = vmatpush1.bf16.msra.mxu0 0
      %626 = vmatprep.subr.bf16.mxu0 0
      %627 = vmatpush1.bf16.msra.mxu0 0
      %628 = vmatprep.subr.bf16.mxu0 0
      %629 = vmatpush1.bf16.msra.mxu0 0
      %630 = vmatprep.subr.bf16.mxu0 0
      %631 = vmatpush1.bf16.msra.mxu0 0
      %632 = vmatprep.subr.bf16.mxu0 0
      %633 = vmatpush1.bf16.msra.mxu0 0
      %634 = vmatprep.subr.bf16.mxu0 0
      %635 = vmatpush1.bf16.msra.mxu0 0
      %636 = vmatprep.subr.bf16.mxu0 0
      %637 = vmatpush1.bf16.msra.mxu0 %v620
      %638 = vmatprep.subr.bf16.mxu0 0
      %639 = vmatpush2.bf16.msra.mxu0 0
      %640 = vmatprep.subr.bf16.mxu0 0
      %641 = vmatpush2.bf16.msra.mxu0 0
      %642 = vmatprep.subr.bf16.mxu0 0
      %643 = vmatpush2.bf16.msra.mxu0 0
      %644 = vmatprep.subr.bf16.mxu0 0
      %645 = vmatpush2.bf16.msra.mxu0 0
      %646 = vmatprep.subr.bf16.mxu0 0
      %647 = vmatpush2.bf16.msra.mxu0 0
      %648 = vmatprep.subr.bf16.mxu0 0
      %649 = vmatpush2.bf16.msra.mxu0 0
      %650 = vmatprep.subr.bf16.mxu0 0
      %651 = vmatpush2.bf16.msra.mxu0 0
      %652 = vmatprep.subr.bf16.mxu0 0
      %653 = vmatpush2.bf16.msra.mxu0 0
      %654 = vmatprep.mubr.bf16.mxu0 0
      %655 = vmatmul.mubr.bf16.gmra.mxu0 %v616
      %v656 = vpop.f32.mrf.mxu0
      %v657 = vadd.f32 0.0, %v656
      %v658 = vpop.f32.mrf.mxu0
      %v659 = vpop.f32.mrf.mxu0
      %v660 = vpop.f32.mrf.mxu0
      %661 = vdwg.mxu0
      %v662 = vrcp.pop %v611
      %v663 = vmul.f32 %v657, %v662
      %664 = vst.msk [vmem:[#allocation2] sm:$0xff] %vm556, %v663
      %665 = vrot.lane.b32.xlu0 %v546, 120
      %v666 = vpop.permute.xlu0 %665
      %667 = vrot.lane.b32.xlu0 %v546, 88
      %v668 = vpop.permute.xlu0 %667
      %v670 = vsel %vm556, %v666, 0
      %v673 = vsel %vm556, %v668, 0
      %675 = vmatprep.subr.bf16.mxu0 0
      %676 = vmatpush1.bf16.xpose.msra.mxu0 0
      %677 = vmatprep.subr.bf16.mxu0 0
      %678 = vmatpush1.bf16.xpose.msra.mxu0 0
      %679 = vmatprep.subr.bf16.mxu0 0
      %680 = vmatpush1.bf16.xpose.msra.mxu0 0
      %681 = vmatprep.subr.bf16.mxu0 0
      %682 = vmatpush1.bf16.xpose.msra.mxu0 0
      %683 = vmatprep.subr.bf16.mxu0 0
      %684 = vmatpush1.bf16.xpose.msra.mxu0 0
      %685 = vmatprep.subr.bf16.mxu0 0
      %686 = vmatpush1.bf16.xpose.msra.mxu0 0
      %687 = vmatprep.subr.bf16.mxu0 0
      %688 = vmatpush1.bf16.xpose.msra.mxu0 0
      %689 = vmatprep.subr.bf16.mxu0 0
      %690 = vmatpush1.bf16.xpose.msra.mxu0 %v673
      %691 = vmatprep.subr.bf16.mxu0 0
      %692 = vmatpush2.bf16.xpose.msra.mxu0 0
      %693 = vmatprep.subr.bf16.mxu0 0
      %694 = vmatpush2.bf16.xpose.msra.mxu0 0
      %695 = vmatprep.subr.bf16.mxu0 0
      %696 = vmatpush2.bf16.xpose.msra.mxu0 0
      %697 = vmatprep.subr.bf16.mxu0 0
      %698 = vmatpush2.bf16.xpose.msra.mxu0 0
      %699 = vmatprep.subr.bf16.mxu0 0
      %700 = vmatpush2.bf16.xpose.msra.mxu0 0
      %701 = vmatprep.subr.bf16.mxu0 0
      %702 = vmatpush2.bf16.xpose.msra.mxu0 0
      %703 = vmatprep.subr.bf16.mxu0 0
      %704 = vmatpush2.bf16.xpose.msra.mxu0 0
      %705 = vmatprep.subr.bf16.mxu0 0
      %706 = vmatpush2.bf16.xpose.msra.mxu0 0
      %707 = vmatprep.mubr.bf16.mxu0 0
      %708 = vmatmul.mubr.bf16.gmra.mxu0 %v670
      %v709 = vpop.f32.mrf.mxu0
      %v710 = vadd.f32 %v551, %v709
      %v711 = vpop.f32.mrf.mxu0
      %v712 = vpop.f32.mrf.mxu0
      %v713 = vpop.f32.mrf.mxu0
      %714 = vdwg.mxu0
      %v715 = vsel %vm556, %v710, -inf
      %716 = vmax.xlane.f32.xlu0 %v715
      %v717 = vpop.xlane.xlu0 %716
      %v718 = vsub.f32 %v710, %v717
      %v719 = vmul.f32 %v718, 1.442695
      %v720 = vpow.pop %v719
      %v721 = vsel %vm556, %v720, 0.0
      %722 = vadd.xlane.f32.xlu0 %v721
      %v723 = vpop.xlane.xlu0 %722
      %v724 = vpack.c.bf16 %v720, %v720
      %725 = vrot.lane.b32.xlu0 %v546, 56
      %v726 = vpop.permute.xlu0 %725
      %v728 = vsel %vm556, %v724, 0
      %v731 = vsel %vm618, %v726, 0
      %733 = vmatprep.subr.bf16.mxu0 0
      %734 = vmatpush1.bf16.msra.mxu0 0
      %735 = vmatprep.subr.bf16.mxu0 0
      %736 = vmatpush1.bf16.msra.mxu0 0
      %737 = vmatprep.subr.bf16.mxu0 0
      %738 = vmatpush1.bf16.msra.mxu0 0
      %739 = vmatprep.subr.bf16.mxu0 0
      %740 = vmatpush1.bf16.msra.mxu0 0
      %741 = vmatprep.subr.bf16.mxu0 0
      %742 = vmatpush1.bf16.msra.mxu0 0
      %743 = vmatprep.subr.bf16.mxu0 0
      %744 = vmatpush1.bf16.msra.mxu0 0
      %745 = vmatprep.subr.bf16.mxu0 0
      %746 = vmatpush1.bf16.msra.mxu0 0
      %747 = vmatprep.subr.bf16.mxu0 0
      %748 = vmatpush1.bf16.msra.mxu0 %v731
      %749 = vmatprep.subr.bf16.mxu0 0
      %750 = vmatpush2.bf16.msra.mxu0 0
      %751 = vmatprep.subr.bf16.mxu0 0
      %752 = vmatpush2.bf16.msra.mxu0 0
      %753 = vmatprep.subr.bf16.mxu0 0
      %754 = vmatpush2.bf16.msra.mxu0 0
      %755 = vmatprep.subr.bf16.mxu0 0
      %756 = vmatpush2.bf16.msra.mxu0 0
      %757 = vmatprep.subr.bf16.mxu0 0
      %758 = vmatpush2.bf16.msra.mxu0 0
      %759 = vmatprep.subr.bf16.mxu0 0
      %760 = vmatpush2.bf16.msra.mxu0 0
      %761 = vmatprep.subr.bf16.mxu0 0
      %762 = vmatpush2.bf16.msra.mxu0 0
      %763 = vmatprep.subr.bf16.mxu0 0
      %764 = vmatpush2.bf16.msra.mxu0 0
      %765 = vmatprep.mubr.bf16.mxu0 0
      %766 = vmatmul.mubr.bf16.gmra.mxu0 %v728
      %v767 = vpop.f32.mrf.mxu0
      %v768 = vadd.f32 0.0, %v767
      %v769 = vpop.f32.mrf.mxu0
      %v770 = vpop.f32.mrf.mxu0
      %v771 = vpop.f32.mrf.mxu0
      %772 = vdwg.mxu0
      %v773 = vrcp.pop %v723
      %v774 = vmul.f32 %v768, %v773
      %776 = vrot.lane.b32.xlu0 %v774, 8
      %v777 = vpop.permute.xlu0 %776
      %vm779 = vcmask 130112
      %780 = vst.msk [vmem:[#allocation2] sm:$0xff] %vm779, %v777
      %781 = vrot.lane.b32.xlu0 %v546, 112
      %v782 = vpop.permute.xlu0 %781
      %783 = vrot.lane.b32.xlu0 %v546, 80
      %v784 = vpop.permute.xlu0 %783
      %v786 = vsel %vm556, %v782, 0
      %v789 = vsel %vm556, %v784, 0
      %791 = vmatprep.subr.bf16.mxu0 0
      %792 = vmatpush1.bf16.xpose.msra.mxu0 0
      %793 = vmatprep.subr.bf16.mxu0 0
      %794 = vmatpush1.bf16.xpose.msra.mxu0 0
      %795 = vmatprep.subr.bf16.mxu0 0
      %796 = vmatpush1.bf16.xpose.msra.mxu0 0
      %797 = vmatprep.subr.bf16.mxu0 0
      %798 = vmatpush1.bf16.xpose.msra.mxu0 0
      %799 = vmatprep.subr.bf16.mxu0 0
      %800 = vmatpush1.bf16.xpose.msra.mxu0 0
      %801 = vmatprep.subr.bf16.mxu0 0
      %802 = vmatpush1.bf16.xpose.msra.mxu0 0
      %803 = vmatprep.subr.bf16.mxu0 0
      %804 = vmatpush1.bf16.xpose.msra.mxu0 0
      %805 = vmatprep.subr.bf16.mxu0 0
      %806 = vmatpush1.bf16.xpose.msra.mxu0 %v789
      %807 = vmatprep.subr.bf16.mxu0 0
      %808 = vmatpush2.bf16.xpose.msra.mxu0 0
      %809 = vmatprep.subr.bf16.mxu0 0
      %810 = vmatpush2.bf16.xpose.msra.mxu0 0
      %811 = vmatprep.subr.bf16.mxu0 0
      %812 = vmatpush2.bf16.xpose.msra.mxu0 0
      %813 = vmatprep.subr.bf16.mxu0 0
      %814 = vmatpush2.bf16.xpose.msra.mxu0 0
      %815 = vmatprep.subr.bf16.mxu0 0
      %816 = vmatpush2.bf16.xpose.msra.mxu0 0
      %817 = vmatprep.subr.bf16.mxu0 0
      %818 = vmatpush2.bf16.xpose.msra.mxu0 0
      %819 = vmatprep.subr.bf16.mxu0 0
      %820 = vmatpush2.bf16.xpose.msra.mxu0 0
      %821 = vmatprep.subr.bf16.mxu0 0
      %822 = vmatpush2.bf16.xpose.msra.mxu0 0
      %823 = vmatprep.mubr.bf16.mxu0 0
      %824 = vmatmul.mubr.bf16.gmra.mxu0 %v786
      %v825 = vpop.f32.mrf.mxu0
      %v826 = vadd.f32 %v551, %v825
      %v827 = vpop.f32.mrf.mxu0
      %v828 = vpop.f32.mrf.mxu0
      %v829 = vpop.f32.mrf.mxu0
      %830 = vdwg.mxu0
      %v831 = vsel %vm556, %v826, -inf
      %832 = vmax.xlane.f32.xlu0 %v831
      %v833 = vpop.xlane.xlu0 %832
      %v834 = vsub.f32 %v826, %v833
      %v835 = vmul.f32 %v834, 1.442695
      %v836 = vpow.pop %v835
      %v837 = vsel %vm556, %v836, 0.0
      %838 = vadd.xlane.f32.xlu0 %v837
      %v839 = vpop.xlane.xlu0 %838
      %v840 = vpack.c.bf16 %v836, %v836
      %841 = vrot.lane.b32.xlu0 %v546, 48
      %v842 = vpop.permute.xlu0 %841
      %v844 = vsel %vm556, %v840, 0
      %v847 = vsel %vm618, %v842, 0
      %849 = vmatprep.subr.bf16.mxu0 0
      %850 = vmatpush1.bf16.msra.mxu0 0
      %851 = vmatprep.subr.bf16.mxu0 0
      %852 = vmatpush1.bf16.msra.mxu0 0
      %853 = vmatprep.subr.bf16.mxu0 0
      %854 = vmatpush1.bf16.msra.mxu0 0
      %855 = vmatprep.subr.bf16.mxu0 0
      %856 = vmatpush1.bf16.msra.mxu0 0
      %857 = vmatprep.subr.bf16.mxu0 0
      %858 = vmatpush1.bf16.msra.mxu0 0
      %859 = vmatprep.subr.bf16.mxu0 0
      %860 = vmatpush1.bf16.msra.mxu0 0
      %861 = vmatprep.subr.bf16.mxu0 0
      %862 = vmatpush1.bf16.msra.mxu0 0
      %863 = vmatprep.subr.bf16.mxu0 0
      %864 = vmatpush1.bf16.msra.mxu0 %v847
      %865 = vmatprep.subr.bf16.mxu0 0
      %866 = vmatpush2.bf16.msra.mxu0 0
      %867 = vmatprep.subr.bf16.mxu0 0
      %868 = vmatpush2.bf16.msra.mxu0 0
      %869 = vmatprep.subr.bf16.mxu0 0
      %870 = vmatpush2.bf16.msra.mxu0 0
      %871 = vmatprep.subr.bf16.mxu0 0
      %872 = vmatpush2.bf16.msra.mxu0 0
      %873 = vmatprep.subr.bf16.mxu0 0
      %874 = vmatpush2.bf16.msra.mxu0 0
      %875 = vmatprep.subr.bf16.mxu0 0
      %876 = vmatpush2.bf16.msra.mxu0 0
      %877 = vmatprep.subr.bf16.mxu0 0
      %878 = vmatpush2.bf16.msra.mxu0 0
      %879 = vmatprep.subr.bf16.mxu0 0
      %880 = vmatpush2.bf16.msra.mxu0 0
      %881 = vmatprep.mubr.bf16.mxu0 0
      %882 = vmatmul.mubr.bf16.gmra.mxu0 %v844
      %v883 = vpop.f32.mrf.mxu0
      %v884 = vadd.f32 0.0, %v883
      %v885 = vpop.f32.mrf.mxu0
      %v886 = vpop.f32.mrf.mxu0
      %v887 = vpop.f32.mrf.mxu0
      %888 = vdwg.mxu0
      %v889 = vrcp.pop %v839
      %v890 = vmul.f32 %v884, %v889
      %892 = vrot.lane.b32.xlu0 %v890, 16
      %v893 = vpop.permute.xlu0 %892
      %vm895 = vcmask 195712
      %896 = vst.msk [vmem:[#allocation2] sm:$0xff] %vm895, %v893
      %897 = vrot.lane.b32.xlu0 %v546, 104
      %v898 = vpop.permute.xlu0 %897
      %899 = vrot.lane.b32.xlu0 %v546, 72
      %v900 = vpop.permute.xlu0 %899
      %v902 = vsel %vm556, %v898, 0
      %v905 = vsel %vm556, %v900, 0
      %907 = vmatprep.subr.bf16.mxu0 0
      %908 = vmatpush1.bf16.xpose.msra.mxu0 0
      %909 = vmatprep.subr.bf16.mxu0 0
      %910 = vmatpush1.bf16.xpose.msra.mxu0 0
      %911 = vmatprep.subr.bf16.mxu0 0
      %912 = vmatpush1.bf16.xpose.msra.mxu0 0
      %913 = vmatprep.subr.bf16.mxu0 0
      %914 = vmatpush1.bf16.xpose.msra.mxu0 0
      %915 = vmatprep.subr.bf16.mxu0 0
      %916 = vmatpush1.bf16.xpose.msra.mxu0 0
      %917 = vmatprep.subr.bf16.mxu0 0
      %918 = vmatpush1.bf16.xpose.msra.mxu0 0
      %919 = vmatprep.subr.bf16.mxu0 0
      %920 = vmatpush1.bf16.xpose.msra.mxu0 0
      %921 = vmatprep.subr.bf16.mxu0 0
      %922 = vmatpush1.bf16.xpose.msra.mxu0 %v905
      %923 = vmatprep.subr.bf16.mxu0 0
      %924 = vmatpush2.bf16.xpose.msra.mxu0 0
      %925 = vmatprep.subr.bf16.mxu0 0
      %926 = vmatpush2.bf16.xpose.msra.mxu0 0
      %927 = vmatprep.subr.bf16.mxu0 0
      %928 = vmatpush2.bf16.xpose.msra.mxu0 0
      %929 = vmatprep.subr.bf16.mxu0 0
      %930 = vmatpush2.bf16.xpose.msra.mxu0 0
      %931 = vmatprep.subr.bf16.mxu0 0
      %932 = vmatpush2.bf16.xpose.msra.mxu0 0
      %933 = vmatprep.subr.bf16.mxu0 0
      %934 = vmatpush2.bf16.xpose.msra.mxu0 0
      %935 = vmatprep.subr.bf16.mxu0 0
      %936 = vmatpush2.bf16.xpose.msra.mxu0 0
      %937 = vmatprep.subr.bf16.mxu0 0
      %938 = vmatpush2.bf16.xpose.msra.mxu0 0
      %939 = vmatprep.mubr.bf16.mxu0 0
      %940 = vmatmul.mubr.bf16.gmra.mxu0 %v902
      %v941 = vpop.f32.mrf.mxu0
      %v942 = vadd.f32 %v551, %v941
      %v943 = vpop.f32.mrf.mxu0
      %v944 = vpop.f32.mrf.mxu0
      %v945 = vpop.f32.mrf.mxu0
      %946 = vdwg.mxu0
      %v947 = vsel %vm556, %v942, -inf
      %948 = vmax.xlane.f32.xlu0 %v947
      %v949 = vpop.xlane.xlu0 %948
      %v950 = vsub.f32 %v942, %v949
      %v951 = vmul.f32 %v950, 1.442695
      %v952 = vpow.pop %v951
      %v953 = vsel %vm556, %v952, 0.0
      %954 = vadd.xlane.f32.xlu0 %v953
      %v955 = vpop.xlane.xlu0 %954
      %v956 = vpack.c.bf16 %v952, %v952
      %957 = vrot.lane.b32.xlu0 %v546, 40
      %v958 = vpop.permute.xlu0 %957
      %v960 = vsel %vm556, %v956, 0
      %v963 = vsel %vm618, %v958, 0
      %965 = vmatprep.subr.bf16.mxu0 0
      %966 = vmatpush1.bf16.msra.mxu0 0
      %967 = vmatprep.subr.bf16.mxu0 0
      %968 = vmatpush1.bf16.msra.mxu0 0
      %969 = vmatprep.subr.bf16.mxu0 0
      %970 = vmatpush1.bf16.msra.mxu0 0
      %971 = vmatprep.subr.bf16.mxu0 0
      %972 = vmatpush1.bf16.msra.mxu0 0
      %973 = vmatprep.subr.bf16.mxu0 0
      %974 = vmatpush1.bf16.msra.mxu0 0
      %975 = vmatprep.subr.bf16.mxu0 0
      %976 = vmatpush1.bf16.msra.mxu0 0
      %977 = vmatprep.subr.bf16.mxu0 0
      %978 = vmatpush1.bf16.msra.mxu0 0
      %979 = vmatprep.subr.bf16.mxu0 0
      %980 = vmatpush1.bf16.msra.mxu0 %v963
      %981 = vmatprep.subr.bf16.mxu0 0
      %982 = vmatpush2.bf16.msra.mxu0 0
      %983 = vmatprep.subr.bf16.mxu0 0
      %984 = vmatpush2.bf16.msra.mxu0 0
      %985 = vmatprep.subr.bf16.mxu0 0
      %986 = vmatpush2.bf16.msra.mxu0 0
      %987 = vmatprep.subr.bf16.mxu0 0
      %988 = vmatpush2.bf16.msra.mxu0 0
      %989 = vmatprep.subr.bf16.mxu0 0
      %990 = vmatpush2.bf16.msra.mxu0 0
      %991 = vmatprep.subr.bf16.mxu0 0
      %992 = vmatpush2.bf16.msra.mxu0 0
      %993 = vmatprep.subr.bf16.mxu0 0
      %994 = vmatpush2.bf16.msra.mxu0 0
      %995 = vmatprep.subr.bf16.mxu0 0
      %996 = vmatpush2.bf16.msra.mxu0 0
      %997 = vmatprep.mubr.bf16.mxu0 0
      %998 = vmatmul.mubr.bf16.gmra.mxu0 %v960
      %v999 = vpop.f32.mrf.mxu0
      %v1000 = vadd.f32 0.0, %v999
      %v1001 = vpop.f32.mrf.mxu0
      %v1002 = vpop.f32.mrf.mxu0
      %v1003 = vpop.f32.mrf.mxu0
      %1004 = vdwg.mxu0
      %v1005 = vrcp.pop %v955
      %v1006 = vmul.f32 %v1000, %v1005
      %1008 = vrot.lane.b32.xlu0 %v1006, 24
      %v1009 = vpop.permute.xlu0 %1008
      %vm1011 = vcmask 261312
      %1012 = vst.msk [vmem:[#allocation2] sm:$0xff] %vm1011, %v1009
      %v1013 = vld [vmem:[#allocation2] sm:$0xff]
      %v1014 = vpack.c.bf16 %v1013, %v1013
      %v1015 = vld [vmem:[%s4] sm:$0xf]
      %v1016 = vld [vmem:[%s4 + $0x4] sm:$0xf]
      %v1017 = vld [vmem:[%s4 + $0x8] sm:$0xf]
      %v1018 = vld [vmem:[%s4 + $0xc] sm:$0xf]
      %v1019 = vld [vmem:[%s5] sm:$0x1]
      %v1021 = vlaneseq
      %v1022 = vshrl.u32 %v1021, 7
      %v1023 = vsub.s32 0, %v1022
      %v1024 = vrot.slane %v1019, %v1023
      %v1030 = vunpack.c.l.b16 %v1015
      %v1031 = vunpack.c.l.b16 %v1016
      %v1032 = vunpack.c.l.b16 %v1017
      %v1033 = vunpack.c.l.b16 %v1018
      %v1034 = vpack.c.b16 %v1031, %v1030
      %v1035 = vpack.c.b16 %v1033, %v1032
      %v1039 = vsel %vm501, %v1014, 0
      %1041 = vmatprep.subr.bf16.mxu0 0
      %1042 = vmatpush1.bf16.msra.mxu0 0
      %1043 = vmatprep.subr.bf16.mxu0 0
      %1044 = vmatpush1.bf16.msra.mxu0 0
      %1045 = vmatprep.subr.bf16.mxu0 0
      %1046 = vmatpush1.bf16.msra.mxu0 0
      %1047 = vmatprep.subr.bf16.mxu0 0
      %1048 = vmatpush1.bf16.msra.mxu0 0
      %1049 = vmatprep.subr.bf16.mxu0 0
      %1050 = vmatpush1.bf16.msra.mxu0 0
      %1051 = vmatprep.subr.bf16.mxu0 0
      %1052 = vmatpush1.bf16.msra.mxu0 0
      %1053 = vmatprep.subr.bf16.mxu0 0
      %1054 = vmatpush1.bf16.msra.mxu0 %v1035
      %1055 = vmatprep.subr.bf16.mxu0 0
      %1056 = vmatpush1.bf16.msra.mxu0 %v1034
      %1057 = vmatprep.subr.bf16.mxu0 0
      %1058 = vmatpush2.bf16.msra.mxu0 0
      %1059 = vmatprep.subr.bf16.mxu0 0
      %1060 = vmatpush2.bf16.msra.mxu0 0
      %1061 = vmatprep.subr.bf16.mxu0 0
      %1062 = vmatpush2.bf16.msra.mxu0 0
      %1063 = vmatprep.subr.bf16.mxu0 0
      %1064 = vmatpush2.bf16.msra.mxu0 0
      %1065 = vmatprep.subr.bf16.mxu0 0
      %1066 = vmatpush2.bf16.msra.mxu0 0
      %1067 = vmatprep.subr.bf16.mxu0 0
      %1068 = vmatpush2.bf16.msra.mxu0 0
      %1069 = vmatprep.subr.bf16.mxu0 0
      %1070 = vmatpush2.bf16.msra.mxu0 0
      %1071 = vmatprep.subr.bf16.mxu0 0
      %1072 = vmatpush2.bf16.msra.mxu0 0
      %1073 = vmatprep.mubr.bf16.mxu0 0
      %1074 = vmatmul.mubr.bf16.gmra.mxu0 %v1039
      %v1075 = vpop.f32.mrf.mxu0
      %v1076 = vadd.f32 %v1024, %v1075
      %v1077 = vpop.f32.mrf.mxu0
      %v1078 = vpop.f32.mrf.mxu0
      %v1079 = vpop.f32.mrf.mxu0
      %1080 = vdwg.mxu0
      %v1081 = vadd.f32 %v477, %v1076
      %v1082 = vld [vmem:[%s6] sm:$0x1]
      %v1083 = vld [vmem:[%s7] sm:$0x1]
      %v1084 = vsel %vm501, %v1081, 0.0
      %1085 = vadd.xlane.f32.xlu0 %v1084
      %v1086 = vpop.xlane.xlu0 %1085
      %v1087 = vrcp.pop 32.0
      %v1088 = vmul.f32 %v1086, %v1087
      %v1089 = vsub.f32 %v1081, %v1088
      %v1090 = vmul.f32 %v1089, %v1089
      %v1091 = vsel %vm501, %v1090, 0.0
      %1092 = vadd.xlane.f32.xlu0 %v1091
      %v1093 = vpop.xlane.xlu0 %1092
      %v1094 = vmul.f32 %v1093, %v1087
      %v1095 = vadd.f32 %v1094, 1e-12
      %v1096 = vrsqrt.pop %v1095
      %v1097 = vmul.f32 %v1089, %v1096
      %v1099 = vlaneseq
      %v1100 = vshrl.u32 %v1099, 7
      %v1101 = vsub.s32 0, %v1100
      %v1102 = vrot.slane %v1082, %v1101
      %v1104 = vmul.f32 %v1097, %v1102
      %v1106 = vlaneseq
      %v1107 = vshrl.u32 %v1106, 7
      %v1108 = vsub.s32 0, %v1107
      %v1109 = vrot.slane %v1083, %v1108
      %v1111 = vadd.f32 %v1104, %v1109
      %v1112 = vpack.c.bf16 %v1111, %v1111
      %v1113 = vld [vmem:[%s8] sm:$0xf]
      %v1114 = vld [vmem:[%s8 + $0x4] sm:$0xf]
      %v1115 = vld [vmem:[%s8 + $0x8] sm:$0xf]
      %v1116 = vld [vmem:[%s8 + $0xc] sm:$0xf]
      %v1117 = vld [vmem:[%s9] sm:$0x1]
      %v1119 = vlaneseq
      %v1120 = vshrl.u32 %v1119, 7
      %v1121 = vsub.s32 0, %v1120
      %v1122 = vrot.slane %v1117, %v1121
      %v1128 = vunpack.c.l.b16 %v1113
      %v1129 = vunpack.c.l.b16 %v1114
      %v1130 = vunpack.c.l.b16 %v1115
      %v1131 = vunpack.c.l.b16 %v1116
      %v1132 = vpack.c.b16 %v1129, %v1128
      %v1133 = vpack.c.b16 %v1131, %v1130
      %v1137 = vsel %vm501, %v1112, 0
      %1139 = vmatprep.subr.bf16.mxu0 0
      %1140 = vmatpush1.bf16.msra.mxu0 0
      %1141 = vmatprep.subr.bf16.mxu0 0
      %1142 = vmatpush1.bf16.msra.mxu0 0
      %1143 = vmatprep.subr.bf16.mxu0 0
      %1144 = vmatpush1.bf16.msra.mxu0 0
      %1145 = vmatprep.subr.bf16.mxu0 0
      %1146 = vmatpush1.bf16.msra.mxu0 0
      %1147 = vmatprep.subr.bf16.mxu0 0
      %1148 = vmatpush1.bf16.msra.mxu0 0
      %1149 = vmatprep.subr.bf16.mxu0 0
      %1150 = vmatpush1.bf16.msra.mxu0 0
      %1151 = vmatprep.subr.bf16.mxu0 0
      %1152 = vmatpush1.bf16.msra.mxu0 %v1133
      %1153 = vmatprep.subr.bf16.mxu0 0
      %1154 = vmatpush1.bf16.msra.mxu0 %v1132
      %1155 = vmatprep.subr.bf16.mxu0 0
      %1156 = vmatpush2.bf16.msra.mxu0 0
      %1157 = vmatprep.subr.bf16.mxu0 0
      %1158 = vmatpush2.bf16.msra.mxu0 0
      %1159 = vmatprep.subr.bf16.mxu0 0
      %1160 = vmatpush2.bf16.msra.mxu0 0
      %1161 = vmatprep.subr.bf16.mxu0 0
      %1162 = vmatpush2.bf16.msra.mxu0 0
      %1163 = vmatprep.subr.bf16.mxu0 0
      %1164 = vmatpush2.bf16.msra.mxu0 0
      %1165 = vmatprep.subr.bf16.mxu0 0
      %1166 = vmatpush2.bf16.msra.mxu0 0
      %1167 = vmatprep.subr.bf16.mxu0 0
      %1168 = vmatpush2.bf16.msra.mxu0 0
      %1169 = vmatprep.subr.bf16.mxu0 0
      %1170 = vmatpush2.bf16.msra.mxu0 0
      %1171 = vmatprep.mubr.bf16.mxu0 0
      %1172 = vmatmul.mubr.bf16.gmra.mxu0 %v1137
      %v1173 = vpop.f32.mrf.mxu0
      %v1174 = vadd.f32 %v1122, %v1173
      %v1175 = vpop.f32.mrf.mxu0
      %v1176 = vpop.f32.mrf.mxu0
      %v1177 = vpop.f32.mrf.mxu0
      %1178 = vdwg.mxu0
      %v1179 = vmul.f32 %v1174, %v1174
      %v1180 = vmul.f32 %v1174, %v1179
      %v1181 = vmul.f32 %v1180, 0.044715
      %v1182 = vadd.f32 %v1174, %v1181
      %v1183 = vmul.f32 %v1182, 0.7978846
      %v1184 = vtanh.pop %v1183
      %v1185 = vadd.f32 %v1184, 1.0
      %v1186 = vmul.f32 %v1185, 0.5
      %v1187 = vmul.f32 %v1174, %v1186
      %v1188 = vpack.c.bf16 %v1187, %v1187
      %v1189 = vld [vmem:[%s10] sm:$0xf]
      %v1190 = vld [vmem:[%s10 + $0x4] sm:$0xf]
      %v1191 = vld [vmem:[%s10 + $0x8] sm:$0xf]
      %v1192 = vld [vmem:[%s10 + $0xc] sm:$0xf]
      %v1193 = vld [vmem:[%s10 + $0x10] sm:$0xf]
      %v1194 = vld [vmem:[%s10 + $0x14] sm:$0xf]
      %v1195 = vld [vmem:[%s10 + $0x18] sm:$0xf]
      %v1196 = vld [vmem:[%s10 + $0x1c] sm:$0xf]
      %v1197 = vld [vmem:[%s11] sm:$0x1]
      %v1199 = vlaneseq
      %v1200 = vshrl.u32 %v1199, 7
      %v1201 = vsub.s32 0, %v1200
      %v1202 = vrot.slane %v1197, %v1201
      %v1212 = vunpack.c.l.b16 %v1189
      %v1213 = vunpack.c.l.b16 %v1190
      %v1214 = vunpack.c.l.b16 %v1191
      %v1215 = vunpack.c.l.b16 %v1192
      %v1216 = vunpack.c.l.b16 %v1193
      %v1217 = vunpack.c.l.b16 %v1194
      %v1218 = vunpack.c.l.b16 %v1195
      %v1219 = vunpack.c.l.b16 %v1196
      %v1220 = vpack.c.b16 %v1213, %v1212
      %v1221 = vpack.c.b16 %v1215, %v1214
      %v1222 = vpack.c.b16 %v1217, %v1216
      %v1223 = vpack.c.b16 %v1219, %v1218
      %vm1228 = vcmask 523264
      %v1230 = vsel %vm1228, %v1188, 0
      %1232 = vmatprep.subr.bf16.mxu0 0
      %1233 = vmatpush1.bf16.msra.mxu0 0
      %1234 = vmatprep.subr.bf16.mxu0 0
      %1235 = vmatpush1.bf16.msra.mxu0 0
      %1236 = vmatprep.subr.bf16.mxu0 0
      %1237 = vmatpush1.bf16.msra.mxu0 0
      %1238 = vmatprep.subr.bf16.mxu0 0
      %1239 = vmatpush1.bf16.msra.mxu0 0
      %1240 = vmatprep.subr.bf16.mxu0 0
      %1241 = vmatpush1.bf16.msra.mxu0 %v1223
      %1242 = vmatprep.subr.bf16.mxu0 0
      %1243 = vmatpush1.bf16.msra.mxu0 %v1222
      %1244 = vmatprep.subr.bf16.mxu0 0
      %1245 = vmatpush1.bf16.msra.mxu0 %v1221
      %1246 = vmatprep.subr.bf16.mxu0 0
      %1247 = vmatpush1.bf16.msra.mxu0 %v1220
      %1248 = vmatprep.subr.bf16.mxu0 0
      %1249 = vmatpush2.bf16.msra.mxu0 0
      %1250 = vmatprep.subr.bf16.mxu0 0
      %1251 = vmatpush2.bf16.msra.mxu0 0
      %1252 = vmatprep.subr.bf16.mxu0 0
      %1253 = vmatpush2.bf16.msra.mxu0 0
      %1254 = vmatprep.subr.bf16.mxu0 0
      %1255 = vmatpush2.bf16.msra.mxu0 0
      %1256 = vmatprep.subr.bf16.mxu0 0
      %1257 = vmatpush2.bf16.msra.mxu0 0
      %1258 = vmatprep.subr.bf16.mxu0 0
      %1259 = vmatpush2.bf16.msra.mxu0 0
      %1260 = vmatprep.subr.bf16.mxu0 0
      %1261 = vmatpush2.bf16.msra.mxu0 0
      %1262 = vmatprep.subr.bf16.mxu0 0
      %1263 = vmatpush2.bf16.msra.mxu0 0
      %1264 = vmatprep.mubr.bf16.mxu0 0
      %1265 = vmatmul.mubr.bf16.gmra.mxu0 %v1230
      %v1266 = vpop.f32.mrf.mxu0
      %v1267 = vadd.f32 %v1202, %v1266
      %v1268 = vpop.f32.mrf.mxu0
      %v1269 = vpop.f32.mrf.mxu0
      %v1270 = vpop.f32.mrf.mxu0
      %1271 = vdwg.mxu0
      %v1272 = vadd.f32 %v1111, %v1267
      %v1273 = vld [vmem:[%s12] sm:$0x1]
      %v1274 = vld [vmem:[%s13] sm:$0x1]
      %v1275 = vsel %vm501, %v1272, 0.0
      %1276 = vadd.xlane.f32.xlu0 %v1275
      %v1277 = vpop.xlane.xlu0 %1276
      %v1278 = vmul.f32 %v1277, %v1087
      %v1279 = vsub.f32 %v1272, %v1278
      %v1280 = vmul.f32 %v1279, %v1279
      %v1281 = vsel %vm501, %v1280, 0.0
      %1282 = vadd.xlane.f32.xlu0 %v1281
      %v1283 = vpop.xlane.xlu0 %1282
      %v1284 = vmul.f32 %v1283, %v1087
      %v1285 = vadd.f32 %v1284, 1e-12
      %v1286 = vrsqrt.pop %v1285
      %v1287 = vmul.f32 %v1279, %v1286
      %v1289 = vlaneseq
      %v1290 = vshrl.u32 %v1289, 7
      %v1291 = vsub.s32 0, %v1290
      %v1292 = vrot.slane %v1273, %v1291
      %v1294 = vmul.f32 %v1287, %v1292
      %v1296 = vlaneseq
      %v1297 = vshrl.u32 %v1296, 7
      %v1298 = vsub.s32 0, %v1297
      %v1299 = vrot.slane %v1274, %v1298
      %v1301 = vadd.f32 %v1294, %v1299
      %v1302 = vsel %vm501, %v1301, 0.0
      %v1303 = vrot.slane %v1302, 4
      %v1304 = vadd.f32 %v1302, %v1303
      %v1305 = vrot.slane %v1304, 2
      %v1306 = vadd.f32 %v1304, %v1305
      %v1307 = vrot.slane %v1306, 1
      %v1308 = vadd.f32 %v1306, %v1307
      %v1309 = vrcp.pop 8.0
      %v1310 = vmul.f32 %v1308, %v1309
      %vm1311 = vcmask 253952
      %1312 = vst.msk [vmem:[%s474] sm:$0x1] %vm1311, %v1310
      %p1313 = scmp.lt.s32.totalorder %s25, 5
      %s1314 = scalar_select %p1313, %s25, 5
      %s1315 = scalar_lea.vmem %s14, %s1314
      // Predicated region
      $region77: #{simplified_html_forward.6} parent=75 // pred_check
        %p1316 = pneg %p347
      $region78: #{simplified_html_forward.6} parent=75 // pred_check_branch
        %1318 = sbr.rel (%p1316) target = $region80
      $region79: #{simplified_html_forward.6} parent=75 // pred_region
        _
      $region80: #{simplified_html_forward.6} parent=75 // pred_fallthru
        _
    $region76: #{simplified_html_forward.6} parent=5 // pred_fallthru
      _
    %p1319 = scmp.le.s32.totalorder 2, %s20
    // Predicated region
    $region81: #{simplified_html_forward.6} parent=5 // pred_check
      %p1320 = pneg %p1319
    $region82: #{simplified_html_forward.6} parent=5 // pred_check_branch
      %1322 = sbr.rel (%p1320) target = $region84
    $region83: #{simplified_html_forward.6} parent=5 // pred_region
      %s1323 = ssub.s32 %s20, 2
      // Predicated region
      $region85: #{simplified_html_forward.6} parent=83 // pred_check
        %p1324 = pneg %p353
      $region86: #{simplified_html_forward.6} parent=83 // pred_check_branch
        %1326 = sbr.rel (%p1324) target = $region88
      $region87: #{simplified_html_forward.6} parent=83 // pred_region
        %p1327 = scmp.lt.s32.totalorder %s26, 5
        %s1328 = scalar_select %p1327, %s26, 5
        %s1329 = scalar_lea.vmem %s14, %s1328
      $region88: #{simplified_html_forward.6} parent=83 // pred_fallthru
        _
    $region84: #{simplified_html_forward.6} parent=5 // pred_fallthru
      _
  $region6: #{simplified_html_forward.6} parent=0 // loop_footer
    %s24 = sadd.s32 1, %s20
  $region7: #{simplified_html_forward.6} parent=0 // loop_footer_branch
    %19 = sbr.rel target = $region3
  $region8: #{simplified_html_forward.6} parent=0 // loop_exit
    _

// kernel: simplified_html_forward.7
$region0: #{simplified_html_forward.7}
  #allocation0 [shape = 'u32[]', space=smem, size = 0x4, offset = 0x4, fixed_abs, tag = 'smem constant byte address 0x4 - core index']
  #allocation1 [shape = 'u32[144,128]{1,0:T(1,128)}', space=vmem, size = 0x12000, scoped, tag = 'internal scratch']
  #allocation2 [shape = 'f32[1,1]{1,0:T(1,128)S(1)}', space=vmem, size = 0x200, scoped, tag = 'scoped memory for simplified_html_forward.7']
  %s0 = inlined_call_operand.vmem [shape: f32[2,3,32], index: 0, kind: input, shape index: {}]
  %s1 = inlined_call_operand.vmem [shape: f32[32,1], index: 1, kind: input, shape index: {}]
  %s2 = inlined_call_operand.<no memory space> [shape: f32[1,1], index: 2, kind: input, shape index: {}]
  %s3 = inlined_call_operand.vmem [shape: f32[2,1], index: 3, kind: output, shape index: {}]
  %s4 = sld [smem:[#allocation0]]
  $region22: #{simplified_html_forward.7} parent=0
    _
  %s6 = ssub.s32 1, %s4
  %s7 = scalar_select 0, %s6, %s4
  %v8 = vstv %s2
  %9 = vst [vmem:[#allocation2] sm:$0x1] %v8
  // Predicated region
  $region2: #{simplified_html_forward.7} parent=0 // pred_check
    _
  $region3: #{simplified_html_forward.7} parent=0 // pred_check_branch
    %11 = sbr.rel (0) target = $region5
  $region4: #{simplified_html_forward.7} parent=0 // pred_region
    _
  $region5: #{simplified_html_forward.7} parent=0 // pred_fallthru
    _
  // Predicated region
  $region6: #{simplified_html_forward.7} parent=0 // pred_check
    _
  $region7: #{simplified_html_forward.7} parent=0 // pred_check_branch
    %13 = sbr.rel (0) target = $region9
  $region8: #{simplified_html_forward.7} parent=0 // pred_region
    _
  $region9: #{simplified_html_forward.7} parent=0 // pred_fallthru
    _
  // Predicated region
  $region10: #{simplified_html_forward.7} parent=0 // pred_check
    _
  $region11: #{simplified_html_forward.7} parent=0 // pred_check_branch
    %15 = sbr.rel (0) target = $region13
  $region12: #{simplified_html_forward.7} parent=0 // pred_region
    _
  $region13: #{simplified_html_forward.7} parent=0 // pred_fallthru
    _
  %v16 = vld [vmem:[%s0] sm:$0x7]
  %v17 = vld [vmem:[%s0 + $0x4] sm:$0x7]
  %vm18 = vcmask 256000
  %v19 = vsel %vm18, %v16, 0.0
  %v20 = vrot.slane %v19, 4
  %v21 = vadd.f32 %v19, %v20
  %v22 = vrot.slane %v21, 2
  %v23 = vadd.f32 %v21, %v22
  %v24 = vrot.slane %v23, 1
  %v25 = vadd.f32 %v23, %v24
  %v26 = vsel %vm18, %v17, 0.0
  %v27 = vrot.slane %v26, 4
  %v28 = vadd.f32 %v26, %v27
  %v29 = vrot.slane %v28, 2
  %v30 = vadd.f32 %v28, %v29
  %v31 = vrot.slane %v30, 1
  %v32 = vadd.f32 %v30, %v31
  %v33 = vrcp.pop 3.0
  %v34 = vmul.f32 %v25, %v33
  %v35 = vmul.f32 %v32, %v33
  %v36 = vld [vmem:[%s1] sm:$0xff]
  %v37 = vld [vmem:[%s1 + $0x8] sm:$0xff]
  %v38 = vld [vmem:[%s1 + $0x10] sm:$0xff]
  %v39 = vld [vmem:[%s1 + $0x18] sm:$0xff]
  %v40 = vld [vmem:[#allocation2] sm:$0x1]
  %v42 = vlaneseq
  %v43 = vshrl.u32 %v42, 7
  %v44 = vsub.s32 0, %v43
  %v45 = vrot.slane %v40, %v44
  %vm49 = vcmask 1041409
  %v50 = vsel %vm49, %v35, %v34
  %vm51 = vcmask 261120
  %v52 = vsel %vm51, %v50, 0
  %54 = vmatprep.subr.mxu0 0.0
  %55 = vmatpush1.msra.mxu0 0.0
  %56 = vmatprep.subr.mxu0 0.0
  %57 = vmatpush1.msra.mxu0 0.0
  %58 = vmatprep.subr.mxu0 0.0
  %59 = vmatpush1.msra.mxu0 0.0
  %60 = vmatprep.subr.mxu0 0.0
  %61 = vmatpush1.msra.mxu0 0.0
  %62 = vmatprep.subr.mxu0 0.0
  %63 = vmatpush1.msra.mxu0 0.0
  %64 = vmatprep.subr.mxu0 0.0
  %65 = vmatpush1.msra.mxu0 0.0
  %66 = vmatprep.subr.mxu0 0.0
  %67 = vmatpush1.msra.mxu0 0.0
  %68 = vmatprep.subr.mxu0 0.0
  %69 = vmatpush1.msra.mxu0 0.0
  %70 = vmatprep.subr.mxu0 0.0
  %71 = vmatpush1.msra.mxu0 0.0
  %72 = vmatprep.subr.mxu0 0.0
  %73 = vmatpush1.msra.mxu0 0.0
  %74 = vmatprep.subr.mxu0 0.0
  %75 = vmatpush1.msra.mxu0 0.0
  %76 = vmatprep.subr.mxu0 0.0
  %77 = vmatpush1.msra.mxu0 0.0
  %78 = vmatprep.subr.mxu0 0.0
  %79 = vmatpush1.msra.mxu0 %v39
  %80 = vmatprep.subr.mxu0 0.0
  %81 = vmatpush1.msra.mxu0 %v38
  %82 = vmatprep.subr.mxu0 0.0
  %83 = vmatpush1.msra.mxu0 %v37
  %84 = vmatprep.subr.mxu0 0.0
  %85 = vmatpush1.msra.mxu0 %v36
  %86 = vmatprep.subr.mxu0 0.0
  %87 = vmatpush2.msra.mxu0 0.0
  %88 = vmatprep.subr.mxu0 0.0
  %89 = vmatpush2.msra.mxu0 0.0
  %90 = vmatprep.subr.mxu0 0.0
  %91 = vmatpush2.msra.mxu0 0.0
  %92 = vmatprep.subr.mxu0 0.0
  %93 = vmatpush2.msra.mxu0 0.0
  %94 = vmatprep.subr.mxu0 0.0
  %95 = vmatpush2.msra.mxu0 0.0
  %96 = vmatprep.subr.mxu0 0.0
  %97 = vmatpush2.msra.mxu0 0.0
  %98 = vmatprep.subr.mxu0 0.0
  %99 = vmatpush2.msra.mxu0 0.0
  %100 = vmatprep.subr.mxu0 0.0
  %101 = vmatpush2.msra.mxu0 0.0
  %102 = vmatprep.subr.mxu0 0.0
  %103 = vmatpush2.msra.mxu0 0.0
  %104 = vmatprep.subr.mxu0 0.0
  %105 = vmatpush2.msra.mxu0 0.0
  %106 = vmatprep.subr.mxu0 0.0
  %107 = vmatpush2.msra.mxu0 0.0
  %108 = vmatprep.subr.mxu0 0.0
  %109 = vmatpush2.msra.mxu0 0.0
  %110 = vmatprep.subr.mxu0 0.0
  %111 = vmatpush2.msra.mxu0 0.0
  %112 = vmatprep.subr.mxu0 0.0
  %113 = vmatpush2.msra.mxu0 0.0
  %114 = vmatprep.subr.mxu0 0.0
  %115 = vmatpush2.msra.mxu0 0.0
  %116 = vmatprep.subr.mxu0 0.0
  %117 = vmatpush2.msra.mxu0 0.0
  %118 = vmatprep.mubr.f32.mxu0 0.0
  %119 = vmatmul.mubr.f32.gmra.mxu0 %v52
  %v120 = vpop.f32.mrf.mxu0
  %v121 = vadd.f32 %v45, %v120
  %v122 = vpop.f32.mrf.mxu0
  %123 = vdwg.mxu0
  %v124 = vxor.u32 %v121, 2147483648
  %v125 = vmul.f32 %v124, 1.442695
  %v126 = vpow.pop %v125
  %v127 = vadd.f32 %v126, 1.0
  %v128 = vrcp.pop %v127
  %v129 = vmul.f32 1.0, %v128
  %vm130 = vcmask 1024
  %131 = vst.msk [vmem:[%s3] sm:$0x3] %vm130, %v129
  // Predicated region
  $region14: #{simplified_html_forward.7} parent=0 // pred_check
    _
  $region15: #{simplified_html_forward.7} parent=0 // pred_check_branch
    %133 = sbr.rel (0) target = $region17
  $region16: #{simplified_html_forward.7} parent=0 // pred_region
    _
  $region17: #{simplified_html_forward.7} parent=0 // pred_fallthru
    _
  // Predicated region
  $region18: #{simplified_html_forward.7} parent=0 // pred_check
    _
  $region19: #{simplified_html_forward.7} parent=0 // pred_check_branch
    %135 = sbr.rel (0) target = $region21
  $region20: #{simplified_html_forward.7} parent=0 // pred_region
    _
  $region21: #{simplified_html_forward.7} parent=0 // pred_fallthru
    _

</llo_original>
